<compile_context>
chip_gen: v7x
topology: tpu7x:2x2x1
jax: 0.10.0
libtpu: 0.0.40
codegen_flags: <defaults>
</compile_context>

<pallas_src>
import math

import jax
import jax.numpy as jnp
from jax import lax
from jax.experimental import pallas as pl
from jax.experimental.pallas import tpu as pltpu

D_MODEL = 32
N_HEADS = 4
D_K = D_MODEL // N_HEADS
D_FF = 64
N_LAYERS = 2
EPS = 1e-6
_ATT_SCALE = 1.0 / math.sqrt(D_K)
_SLAB_LANES = 128          # lane-dense packed weight slab width


# --------------------- packed-weight slab layout (static) --------------------

def _round8(n):
    return ((n + 7) // 8) * 8


def _build_layout():
    """Static (row_offset, nrows, ncols) per tensor inside the packed slab.

    Row offsets are 8-aligned (sublane tile boundary) so the in-kernel static
    slices never straddle a sublane tile at an odd offset.
    """
    layout = {}
    row = 0

    def add(name, nrows, ncols):
        nonlocal row
        layout[name] = (row, nrows, ncols)
        row += _round8(nrows)

    for l in range(N_LAYERS):
        add(f"sa_wqkv{l}", D_MODEL, 3 * D_MODEL)
        add(f"sa_bqkv{l}", 1, 3 * D_MODEL)
        add(f"sa_wo{l}", D_MODEL, D_MODEL)
        add(f"sa_bo{l}", 1, D_MODEL)
        add(f"ca_wqkv{l}", D_MODEL, 3 * D_MODEL)
        add(f"ca_bqkv{l}", 1, 3 * D_MODEL)
        add(f"ca_wo{l}", D_MODEL, D_MODEL)
        add(f"ca_bo{l}", 1, D_MODEL)
        add(f"ff_w1{l}", D_MODEL, D_FF)
        add(f"ff_b1{l}", 1, D_FF)
        add(f"ff_w2{l}", D_FF, D_MODEL)
        add(f"ff_b2{l}", 1, D_MODEL)
        add(f"ln_a{l}", 3, D_MODEL)
        add(f"ln_b{l}", 3, D_MODEL)
    add("norm_a", 1, D_MODEL)
    add("norm_b", 1, D_MODEL)
    return layout, row


_LAYOUT, _SLAB_ROWS = _build_layout()


def pack_weights(params):
    """Pack all decoder parameters into one (rows, 128) f32 slab.

    The attention score scale 1/sqrt(d_k) is folded into the Q columns of the
    fused QKV weights/biases here (host side), so the kernel never multiplies
    the score matrices by the scale.
    """
    slab = jnp.zeros((_SLAB_ROWS, _SLAB_LANES), jnp.float32)

    def put(s, name, value):
        r0, nr, nc = _LAYOUT[name]
        assert value.shape == (nr, nc), (name, value.shape, (nr, nc))
        return s.at[r0:r0 + nr, 0:nc].set(value.astype(jnp.float32))

    qkv_scale = jnp.concatenate([
        jnp.full((D_MODEL,), _ATT_SCALE, jnp.float32),
        jnp.ones((2 * D_MODEL,), jnp.float32)])

    for l in range(N_LAYERS):
        slab = put(slab, f"sa_wqkv{l}", params["sa_wqkv"][l] * qkv_scale)
        slab = put(slab, f"sa_bqkv{l}", params["sa_bqkv"][l] * qkv_scale)
        slab = put(slab, f"sa_wo{l}", params["sa_wo"][l])
        slab = put(slab, f"sa_bo{l}", params["sa_bo"][l])
        slab = put(slab, f"ca_wqkv{l}", params["ca_wqkv"][l] * qkv_scale)
        slab = put(slab, f"ca_bqkv{l}", params["ca_bqkv"][l] * qkv_scale)
        slab = put(slab, f"ca_wo{l}", params["ca_wo"][l])
        slab = put(slab, f"ca_bo{l}", params["ca_bo"][l])
        slab = put(slab, f"ff_w1{l}", params["ff_w1"][l])
        slab = put(slab, f"ff_b1{l}", params["ff_b1"][l])
        slab = put(slab, f"ff_w2{l}", params["ff_w2"][l])
        slab = put(slab, f"ff_b2{l}", params["ff_b2"][l])
        slab = put(slab, f"ln_a{l}", params["ln_a"][l])
        slab = put(slab, f"ln_b{l}", params["ln_b"][l])
    slab = put(slab, "norm_a", params["norm_a"])
    slab = put(slab, "norm_b", params["norm_b"])
    return slab


# ------------------------- in-kernel building blocks -------------------------

def _recip(x):
    # EUP approximate reciprocal (otherwise-idle slot) + one Newton-Raphson
    # refinement on the VPU -> ~full f32 precision at ~zero extra cost.
    r = pl.reciprocal(x, approx=True)
    return r * (2.0 - x * r)


def _layer_norm(x, a, b):
    # torch.Tensor.std is *unbiased* (divides by N-1); eps is added to std.
    mean = jnp.mean(x, axis=-1, keepdims=True)
    xc = x - mean
    var = jnp.sum(xc * xc, axis=-1, keepdims=True) * (1.0 / (D_MODEL - 1))
    std = jnp.sqrt(var)
    return a * xc * _recip(std + EPS) + b


def _mha(q, k, v, add_masks, wo, bo, B, Tq, Tk):
    """Multi-head attention on VMEM-resident, batch-folded values.

    q: (B*Tq, D) already pre-scaled by 1/sqrt(d_k) (folded into Wq on host),
    k, v: (B*Tk, D), add_masks: list of B additive (Tq, Tk) masks (-1e9).
    wo: (D, D), bo: (1, D).  All ops are 2-D; no explicit transposes — the
    score matmul contracts the last dims of Q and K via dot_general.
    """
    ctx_rows = []
    for b in range(B):                    # B is tiny & static -> unrolled
        qb = q[b * Tq:(b + 1) * Tq, :]
        kb = k[b * Tk:(b + 1) * Tk, :]
        vb = v[b * Tk:(b + 1) * Tk, :]
        heads = []
        for h in range(N_HEADS):          # static unroll
            sl = slice(h * D_K, (h + 1) * D_K)
            s = lax.dot_general(qb[:, sl], kb[:, sl],
                                (((1,), (1,)), ((), ())),
                                preferred_element_type=jnp.float32)  # (Tq,Tk)
            s = s + add_masks[b]
            m = jnp.max(s, axis=-1, keepdims=True)
            p = jnp.exp(s - m)
            p = p * _recip(jnp.sum(p, axis=-1, keepdims=True))
            heads.append(jnp.dot(p, vb[:, sl],
                                 preferred_element_type=jnp.float32))
        ctx_rows.append(jnp.concatenate(heads, axis=-1))             # (Tq, D)
    ctx = jnp.concatenate(ctx_rows, axis=0) if B > 1 else ctx_rows[0]
    # Single output projection over all folded rows.
    return jnp.dot(ctx, wo, preferred_element_type=jnp.float32) + bo


# ------------------------------- fused kernel -------------------------------

def _decoder_kernel(x_ref, mem_ref, tmask_ref, smask_ref, w_ref, o_ref):
    B, Tq, Tk = smask_ref.shape           # static at trace time

    x = x_ref[...]                        # (B*Tq, D)
    mem = mem_ref[...]                    # (B*Tk, D)
    tmask = tmask_ref[...]                # (Tq, Tq) additive mask

    def w(name):
        # Static slice of the packed weight slab ref: zero runtime cost.
        r0, nr, nc = _LAYOUT[name]
        return w_ref[r0:r0 + nr, 0:nc]

    tgt_masks = [tmask] * B               # same causal mask for every batch
    src_masks = [smask_ref[b] for b in range(B)]

    for l in range(N_LAYERS):             # N_LAYERS is tiny -> fully unrolled
        lna = w(f"ln_a{l}")               # (3, D)
        lnb = w(f"ln_b{l}")

        # SublayerConnection: x + sublayer(norm(x))  (dropout == identity).
        # --- masked self-attention: one fused QKV matmul over all rows ---
        xn = _layer_norm(x, lna[0:1, :], lnb[0:1, :])
        qkv = jnp.dot(xn, w(f"sa_wqkv{l}"),
                      preferred_element_type=jnp.float32) + w(f"sa_bqkv{l}")
        x = x + _mha(qkv[:, :D_MODEL], qkv[:, D_MODEL:2 * D_MODEL],
                     qkv[:, 2 * D_MODEL:], tgt_masks,
                     w(f"sa_wo{l}"), w(f"sa_bo{l}"), B, Tq, Tq)

        # --- source attention: Q from decoder rows, fused KV from memory ---
        xn = _layer_norm(x, lna[1:2, :], lnb[1:2, :])
        wqkv = w(f"ca_wqkv{l}")
        bqkv = w(f"ca_bqkv{l}")
        q = jnp.dot(xn, wqkv[:, :D_MODEL],
                    preferred_element_type=jnp.float32) + bqkv[:, :D_MODEL]
        kv = jnp.dot(mem, wqkv[:, D_MODEL:],
                     preferred_element_type=jnp.float32) + bqkv[:, D_MODEL:]
        x = x + _mha(q, kv[:, :D_MODEL], kv[:, D_MODEL:], src_masks,
                     w(f"ca_wo{l}"), w(f"ca_bo{l}"), B, Tq, Tk)

        # --- position-wise feed forward over all folded rows ---
        xn = _layer_norm(x, lna[2:3, :], lnb[2:3, :])
        h = jnp.maximum(
            jnp.dot(xn, w(f"ff_w1{l}"),
                    preferred_element_type=jnp.float32) + w(f"ff_b1{l}"), 0.0)
        x = x + jnp.dot(h, w(f"ff_w2{l}"),
                        preferred_element_type=jnp.float32) + w(f"ff_b2{l}")

    o_ref[...] = _layer_norm(x, w("norm_a"), w("norm_b"))


def decoder_forward(x, memory, tgt_add_mask, src_add_mask, weight_slab):
    """Full N-layer decoder + final LayerNorm in a single grid-less pallas_call.

    x:            (B, Tq, D)   decoder input
    memory:       (B, Tk, D)   encoder memory
    tgt_add_mask: (Tq, Tq)     additive causal mask (shared across batch)
    src_add_mask: (B, Tq, Tk)  additive source mask
    weight_slab:  (_SLAB_ROWS, 128) packed parameters (see pack_weights)
    """
    B, Tq, D = x.shape
    assert D == D_MODEL
    Tk = memory.shape[1]

    # Fold batch into the row dimension on the host (free reshape).
    x2 = x.reshape(B * Tq, D)
    mem2 = memory.reshape(B * Tk, D)

    vmem = pl.BlockSpec(memory_space=pltpu.MemorySpace.VMEM)
    out2 = pl.pallas_call(
        _decoder_kernel,
        out_shape=jax.ShapeDtypeStruct((B * Tq, D_MODEL), jnp.float32),
        in_specs=[vmem] * 5,      # whole operands VMEM-resident, no grid loop
        out_specs=vmem,
    )(x2, mem2, tgt_add_mask, src_add_mask, weight_slab)
    return out2.reshape(B, Tq, D_MODEL)


# ----------------------- deterministic parameter init ----------------------

def init_params(key):
    def dense(k, din, dout):
        k1, k2 = jax.random.split(k)
        w = jax.random.normal(k1, (din, dout), jnp.float32) * 0.1
        b = jax.random.normal(k2, (dout,), jnp.float32) * 0.1
        return w, b

    def attn(k):
        ks = jax.random.split(k, 4)
        wq, bq = dense(ks[0], D_MODEL, D_MODEL)
        wk, bk = dense(ks[1], D_MODEL, D_MODEL)
        wv, bv = dense(ks[2], D_MODEL, D_MODEL)
        wo, bo = dense(ks[3], D_MODEL, D_MODEL)
        wqkv = jnp.concatenate([wq, wk, wv], axis=1)               # (D, 3D)
        bqkv = jnp.concatenate([bq, bk, bv]).reshape(1, 3 * D_MODEL)
        return wqkv, bqkv, wo, bo.reshape(1, D_MODEL)

    ks = jax.random.split(key, 4)
    sa_wqkv, sa_bqkv, sa_wo, sa_bo = attn(ks[0])
    ca_wqkv, ca_bqkv, ca_wo, ca_bo = attn(ks[1])
    w1, b1 = dense(ks[2], D_MODEL, D_FF)
    w2, b2 = dense(ks[3], D_FF, D_MODEL)

    def stack(a):
        # clones() deep-copies the layer -> all N layers share identical init.
        return jnp.stack([a] * N_LAYERS, axis=0)

    return dict(
        sa_wqkv=stack(sa_wqkv), sa_bqkv=stack(sa_bqkv),
        sa_wo=stack(sa_wo), sa_bo=stack(sa_bo),
        ca_wqkv=stack(ca_wqkv), ca_bqkv=stack(ca_bqkv),
        ca_wo=stack(ca_wo), ca_bo=stack(ca_bo),
        ff_w1=stack(w1), ff_b1=stack(b1.reshape(1, D_FF)),
        ff_w2=stack(w2), ff_b2=stack(b2.reshape(1, D_MODEL)),
        ln_a=jnp.ones((N_LAYERS, 3, D_MODEL), jnp.float32),
        ln_b=jnp.zeros((N_LAYERS, 3, D_MODEL), jnp.float32),
        norm_a=jnp.ones((1, D_MODEL), jnp.float32),
        norm_b=jnp.zeros((1, D_MODEL), jnp.float32),
    )


# ----------------------------- pure-JAX reference ---------------------------

def _ref_ln(x, a, b):
    mean = x.mean(-1, keepdims=True)
    std = jnp.std(x, axis=-1, keepdims=True, ddof=1)
    return a * (x - mean) / (std + EPS) + b


def _ref_mha(xq, xkv, mask, wqkv, bqkv, wo, bo):
    B, Tq, _ = xq.shape
    Tk = xkv.shape[1]
    q = xq @ wqkv[:, :D_MODEL] + bqkv[0, :D_MODEL]
    k = xkv @ wqkv[:, D_MODEL:2 * D_MODEL] + bqkv[0, D_MODEL:2 * D_MODEL]
    v = xkv @ wqkv[:, 2 * D_MODEL:] + bqkv[0, 2 * D_MODEL:]
    q = q.reshape(B, Tq, N_HEADS, D_K).transpose(0, 2, 1, 3)
    k = k.reshape(B, Tk, N_HEADS, D_K).transpose(0, 2, 1, 3)
    v = v.reshape(B, Tk, N_HEADS, D_K).transpose(0, 2, 1, 3)
    s = jnp.einsum("bhqd,bhkd->bhqk", q, k) / math.sqrt(D_K)
    s = jnp.where(mask[:, None, :, :] == 0, -1e9, s)
    p = jax.nn.softmax(s, axis=-1)
    o = jnp.einsum("bhqk,bhkd->bhqd", p, v).transpose(0, 2, 1, 3)
    return o.reshape(B, Tq, D_MODEL) @ wo + bo[0]


def _ref_decoder(x, memory, src_mask, tgt_mask, p):
    for l in range(N_LAYERS):
        xn = _ref_ln(x, p["ln_a"][l, 0], p["ln_b"][l, 0])
        x = x + _ref_mha(xn, xn, tgt_mask, p["sa_wqkv"][l], p["sa_bqkv"][l],
                         p["sa_wo"][l], p["sa_bo"][l])
        xn = _ref_ln(x, p["ln_a"][l, 1], p["ln_b"][l, 1])
        x = x + _ref_mha(xn, memory, src_mask, p["ca_wqkv"][l], p["ca_bqkv"][l],
                         p["ca_wo"][l], p["ca_bo"][l])
        xn = _ref_ln(x, p["ln_a"][l, 2], p["ln_b"][l, 2])
        h = jnp.maximum(xn @ p["ff_w1"][l] + p["ff_b1"][l][0], 0.0)
        x = x + h @ p["ff_w2"][l] + p["ff_b2"][l][0]
    return _ref_ln(x, p["norm_a"][0], p["norm_b"][0])


# ---------------------------------- main ------------------------------------

if __name__ == "__main__":
    B, T_TGT, T_SRC = 2, 8, 10

    key = jax.random.PRNGKey(0)
    kx, km = jax.random.split(key)
    x = jax.random.normal(kx, (B, T_TGT, D_MODEL), jnp.float32)
    memory = jax.random.normal(km, (B, T_SRC, D_MODEL), jnp.float32)

    # tgt_mask: causal (subsequent) mask, identical across batch.
    # src_mask: all ones (as in the reference snippet's src_mask).
    tgt_mask = jnp.tril(jnp.ones((T_TGT, T_TGT), jnp.float32))[None]  # (1,Tq,Tq)
    src_mask = jnp.ones((B, T_TGT, T_SRC), jnp.float32)

    # Additive masks precomputed once and reused by every layer / head.
    tgt_add = (1.0 - tgt_mask[0]) * (-1e9)      # (Tq, Tq), shared across batch
    src_add = (1.0 - src_mask) * (-1e9)         # (B, Tq, Tk)

    params = init_params(jax.random.PRNGKey(1))
    weight_slab = pack_weights(params)          # one lane-dense packed operand

    out = decoder_forward(x, memory, tgt_add, src_add, weight_slab)
    out = jax.block_until_ready(out)

    ref = _ref_decoder(x, memory, src_mask, tgt_mask, params)
    assert out.shape == (B, T_TGT, D_MODEL)
    err = float(jnp.max(jnp.abs(out - ref)))
    assert err < 1e-4, f"mismatch vs pure-JAX reference: {err}"

    # TODO(synk): dropout inside SublayerConnection is identity in eval mode and is omitted.
    print("KERNEL_OK")
</pallas_src>

<mosaic_0001>
module attributes {stable_mosaic.version = 11 : i64} {
  func.func @_decoder_kernel(%arg0: memref<16x32xf32, #tpu.memory_space<vmem>>, %arg1: memref<20x32xf32, #tpu.memory_space<vmem>>, %arg2: memref<8x8xf32, #tpu.memory_space<vmem>>, %arg3: memref<2x8x10xf32, #tpu.memory_space<vmem>>, %arg4: memref<592x128xf32, #tpu.memory_space<vmem>>, %arg5: memref<16x32xf32, #tpu.memory_space<vmem>>) attributes {dimension_semantics = [], scalar_prefetch = 0 : i64, scratch_operands = 0 : i64, tpu.core_type = #tpu.core_type<tc>} {
    %c0 = arith.constant 0 : index
    %c0_0 = arith.constant 0 : index
    %0 = vector.load %arg0[%c0, %c0_0] : memref<16x32xf32, #tpu.memory_space<vmem>>, vector<16x32xf32>
    %c0_1 = arith.constant 0 : index
    %c0_2 = arith.constant 0 : index
    %1 = vector.load %arg1[%c0_1, %c0_2] : memref<20x32xf32, #tpu.memory_space<vmem>>, vector<20x32xf32>
    %c0_3 = arith.constant 0 : index
    %c0_4 = arith.constant 0 : index
    %2 = vector.load %arg2[%c0_3, %c0_4] : memref<8x8xf32, #tpu.memory_space<vmem>>, vector<8x8xf32>
    %c0_5 = arith.constant 0 : index
    %c0_6 = arith.constant 0 : index
    %c0_7 = arith.constant 0 : index
    %3 = vector.load %arg3[%c0_5, %c0_6, %c0_7] : memref<2x8x10xf32, #tpu.memory_space<vmem>>, vector<1x8x10xf32>
    %4 = vector.shape_cast %3 : vector<1x8x10xf32> to vector<8x10xf32>
    %c1 = arith.constant 1 : index
    %c0_8 = arith.constant 0 : index
    %c0_9 = arith.constant 0 : index
    %5 = vector.load %arg3[%c1, %c0_8, %c0_9] : memref<2x8x10xf32, #tpu.memory_space<vmem>>, vector<1x8x10xf32>
    %6 = vector.shape_cast %5 : vector<1x8x10xf32> to vector<8x10xf32>
    %c272 = arith.constant 272 : index
    %c0_10 = arith.constant 0 : index
    %7 = vector.load %arg4[%c272, %c0_10] : memref<592x128xf32, #tpu.memory_space<vmem>>, vector<3x32xf32>
    %c280 = arith.constant 280 : index
    %c0_11 = arith.constant 0 : index
    %8 = vector.load %arg4[%c280, %c0_11] : memref<592x128xf32, #tpu.memory_space<vmem>>, vector<3x32xf32>
    %9 = vector.extract_strided_slice %7 {offsets = [0, 0], sizes = [1, 32], strides = [1, 1]} : vector<3x32xf32> to vector<1x32xf32>
    %10 = vector.extract_strided_slice %8 {offsets = [0, 0], sizes = [1, 32], strides = [1, 1]} : vector<3x32xf32> to vector<1x32xf32>
    %cst = arith.constant dense<0.000000e+00> : vector<16xf32>
    %11 = vector.multi_reduction <add>, %0, %cst [1] : vector<16x32xf32> to vector<16xf32>
    %12 = vector.shape_cast %11 : vector<16xf32> to vector<16x1xf32>
    %cst_12 = arith.constant 3.200000e+01 : f32
    %13 = vector.broadcast %cst_12 : f32 to vector<16x1xf32>
    %14 = arith.divf %12, %13 : vector<16x1xf32>
    %15 = vector.broadcast %14 : vector<16x1xf32> to vector<16x32xf32>
    %16 = arith.subf %0, %15 : vector<16x32xf32>
    %17 = arith.mulf %16, %16 : vector<16x32xf32>
    %cst_13 = arith.constant dense<0.000000e+00> : vector<16xf32>
    %18 = vector.multi_reduction <add>, %17, %cst_13 [1] : vector<16x32xf32> to vector<16xf32>
    %19 = vector.shape_cast %18 : vector<16xf32> to vector<16x1xf32>
    %cst_14 = arith.constant 0.0322580636 : f32
    %20 = vector.broadcast %cst_14 : f32 to vector<16x1xf32>
    %21 = arith.mulf %19, %20 : vector<16x1xf32>
    %22 = math.sqrt %21 : vector<16x1xf32>
    %23 = vector.broadcast %9 : vector<1x32xf32> to vector<16x32xf32>
    %24 = arith.mulf %23, %16 : vector<16x32xf32>
    %cst_15 = arith.constant 9.99999997E-7 : f32
    %25 = vector.broadcast %cst_15 : f32 to vector<16x1xf32>
    %26 = arith.addf %22, %25 : vector<16x1xf32>
    %27 = tpu.reciprocal %26 {approx = true} : vector<16x1xf32> -> vector<16x1xf32>
    %28 = arith.mulf %26, %27 : vector<16x1xf32>
    %cst_16 = arith.constant 2.000000e+00 : f32
    %29 = vector.broadcast %cst_16 : f32 to vector<16x1xf32>
    %30 = arith.subf %29, %28 : vector<16x1xf32>
    %31 = arith.mulf %27, %30 : vector<16x1xf32>
    %32 = vector.broadcast %31 : vector<16x1xf32> to vector<16x32xf32>
    %33 = arith.mulf %24, %32 : vector<16x32xf32>
    %34 = vector.broadcast %10 : vector<1x32xf32> to vector<16x32xf32>
    %35 = arith.addf %33, %34 : vector<16x32xf32>
    %c0_17 = arith.constant 0 : index
    %c0_18 = arith.constant 0 : index
    %36 = vector.load %arg4[%c0_17, %c0_18] : memref<592x128xf32, #tpu.memory_space<vmem>>, vector<32x96xf32>
    %cst_19 = arith.constant dense<0.000000e+00> : vector<16x96xf32>
    %37 = tpu.matmul %35, %36, %cst_19 {dimension_numbers = #tpu.dot_dimension_numbers<[1], [0], [0], [1], [0, 0, 1, 1], [], []>} : vector<16x32xf32>, vector<32x96xf32>, vector<16x96xf32> -> vector<16x96xf32>
    %c32 = arith.constant 32 : index
    %c0_20 = arith.constant 0 : index
    %38 = vector.load %arg4[%c32, %c0_20] : memref<592x128xf32, #tpu.memory_space<vmem>>, vector<1x96xf32>
    %39 = vector.broadcast %38 : vector<1x96xf32> to vector<16x96xf32>
    %40 = arith.addf %37, %39 : vector<16x96xf32>
    %41 = vector.extract_strided_slice %40 {offsets = [0, 0], sizes = [16, 32], strides = [1, 1]} : vector<16x96xf32> to vector<16x32xf32>
    %42 = vector.extract_strided_slice %40 {offsets = [0, 32], sizes = [16, 32], strides = [1, 1]} : vector<16x96xf32> to vector<16x32xf32>
    %43 = vector.extract_strided_slice %40 {offsets = [0, 64], sizes = [16, 32], strides = [1, 1]} : vector<16x96xf32> to vector<16x32xf32>
    %c40 = arith.constant 40 : index
    %c0_21 = arith.constant 0 : index
    %44 = vector.load %arg4[%c40, %c0_21] : memref<592x128xf32, #tpu.memory_space<vmem>>, vector<32x32xf32>
    %c72 = arith.constant 72 : index
    %c0_22 = arith.constant 0 : index
    %45 = vector.load %arg4[%c72, %c0_22] : memref<592x128xf32, #tpu.memory_space<vmem>>, vector<1x32xf32>
    %46 = vector.extract_strided_slice %41 {offsets = [0, 0], sizes = [8, 32], strides = [1, 1]} : vector<16x32xf32> to vector<8x32xf32>
    %47 = vector.extract_strided_slice %42 {offsets = [0, 0], sizes = [8, 32], strides = [1, 1]} : vector<16x32xf32> to vector<8x32xf32>
    %48 = vector.extract_strided_slice %43 {offsets = [0, 0], sizes = [8, 32], strides = [1, 1]} : vector<16x32xf32> to vector<8x32xf32>
    %49 = vector.extract_strided_slice %46 {offsets = [0, 0], sizes = [8, 8], strides = [1, 1]} : vector<8x32xf32> to vector<8x8xf32>
    %50 = vector.extract_strided_slice %47 {offsets = [0, 0], sizes = [8, 8], strides = [1, 1]} : vector<8x32xf32> to vector<8x8xf32>
    %cst_23 = arith.constant dense<0.000000e+00> : vector<8x8xf32>
    %51 = tpu.matmul %49, %50, %cst_23 {dimension_numbers = #tpu.dot_dimension_numbers<[1], [1], [0], [0], [0, 0, 1, 0], [], []>} : vector<8x8xf32>, vector<8x8xf32>, vector<8x8xf32> -> vector<8x8xf32>
    %52 = arith.addf %51, %2 : vector<8x8xf32>
    %cst_24 = arith.constant dense<0xFF800000> : vector<8xf32>
    %53 = vector.multi_reduction <maximumf>, %52, %cst_24 [1] : vector<8x8xf32> to vector<8xf32>
    %54 = vector.shape_cast %53 : vector<8xf32> to vector<8x1xf32>
    %55 = vector.broadcast %54 : vector<8x1xf32> to vector<8x8xf32>
    %56 = arith.subf %52, %55 : vector<8x8xf32>
    %57 = math.exp %56 : vector<8x8xf32>
    %cst_25 = arith.constant dense<0.000000e+00> : vector<8xf32>
    %58 = vector.multi_reduction <add>, %57, %cst_25 [1] : vector<8x8xf32> to vector<8xf32>
    %59 = vector.shape_cast %58 : vector<8xf32> to vector<8x1xf32>
    %60 = tpu.reciprocal %59 {approx = true} : vector<8x1xf32> -> vector<8x1xf32>
    %61 = arith.mulf %59, %60 : vector<8x1xf32>
    %cst_26 = arith.constant 2.000000e+00 : f32
    %62 = vector.broadcast %cst_26 : f32 to vector<8x1xf32>
    %63 = arith.subf %62, %61 : vector<8x1xf32>
    %64 = arith.mulf %60, %63 : vector<8x1xf32>
    %65 = vector.broadcast %64 : vector<8x1xf32> to vector<8x8xf32>
    %66 = arith.mulf %57, %65 : vector<8x8xf32>
    %67 = vector.extract_strided_slice %48 {offsets = [0, 0], sizes = [8, 8], strides = [1, 1]} : vector<8x32xf32> to vector<8x8xf32>
    %cst_27 = arith.constant dense<0.000000e+00> : vector<8x8xf32>
    %68 = tpu.matmul %66, %67, %cst_27 {dimension_numbers = #tpu.dot_dimension_numbers<[1], [0], [0], [1], [0, 0, 1, 1], [], []>} : vector<8x8xf32>, vector<8x8xf32>, vector<8x8xf32> -> vector<8x8xf32>
    %69 = vector.extract_strided_slice %46 {offsets = [0, 8], sizes = [8, 8], strides = [1, 1]} : vector<8x32xf32> to vector<8x8xf32>
    %70 = vector.extract_strided_slice %47 {offsets = [0, 8], sizes = [8, 8], strides = [1, 1]} : vector<8x32xf32> to vector<8x8xf32>
    %cst_28 = arith.constant dense<0.000000e+00> : vector<8x8xf32>
    %71 = tpu.matmul %69, %70, %cst_28 {dimension_numbers = #tpu.dot_dimension_numbers<[1], [1], [0], [0], [0, 0, 1, 0], [], []>} : vector<8x8xf32>, vector<8x8xf32>, vector<8x8xf32> -> vector<8x8xf32>
    %72 = arith.addf %71, %2 : vector<8x8xf32>
    %cst_29 = arith.constant dense<0xFF800000> : vector<8xf32>
    %73 = vector.multi_reduction <maximumf>, %72, %cst_29 [1] : vector<8x8xf32> to vector<8xf32>
    %74 = vector.shape_cast %73 : vector<8xf32> to vector<8x1xf32>
    %75 = vector.broadcast %74 : vector<8x1xf32> to vector<8x8xf32>
    %76 = arith.subf %72, %75 : vector<8x8xf32>
    %77 = math.exp %76 : vector<8x8xf32>
    %cst_30 = arith.constant dense<0.000000e+00> : vector<8xf32>
    %78 = vector.multi_reduction <add>, %77, %cst_30 [1] : vector<8x8xf32> to vector<8xf32>
    %79 = vector.shape_cast %78 : vector<8xf32> to vector<8x1xf32>
    %80 = tpu.reciprocal %79 {approx = true} : vector<8x1xf32> -> vector<8x1xf32>
    %81 = arith.mulf %79, %80 : vector<8x1xf32>
    %cst_31 = arith.constant 2.000000e+00 : f32
    %82 = vector.broadcast %cst_31 : f32 to vector<8x1xf32>
    %83 = arith.subf %82, %81 : vector<8x1xf32>
    %84 = arith.mulf %80, %83 : vector<8x1xf32>
    %85 = vector.broadcast %84 : vector<8x1xf32> to vector<8x8xf32>
    %86 = arith.mulf %77, %85 : vector<8x8xf32>
    %87 = vector.extract_strided_slice %48 {offsets = [0, 8], sizes = [8, 8], strides = [1, 1]} : vector<8x32xf32> to vector<8x8xf32>
    %cst_32 = arith.constant dense<0.000000e+00> : vector<8x8xf32>
    %88 = tpu.matmul %86, %87, %cst_32 {dimension_numbers = #tpu.dot_dimension_numbers<[1], [0], [0], [1], [0, 0, 1, 1], [], []>} : vector<8x8xf32>, vector<8x8xf32>, vector<8x8xf32> -> vector<8x8xf32>
    %89 = vector.extract_strided_slice %46 {offsets = [0, 16], sizes = [8, 8], strides = [1, 1]} : vector<8x32xf32> to vector<8x8xf32>
    %90 = vector.extract_strided_slice %47 {offsets = [0, 16], sizes = [8, 8], strides = [1, 1]} : vector<8x32xf32> to vector<8x8xf32>
    %cst_33 = arith.constant dense<0.000000e+00> : vector<8x8xf32>
    %91 = tpu.matmul %89, %90, %cst_33 {dimension_numbers = #tpu.dot_dimension_numbers<[1], [1], [0], [0], [0, 0, 1, 0], [], []>} : vector<8x8xf32>, vector<8x8xf32>, vector<8x8xf32> -> vector<8x8xf32>
    %92 = arith.addf %91, %2 : vector<8x8xf32>
    %cst_34 = arith.constant dense<0xFF800000> : vector<8xf32>
    %93 = vector.multi_reduction <maximumf>, %92, %cst_34 [1] : vector<8x8xf32> to vector<8xf32>
    %94 = vector.shape_cast %93 : vector<8xf32> to vector<8x1xf32>
    %95 = vector.broadcast %94 : vector<8x1xf32> to vector<8x8xf32>
    %96 = arith.subf %92, %95 : vector<8x8xf32>
    %97 = math.exp %96 : vector<8x8xf32>
    %cst_35 = arith.constant dense<0.000000e+00> : vector<8xf32>
    %98 = vector.multi_reduction <add>, %97, %cst_35 [1] : vector<8x8xf32> to vector<8xf32>
    %99 = vector.shape_cast %98 : vector<8xf32> to vector<8x1xf32>
    %100 = tpu.reciprocal %99 {approx = true} : vector<8x1xf32> -> vector<8x1xf32>
    %101 = arith.mulf %99, %100 : vector<8x1xf32>
    %cst_36 = arith.constant 2.000000e+00 : f32
    %102 = vector.broadcast %cst_36 : f32 to vector<8x1xf32>
    %103 = arith.subf %102, %101 : vector<8x1xf32>
    %104 = arith.mulf %100, %103 : vector<8x1xf32>
    %105 = vector.broadcast %104 : vector<8x1xf32> to vector<8x8xf32>
    %106 = arith.mulf %97, %105 : vector<8x8xf32>
    %107 = vector.extract_strided_slice %48 {offsets = [0, 16], sizes = [8, 8], strides = [1, 1]} : vector<8x32xf32> to vector<8x8xf32>
    %cst_37 = arith.constant dense<0.000000e+00> : vector<8x8xf32>
    %108 = tpu.matmul %106, %107, %cst_37 {dimension_numbers = #tpu.dot_dimension_numbers<[1], [0], [0], [1], [0, 0, 1, 1], [], []>} : vector<8x8xf32>, vector<8x8xf32>, vector<8x8xf32> -> vector<8x8xf32>
    %109 = vector.extract_strided_slice %46 {offsets = [0, 24], sizes = [8, 8], strides = [1, 1]} : vector<8x32xf32> to vector<8x8xf32>
    %110 = vector.extract_strided_slice %47 {offsets = [0, 24], sizes = [8, 8], strides = [1, 1]} : vector<8x32xf32> to vector<8x8xf32>
    %cst_38 = arith.constant dense<0.000000e+00> : vector<8x8xf32>
    %111 = tpu.matmul %109, %110, %cst_38 {dimension_numbers = #tpu.dot_dimension_numbers<[1], [1], [0], [0], [0, 0, 1, 0], [], []>} : vector<8x8xf32>, vector<8x8xf32>, vector<8x8xf32> -> vector<8x8xf32>
    %112 = arith.addf %111, %2 : vector<8x8xf32>
    %cst_39 = arith.constant dense<0xFF800000> : vector<8xf32>
    %113 = vector.multi_reduction <maximumf>, %112, %cst_39 [1] : vector<8x8xf32> to vector<8xf32>
    %114 = vector.shape_cast %113 : vector<8xf32> to vector<8x1xf32>
    %115 = vector.broadcast %114 : vector<8x1xf32> to vector<8x8xf32>
    %116 = arith.subf %112, %115 : vector<8x8xf32>
    %117 = math.exp %116 : vector<8x8xf32>
    %cst_40 = arith.constant dense<0.000000e+00> : vector<8xf32>
    %118 = vector.multi_reduction <add>, %117, %cst_40 [1] : vector<8x8xf32> to vector<8xf32>
    %119 = vector.shape_cast %118 : vector<8xf32> to vector<8x1xf32>
    %120 = tpu.reciprocal %119 {approx = true} : vector<8x1xf32> -> vector<8x1xf32>
    %121 = arith.mulf %119, %120 : vector<8x1xf32>
    %cst_41 = arith.constant 2.000000e+00 : f32
    %122 = vector.broadcast %cst_41 : f32 to vector<8x1xf32>
    %123 = arith.subf %122, %121 : vector<8x1xf32>
    %124 = arith.mulf %120, %123 : vector<8x1xf32>
    %125 = vector.broadcast %124 : vector<8x1xf32> to vector<8x8xf32>
    %126 = arith.mulf %117, %125 : vector<8x8xf32>
    %127 = vector.extract_strided_slice %48 {offsets = [0, 24], sizes = [8, 8], strides = [1, 1]} : vector<8x32xf32> to vector<8x8xf32>
    %cst_42 = arith.constant dense<0.000000e+00> : vector<8x8xf32>
    %128 = tpu.matmul %126, %127, %cst_42 {dimension_numbers = #tpu.dot_dimension_numbers<[1], [0], [0], [1], [0, 0, 1, 1], [], []>} : vector<8x8xf32>, vector<8x8xf32>, vector<8x8xf32> -> vector<8x8xf32>
    %129 = tpu.concatenate %68, %88, %108, %128 in 1 : vector<8x8xf32>, vector<8x8xf32>, vector<8x8xf32>, vector<8x8xf32> -> vector<8x32xf32>
    %130 = vector.extract_strided_slice %41 {offsets = [8, 0], sizes = [8, 32], strides = [1, 1]} : vector<16x32xf32> to vector<8x32xf32>
    %131 = vector.extract_strided_slice %42 {offsets = [8, 0], sizes = [8, 32], strides = [1, 1]} : vector<16x32xf32> to vector<8x32xf32>
    %132 = vector.extract_strided_slice %43 {offsets = [8, 0], sizes = [8, 32], strides = [1, 1]} : vector<16x32xf32> to vector<8x32xf32>
    %133 = vector.extract_strided_slice %130 {offsets = [0, 0], sizes = [8, 8], strides = [1, 1]} : vector<8x32xf32> to vector<8x8xf32>
    %134 = vector.extract_strided_slice %131 {offsets = [0, 0], sizes = [8, 8], strides = [1, 1]} : vector<8x32xf32> to vector<8x8xf32>
    %cst_43 = arith.constant dense<0.000000e+00> : vector<8x8xf32>
    %135 = tpu.matmul %133, %134, %cst_43 {dimension_numbers = #tpu.dot_dimension_numbers<[1], [1], [0], [0], [0, 0, 1, 0], [], []>} : vector<8x8xf32>, vector<8x8xf32>, vector<8x8xf32> -> vector<8x8xf32>
    %136 = arith.addf %135, %2 : vector<8x8xf32>
    %cst_44 = arith.constant dense<0xFF800000> : vector<8xf32>
    %137 = vector.multi_reduction <maximumf>, %136, %cst_44 [1] : vector<8x8xf32> to vector<8xf32>
    %138 = vector.shape_cast %137 : vector<8xf32> to vector<8x1xf32>
    %139 = vector.broadcast %138 : vector<8x1xf32> to vector<8x8xf32>
    %140 = arith.subf %136, %139 : vector<8x8xf32>
    %141 = math.exp %140 : vector<8x8xf32>
    %cst_45 = arith.constant dense<0.000000e+00> : vector<8xf32>
    %142 = vector.multi_reduction <add>, %141, %cst_45 [1] : vector<8x8xf32> to vector<8xf32>
    %143 = vector.shape_cast %142 : vector<8xf32> to vector<8x1xf32>
    %144 = tpu.reciprocal %143 {approx = true} : vector<8x1xf32> -> vector<8x1xf32>
    %145 = arith.mulf %143, %144 : vector<8x1xf32>
    %cst_46 = arith.constant 2.000000e+00 : f32
    %146 = vector.broadcast %cst_46 : f32 to vector<8x1xf32>
    %147 = arith.subf %146, %145 : vector<8x1xf32>
    %148 = arith.mulf %144, %147 : vector<8x1xf32>
    %149 = vector.broadcast %148 : vector<8x1xf32> to vector<8x8xf32>
    %150 = arith.mulf %141, %149 : vector<8x8xf32>
    %151 = vector.extract_strided_slice %132 {offsets = [0, 0], sizes = [8, 8], strides = [1, 1]} : vector<8x32xf32> to vector<8x8xf32>
    %cst_47 = arith.constant dense<0.000000e+00> : vector<8x8xf32>
    %152 = tpu.matmul %150, %151, %cst_47 {dimension_numbers = #tpu.dot_dimension_numbers<[1], [0], [0], [1], [0, 0, 1, 1], [], []>} : vector<8x8xf32>, vector<8x8xf32>, vector<8x8xf32> -> vector<8x8xf32>
    %153 = vector.extract_strided_slice %130 {offsets = [0, 8], sizes = [8, 8], strides = [1, 1]} : vector<8x32xf32> to vector<8x8xf32>
    %154 = vector.extract_strided_slice %131 {offsets = [0, 8], sizes = [8, 8], strides = [1, 1]} : vector<8x32xf32> to vector<8x8xf32>
    %cst_48 = arith.constant dense<0.000000e+00> : vector<8x8xf32>
    %155 = tpu.matmul %153, %154, %cst_48 {dimension_numbers = #tpu.dot_dimension_numbers<[1], [1], [0], [0], [0, 0, 1, 0], [], []>} : vector<8x8xf32>, vector<8x8xf32>, vector<8x8xf32> -> vector<8x8xf32>
    %156 = arith.addf %155, %2 : vector<8x8xf32>
    %cst_49 = arith.constant dense<0xFF800000> : vector<8xf32>
    %157 = vector.multi_reduction <maximumf>, %156, %cst_49 [1] : vector<8x8xf32> to vector<8xf32>
    %158 = vector.shape_cast %157 : vector<8xf32> to vector<8x1xf32>
    %159 = vector.broadcast %158 : vector<8x1xf32> to vector<8x8xf32>
    %160 = arith.subf %156, %159 : vector<8x8xf32>
    %161 = math.exp %160 : vector<8x8xf32>
    %cst_50 = arith.constant dense<0.000000e+00> : vector<8xf32>
    %162 = vector.multi_reduction <add>, %161, %cst_50 [1] : vector<8x8xf32> to vector<8xf32>
    %163 = vector.shape_cast %162 : vector<8xf32> to vector<8x1xf32>
    %164 = tpu.reciprocal %163 {approx = true} : vector<8x1xf32> -> vector<8x1xf32>
    %165 = arith.mulf %163, %164 : vector<8x1xf32>
    %cst_51 = arith.constant 2.000000e+00 : f32
    %166 = vector.broadcast %cst_51 : f32 to vector<8x1xf32>
    %167 = arith.subf %166, %165 : vector<8x1xf32>
    %168 = arith.mulf %164, %167 : vector<8x1xf32>
    %169 = vector.broadcast %168 : vector<8x1xf32> to vector<8x8xf32>
    %170 = arith.mulf %161, %169 : vector<8x8xf32>
    %171 = vector.extract_strided_slice %132 {offsets = [0, 8], sizes = [8, 8], strides = [1, 1]} : vector<8x32xf32> to vector<8x8xf32>
    %cst_52 = arith.constant dense<0.000000e+00> : vector<8x8xf32>
    %172 = tpu.matmul %170, %171, %cst_52 {dimension_numbers = #tpu.dot_dimension_numbers<[1], [0], [0], [1], [0, 0, 1, 1], [], []>} : vector<8x8xf32>, vector<8x8xf32>, vector<8x8xf32> -> vector<8x8xf32>
    %173 = vector.extract_strided_slice %130 {offsets = [0, 16], sizes = [8, 8], strides = [1, 1]} : vector<8x32xf32> to vector<8x8xf32>
    %174 = vector.extract_strided_slice %131 {offsets = [0, 16], sizes = [8, 8], strides = [1, 1]} : vector<8x32xf32> to vector<8x8xf32>
    %cst_53 = arith.constant dense<0.000000e+00> : vector<8x8xf32>
    %175 = tpu.matmul %173, %174, %cst_53 {dimension_numbers = #tpu.dot_dimension_numbers<[1], [1], [0], [0], [0, 0, 1, 0], [], []>} : vector<8x8xf32>, vector<8x8xf32>, vector<8x8xf32> -> vector<8x8xf32>
    %176 = arith.addf %175, %2 : vector<8x8xf32>
    %cst_54 = arith.constant dense<0xFF800000> : vector<8xf32>
    %177 = vector.multi_reduction <maximumf>, %176, %cst_54 [1] : vector<8x8xf32> to vector<8xf32>
    %178 = vector.shape_cast %177 : vector<8xf32> to vector<8x1xf32>
    %179 = vector.broadcast %178 : vector<8x1xf32> to vector<8x8xf32>
    %180 = arith.subf %176, %179 : vector<8x8xf32>
    %181 = math.exp %180 : vector<8x8xf32>
    %cst_55 = arith.constant dense<0.000000e+00> : vector<8xf32>
    %182 = vector.multi_reduction <add>, %181, %cst_55 [1] : vector<8x8xf32> to vector<8xf32>
    %183 = vector.shape_cast %182 : vector<8xf32> to vector<8x1xf32>
    %184 = tpu.reciprocal %183 {approx = true} : vector<8x1xf32> -> vector<8x1xf32>
    %185 = arith.mulf %183, %184 : vector<8x1xf32>
    %cst_56 = arith.constant 2.000000e+00 : f32
    %186 = vector.broadcast %cst_56 : f32 to vector<8x1xf32>
    %187 = arith.subf %186, %185 : vector<8x1xf32>
    %188 = arith.mulf %184, %187 : vector<8x1xf32>
    %189 = vector.broadcast %188 : vector<8x1xf32> to vector<8x8xf32>
    %190 = arith.mulf %181, %189 : vector<8x8xf32>
    %191 = vector.extract_strided_slice %132 {offsets = [0, 16], sizes = [8, 8], strides = [1, 1]} : vector<8x32xf32> to vector<8x8xf32>
    %cst_57 = arith.constant dense<0.000000e+00> : vector<8x8xf32>
    %192 = tpu.matmul %190, %191, %cst_57 {dimension_numbers = #tpu.dot_dimension_numbers<[1], [0], [0], [1], [0, 0, 1, 1], [], []>} : vector<8x8xf32>, vector<8x8xf32>, vector<8x8xf32> -> vector<8x8xf32>
    %193 = vector.extract_strided_slice %130 {offsets = [0, 24], sizes = [8, 8], strides = [1, 1]} : vector<8x32xf32> to vector<8x8xf32>
    %194 = vector.extract_strided_slice %131 {offsets = [0, 24], sizes = [8, 8], strides = [1, 1]} : vector<8x32xf32> to vector<8x8xf32>
    %cst_58 = arith.constant dense<0.000000e+00> : vector<8x8xf32>
    %195 = tpu.matmul %193, %194, %cst_58 {dimension_numbers = #tpu.dot_dimension_numbers<[1], [1], [0], [0], [0, 0, 1, 0], [], []>} : vector<8x8xf32>, vector<8x8xf32>, vector<8x8xf32> -> vector<8x8xf32>
    %196 = arith.addf %195, %2 : vector<8x8xf32>
    %cst_59 = arith.constant dense<0xFF800000> : vector<8xf32>
    %197 = vector.multi_reduction <maximumf>, %196, %cst_59 [1] : vector<8x8xf32> to vector<8xf32>
    %198 = vector.shape_cast %197 : vector<8xf32> to vector<8x1xf32>
    %199 = vector.broadcast %198 : vector<8x1xf32> to vector<8x8xf32>
    %200 = arith.subf %196, %199 : vector<8x8xf32>
    %201 = math.exp %200 : vector<8x8xf32>
    %cst_60 = arith.constant dense<0.000000e+00> : vector<8xf32>
    %202 = vector.multi_reduction <add>, %201, %cst_60 [1] : vector<8x8xf32> to vector<8xf32>
    %203 = vector.shape_cast %202 : vector<8xf32> to vector<8x1xf32>
    %204 = tpu.reciprocal %203 {approx = true} : vector<8x1xf32> -> vector<8x1xf32>
    %205 = arith.mulf %203, %204 : vector<8x1xf32>
    %cst_61 = arith.constant 2.000000e+00 : f32
    %206 = vector.broadcast %cst_61 : f32 to vector<8x1xf32>
    %207 = arith.subf %206, %205 : vector<8x1xf32>
    %208 = arith.mulf %204, %207 : vector<8x1xf32>
    %209 = vector.broadcast %208 : vector<8x1xf32> to vector<8x8xf32>
    %210 = arith.mulf %201, %209 : vector<8x8xf32>
    %211 = vector.extract_strided_slice %132 {offsets = [0, 24], sizes = [8, 8], strides = [1, 1]} : vector<8x32xf32> to vector<8x8xf32>
    %cst_62 = arith.constant dense<0.000000e+00> : vector<8x8xf32>
    %212 = tpu.matmul %210, %211, %cst_62 {dimension_numbers = #tpu.dot_dimension_numbers<[1], [0], [0], [1], [0, 0, 1, 1], [], []>} : vector<8x8xf32>, vector<8x8xf32>, vector<8x8xf32> -> vector<8x8xf32>
    %213 = tpu.concatenate %152, %172, %192, %212 in 1 : vector<8x8xf32>, vector<8x8xf32>, vector<8x8xf32>, vector<8x8xf32> -> vector<8x32xf32>
    %214 = tpu.concatenate %129, %213 in 0 : vector<8x32xf32>, vector<8x32xf32> -> vector<16x32xf32>
    %cst_63 = arith.constant dense<0.000000e+00> : vector<16x32xf32>
    %215 = tpu.matmul %214, %44, %cst_63 {dimension_numbers = #tpu.dot_dimension_numbers<[1], [0], [0], [1], [0, 0, 1, 1], [], []>} : vector<16x32xf32>, vector<32x32xf32>, vector<16x32xf32> -> vector<16x32xf32>
    %216 = vector.broadcast %45 : vector<1x32xf32> to vector<16x32xf32>
    %217 = arith.addf %215, %216 : vector<16x32xf32>
    %218 = arith.addf %0, %217 : vector<16x32xf32>
    %219 = vector.extract_strided_slice %7 {offsets = [1, 0], sizes = [1, 32], strides = [1, 1]} : vector<3x32xf32> to vector<1x32xf32>
    %220 = vector.extract_strided_slice %8 {offsets = [1, 0], sizes = [1, 32], strides = [1, 1]} : vector<3x32xf32> to vector<1x32xf32>
    %cst_64 = arith.constant dense<0.000000e+00> : vector<16xf32>
    %221 = vector.multi_reduction <add>, %218, %cst_64 [1] : vector<16x32xf32> to vector<16xf32>
    %222 = vector.shape_cast %221 : vector<16xf32> to vector<16x1xf32>
    %cst_65 = arith.constant 3.200000e+01 : f32
    %223 = vector.broadcast %cst_65 : f32 to vector<16x1xf32>
    %224 = arith.divf %222, %223 : vector<16x1xf32>
    %225 = vector.broadcast %224 : vector<16x1xf32> to vector<16x32xf32>
    %226 = arith.subf %218, %225 : vector<16x32xf32>
    %227 = arith.mulf %226, %226 : vector<16x32xf32>
    %cst_66 = arith.constant dense<0.000000e+00> : vector<16xf32>
    %228 = vector.multi_reduction <add>, %227, %cst_66 [1] : vector<16x32xf32> to vector<16xf32>
    %229 = vector.shape_cast %228 : vector<16xf32> to vector<16x1xf32>
    %cst_67 = arith.constant 0.0322580636 : f32
    %230 = vector.broadcast %cst_67 : f32 to vector<16x1xf32>
    %231 = arith.mulf %229, %230 : vector<16x1xf32>
    %232 = math.sqrt %231 : vector<16x1xf32>
    %233 = vector.broadcast %219 : vector<1x32xf32> to vector<16x32xf32>
    %234 = arith.mulf %233, %226 : vector<16x32xf32>
    %cst_68 = arith.constant 9.99999997E-7 : f32
    %235 = vector.broadcast %cst_68 : f32 to vector<16x1xf32>
    %236 = arith.addf %232, %235 : vector<16x1xf32>
    %237 = tpu.reciprocal %236 {approx = true} : vector<16x1xf32> -> vector<16x1xf32>
    %238 = arith.mulf %236, %237 : vector<16x1xf32>
    %cst_69 = arith.constant 2.000000e+00 : f32
    %239 = vector.broadcast %cst_69 : f32 to vector<16x1xf32>
    %240 = arith.subf %239, %238 : vector<16x1xf32>
    %241 = arith.mulf %237, %240 : vector<16x1xf32>
    %242 = vector.broadcast %241 : vector<16x1xf32> to vector<16x32xf32>
    %243 = arith.mulf %234, %242 : vector<16x32xf32>
    %244 = vector.broadcast %220 : vector<1x32xf32> to vector<16x32xf32>
    %245 = arith.addf %243, %244 : vector<16x32xf32>
    %c80 = arith.constant 80 : index
    %c0_70 = arith.constant 0 : index
    %246 = vector.load %arg4[%c80, %c0_70] : memref<592x128xf32, #tpu.memory_space<vmem>>, vector<32x96xf32>
    %c112 = arith.constant 112 : index
    %c0_71 = arith.constant 0 : index
    %247 = vector.load %arg4[%c112, %c0_71] : memref<592x128xf32, #tpu.memory_space<vmem>>, vector<1x96xf32>
    %248 = vector.extract_strided_slice %246 {offsets = [0, 0], sizes = [32, 32], strides = [1, 1]} : vector<32x96xf32> to vector<32x32xf32>
    %cst_72 = arith.constant dense<0.000000e+00> : vector<16x32xf32>
    %249 = tpu.matmul %245, %248, %cst_72 {dimension_numbers = #tpu.dot_dimension_numbers<[1], [0], [0], [1], [0, 0, 1, 1], [], []>} : vector<16x32xf32>, vector<32x32xf32>, vector<16x32xf32> -> vector<16x32xf32>
    %250 = vector.extract_strided_slice %247 {offsets = [0, 0], sizes = [1, 32], strides = [1, 1]} : vector<1x96xf32> to vector<1x32xf32>
    %251 = vector.broadcast %250 : vector<1x32xf32> to vector<16x32xf32>
    %252 = arith.addf %249, %251 : vector<16x32xf32>
    %253 = vector.extract_strided_slice %246 {offsets = [0, 32], sizes = [32, 64], strides = [1, 1]} : vector<32x96xf32> to vector<32x64xf32>
    %cst_73 = arith.constant dense<0.000000e+00> : vector<20x64xf32>
    %254 = tpu.matmul %1, %253, %cst_73 {dimension_numbers = #tpu.dot_dimension_numbers<[1], [0], [0], [1], [0, 0, 1, 1], [], []>} : vector<20x32xf32>, vector<32x64xf32>, vector<20x64xf32> -> vector<20x64xf32>
    %255 = vector.extract_strided_slice %247 {offsets = [0, 32], sizes = [1, 64], strides = [1, 1]} : vector<1x96xf32> to vector<1x64xf32>
    %256 = vector.broadcast %255 : vector<1x64xf32> to vector<20x64xf32>
    %257 = arith.addf %254, %256 : vector<20x64xf32>
    %258 = vector.extract_strided_slice %257 {offsets = [0, 0], sizes = [20, 32], strides = [1, 1]} : vector<20x64xf32> to vector<20x32xf32>
    %259 = vector.extract_strided_slice %257 {offsets = [0, 32], sizes = [20, 32], strides = [1, 1]} : vector<20x64xf32> to vector<20x32xf32>
    %c120 = arith.constant 120 : index
    %c0_74 = arith.constant 0 : index
    %260 = vector.load %arg4[%c120, %c0_74] : memref<592x128xf32, #tpu.memory_space<vmem>>, vector<32x32xf32>
    %c152 = arith.constant 152 : index
    %c0_75 = arith.constant 0 : index
    %261 = vector.load %arg4[%c152, %c0_75] : memref<592x128xf32, #tpu.memory_space<vmem>>, vector<1x32xf32>
    %262 = vector.extract_strided_slice %252 {offsets = [0, 0], sizes = [8, 32], strides = [1, 1]} : vector<16x32xf32> to vector<8x32xf32>
    %263 = vector.extract_strided_slice %258 {offsets = [0, 0], sizes = [10, 32], strides = [1, 1]} : vector<20x32xf32> to vector<10x32xf32>
    %264 = vector.extract_strided_slice %259 {offsets = [0, 0], sizes = [10, 32], strides = [1, 1]} : vector<20x32xf32> to vector<10x32xf32>
    %265 = vector.extract_strided_slice %262 {offsets = [0, 0], sizes = [8, 8], strides = [1, 1]} : vector<8x32xf32> to vector<8x8xf32>
    %266 = vector.extract_strided_slice %263 {offsets = [0, 0], sizes = [10, 8], strides = [1, 1]} : vector<10x32xf32> to vector<10x8xf32>
    %cst_76 = arith.constant dense<0.000000e+00> : vector<8x10xf32>
    %267 = tpu.matmul %265, %266, %cst_76 {dimension_numbers = #tpu.dot_dimension_numbers<[1], [1], [0], [0], [0, 0, 1, 0], [], []>} : vector<8x8xf32>, vector<10x8xf32>, vector<8x10xf32> -> vector<8x10xf32>
    %268 = arith.addf %267, %4 : vector<8x10xf32>
    %cst_77 = arith.constant dense<0xFF800000> : vector<8xf32>
    %269 = vector.multi_reduction <maximumf>, %268, %cst_77 [1] : vector<8x10xf32> to vector<8xf32>
    %270 = vector.shape_cast %269 : vector<8xf32> to vector<8x1xf32>
    %271 = vector.broadcast %270 : vector<8x1xf32> to vector<8x10xf32>
    %272 = arith.subf %268, %271 : vector<8x10xf32>
    %273 = math.exp %272 : vector<8x10xf32>
    %cst_78 = arith.constant dense<0.000000e+00> : vector<8xf32>
    %274 = vector.multi_reduction <add>, %273, %cst_78 [1] : vector<8x10xf32> to vector<8xf32>
    %275 = vector.shape_cast %274 : vector<8xf32> to vector<8x1xf32>
    %276 = tpu.reciprocal %275 {approx = true} : vector<8x1xf32> -> vector<8x1xf32>
    %277 = arith.mulf %275, %276 : vector<8x1xf32>
    %cst_79 = arith.constant 2.000000e+00 : f32
    %278 = vector.broadcast %cst_79 : f32 to vector<8x1xf32>
    %279 = arith.subf %278, %277 : vector<8x1xf32>
    %280 = arith.mulf %276, %279 : vector<8x1xf32>
    %281 = vector.broadcast %280 : vector<8x1xf32> to vector<8x10xf32>
    %282 = arith.mulf %273, %281 : vector<8x10xf32>
    %283 = vector.extract_strided_slice %264 {offsets = [0, 0], sizes = [10, 8], strides = [1, 1]} : vector<10x32xf32> to vector<10x8xf32>
    %cst_80 = arith.constant dense<0.000000e+00> : vector<8x8xf32>
    %284 = tpu.matmul %282, %283, %cst_80 {dimension_numbers = #tpu.dot_dimension_numbers<[1], [0], [0], [1], [0, 0, 1, 1], [], []>} : vector<8x10xf32>, vector<10x8xf32>, vector<8x8xf32> -> vector<8x8xf32>
    %285 = vector.extract_strided_slice %262 {offsets = [0, 8], sizes = [8, 8], strides = [1, 1]} : vector<8x32xf32> to vector<8x8xf32>
    %286 = vector.extract_strided_slice %263 {offsets = [0, 8], sizes = [10, 8], strides = [1, 1]} : vector<10x32xf32> to vector<10x8xf32>
    %cst_81 = arith.constant dense<0.000000e+00> : vector<8x10xf32>
    %287 = tpu.matmul %285, %286, %cst_81 {dimension_numbers = #tpu.dot_dimension_numbers<[1], [1], [0], [0], [0, 0, 1, 0], [], []>} : vector<8x8xf32>, vector<10x8xf32>, vector<8x10xf32> -> vector<8x10xf32>
    %288 = arith.addf %287, %4 : vector<8x10xf32>
    %cst_82 = arith.constant dense<0xFF800000> : vector<8xf32>
    %289 = vector.multi_reduction <maximumf>, %288, %cst_82 [1] : vector<8x10xf32> to vector<8xf32>
    %290 = vector.shape_cast %289 : vector<8xf32> to vector<8x1xf32>
    %291 = vector.broadcast %290 : vector<8x1xf32> to vector<8x10xf32>
    %292 = arith.subf %288, %291 : vector<8x10xf32>
    %293 = math.exp %292 : vector<8x10xf32>
    %cst_83 = arith.constant dense<0.000000e+00> : vector<8xf32>
    %294 = vector.multi_reduction <add>, %293, %cst_83 [1] : vector<8x10xf32> to vector<8xf32>
    %295 = vector.shape_cast %294 : vector<8xf32> to vector<8x1xf32>
    %296 = tpu.reciprocal %295 {approx = true} : vector<8x1xf32> -> vector<8x1xf32>
    %297 = arith.mulf %295, %296 : vector<8x1xf32>
    %cst_84 = arith.constant 2.000000e+00 : f32
    %298 = vector.broadcast %cst_84 : f32 to vector<8x1xf32>
    %299 = arith.subf %298, %297 : vector<8x1xf32>
    %300 = arith.mulf %296, %299 : vector<8x1xf32>
    %301 = vector.broadcast %300 : vector<8x1xf32> to vector<8x10xf32>
    %302 = arith.mulf %293, %301 : vector<8x10xf32>
    %303 = vector.extract_strided_slice %264 {offsets = [0, 8], sizes = [10, 8], strides = [1, 1]} : vector<10x32xf32> to vector<10x8xf32>
    %cst_85 = arith.constant dense<0.000000e+00> : vector<8x8xf32>
    %304 = tpu.matmul %302, %303, %cst_85 {dimension_numbers = #tpu.dot_dimension_numbers<[1], [0], [0], [1], [0, 0, 1, 1], [], []>} : vector<8x10xf32>, vector<10x8xf32>, vector<8x8xf32> -> vector<8x8xf32>
    %305 = vector.extract_strided_slice %262 {offsets = [0, 16], sizes = [8, 8], strides = [1, 1]} : vector<8x32xf32> to vector<8x8xf32>
    %306 = vector.extract_strided_slice %263 {offsets = [0, 16], sizes = [10, 8], strides = [1, 1]} : vector<10x32xf32> to vector<10x8xf32>
    %cst_86 = arith.constant dense<0.000000e+00> : vector<8x10xf32>
    %307 = tpu.matmul %305, %306, %cst_86 {dimension_numbers = #tpu.dot_dimension_numbers<[1], [1], [0], [0], [0, 0, 1, 0], [], []>} : vector<8x8xf32>, vector<10x8xf32>, vector<8x10xf32> -> vector<8x10xf32>
    %308 = arith.addf %307, %4 : vector<8x10xf32>
    %cst_87 = arith.constant dense<0xFF800000> : vector<8xf32>
    %309 = vector.multi_reduction <maximumf>, %308, %cst_87 [1] : vector<8x10xf32> to vector<8xf32>
    %310 = vector.shape_cast %309 : vector<8xf32> to vector<8x1xf32>
    %311 = vector.broadcast %310 : vector<8x1xf32> to vector<8x10xf32>
    %312 = arith.subf %308, %311 : vector<8x10xf32>
    %313 = math.exp %312 : vector<8x10xf32>
    %cst_88 = arith.constant dense<0.000000e+00> : vector<8xf32>
    %314 = vector.multi_reduction <add>, %313, %cst_88 [1] : vector<8x10xf32> to vector<8xf32>
    %315 = vector.shape_cast %314 : vector<8xf32> to vector<8x1xf32>
    %316 = tpu.reciprocal %315 {approx = true} : vector<8x1xf32> -> vector<8x1xf32>
    %317 = arith.mulf %315, %316 : vector<8x1xf32>
    %cst_89 = arith.constant 2.000000e+00 : f32
    %318 = vector.broadcast %cst_89 : f32 to vector<8x1xf32>
    %319 = arith.subf %318, %317 : vector<8x1xf32>
    %320 = arith.mulf %316, %319 : vector<8x1xf32>
    %321 = vector.broadcast %320 : vector<8x1xf32> to vector<8x10xf32>
    %322 = arith.mulf %313, %321 : vector<8x10xf32>
    %323 = vector.extract_strided_slice %264 {offsets = [0, 16], sizes = [10, 8], strides = [1, 1]} : vector<10x32xf32> to vector<10x8xf32>
    %cst_90 = arith.constant dense<0.000000e+00> : vector<8x8xf32>
    %324 = tpu.matmul %322, %323, %cst_90 {dimension_numbers = #tpu.dot_dimension_numbers<[1], [0], [0], [1], [0, 0, 1, 1], [], []>} : vector<8x10xf32>, vector<10x8xf32>, vector<8x8xf32> -> vector<8x8xf32>
    %325 = vector.extract_strided_slice %262 {offsets = [0, 24], sizes = [8, 8], strides = [1, 1]} : vector<8x32xf32> to vector<8x8xf32>
    %326 = vector.extract_strided_slice %263 {offsets = [0, 24], sizes = [10, 8], strides = [1, 1]} : vector<10x32xf32> to vector<10x8xf32>
    %cst_91 = arith.constant dense<0.000000e+00> : vector<8x10xf32>
    %327 = tpu.matmul %325, %326, %cst_91 {dimension_numbers = #tpu.dot_dimension_numbers<[1], [1], [0], [0], [0, 0, 1, 0], [], []>} : vector<8x8xf32>, vector<10x8xf32>, vector<8x10xf32> -> vector<8x10xf32>
    %328 = arith.addf %327, %4 : vector<8x10xf32>
    %cst_92 = arith.constant dense<0xFF800000> : vector<8xf32>
    %329 = vector.multi_reduction <maximumf>, %328, %cst_92 [1] : vector<8x10xf32> to vector<8xf32>
    %330 = vector.shape_cast %329 : vector<8xf32> to vector<8x1xf32>
    %331 = vector.broadcast %330 : vector<8x1xf32> to vector<8x10xf32>
    %332 = arith.subf %328, %331 : vector<8x10xf32>
    %333 = math.exp %332 : vector<8x10xf32>
    %cst_93 = arith.constant dense<0.000000e+00> : vector<8xf32>
    %334 = vector.multi_reduction <add>, %333, %cst_93 [1] : vector<8x10xf32> to vector<8xf32>
    %335 = vector.shape_cast %334 : vector<8xf32> to vector<8x1xf32>
    %336 = tpu.reciprocal %335 {approx = true} : vector<8x1xf32> -> vector<8x1xf32>
    %337 = arith.mulf %335, %336 : vector<8x1xf32>
    %cst_94 = arith.constant 2.000000e+00 : f32
    %338 = vector.broadcast %cst_94 : f32 to vector<8x1xf32>
    %339 = arith.subf %338, %337 : vector<8x1xf32>
    %340 = arith.mulf %336, %339 : vector<8x1xf32>
    %341 = vector.broadcast %340 : vector<8x1xf32> to vector<8x10xf32>
    %342 = arith.mulf %333, %341 : vector<8x10xf32>
    %343 = vector.extract_strided_slice %264 {offsets = [0, 24], sizes = [10, 8], strides = [1, 1]} : vector<10x32xf32> to vector<10x8xf32>
    %cst_95 = arith.constant dense<0.000000e+00> : vector<8x8xf32>
    %344 = tpu.matmul %342, %343, %cst_95 {dimension_numbers = #tpu.dot_dimension_numbers<[1], [0], [0], [1], [0, 0, 1, 1], [], []>} : vector<8x10xf32>, vector<10x8xf32>, vector<8x8xf32> -> vector<8x8xf32>
    %345 = tpu.concatenate %284, %304, %324, %344 in 1 : vector<8x8xf32>, vector<8x8xf32>, vector<8x8xf32>, vector<8x8xf32> -> vector<8x32xf32>
    %346 = vector.extract_strided_slice %252 {offsets = [8, 0], sizes = [8, 32], strides = [1, 1]} : vector<16x32xf32> to vector<8x32xf32>
    %347 = vector.extract_strided_slice %258 {offsets = [10, 0], sizes = [10, 32], strides = [1, 1]} : vector<20x32xf32> to vector<10x32xf32>
    %348 = vector.extract_strided_slice %259 {offsets = [10, 0], sizes = [10, 32], strides = [1, 1]} : vector<20x32xf32> to vector<10x32xf32>
    %349 = vector.extract_strided_slice %346 {offsets = [0, 0], sizes = [8, 8], strides = [1, 1]} : vector<8x32xf32> to vector<8x8xf32>
    %350 = vector.extract_strided_slice %347 {offsets = [0, 0], sizes = [10, 8], strides = [1, 1]} : vector<10x32xf32> to vector<10x8xf32>
    %cst_96 = arith.constant dense<0.000000e+00> : vector<8x10xf32>
    %351 = tpu.matmul %349, %350, %cst_96 {dimension_numbers = #tpu.dot_dimension_numbers<[1], [1], [0], [0], [0, 0, 1, 0], [], []>} : vector<8x8xf32>, vector<10x8xf32>, vector<8x10xf32> -> vector<8x10xf32>
    %352 = arith.addf %351, %6 : vector<8x10xf32>
    %cst_97 = arith.constant dense<0xFF800000> : vector<8xf32>
    %353 = vector.multi_reduction <maximumf>, %352, %cst_97 [1] : vector<8x10xf32> to vector<8xf32>
    %354 = vector.shape_cast %353 : vector<8xf32> to vector<8x1xf32>
    %355 = vector.broadcast %354 : vector<8x1xf32> to vector<8x10xf32>
    %356 = arith.subf %352, %355 : vector<8x10xf32>
    %357 = math.exp %356 : vector<8x10xf32>
    %cst_98 = arith.constant dense<0.000000e+00> : vector<8xf32>
    %358 = vector.multi_reduction <add>, %357, %cst_98 [1] : vector<8x10xf32> to vector<8xf32>
    %359 = vector.shape_cast %358 : vector<8xf32> to vector<8x1xf32>
    %360 = tpu.reciprocal %359 {approx = true} : vector<8x1xf32> -> vector<8x1xf32>
    %361 = arith.mulf %359, %360 : vector<8x1xf32>
    %cst_99 = arith.constant 2.000000e+00 : f32
    %362 = vector.broadcast %cst_99 : f32 to vector<8x1xf32>
    %363 = arith.subf %362, %361 : vector<8x1xf32>
    %364 = arith.mulf %360, %363 : vector<8x1xf32>
    %365 = vector.broadcast %364 : vector<8x1xf32> to vector<8x10xf32>
    %366 = arith.mulf %357, %365 : vector<8x10xf32>
    %367 = vector.extract_strided_slice %348 {offsets = [0, 0], sizes = [10, 8], strides = [1, 1]} : vector<10x32xf32> to vector<10x8xf32>
    %cst_100 = arith.constant dense<0.000000e+00> : vector<8x8xf32>
    %368 = tpu.matmul %366, %367, %cst_100 {dimension_numbers = #tpu.dot_dimension_numbers<[1], [0], [0], [1], [0, 0, 1, 1], [], []>} : vector<8x10xf32>, vector<10x8xf32>, vector<8x8xf32> -> vector<8x8xf32>
    %369 = vector.extract_strided_slice %346 {offsets = [0, 8], sizes = [8, 8], strides = [1, 1]} : vector<8x32xf32> to vector<8x8xf32>
    %370 = vector.extract_strided_slice %347 {offsets = [0, 8], sizes = [10, 8], strides = [1, 1]} : vector<10x32xf32> to vector<10x8xf32>
    %cst_101 = arith.constant dense<0.000000e+00> : vector<8x10xf32>
    %371 = tpu.matmul %369, %370, %cst_101 {dimension_numbers = #tpu.dot_dimension_numbers<[1], [1], [0], [0], [0, 0, 1, 0], [], []>} : vector<8x8xf32>, vector<10x8xf32>, vector<8x10xf32> -> vector<8x10xf32>
    %372 = arith.addf %371, %6 : vector<8x10xf32>
    %cst_102 = arith.constant dense<0xFF800000> : vector<8xf32>
    %373 = vector.multi_reduction <maximumf>, %372, %cst_102 [1] : vector<8x10xf32> to vector<8xf32>
    %374 = vector.shape_cast %373 : vector<8xf32> to vector<8x1xf32>
    %375 = vector.broadcast %374 : vector<8x1xf32> to vector<8x10xf32>
    %376 = arith.subf %372, %375 : vector<8x10xf32>
    %377 = math.exp %376 : vector<8x10xf32>
    %cst_103 = arith.constant dense<0.000000e+00> : vector<8xf32>
    %378 = vector.multi_reduction <add>, %377, %cst_103 [1] : vector<8x10xf32> to vector<8xf32>
    %379 = vector.shape_cast %378 : vector<8xf32> to vector<8x1xf32>
    %380 = tpu.reciprocal %379 {approx = true} : vector<8x1xf32> -> vector<8x1xf32>
    %381 = arith.mulf %379, %380 : vector<8x1xf32>
    %cst_104 = arith.constant 2.000000e+00 : f32
    %382 = vector.broadcast %cst_104 : f32 to vector<8x1xf32>
    %383 = arith.subf %382, %381 : vector<8x1xf32>
    %384 = arith.mulf %380, %383 : vector<8x1xf32>
    %385 = vector.broadcast %384 : vector<8x1xf32> to vector<8x10xf32>
    %386 = arith.mulf %377, %385 : vector<8x10xf32>
    %387 = vector.extract_strided_slice %348 {offsets = [0, 8], sizes = [10, 8], strides = [1, 1]} : vector<10x32xf32> to vector<10x8xf32>
    %cst_105 = arith.constant dense<0.000000e+00> : vector<8x8xf32>
    %388 = tpu.matmul %386, %387, %cst_105 {dimension_numbers = #tpu.dot_dimension_numbers<[1], [0], [0], [1], [0, 0, 1, 1], [], []>} : vector<8x10xf32>, vector<10x8xf32>, vector<8x8xf32> -> vector<8x8xf32>
    %389 = vector.extract_strided_slice %346 {offsets = [0, 16], sizes = [8, 8], strides = [1, 1]} : vector<8x32xf32> to vector<8x8xf32>
    %390 = vector.extract_strided_slice %347 {offsets = [0, 16], sizes = [10, 8], strides = [1, 1]} : vector<10x32xf32> to vector<10x8xf32>
    %cst_106 = arith.constant dense<0.000000e+00> : vector<8x10xf32>
    %391 = tpu.matmul %389, %390, %cst_106 {dimension_numbers = #tpu.dot_dimension_numbers<[1], [1], [0], [0], [0, 0, 1, 0], [], []>} : vector<8x8xf32>, vector<10x8xf32>, vector<8x10xf32> -> vector<8x10xf32>
    %392 = arith.addf %391, %6 : vector<8x10xf32>
    %cst_107 = arith.constant dense<0xFF800000> : vector<8xf32>
    %393 = vector.multi_reduction <maximumf>, %392, %cst_107 [1] : vector<8x10xf32> to vector<8xf32>
    %394 = vector.shape_cast %393 : vector<8xf32> to vector<8x1xf32>
    %395 = vector.broadcast %394 : vector<8x1xf32> to vector<8x10xf32>
    %396 = arith.subf %392, %395 : vector<8x10xf32>
    %397 = math.exp %396 : vector<8x10xf32>
    %cst_108 = arith.constant dense<0.000000e+00> : vector<8xf32>
    %398 = vector.multi_reduction <add>, %397, %cst_108 [1] : vector<8x10xf32> to vector<8xf32>
    %399 = vector.shape_cast %398 : vector<8xf32> to vector<8x1xf32>
    %400 = tpu.reciprocal %399 {approx = true} : vector<8x1xf32> -> vector<8x1xf32>
    %401 = arith.mulf %399, %400 : vector<8x1xf32>
    %cst_109 = arith.constant 2.000000e+00 : f32
    %402 = vector.broadcast %cst_109 : f32 to vector<8x1xf32>
    %403 = arith.subf %402, %401 : vector<8x1xf32>
    %404 = arith.mulf %400, %403 : vector<8x1xf32>
    %405 = vector.broadcast %404 : vector<8x1xf32> to vector<8x10xf32>
    %406 = arith.mulf %397, %405 : vector<8x10xf32>
    %407 = vector.extract_strided_slice %348 {offsets = [0, 16], sizes = [10, 8], strides = [1, 1]} : vector<10x32xf32> to vector<10x8xf32>
    %cst_110 = arith.constant dense<0.000000e+00> : vector<8x8xf32>
    %408 = tpu.matmul %406, %407, %cst_110 {dimension_numbers = #tpu.dot_dimension_numbers<[1], [0], [0], [1], [0, 0, 1, 1], [], []>} : vector<8x10xf32>, vector<10x8xf32>, vector<8x8xf32> -> vector<8x8xf32>
    %409 = vector.extract_strided_slice %346 {offsets = [0, 24], sizes = [8, 8], strides = [1, 1]} : vector<8x32xf32> to vector<8x8xf32>
    %410 = vector.extract_strided_slice %347 {offsets = [0, 24], sizes = [10, 8], strides = [1, 1]} : vector<10x32xf32> to vector<10x8xf32>
    %cst_111 = arith.constant dense<0.000000e+00> : vector<8x10xf32>
    %411 = tpu.matmul %409, %410, %cst_111 {dimension_numbers = #tpu.dot_dimension_numbers<[1], [1], [0], [0], [0, 0, 1, 0], [], []>} : vector<8x8xf32>, vector<10x8xf32>, vector<8x10xf32> -> vector<8x10xf32>
    %412 = arith.addf %411, %6 : vector<8x10xf32>
    %cst_112 = arith.constant dense<0xFF800000> : vector<8xf32>
    %413 = vector.multi_reduction <maximumf>, %412, %cst_112 [1] : vector<8x10xf32> to vector<8xf32>
    %414 = vector.shape_cast %413 : vector<8xf32> to vector<8x1xf32>
    %415 = vector.broadcast %414 : vector<8x1xf32> to vector<8x10xf32>
    %416 = arith.subf %412, %415 : vector<8x10xf32>
    %417 = math.exp %416 : vector<8x10xf32>
    %cst_113 = arith.constant dense<0.000000e+00> : vector<8xf32>
    %418 = vector.multi_reduction <add>, %417, %cst_113 [1] : vector<8x10xf32> to vector<8xf32>
    %419 = vector.shape_cast %418 : vector<8xf32> to vector<8x1xf32>
    %420 = tpu.reciprocal %419 {approx = true} : vector<8x1xf32> -> vector<8x1xf32>
    %421 = arith.mulf %419, %420 : vector<8x1xf32>
    %cst_114 = arith.constant 2.000000e+00 : f32
    %422 = vector.broadcast %cst_114 : f32 to vector<8x1xf32>
    %423 = arith.subf %422, %421 : vector<8x1xf32>
    %424 = arith.mulf %420, %423 : vector<8x1xf32>
    %425 = vector.broadcast %424 : vector<8x1xf32> to vector<8x10xf32>
    %426 = arith.mulf %417, %425 : vector<8x10xf32>
    %427 = vector.extract_strided_slice %348 {offsets = [0, 24], sizes = [10, 8], strides = [1, 1]} : vector<10x32xf32> to vector<10x8xf32>
    %cst_115 = arith.constant dense<0.000000e+00> : vector<8x8xf32>
    %428 = tpu.matmul %426, %427, %cst_115 {dimension_numbers = #tpu.dot_dimension_numbers<[1], [0], [0], [1], [0, 0, 1, 1], [], []>} : vector<8x10xf32>, vector<10x8xf32>, vector<8x8xf32> -> vector<8x8xf32>
    %429 = tpu.concatenate %368, %388, %408, %428 in 1 : vector<8x8xf32>, vector<8x8xf32>, vector<8x8xf32>, vector<8x8xf32> -> vector<8x32xf32>
    %430 = tpu.concatenate %345, %429 in 0 : vector<8x32xf32>, vector<8x32xf32> -> vector<16x32xf32>
    %cst_116 = arith.constant dense<0.000000e+00> : vector<16x32xf32>
    %431 = tpu.matmul %430, %260, %cst_116 {dimension_numbers = #tpu.dot_dimension_numbers<[1], [0], [0], [1], [0, 0, 1, 1], [], []>} : vector<16x32xf32>, vector<32x32xf32>, vector<16x32xf32> -> vector<16x32xf32>
    %432 = vector.broadcast %261 : vector<1x32xf32> to vector<16x32xf32>
    %433 = arith.addf %431, %432 : vector<16x32xf32>
    %434 = arith.addf %218, %433 : vector<16x32xf32>
    %435 = vector.extract_strided_slice %7 {offsets = [2, 0], sizes = [1, 32], strides = [1, 1]} : vector<3x32xf32> to vector<1x32xf32>
    %436 = vector.extract_strided_slice %8 {offsets = [2, 0], sizes = [1, 32], strides = [1, 1]} : vector<3x32xf32> to vector<1x32xf32>
    %cst_117 = arith.constant dense<0.000000e+00> : vector<16xf32>
    %437 = vector.multi_reduction <add>, %434, %cst_117 [1] : vector<16x32xf32> to vector<16xf32>
    %438 = vector.shape_cast %437 : vector<16xf32> to vector<16x1xf32>
    %cst_118 = arith.constant 3.200000e+01 : f32
    %439 = vector.broadcast %cst_118 : f32 to vector<16x1xf32>
    %440 = arith.divf %438, %439 : vector<16x1xf32>
    %441 = vector.broadcast %440 : vector<16x1xf32> to vector<16x32xf32>
    %442 = arith.subf %434, %441 : vector<16x32xf32>
    %443 = arith.mulf %442, %442 : vector<16x32xf32>
    %cst_119 = arith.constant dense<0.000000e+00> : vector<16xf32>
    %444 = vector.multi_reduction <add>, %443, %cst_119 [1] : vector<16x32xf32> to vector<16xf32>
    %445 = vector.shape_cast %444 : vector<16xf32> to vector<16x1xf32>
    %cst_120 = arith.constant 0.0322580636 : f32
    %446 = vector.broadcast %cst_120 : f32 to vector<16x1xf32>
    %447 = arith.mulf %445, %446 : vector<16x1xf32>
    %448 = math.sqrt %447 : vector<16x1xf32>
    %449 = vector.broadcast %435 : vector<1x32xf32> to vector<16x32xf32>
    %450 = arith.mulf %449, %442 : vector<16x32xf32>
    %cst_121 = arith.constant 9.99999997E-7 : f32
    %451 = vector.broadcast %cst_121 : f32 to vector<16x1xf32>
    %452 = arith.addf %448, %451 : vector<16x1xf32>
    %453 = tpu.reciprocal %452 {approx = true} : vector<16x1xf32> -> vector<16x1xf32>
    %454 = arith.mulf %452, %453 : vector<16x1xf32>
    %cst_122 = arith.constant 2.000000e+00 : f32
    %455 = vector.broadcast %cst_122 : f32 to vector<16x1xf32>
    %456 = arith.subf %455, %454 : vector<16x1xf32>
    %457 = arith.mulf %453, %456 : vector<16x1xf32>
    %458 = vector.broadcast %457 : vector<16x1xf32> to vector<16x32xf32>
    %459 = arith.mulf %450, %458 : vector<16x32xf32>
    %460 = vector.broadcast %436 : vector<1x32xf32> to vector<16x32xf32>
    %461 = arith.addf %459, %460 : vector<16x32xf32>
    %c160 = arith.constant 160 : index
    %c0_123 = arith.constant 0 : index
    %462 = vector.load %arg4[%c160, %c0_123] : memref<592x128xf32, #tpu.memory_space<vmem>>, vector<32x64xf32>
    %cst_124 = arith.constant dense<0.000000e+00> : vector<16x64xf32>
    %463 = tpu.matmul %461, %462, %cst_124 {dimension_numbers = #tpu.dot_dimension_numbers<[1], [0], [0], [1], [0, 0, 1, 1], [], []>} : vector<16x32xf32>, vector<32x64xf32>, vector<16x64xf32> -> vector<16x64xf32>
    %c192 = arith.constant 192 : index
    %c0_125 = arith.constant 0 : index
    %464 = vector.load %arg4[%c192, %c0_125] : memref<592x128xf32, #tpu.memory_space<vmem>>, vector<1x64xf32>
    %465 = vector.broadcast %464 : vector<1x64xf32> to vector<16x64xf32>
    %466 = arith.addf %463, %465 : vector<16x64xf32>
    %cst_126 = arith.constant 0.000000e+00 : f32
    %467 = vector.broadcast %cst_126 : f32 to vector<16x64xf32>
    %468 = arith.maximumf %466, %467 : vector<16x64xf32>
    %c200 = arith.constant 200 : index
    %c0_127 = arith.constant 0 : index
    %469 = vector.load %arg4[%c200, %c0_127] : memref<592x128xf32, #tpu.memory_space<vmem>>, vector<64x32xf32>
    %cst_128 = arith.constant dense<0.000000e+00> : vector<16x32xf32>
    %470 = tpu.matmul %468, %469, %cst_128 {dimension_numbers = #tpu.dot_dimension_numbers<[1], [0], [0], [1], [0, 0, 1, 1], [], []>} : vector<16x64xf32>, vector<64x32xf32>, vector<16x32xf32> -> vector<16x32xf32>
    %471 = arith.addf %434, %470 : vector<16x32xf32>
    %c264 = arith.constant 264 : index
    %c0_129 = arith.constant 0 : index
    %472 = vector.load %arg4[%c264, %c0_129] : memref<592x128xf32, #tpu.memory_space<vmem>>, vector<1x32xf32>
    %473 = vector.broadcast %472 : vector<1x32xf32> to vector<16x32xf32>
    %474 = arith.addf %471, %473 : vector<16x32xf32>
    %c560 = arith.constant 560 : index
    %c0_130 = arith.constant 0 : index
    %475 = vector.load %arg4[%c560, %c0_130] : memref<592x128xf32, #tpu.memory_space<vmem>>, vector<3x32xf32>
    %c568 = arith.constant 568 : index
    %c0_131 = arith.constant 0 : index
    %476 = vector.load %arg4[%c568, %c0_131] : memref<592x128xf32, #tpu.memory_space<vmem>>, vector<3x32xf32>
    %477 = vector.extract_strided_slice %475 {offsets = [0, 0], sizes = [1, 32], strides = [1, 1]} : vector<3x32xf32> to vector<1x32xf32>
    %478 = vector.extract_strided_slice %476 {offsets = [0, 0], sizes = [1, 32], strides = [1, 1]} : vector<3x32xf32> to vector<1x32xf32>
    %cst_132 = arith.constant dense<0.000000e+00> : vector<16xf32>
    %479 = vector.multi_reduction <add>, %474, %cst_132 [1] : vector<16x32xf32> to vector<16xf32>
    %480 = vector.shape_cast %479 : vector<16xf32> to vector<16x1xf32>
    %cst_133 = arith.constant 3.200000e+01 : f32
    %481 = vector.broadcast %cst_133 : f32 to vector<16x1xf32>
    %482 = arith.divf %480, %481 : vector<16x1xf32>
    %483 = vector.broadcast %482 : vector<16x1xf32> to vector<16x32xf32>
    %484 = arith.subf %474, %483 : vector<16x32xf32>
    %485 = arith.mulf %484, %484 : vector<16x32xf32>
    %cst_134 = arith.constant dense<0.000000e+00> : vector<16xf32>
    %486 = vector.multi_reduction <add>, %485, %cst_134 [1] : vector<16x32xf32> to vector<16xf32>
    %487 = vector.shape_cast %486 : vector<16xf32> to vector<16x1xf32>
    %cst_135 = arith.constant 0.0322580636 : f32
    %488 = vector.broadcast %cst_135 : f32 to vector<16x1xf32>
    %489 = arith.mulf %487, %488 : vector<16x1xf32>
    %490 = math.sqrt %489 : vector<16x1xf32>
    %491 = vector.broadcast %477 : vector<1x32xf32> to vector<16x32xf32>
    %492 = arith.mulf %491, %484 : vector<16x32xf32>
    %cst_136 = arith.constant 9.99999997E-7 : f32
    %493 = vector.broadcast %cst_136 : f32 to vector<16x1xf32>
    %494 = arith.addf %490, %493 : vector<16x1xf32>
    %495 = tpu.reciprocal %494 {approx = true} : vector<16x1xf32> -> vector<16x1xf32>
    %496 = arith.mulf %494, %495 : vector<16x1xf32>
    %cst_137 = arith.constant 2.000000e+00 : f32
    %497 = vector.broadcast %cst_137 : f32 to vector<16x1xf32>
    %498 = arith.subf %497, %496 : vector<16x1xf32>
    %499 = arith.mulf %495, %498 : vector<16x1xf32>
    %500 = vector.broadcast %499 : vector<16x1xf32> to vector<16x32xf32>
    %501 = arith.mulf %492, %500 : vector<16x32xf32>
    %502 = vector.broadcast %478 : vector<1x32xf32> to vector<16x32xf32>
    %503 = arith.addf %501, %502 : vector<16x32xf32>
    %c288 = arith.constant 288 : index
    %c0_138 = arith.constant 0 : index
    %504 = vector.load %arg4[%c288, %c0_138] : memref<592x128xf32, #tpu.memory_space<vmem>>, vector<32x96xf32>
    %cst_139 = arith.constant dense<0.000000e+00> : vector<16x96xf32>
    %505 = tpu.matmul %503, %504, %cst_139 {dimension_numbers = #tpu.dot_dimension_numbers<[1], [0], [0], [1], [0, 0, 1, 1], [], []>} : vector<16x32xf32>, vector<32x96xf32>, vector<16x96xf32> -> vector<16x96xf32>
    %c320 = arith.constant 320 : index
    %c0_140 = arith.constant 0 : index
    %506 = vector.load %arg4[%c320, %c0_140] : memref<592x128xf32, #tpu.memory_space<vmem>>, vector<1x96xf32>
    %507 = vector.broadcast %506 : vector<1x96xf32> to vector<16x96xf32>
    %508 = arith.addf %505, %507 : vector<16x96xf32>
    %509 = vector.extract_strided_slice %508 {offsets = [0, 0], sizes = [16, 32], strides = [1, 1]} : vector<16x96xf32> to vector<16x32xf32>
    %510 = vector.extract_strided_slice %508 {offsets = [0, 32], sizes = [16, 32], strides = [1, 1]} : vector<16x96xf32> to vector<16x32xf32>
    %511 = vector.extract_strided_slice %508 {offsets = [0, 64], sizes = [16, 32], strides = [1, 1]} : vector<16x96xf32> to vector<16x32xf32>
    %c328 = arith.constant 328 : index
    %c0_141 = arith.constant 0 : index
    %512 = vector.load %arg4[%c328, %c0_141] : memref<592x128xf32, #tpu.memory_space<vmem>>, vector<32x32xf32>
    %c360 = arith.constant 360 : index
    %c0_142 = arith.constant 0 : index
    %513 = vector.load %arg4[%c360, %c0_142] : memref<592x128xf32, #tpu.memory_space<vmem>>, vector<1x32xf32>
    %514 = vector.extract_strided_slice %509 {offsets = [0, 0], sizes = [8, 32], strides = [1, 1]} : vector<16x32xf32> to vector<8x32xf32>
    %515 = vector.extract_strided_slice %510 {offsets = [0, 0], sizes = [8, 32], strides = [1, 1]} : vector<16x32xf32> to vector<8x32xf32>
    %516 = vector.extract_strided_slice %511 {offsets = [0, 0], sizes = [8, 32], strides = [1, 1]} : vector<16x32xf32> to vector<8x32xf32>
    %517 = vector.extract_strided_slice %514 {offsets = [0, 0], sizes = [8, 8], strides = [1, 1]} : vector<8x32xf32> to vector<8x8xf32>
    %518 = vector.extract_strided_slice %515 {offsets = [0, 0], sizes = [8, 8], strides = [1, 1]} : vector<8x32xf32> to vector<8x8xf32>
    %cst_143 = arith.constant dense<0.000000e+00> : vector<8x8xf32>
    %519 = tpu.matmul %517, %518, %cst_143 {dimension_numbers = #tpu.dot_dimension_numbers<[1], [1], [0], [0], [0, 0, 1, 0], [], []>} : vector<8x8xf32>, vector<8x8xf32>, vector<8x8xf32> -> vector<8x8xf32>
    %520 = arith.addf %519, %2 : vector<8x8xf32>
    %cst_144 = arith.constant dense<0xFF800000> : vector<8xf32>
    %521 = vector.multi_reduction <maximumf>, %520, %cst_144 [1] : vector<8x8xf32> to vector<8xf32>
    %522 = vector.shape_cast %521 : vector<8xf32> to vector<8x1xf32>
    %523 = vector.broadcast %522 : vector<8x1xf32> to vector<8x8xf32>
    %524 = arith.subf %520, %523 : vector<8x8xf32>
    %525 = math.exp %524 : vector<8x8xf32>
    %cst_145 = arith.constant dense<0.000000e+00> : vector<8xf32>
    %526 = vector.multi_reduction <add>, %525, %cst_145 [1] : vector<8x8xf32> to vector<8xf32>
    %527 = vector.shape_cast %526 : vector<8xf32> to vector<8x1xf32>
    %528 = tpu.reciprocal %527 {approx = true} : vector<8x1xf32> -> vector<8x1xf32>
    %529 = arith.mulf %527, %528 : vector<8x1xf32>
    %cst_146 = arith.constant 2.000000e+00 : f32
    %530 = vector.broadcast %cst_146 : f32 to vector<8x1xf32>
    %531 = arith.subf %530, %529 : vector<8x1xf32>
    %532 = arith.mulf %528, %531 : vector<8x1xf32>
    %533 = vector.broadcast %532 : vector<8x1xf32> to vector<8x8xf32>
    %534 = arith.mulf %525, %533 : vector<8x8xf32>
    %535 = vector.extract_strided_slice %516 {offsets = [0, 0], sizes = [8, 8], strides = [1, 1]} : vector<8x32xf32> to vector<8x8xf32>
    %cst_147 = arith.constant dense<0.000000e+00> : vector<8x8xf32>
    %536 = tpu.matmul %534, %535, %cst_147 {dimension_numbers = #tpu.dot_dimension_numbers<[1], [0], [0], [1], [0, 0, 1, 1], [], []>} : vector<8x8xf32>, vector<8x8xf32>, vector<8x8xf32> -> vector<8x8xf32>
    %537 = vector.extract_strided_slice %514 {offsets = [0, 8], sizes = [8, 8], strides = [1, 1]} : vector<8x32xf32> to vector<8x8xf32>
    %538 = vector.extract_strided_slice %515 {offsets = [0, 8], sizes = [8, 8], strides = [1, 1]} : vector<8x32xf32> to vector<8x8xf32>
    %cst_148 = arith.constant dense<0.000000e+00> : vector<8x8xf32>
    %539 = tpu.matmul %537, %538, %cst_148 {dimension_numbers = #tpu.dot_dimension_numbers<[1], [1], [0], [0], [0, 0, 1, 0], [], []>} : vector<8x8xf32>, vector<8x8xf32>, vector<8x8xf32> -> vector<8x8xf32>
    %540 = arith.addf %539, %2 : vector<8x8xf32>
    %cst_149 = arith.constant dense<0xFF800000> : vector<8xf32>
    %541 = vector.multi_reduction <maximumf>, %540, %cst_149 [1] : vector<8x8xf32> to vector<8xf32>
    %542 = vector.shape_cast %541 : vector<8xf32> to vector<8x1xf32>
    %543 = vector.broadcast %542 : vector<8x1xf32> to vector<8x8xf32>
    %544 = arith.subf %540, %543 : vector<8x8xf32>
    %545 = math.exp %544 : vector<8x8xf32>
    %cst_150 = arith.constant dense<0.000000e+00> : vector<8xf32>
    %546 = vector.multi_reduction <add>, %545, %cst_150 [1] : vector<8x8xf32> to vector<8xf32>
    %547 = vector.shape_cast %546 : vector<8xf32> to vector<8x1xf32>
    %548 = tpu.reciprocal %547 {approx = true} : vector<8x1xf32> -> vector<8x1xf32>
    %549 = arith.mulf %547, %548 : vector<8x1xf32>
    %cst_151 = arith.constant 2.000000e+00 : f32
    %550 = vector.broadcast %cst_151 : f32 to vector<8x1xf32>
    %551 = arith.subf %550, %549 : vector<8x1xf32>
    %552 = arith.mulf %548, %551 : vector<8x1xf32>
    %553 = vector.broadcast %552 : vector<8x1xf32> to vector<8x8xf32>
    %554 = arith.mulf %545, %553 : vector<8x8xf32>
    %555 = vector.extract_strided_slice %516 {offsets = [0, 8], sizes = [8, 8], strides = [1, 1]} : vector<8x32xf32> to vector<8x8xf32>
    %cst_152 = arith.constant dense<0.000000e+00> : vector<8x8xf32>
    %556 = tpu.matmul %554, %555, %cst_152 {dimension_numbers = #tpu.dot_dimension_numbers<[1], [0], [0], [1], [0, 0, 1, 1], [], []>} : vector<8x8xf32>, vector<8x8xf32>, vector<8x8xf32> -> vector<8x8xf32>
    %557 = vector.extract_strided_slice %514 {offsets = [0, 16], sizes = [8, 8], strides = [1, 1]} : vector<8x32xf32> to vector<8x8xf32>
    %558 = vector.extract_strided_slice %515 {offsets = [0, 16], sizes = [8, 8], strides = [1, 1]} : vector<8x32xf32> to vector<8x8xf32>
    %cst_153 = arith.constant dense<0.000000e+00> : vector<8x8xf32>
    %559 = tpu.matmul %557, %558, %cst_153 {dimension_numbers = #tpu.dot_dimension_numbers<[1], [1], [0], [0], [0, 0, 1, 0], [], []>} : vector<8x8xf32>, vector<8x8xf32>, vector<8x8xf32> -> vector<8x8xf32>
    %560 = arith.addf %559, %2 : vector<8x8xf32>
    %cst_154 = arith.constant dense<0xFF800000> : vector<8xf32>
    %561 = vector.multi_reduction <maximumf>, %560, %cst_154 [1] : vector<8x8xf32> to vector<8xf32>
    %562 = vector.shape_cast %561 : vector<8xf32> to vector<8x1xf32>
    %563 = vector.broadcast %562 : vector<8x1xf32> to vector<8x8xf32>
    %564 = arith.subf %560, %563 : vector<8x8xf32>
    %565 = math.exp %564 : vector<8x8xf32>
    %cst_155 = arith.constant dense<0.000000e+00> : vector<8xf32>
    %566 = vector.multi_reduction <add>, %565, %cst_155 [1] : vector<8x8xf32> to vector<8xf32>
    %567 = vector.shape_cast %566 : vector<8xf32> to vector<8x1xf32>
    %568 = tpu.reciprocal %567 {approx = true} : vector<8x1xf32> -> vector<8x1xf32>
    %569 = arith.mulf %567, %568 : vector<8x1xf32>
    %cst_156 = arith.constant 2.000000e+00 : f32
    %570 = vector.broadcast %cst_156 : f32 to vector<8x1xf32>
    %571 = arith.subf %570, %569 : vector<8x1xf32>
    %572 = arith.mulf %568, %571 : vector<8x1xf32>
    %573 = vector.broadcast %572 : vector<8x1xf32> to vector<8x8xf32>
    %574 = arith.mulf %565, %573 : vector<8x8xf32>
    %575 = vector.extract_strided_slice %516 {offsets = [0, 16], sizes = [8, 8], strides = [1, 1]} : vector<8x32xf32> to vector<8x8xf32>
    %cst_157 = arith.constant dense<0.000000e+00> : vector<8x8xf32>
    %576 = tpu.matmul %574, %575, %cst_157 {dimension_numbers = #tpu.dot_dimension_numbers<[1], [0], [0], [1], [0, 0, 1, 1], [], []>} : vector<8x8xf32>, vector<8x8xf32>, vector<8x8xf32> -> vector<8x8xf32>
    %577 = vector.extract_strided_slice %514 {offsets = [0, 24], sizes = [8, 8], strides = [1, 1]} : vector<8x32xf32> to vector<8x8xf32>
    %578 = vector.extract_strided_slice %515 {offsets = [0, 24], sizes = [8, 8], strides = [1, 1]} : vector<8x32xf32> to vector<8x8xf32>
    %cst_158 = arith.constant dense<0.000000e+00> : vector<8x8xf32>
    %579 = tpu.matmul %577, %578, %cst_158 {dimension_numbers = #tpu.dot_dimension_numbers<[1], [1], [0], [0], [0, 0, 1, 0], [], []>} : vector<8x8xf32>, vector<8x8xf32>, vector<8x8xf32> -> vector<8x8xf32>
    %580 = arith.addf %579, %2 : vector<8x8xf32>
    %cst_159 = arith.constant dense<0xFF800000> : vector<8xf32>
    %581 = vector.multi_reduction <maximumf>, %580, %cst_159 [1] : vector<8x8xf32> to vector<8xf32>
    %582 = vector.shape_cast %581 : vector<8xf32> to vector<8x1xf32>
    %583 = vector.broadcast %582 : vector<8x1xf32> to vector<8x8xf32>
    %584 = arith.subf %580, %583 : vector<8x8xf32>
    %585 = math.exp %584 : vector<8x8xf32>
    %cst_160 = arith.constant dense<0.000000e+00> : vector<8xf32>
    %586 = vector.multi_reduction <add>, %585, %cst_160 [1] : vector<8x8xf32> to vector<8xf32>
    %587 = vector.shape_cast %586 : vector<8xf32> to vector<8x1xf32>
    %588 = tpu.reciprocal %587 {approx = true} : vector<8x1xf32> -> vector<8x1xf32>
    %589 = arith.mulf %587, %588 : vector<8x1xf32>
    %cst_161 = arith.constant 2.000000e+00 : f32
    %590 = vector.broadcast %cst_161 : f32 to vector<8x1xf32>
    %591 = arith.subf %590, %589 : vector<8x1xf32>
    %592 = arith.mulf %588, %591 : vector<8x1xf32>
    %593 = vector.broadcast %592 : vector<8x1xf32> to vector<8x8xf32>
    %594 = arith.mulf %585, %593 : vector<8x8xf32>
    %595 = vector.extract_strided_slice %516 {offsets = [0, 24], sizes = [8, 8], strides = [1, 1]} : vector<8x32xf32> to vector<8x8xf32>
    %cst_162 = arith.constant dense<0.000000e+00> : vector<8x8xf32>
    %596 = tpu.matmul %594, %595, %cst_162 {dimension_numbers = #tpu.dot_dimension_numbers<[1], [0], [0], [1], [0, 0, 1, 1], [], []>} : vector<8x8xf32>, vector<8x8xf32>, vector<8x8xf32> -> vector<8x8xf32>
    %597 = tpu.concatenate %536, %556, %576, %596 in 1 : vector<8x8xf32>, vector<8x8xf32>, vector<8x8xf32>, vector<8x8xf32> -> vector<8x32xf32>
    %598 = vector.extract_strided_slice %509 {offsets = [8, 0], sizes = [8, 32], strides = [1, 1]} : vector<16x32xf32> to vector<8x32xf32>
    %599 = vector.extract_strided_slice %510 {offsets = [8, 0], sizes = [8, 32], strides = [1, 1]} : vector<16x32xf32> to vector<8x32xf32>
    %600 = vector.extract_strided_slice %511 {offsets = [8, 0], sizes = [8, 32], strides = [1, 1]} : vector<16x32xf32> to vector<8x32xf32>
    %601 = vector.extract_strided_slice %598 {offsets = [0, 0], sizes = [8, 8], strides = [1, 1]} : vector<8x32xf32> to vector<8x8xf32>
    %602 = vector.extract_strided_slice %599 {offsets = [0, 0], sizes = [8, 8], strides = [1, 1]} : vector<8x32xf32> to vector<8x8xf32>
    %cst_163 = arith.constant dense<0.000000e+00> : vector<8x8xf32>
    %603 = tpu.matmul %601, %602, %cst_163 {dimension_numbers = #tpu.dot_dimension_numbers<[1], [1], [0], [0], [0, 0, 1, 0], [], []>} : vector<8x8xf32>, vector<8x8xf32>, vector<8x8xf32> -> vector<8x8xf32>
    %604 = arith.addf %603, %2 : vector<8x8xf32>
    %cst_164 = arith.constant dense<0xFF800000> : vector<8xf32>
    %605 = vector.multi_reduction <maximumf>, %604, %cst_164 [1] : vector<8x8xf32> to vector<8xf32>
    %606 = vector.shape_cast %605 : vector<8xf32> to vector<8x1xf32>
    %607 = vector.broadcast %606 : vector<8x1xf32> to vector<8x8xf32>
    %608 = arith.subf %604, %607 : vector<8x8xf32>
    %609 = math.exp %608 : vector<8x8xf32>
    %cst_165 = arith.constant dense<0.000000e+00> : vector<8xf32>
    %610 = vector.multi_reduction <add>, %609, %cst_165 [1] : vector<8x8xf32> to vector<8xf32>
    %611 = vector.shape_cast %610 : vector<8xf32> to vector<8x1xf32>
    %612 = tpu.reciprocal %611 {approx = true} : vector<8x1xf32> -> vector<8x1xf32>
    %613 = arith.mulf %611, %612 : vector<8x1xf32>
    %cst_166 = arith.constant 2.000000e+00 : f32
    %614 = vector.broadcast %cst_166 : f32 to vector<8x1xf32>
    %615 = arith.subf %614, %613 : vector<8x1xf32>
    %616 = arith.mulf %612, %615 : vector<8x1xf32>
    %617 = vector.broadcast %616 : vector<8x1xf32> to vector<8x8xf32>
    %618 = arith.mulf %609, %617 : vector<8x8xf32>
    %619 = vector.extract_strided_slice %600 {offsets = [0, 0], sizes = [8, 8], strides = [1, 1]} : vector<8x32xf32> to vector<8x8xf32>
    %cst_167 = arith.constant dense<0.000000e+00> : vector<8x8xf32>
    %620 = tpu.matmul %618, %619, %cst_167 {dimension_numbers = #tpu.dot_dimension_numbers<[1], [0], [0], [1], [0, 0, 1, 1], [], []>} : vector<8x8xf32>, vector<8x8xf32>, vector<8x8xf32> -> vector<8x8xf32>
    %621 = vector.extract_strided_slice %598 {offsets = [0, 8], sizes = [8, 8], strides = [1, 1]} : vector<8x32xf32> to vector<8x8xf32>
    %622 = vector.extract_strided_slice %599 {offsets = [0, 8], sizes = [8, 8], strides = [1, 1]} : vector<8x32xf32> to vector<8x8xf32>
    %cst_168 = arith.constant dense<0.000000e+00> : vector<8x8xf32>
    %623 = tpu.matmul %621, %622, %cst_168 {dimension_numbers = #tpu.dot_dimension_numbers<[1], [1], [0], [0], [0, 0, 1, 0], [], []>} : vector<8x8xf32>, vector<8x8xf32>, vector<8x8xf32> -> vector<8x8xf32>
    %624 = arith.addf %623, %2 : vector<8x8xf32>
    %cst_169 = arith.constant dense<0xFF800000> : vector<8xf32>
    %625 = vector.multi_reduction <maximumf>, %624, %cst_169 [1] : vector<8x8xf32> to vector<8xf32>
    %626 = vector.shape_cast %625 : vector<8xf32> to vector<8x1xf32>
    %627 = vector.broadcast %626 : vector<8x1xf32> to vector<8x8xf32>
    %628 = arith.subf %624, %627 : vector<8x8xf32>
    %629 = math.exp %628 : vector<8x8xf32>
    %cst_170 = arith.constant dense<0.000000e+00> : vector<8xf32>
    %630 = vector.multi_reduction <add>, %629, %cst_170 [1] : vector<8x8xf32> to vector<8xf32>
    %631 = vector.shape_cast %630 : vector<8xf32> to vector<8x1xf32>
    %632 = tpu.reciprocal %631 {approx = true} : vector<8x1xf32> -> vector<8x1xf32>
    %633 = arith.mulf %631, %632 : vector<8x1xf32>
    %cst_171 = arith.constant 2.000000e+00 : f32
    %634 = vector.broadcast %cst_171 : f32 to vector<8x1xf32>
    %635 = arith.subf %634, %633 : vector<8x1xf32>
    %636 = arith.mulf %632, %635 : vector<8x1xf32>
    %637 = vector.broadcast %636 : vector<8x1xf32> to vector<8x8xf32>
    %638 = arith.mulf %629, %637 : vector<8x8xf32>
    %639 = vector.extract_strided_slice %600 {offsets = [0, 8], sizes = [8, 8], strides = [1, 1]} : vector<8x32xf32> to vector<8x8xf32>
    %cst_172 = arith.constant dense<0.000000e+00> : vector<8x8xf32>
    %640 = tpu.matmul %638, %639, %cst_172 {dimension_numbers = #tpu.dot_dimension_numbers<[1], [0], [0], [1], [0, 0, 1, 1], [], []>} : vector<8x8xf32>, vector<8x8xf32>, vector<8x8xf32> -> vector<8x8xf32>
    %641 = vector.extract_strided_slice %598 {offsets = [0, 16], sizes = [8, 8], strides = [1, 1]} : vector<8x32xf32> to vector<8x8xf32>
    %642 = vector.extract_strided_slice %599 {offsets = [0, 16], sizes = [8, 8], strides = [1, 1]} : vector<8x32xf32> to vector<8x8xf32>
    %cst_173 = arith.constant dense<0.000000e+00> : vector<8x8xf32>
    %643 = tpu.matmul %641, %642, %cst_173 {dimension_numbers = #tpu.dot_dimension_numbers<[1], [1], [0], [0], [0, 0, 1, 0], [], []>} : vector<8x8xf32>, vector<8x8xf32>, vector<8x8xf32> -> vector<8x8xf32>
    %644 = arith.addf %643, %2 : vector<8x8xf32>
    %cst_174 = arith.constant dense<0xFF800000> : vector<8xf32>
    %645 = vector.multi_reduction <maximumf>, %644, %cst_174 [1] : vector<8x8xf32> to vector<8xf32>
    %646 = vector.shape_cast %645 : vector<8xf32> to vector<8x1xf32>
    %647 = vector.broadcast %646 : vector<8x1xf32> to vector<8x8xf32>
    %648 = arith.subf %644, %647 : vector<8x8xf32>
    %649 = math.exp %648 : vector<8x8xf32>
    %cst_175 = arith.constant dense<0.000000e+00> : vector<8xf32>
    %650 = vector.multi_reduction <add>, %649, %cst_175 [1] : vector<8x8xf32> to vector<8xf32>
    %651 = vector.shape_cast %650 : vector<8xf32> to vector<8x1xf32>
    %652 = tpu.reciprocal %651 {approx = true} : vector<8x1xf32> -> vector<8x1xf32>
    %653 = arith.mulf %651, %652 : vector<8x1xf32>
    %cst_176 = arith.constant 2.000000e+00 : f32
    %654 = vector.broadcast %cst_176 : f32 to vector<8x1xf32>
    %655 = arith.subf %654, %653 : vector<8x1xf32>
    %656 = arith.mulf %652, %655 : vector<8x1xf32>
    %657 = vector.broadcast %656 : vector<8x1xf32> to vector<8x8xf32>
    %658 = arith.mulf %649, %657 : vector<8x8xf32>
    %659 = vector.extract_strided_slice %600 {offsets = [0, 16], sizes = [8, 8], strides = [1, 1]} : vector<8x32xf32> to vector<8x8xf32>
    %cst_177 = arith.constant dense<0.000000e+00> : vector<8x8xf32>
    %660 = tpu.matmul %658, %659, %cst_177 {dimension_numbers = #tpu.dot_dimension_numbers<[1], [0], [0], [1], [0, 0, 1, 1], [], []>} : vector<8x8xf32>, vector<8x8xf32>, vector<8x8xf32> -> vector<8x8xf32>
    %661 = vector.extract_strided_slice %598 {offsets = [0, 24], sizes = [8, 8], strides = [1, 1]} : vector<8x32xf32> to vector<8x8xf32>
    %662 = vector.extract_strided_slice %599 {offsets = [0, 24], sizes = [8, 8], strides = [1, 1]} : vector<8x32xf32> to vector<8x8xf32>
    %cst_178 = arith.constant dense<0.000000e+00> : vector<8x8xf32>
    %663 = tpu.matmul %661, %662, %cst_178 {dimension_numbers = #tpu.dot_dimension_numbers<[1], [1], [0], [0], [0, 0, 1, 0], [], []>} : vector<8x8xf32>, vector<8x8xf32>, vector<8x8xf32> -> vector<8x8xf32>
    %664 = arith.addf %663, %2 : vector<8x8xf32>
    %cst_179 = arith.constant dense<0xFF800000> : vector<8xf32>
    %665 = vector.multi_reduction <maximumf>, %664, %cst_179 [1] : vector<8x8xf32> to vector<8xf32>
    %666 = vector.shape_cast %665 : vector<8xf32> to vector<8x1xf32>
    %667 = vector.broadcast %666 : vector<8x1xf32> to vector<8x8xf32>
    %668 = arith.subf %664, %667 : vector<8x8xf32>
    %669 = math.exp %668 : vector<8x8xf32>
    %cst_180 = arith.constant dense<0.000000e+00> : vector<8xf32>
    %670 = vector.multi_reduction <add>, %669, %cst_180 [1] : vector<8x8xf32> to vector<8xf32>
    %671 = vector.shape_cast %670 : vector<8xf32> to vector<8x1xf32>
    %672 = tpu.reciprocal %671 {approx = true} : vector<8x1xf32> -> vector<8x1xf32>
    %673 = arith.mulf %671, %672 : vector<8x1xf32>
    %cst_181 = arith.constant 2.000000e+00 : f32
    %674 = vector.broadcast %cst_181 : f32 to vector<8x1xf32>
    %675 = arith.subf %674, %673 : vector<8x1xf32>
    %676 = arith.mulf %672, %675 : vector<8x1xf32>
    %677 = vector.broadcast %676 : vector<8x1xf32> to vector<8x8xf32>
    %678 = arith.mulf %669, %677 : vector<8x8xf32>
    %679 = vector.extract_strided_slice %600 {offsets = [0, 24], sizes = [8, 8], strides = [1, 1]} : vector<8x32xf32> to vector<8x8xf32>
    %cst_182 = arith.constant dense<0.000000e+00> : vector<8x8xf32>
    %680 = tpu.matmul %678, %679, %cst_182 {dimension_numbers = #tpu.dot_dimension_numbers<[1], [0], [0], [1], [0, 0, 1, 1], [], []>} : vector<8x8xf32>, vector<8x8xf32>, vector<8x8xf32> -> vector<8x8xf32>
    %681 = tpu.concatenate %620, %640, %660, %680 in 1 : vector<8x8xf32>, vector<8x8xf32>, vector<8x8xf32>, vector<8x8xf32> -> vector<8x32xf32>
    %682 = tpu.concatenate %597, %681 in 0 : vector<8x32xf32>, vector<8x32xf32> -> vector<16x32xf32>
    %cst_183 = arith.constant dense<0.000000e+00> : vector<16x32xf32>
    %683 = tpu.matmul %682, %512, %cst_183 {dimension_numbers = #tpu.dot_dimension_numbers<[1], [0], [0], [1], [0, 0, 1, 1], [], []>} : vector<16x32xf32>, vector<32x32xf32>, vector<16x32xf32> -> vector<16x32xf32>
    %684 = vector.broadcast %513 : vector<1x32xf32> to vector<16x32xf32>
    %685 = arith.addf %683, %684 : vector<16x32xf32>
    %686 = arith.addf %474, %685 : vector<16x32xf32>
    %687 = vector.extract_strided_slice %475 {offsets = [1, 0], sizes = [1, 32], strides = [1, 1]} : vector<3x32xf32> to vector<1x32xf32>
    %688 = vector.extract_strided_slice %476 {offsets = [1, 0], sizes = [1, 32], strides = [1, 1]} : vector<3x32xf32> to vector<1x32xf32>
    %cst_184 = arith.constant dense<0.000000e+00> : vector<16xf32>
    %689 = vector.multi_reduction <add>, %686, %cst_184 [1] : vector<16x32xf32> to vector<16xf32>
    %690 = vector.shape_cast %689 : vector<16xf32> to vector<16x1xf32>
    %cst_185 = arith.constant 3.200000e+01 : f32
    %691 = vector.broadcast %cst_185 : f32 to vector<16x1xf32>
    %692 = arith.divf %690, %691 : vector<16x1xf32>
    %693 = vector.broadcast %692 : vector<16x1xf32> to vector<16x32xf32>
    %694 = arith.subf %686, %693 : vector<16x32xf32>
    %695 = arith.mulf %694, %694 : vector<16x32xf32>
    %cst_186 = arith.constant dense<0.000000e+00> : vector<16xf32>
    %696 = vector.multi_reduction <add>, %695, %cst_186 [1] : vector<16x32xf32> to vector<16xf32>
    %697 = vector.shape_cast %696 : vector<16xf32> to vector<16x1xf32>
    %cst_187 = arith.constant 0.0322580636 : f32
    %698 = vector.broadcast %cst_187 : f32 to vector<16x1xf32>
    %699 = arith.mulf %697, %698 : vector<16x1xf32>
    %700 = math.sqrt %699 : vector<16x1xf32>
    %701 = vector.broadcast %687 : vector<1x32xf32> to vector<16x32xf32>
    %702 = arith.mulf %701, %694 : vector<16x32xf32>
    %cst_188 = arith.constant 9.99999997E-7 : f32
    %703 = vector.broadcast %cst_188 : f32 to vector<16x1xf32>
    %704 = arith.addf %700, %703 : vector<16x1xf32>
    %705 = tpu.reciprocal %704 {approx = true} : vector<16x1xf32> -> vector<16x1xf32>
    %706 = arith.mulf %704, %705 : vector<16x1xf32>
    %cst_189 = arith.constant 2.000000e+00 : f32
    %707 = vector.broadcast %cst_189 : f32 to vector<16x1xf32>
    %708 = arith.subf %707, %706 : vector<16x1xf32>
    %709 = arith.mulf %705, %708 : vector<16x1xf32>
    %710 = vector.broadcast %709 : vector<16x1xf32> to vector<16x32xf32>
    %711 = arith.mulf %702, %710 : vector<16x32xf32>
    %712 = vector.broadcast %688 : vector<1x32xf32> to vector<16x32xf32>
    %713 = arith.addf %711, %712 : vector<16x32xf32>
    %c368 = arith.constant 368 : index
    %c0_190 = arith.constant 0 : index
    %714 = vector.load %arg4[%c368, %c0_190] : memref<592x128xf32, #tpu.memory_space<vmem>>, vector<32x96xf32>
    %c400 = arith.constant 400 : index
    %c0_191 = arith.constant 0 : index
    %715 = vector.load %arg4[%c400, %c0_191] : memref<592x128xf32, #tpu.memory_space<vmem>>, vector<1x96xf32>
    %716 = vector.extract_strided_slice %714 {offsets = [0, 0], sizes = [32, 32], strides = [1, 1]} : vector<32x96xf32> to vector<32x32xf32>
    %cst_192 = arith.constant dense<0.000000e+00> : vector<16x32xf32>
    %717 = tpu.matmul %713, %716, %cst_192 {dimension_numbers = #tpu.dot_dimension_numbers<[1], [0], [0], [1], [0, 0, 1, 1], [], []>} : vector<16x32xf32>, vector<32x32xf32>, vector<16x32xf32> -> vector<16x32xf32>
    %718 = vector.extract_strided_slice %715 {offsets = [0, 0], sizes = [1, 32], strides = [1, 1]} : vector<1x96xf32> to vector<1x32xf32>
    %719 = vector.broadcast %718 : vector<1x32xf32> to vector<16x32xf32>
    %720 = arith.addf %717, %719 : vector<16x32xf32>
    %721 = vector.extract_strided_slice %714 {offsets = [0, 32], sizes = [32, 64], strides = [1, 1]} : vector<32x96xf32> to vector<32x64xf32>
    %cst_193 = arith.constant dense<0.000000e+00> : vector<20x64xf32>
    %722 = tpu.matmul %1, %721, %cst_193 {dimension_numbers = #tpu.dot_dimension_numbers<[1], [0], [0], [1], [0, 0, 1, 1], [], []>} : vector<20x32xf32>, vector<32x64xf32>, vector<20x64xf32> -> vector<20x64xf32>
    %723 = vector.extract_strided_slice %715 {offsets = [0, 32], sizes = [1, 64], strides = [1, 1]} : vector<1x96xf32> to vector<1x64xf32>
    %724 = vector.broadcast %723 : vector<1x64xf32> to vector<20x64xf32>
    %725 = arith.addf %722, %724 : vector<20x64xf32>
    %726 = vector.extract_strided_slice %725 {offsets = [0, 0], sizes = [20, 32], strides = [1, 1]} : vector<20x64xf32> to vector<20x32xf32>
    %727 = vector.extract_strided_slice %725 {offsets = [0, 32], sizes = [20, 32], strides = [1, 1]} : vector<20x64xf32> to vector<20x32xf32>
    %c408 = arith.constant 408 : index
    %c0_194 = arith.constant 0 : index
    %728 = vector.load %arg4[%c408, %c0_194] : memref<592x128xf32, #tpu.memory_space<vmem>>, vector<32x32xf32>
    %c440 = arith.constant 440 : index
    %c0_195 = arith.constant 0 : index
    %729 = vector.load %arg4[%c440, %c0_195] : memref<592x128xf32, #tpu.memory_space<vmem>>, vector<1x32xf32>
    %730 = vector.extract_strided_slice %720 {offsets = [0, 0], sizes = [8, 32], strides = [1, 1]} : vector<16x32xf32> to vector<8x32xf32>
    %731 = vector.extract_strided_slice %726 {offsets = [0, 0], sizes = [10, 32], strides = [1, 1]} : vector<20x32xf32> to vector<10x32xf32>
    %732 = vector.extract_strided_slice %727 {offsets = [0, 0], sizes = [10, 32], strides = [1, 1]} : vector<20x32xf32> to vector<10x32xf32>
    %733 = vector.extract_strided_slice %730 {offsets = [0, 0], sizes = [8, 8], strides = [1, 1]} : vector<8x32xf32> to vector<8x8xf32>
    %734 = vector.extract_strided_slice %731 {offsets = [0, 0], sizes = [10, 8], strides = [1, 1]} : vector<10x32xf32> to vector<10x8xf32>
    %cst_196 = arith.constant dense<0.000000e+00> : vector<8x10xf32>
    %735 = tpu.matmul %733, %734, %cst_196 {dimension_numbers = #tpu.dot_dimension_numbers<[1], [1], [0], [0], [0, 0, 1, 0], [], []>} : vector<8x8xf32>, vector<10x8xf32>, vector<8x10xf32> -> vector<8x10xf32>
    %736 = arith.addf %735, %4 : vector<8x10xf32>
    %cst_197 = arith.constant dense<0xFF800000> : vector<8xf32>
    %737 = vector.multi_reduction <maximumf>, %736, %cst_197 [1] : vector<8x10xf32> to vector<8xf32>
    %738 = vector.shape_cast %737 : vector<8xf32> to vector<8x1xf32>
    %739 = vector.broadcast %738 : vector<8x1xf32> to vector<8x10xf32>
    %740 = arith.subf %736, %739 : vector<8x10xf32>
    %741 = math.exp %740 : vector<8x10xf32>
    %cst_198 = arith.constant dense<0.000000e+00> : vector<8xf32>
    %742 = vector.multi_reduction <add>, %741, %cst_198 [1] : vector<8x10xf32> to vector<8xf32>
    %743 = vector.shape_cast %742 : vector<8xf32> to vector<8x1xf32>
    %744 = tpu.reciprocal %743 {approx = true} : vector<8x1xf32> -> vector<8x1xf32>
    %745 = arith.mulf %743, %744 : vector<8x1xf32>
    %cst_199 = arith.constant 2.000000e+00 : f32
    %746 = vector.broadcast %cst_199 : f32 to vector<8x1xf32>
    %747 = arith.subf %746, %745 : vector<8x1xf32>
    %748 = arith.mulf %744, %747 : vector<8x1xf32>
    %749 = vector.broadcast %748 : vector<8x1xf32> to vector<8x10xf32>
    %750 = arith.mulf %741, %749 : vector<8x10xf32>
    %751 = vector.extract_strided_slice %732 {offsets = [0, 0], sizes = [10, 8], strides = [1, 1]} : vector<10x32xf32> to vector<10x8xf32>
    %cst_200 = arith.constant dense<0.000000e+00> : vector<8x8xf32>
    %752 = tpu.matmul %750, %751, %cst_200 {dimension_numbers = #tpu.dot_dimension_numbers<[1], [0], [0], [1], [0, 0, 1, 1], [], []>} : vector<8x10xf32>, vector<10x8xf32>, vector<8x8xf32> -> vector<8x8xf32>
    %753 = vector.extract_strided_slice %730 {offsets = [0, 8], sizes = [8, 8], strides = [1, 1]} : vector<8x32xf32> to vector<8x8xf32>
    %754 = vector.extract_strided_slice %731 {offsets = [0, 8], sizes = [10, 8], strides = [1, 1]} : vector<10x32xf32> to vector<10x8xf32>
    %cst_201 = arith.constant dense<0.000000e+00> : vector<8x10xf32>
    %755 = tpu.matmul %753, %754, %cst_201 {dimension_numbers = #tpu.dot_dimension_numbers<[1], [1], [0], [0], [0, 0, 1, 0], [], []>} : vector<8x8xf32>, vector<10x8xf32>, vector<8x10xf32> -> vector<8x10xf32>
    %756 = arith.addf %755, %4 : vector<8x10xf32>
    %cst_202 = arith.constant dense<0xFF800000> : vector<8xf32>
    %757 = vector.multi_reduction <maximumf>, %756, %cst_202 [1] : vector<8x10xf32> to vector<8xf32>
    %758 = vector.shape_cast %757 : vector<8xf32> to vector<8x1xf32>
    %759 = vector.broadcast %758 : vector<8x1xf32> to vector<8x10xf32>
    %760 = arith.subf %756, %759 : vector<8x10xf32>
    %761 = math.exp %760 : vector<8x10xf32>
    %cst_203 = arith.constant dense<0.000000e+00> : vector<8xf32>
    %762 = vector.multi_reduction <add>, %761, %cst_203 [1] : vector<8x10xf32> to vector<8xf32>
    %763 = vector.shape_cast %762 : vector<8xf32> to vector<8x1xf32>
    %764 = tpu.reciprocal %763 {approx = true} : vector<8x1xf32> -> vector<8x1xf32>
    %765 = arith.mulf %763, %764 : vector<8x1xf32>
    %cst_204 = arith.constant 2.000000e+00 : f32
    %766 = vector.broadcast %cst_204 : f32 to vector<8x1xf32>
    %767 = arith.subf %766, %765 : vector<8x1xf32>
    %768 = arith.mulf %764, %767 : vector<8x1xf32>
    %769 = vector.broadcast %768 : vector<8x1xf32> to vector<8x10xf32>
    %770 = arith.mulf %761, %769 : vector<8x10xf32>
    %771 = vector.extract_strided_slice %732 {offsets = [0, 8], sizes = [10, 8], strides = [1, 1]} : vector<10x32xf32> to vector<10x8xf32>
    %cst_205 = arith.constant dense<0.000000e+00> : vector<8x8xf32>
    %772 = tpu.matmul %770, %771, %cst_205 {dimension_numbers = #tpu.dot_dimension_numbers<[1], [0], [0], [1], [0, 0, 1, 1], [], []>} : vector<8x10xf32>, vector<10x8xf32>, vector<8x8xf32> -> vector<8x8xf32>
    %773 = vector.extract_strided_slice %730 {offsets = [0, 16], sizes = [8, 8], strides = [1, 1]} : vector<8x32xf32> to vector<8x8xf32>
    %774 = vector.extract_strided_slice %731 {offsets = [0, 16], sizes = [10, 8], strides = [1, 1]} : vector<10x32xf32> to vector<10x8xf32>
    %cst_206 = arith.constant dense<0.000000e+00> : vector<8x10xf32>
    %775 = tpu.matmul %773, %774, %cst_206 {dimension_numbers = #tpu.dot_dimension_numbers<[1], [1], [0], [0], [0, 0, 1, 0], [], []>} : vector<8x8xf32>, vector<10x8xf32>, vector<8x10xf32> -> vector<8x10xf32>
    %776 = arith.addf %775, %4 : vector<8x10xf32>
    %cst_207 = arith.constant dense<0xFF800000> : vector<8xf32>
    %777 = vector.multi_reduction <maximumf>, %776, %cst_207 [1] : vector<8x10xf32> to vector<8xf32>
    %778 = vector.shape_cast %777 : vector<8xf32> to vector<8x1xf32>
    %779 = vector.broadcast %778 : vector<8x1xf32> to vector<8x10xf32>
    %780 = arith.subf %776, %779 : vector<8x10xf32>
    %781 = math.exp %780 : vector<8x10xf32>
    %cst_208 = arith.constant dense<0.000000e+00> : vector<8xf32>
    %782 = vector.multi_reduction <add>, %781, %cst_208 [1] : vector<8x10xf32> to vector<8xf32>
    %783 = vector.shape_cast %782 : vector<8xf32> to vector<8x1xf32>
    %784 = tpu.reciprocal %783 {approx = true} : vector<8x1xf32> -> vector<8x1xf32>
    %785 = arith.mulf %783, %784 : vector<8x1xf32>
    %cst_209 = arith.constant 2.000000e+00 : f32
    %786 = vector.broadcast %cst_209 : f32 to vector<8x1xf32>
    %787 = arith.subf %786, %785 : vector<8x1xf32>
    %788 = arith.mulf %784, %787 : vector<8x1xf32>
    %789 = vector.broadcast %788 : vector<8x1xf32> to vector<8x10xf32>
    %790 = arith.mulf %781, %789 : vector<8x10xf32>
    %791 = vector.extract_strided_slice %732 {offsets = [0, 16], sizes = [10, 8], strides = [1, 1]} : vector<10x32xf32> to vector<10x8xf32>
    %cst_210 = arith.constant dense<0.000000e+00> : vector<8x8xf32>
    %792 = tpu.matmul %790, %791, %cst_210 {dimension_numbers = #tpu.dot_dimension_numbers<[1], [0], [0], [1], [0, 0, 1, 1], [], []>} : vector<8x10xf32>, vector<10x8xf32>, vector<8x8xf32> -> vector<8x8xf32>
    %793 = vector.extract_strided_slice %730 {offsets = [0, 24], sizes = [8, 8], strides = [1, 1]} : vector<8x32xf32> to vector<8x8xf32>
    %794 = vector.extract_strided_slice %731 {offsets = [0, 24], sizes = [10, 8], strides = [1, 1]} : vector<10x32xf32> to vector<10x8xf32>
    %cst_211 = arith.constant dense<0.000000e+00> : vector<8x10xf32>
    %795 = tpu.matmul %793, %794, %cst_211 {dimension_numbers = #tpu.dot_dimension_numbers<[1], [1], [0], [0], [0, 0, 1, 0], [], []>} : vector<8x8xf32>, vector<10x8xf32>, vector<8x10xf32> -> vector<8x10xf32>
    %796 = arith.addf %795, %4 : vector<8x10xf32>
    %cst_212 = arith.constant dense<0xFF800000> : vector<8xf32>
    %797 = vector.multi_reduction <maximumf>, %796, %cst_212 [1] : vector<8x10xf32> to vector<8xf32>
    %798 = vector.shape_cast %797 : vector<8xf32> to vector<8x1xf32>
    %799 = vector.broadcast %798 : vector<8x1xf32> to vector<8x10xf32>
    %800 = arith.subf %796, %799 : vector<8x10xf32>
    %801 = math.exp %800 : vector<8x10xf32>
    %cst_213 = arith.constant dense<0.000000e+00> : vector<8xf32>
    %802 = vector.multi_reduction <add>, %801, %cst_213 [1] : vector<8x10xf32> to vector<8xf32>
    %803 = vector.shape_cast %802 : vector<8xf32> to vector<8x1xf32>
    %804 = tpu.reciprocal %803 {approx = true} : vector<8x1xf32> -> vector<8x1xf32>
    %805 = arith.mulf %803, %804 : vector<8x1xf32>
    %cst_214 = arith.constant 2.000000e+00 : f32
    %806 = vector.broadcast %cst_214 : f32 to vector<8x1xf32>
    %807 = arith.subf %806, %805 : vector<8x1xf32>
    %808 = arith.mulf %804, %807 : vector<8x1xf32>
    %809 = vector.broadcast %808 : vector<8x1xf32> to vector<8x10xf32>
    %810 = arith.mulf %801, %809 : vector<8x10xf32>
    %811 = vector.extract_strided_slice %732 {offsets = [0, 24], sizes = [10, 8], strides = [1, 1]} : vector<10x32xf32> to vector<10x8xf32>
    %cst_215 = arith.constant dense<0.000000e+00> : vector<8x8xf32>
    %812 = tpu.matmul %810, %811, %cst_215 {dimension_numbers = #tpu.dot_dimension_numbers<[1], [0], [0], [1], [0, 0, 1, 1], [], []>} : vector<8x10xf32>, vector<10x8xf32>, vector<8x8xf32> -> vector<8x8xf32>
    %813 = tpu.concatenate %752, %772, %792, %812 in 1 : vector<8x8xf32>, vector<8x8xf32>, vector<8x8xf32>, vector<8x8xf32> -> vector<8x32xf32>
    %814 = vector.extract_strided_slice %720 {offsets = [8, 0], sizes = [8, 32], strides = [1, 1]} : vector<16x32xf32> to vector<8x32xf32>
    %815 = vector.extract_strided_slice %726 {offsets = [10, 0], sizes = [10, 32], strides = [1, 1]} : vector<20x32xf32> to vector<10x32xf32>
    %816 = vector.extract_strided_slice %727 {offsets = [10, 0], sizes = [10, 32], strides = [1, 1]} : vector<20x32xf32> to vector<10x32xf32>
    %817 = vector.extract_strided_slice %814 {offsets = [0, 0], sizes = [8, 8], strides = [1, 1]} : vector<8x32xf32> to vector<8x8xf32>
    %818 = vector.extract_strided_slice %815 {offsets = [0, 0], sizes = [10, 8], strides = [1, 1]} : vector<10x32xf32> to vector<10x8xf32>
    %cst_216 = arith.constant dense<0.000000e+00> : vector<8x10xf32>
    %819 = tpu.matmul %817, %818, %cst_216 {dimension_numbers = #tpu.dot_dimension_numbers<[1], [1], [0], [0], [0, 0, 1, 0], [], []>} : vector<8x8xf32>, vector<10x8xf32>, vector<8x10xf32> -> vector<8x10xf32>
    %820 = arith.addf %819, %6 : vector<8x10xf32>
    %cst_217 = arith.constant dense<0xFF800000> : vector<8xf32>
    %821 = vector.multi_reduction <maximumf>, %820, %cst_217 [1] : vector<8x10xf32> to vector<8xf32>
    %822 = vector.shape_cast %821 : vector<8xf32> to vector<8x1xf32>
    %823 = vector.broadcast %822 : vector<8x1xf32> to vector<8x10xf32>
    %824 = arith.subf %820, %823 : vector<8x10xf32>
    %825 = math.exp %824 : vector<8x10xf32>
    %cst_218 = arith.constant dense<0.000000e+00> : vector<8xf32>
    %826 = vector.multi_reduction <add>, %825, %cst_218 [1] : vector<8x10xf32> to vector<8xf32>
    %827 = vector.shape_cast %826 : vector<8xf32> to vector<8x1xf32>
    %828 = tpu.reciprocal %827 {approx = true} : vector<8x1xf32> -> vector<8x1xf32>
    %829 = arith.mulf %827, %828 : vector<8x1xf32>
    %cst_219 = arith.constant 2.000000e+00 : f32
    %830 = vector.broadcast %cst_219 : f32 to vector<8x1xf32>
    %831 = arith.subf %830, %829 : vector<8x1xf32>
    %832 = arith.mulf %828, %831 : vector<8x1xf32>
    %833 = vector.broadcast %832 : vector<8x1xf32> to vector<8x10xf32>
    %834 = arith.mulf %825, %833 : vector<8x10xf32>
    %835 = vector.extract_strided_slice %816 {offsets = [0, 0], sizes = [10, 8], strides = [1, 1]} : vector<10x32xf32> to vector<10x8xf32>
    %cst_220 = arith.constant dense<0.000000e+00> : vector<8x8xf32>
    %836 = tpu.matmul %834, %835, %cst_220 {dimension_numbers = #tpu.dot_dimension_numbers<[1], [0], [0], [1], [0, 0, 1, 1], [], []>} : vector<8x10xf32>, vector<10x8xf32>, vector<8x8xf32> -> vector<8x8xf32>
    %837 = vector.extract_strided_slice %814 {offsets = [0, 8], sizes = [8, 8], strides = [1, 1]} : vector<8x32xf32> to vector<8x8xf32>
    %838 = vector.extract_strided_slice %815 {offsets = [0, 8], sizes = [10, 8], strides = [1, 1]} : vector<10x32xf32> to vector<10x8xf32>
    %cst_221 = arith.constant dense<0.000000e+00> : vector<8x10xf32>
    %839 = tpu.matmul %837, %838, %cst_221 {dimension_numbers = #tpu.dot_dimension_numbers<[1], [1], [0], [0], [0, 0, 1, 0], [], []>} : vector<8x8xf32>, vector<10x8xf32>, vector<8x10xf32> -> vector<8x10xf32>
    %840 = arith.addf %839, %6 : vector<8x10xf32>
    %cst_222 = arith.constant dense<0xFF800000> : vector<8xf32>
    %841 = vector.multi_reduction <maximumf>, %840, %cst_222 [1] : vector<8x10xf32> to vector<8xf32>
    %842 = vector.shape_cast %841 : vector<8xf32> to vector<8x1xf32>
    %843 = vector.broadcast %842 : vector<8x1xf32> to vector<8x10xf32>
    %844 = arith.subf %840, %843 : vector<8x10xf32>
    %845 = math.exp %844 : vector<8x10xf32>
    %cst_223 = arith.constant dense<0.000000e+00> : vector<8xf32>
    %846 = vector.multi_reduction <add>, %845, %cst_223 [1] : vector<8x10xf32> to vector<8xf32>
    %847 = vector.shape_cast %846 : vector<8xf32> to vector<8x1xf32>
    %848 = tpu.reciprocal %847 {approx = true} : vector<8x1xf32> -> vector<8x1xf32>
    %849 = arith.mulf %847, %848 : vector<8x1xf32>
    %cst_224 = arith.constant 2.000000e+00 : f32
    %850 = vector.broadcast %cst_224 : f32 to vector<8x1xf32>
    %851 = arith.subf %850, %849 : vector<8x1xf32>
    %852 = arith.mulf %848, %851 : vector<8x1xf32>
    %853 = vector.broadcast %852 : vector<8x1xf32> to vector<8x10xf32>
    %854 = arith.mulf %845, %853 : vector<8x10xf32>
    %855 = vector.extract_strided_slice %816 {offsets = [0, 8], sizes = [10, 8], strides = [1, 1]} : vector<10x32xf32> to vector<10x8xf32>
    %cst_225 = arith.constant dense<0.000000e+00> : vector<8x8xf32>
    %856 = tpu.matmul %854, %855, %cst_225 {dimension_numbers = #tpu.dot_dimension_numbers<[1], [0], [0], [1], [0, 0, 1, 1], [], []>} : vector<8x10xf32>, vector<10x8xf32>, vector<8x8xf32> -> vector<8x8xf32>
    %857 = vector.extract_strided_slice %814 {offsets = [0, 16], sizes = [8, 8], strides = [1, 1]} : vector<8x32xf32> to vector<8x8xf32>
    %858 = vector.extract_strided_slice %815 {offsets = [0, 16], sizes = [10, 8], strides = [1, 1]} : vector<10x32xf32> to vector<10x8xf32>
    %cst_226 = arith.constant dense<0.000000e+00> : vector<8x10xf32>
    %859 = tpu.matmul %857, %858, %cst_226 {dimension_numbers = #tpu.dot_dimension_numbers<[1], [1], [0], [0], [0, 0, 1, 0], [], []>} : vector<8x8xf32>, vector<10x8xf32>, vector<8x10xf32> -> vector<8x10xf32>
    %860 = arith.addf %859, %6 : vector<8x10xf32>
    %cst_227 = arith.constant dense<0xFF800000> : vector<8xf32>
    %861 = vector.multi_reduction <maximumf>, %860, %cst_227 [1] : vector<8x10xf32> to vector<8xf32>
    %862 = vector.shape_cast %861 : vector<8xf32> to vector<8x1xf32>
    %863 = vector.broadcast %862 : vector<8x1xf32> to vector<8x10xf32>
    %864 = arith.subf %860, %863 : vector<8x10xf32>
    %865 = math.exp %864 : vector<8x10xf32>
    %cst_228 = arith.constant dense<0.000000e+00> : vector<8xf32>
    %866 = vector.multi_reduction <add>, %865, %cst_228 [1] : vector<8x10xf32> to vector<8xf32>
    %867 = vector.shape_cast %866 : vector<8xf32> to vector<8x1xf32>
    %868 = tpu.reciprocal %867 {approx = true} : vector<8x1xf32> -> vector<8x1xf32>
    %869 = arith.mulf %867, %868 : vector<8x1xf32>
    %cst_229 = arith.constant 2.000000e+00 : f32
    %870 = vector.broadcast %cst_229 : f32 to vector<8x1xf32>
    %871 = arith.subf %870, %869 : vector<8x1xf32>
    %872 = arith.mulf %868, %871 : vector<8x1xf32>
    %873 = vector.broadcast %872 : vector<8x1xf32> to vector<8x10xf32>
    %874 = arith.mulf %865, %873 : vector<8x10xf32>
    %875 = vector.extract_strided_slice %816 {offsets = [0, 16], sizes = [10, 8], strides = [1, 1]} : vector<10x32xf32> to vector<10x8xf32>
    %cst_230 = arith.constant dense<0.000000e+00> : vector<8x8xf32>
    %876 = tpu.matmul %874, %875, %cst_230 {dimension_numbers = #tpu.dot_dimension_numbers<[1], [0], [0], [1], [0, 0, 1, 1], [], []>} : vector<8x10xf32>, vector<10x8xf32>, vector<8x8xf32> -> vector<8x8xf32>
    %877 = vector.extract_strided_slice %814 {offsets = [0, 24], sizes = [8, 8], strides = [1, 1]} : vector<8x32xf32> to vector<8x8xf32>
    %878 = vector.extract_strided_slice %815 {offsets = [0, 24], sizes = [10, 8], strides = [1, 1]} : vector<10x32xf32> to vector<10x8xf32>
    %cst_231 = arith.constant dense<0.000000e+00> : vector<8x10xf32>
    %879 = tpu.matmul %877, %878, %cst_231 {dimension_numbers = #tpu.dot_dimension_numbers<[1], [1], [0], [0], [0, 0, 1, 0], [], []>} : vector<8x8xf32>, vector<10x8xf32>, vector<8x10xf32> -> vector<8x10xf32>
    %880 = arith.addf %879, %6 : vector<8x10xf32>
    %cst_232 = arith.constant dense<0xFF800000> : vector<8xf32>
    %881 = vector.multi_reduction <maximumf>, %880, %cst_232 [1] : vector<8x10xf32> to vector<8xf32>
    %882 = vector.shape_cast %881 : vector<8xf32> to vector<8x1xf32>
    %883 = vector.broadcast %882 : vector<8x1xf32> to vector<8x10xf32>
    %884 = arith.subf %880, %883 : vector<8x10xf32>
    %885 = math.exp %884 : vector<8x10xf32>
    %cst_233 = arith.constant dense<0.000000e+00> : vector<8xf32>
    %886 = vector.multi_reduction <add>, %885, %cst_233 [1] : vector<8x10xf32> to vector<8xf32>
    %887 = vector.shape_cast %886 : vector<8xf32> to vector<8x1xf32>
    %888 = tpu.reciprocal %887 {approx = true} : vector<8x1xf32> -> vector<8x1xf32>
    %889 = arith.mulf %887, %888 : vector<8x1xf32>
    %cst_234 = arith.constant 2.000000e+00 : f32
    %890 = vector.broadcast %cst_234 : f32 to vector<8x1xf32>
    %891 = arith.subf %890, %889 : vector<8x1xf32>
    %892 = arith.mulf %888, %891 : vector<8x1xf32>
    %893 = vector.broadcast %892 : vector<8x1xf32> to vector<8x10xf32>
    %894 = arith.mulf %885, %893 : vector<8x10xf32>
    %895 = vector.extract_strided_slice %816 {offsets = [0, 24], sizes = [10, 8], strides = [1, 1]} : vector<10x32xf32> to vector<10x8xf32>
    %cst_235 = arith.constant dense<0.000000e+00> : vector<8x8xf32>
    %896 = tpu.matmul %894, %895, %cst_235 {dimension_numbers = #tpu.dot_dimension_numbers<[1], [0], [0], [1], [0, 0, 1, 1], [], []>} : vector<8x10xf32>, vector<10x8xf32>, vector<8x8xf32> -> vector<8x8xf32>
    %897 = tpu.concatenate %836, %856, %876, %896 in 1 : vector<8x8xf32>, vector<8x8xf32>, vector<8x8xf32>, vector<8x8xf32> -> vector<8x32xf32>
    %898 = tpu.concatenate %813, %897 in 0 : vector<8x32xf32>, vector<8x32xf32> -> vector<16x32xf32>
    %cst_236 = arith.constant dense<0.000000e+00> : vector<16x32xf32>
    %899 = tpu.matmul %898, %728, %cst_236 {dimension_numbers = #tpu.dot_dimension_numbers<[1], [0], [0], [1], [0, 0, 1, 1], [], []>} : vector<16x32xf32>, vector<32x32xf32>, vector<16x32xf32> -> vector<16x32xf32>
    %900 = vector.broadcast %729 : vector<1x32xf32> to vector<16x32xf32>
    %901 = arith.addf %899, %900 : vector<16x32xf32>
    %902 = arith.addf %686, %901 : vector<16x32xf32>
    %903 = vector.extract_strided_slice %475 {offsets = [2, 0], sizes = [1, 32], strides = [1, 1]} : vector<3x32xf32> to vector<1x32xf32>
    %904 = vector.extract_strided_slice %476 {offsets = [2, 0], sizes = [1, 32], strides = [1, 1]} : vector<3x32xf32> to vector<1x32xf32>
    %cst_237 = arith.constant dense<0.000000e+00> : vector<16xf32>
    %905 = vector.multi_reduction <add>, %902, %cst_237 [1] : vector<16x32xf32> to vector<16xf32>
    %906 = vector.shape_cast %905 : vector<16xf32> to vector<16x1xf32>
    %cst_238 = arith.constant 3.200000e+01 : f32
    %907 = vector.broadcast %cst_238 : f32 to vector<16x1xf32>
    %908 = arith.divf %906, %907 : vector<16x1xf32>
    %909 = vector.broadcast %908 : vector<16x1xf32> to vector<16x32xf32>
    %910 = arith.subf %902, %909 : vector<16x32xf32>
    %911 = arith.mulf %910, %910 : vector<16x32xf32>
    %cst_239 = arith.constant dense<0.000000e+00> : vector<16xf32>
    %912 = vector.multi_reduction <add>, %911, %cst_239 [1] : vector<16x32xf32> to vector<16xf32>
    %913 = vector.shape_cast %912 : vector<16xf32> to vector<16x1xf32>
    %cst_240 = arith.constant 0.0322580636 : f32
    %914 = vector.broadcast %cst_240 : f32 to vector<16x1xf32>
    %915 = arith.mulf %913, %914 : vector<16x1xf32>
    %916 = math.sqrt %915 : vector<16x1xf32>
    %917 = vector.broadcast %903 : vector<1x32xf32> to vector<16x32xf32>
    %918 = arith.mulf %917, %910 : vector<16x32xf32>
    %cst_241 = arith.constant 9.99999997E-7 : f32
    %919 = vector.broadcast %cst_241 : f32 to vector<16x1xf32>
    %920 = arith.addf %916, %919 : vector<16x1xf32>
    %921 = tpu.reciprocal %920 {approx = true} : vector<16x1xf32> -> vector<16x1xf32>
    %922 = arith.mulf %920, %921 : vector<16x1xf32>
    %cst_242 = arith.constant 2.000000e+00 : f32
    %923 = vector.broadcast %cst_242 : f32 to vector<16x1xf32>
    %924 = arith.subf %923, %922 : vector<16x1xf32>
    %925 = arith.mulf %921, %924 : vector<16x1xf32>
    %926 = vector.broadcast %925 : vector<16x1xf32> to vector<16x32xf32>
    %927 = arith.mulf %918, %926 : vector<16x32xf32>
    %928 = vector.broadcast %904 : vector<1x32xf32> to vector<16x32xf32>
    %929 = arith.addf %927, %928 : vector<16x32xf32>
    %c448 = arith.constant 448 : index
    %c0_243 = arith.constant 0 : index
    %930 = vector.load %arg4[%c448, %c0_243] : memref<592x128xf32, #tpu.memory_space<vmem>>, vector<32x64xf32>
    %cst_244 = arith.constant dense<0.000000e+00> : vector<16x64xf32>
    %931 = tpu.matmul %929, %930, %cst_244 {dimension_numbers = #tpu.dot_dimension_numbers<[1], [0], [0], [1], [0, 0, 1, 1], [], []>} : vector<16x32xf32>, vector<32x64xf32>, vector<16x64xf32> -> vector<16x64xf32>
    %c480 = arith.constant 480 : index
    %c0_245 = arith.constant 0 : index
    %932 = vector.load %arg4[%c480, %c0_245] : memref<592x128xf32, #tpu.memory_space<vmem>>, vector<1x64xf32>
    %933 = vector.broadcast %932 : vector<1x64xf32> to vector<16x64xf32>
    %934 = arith.addf %931, %933 : vector<16x64xf32>
    %cst_246 = arith.constant 0.000000e+00 : f32
    %935 = vector.broadcast %cst_246 : f32 to vector<16x64xf32>
    %936 = arith.maximumf %934, %935 : vector<16x64xf32>
    %c488 = arith.constant 488 : index
    %c0_247 = arith.constant 0 : index
    %937 = vector.load %arg4[%c488, %c0_247] : memref<592x128xf32, #tpu.memory_space<vmem>>, vector<64x32xf32>
    %cst_248 = arith.constant dense<0.000000e+00> : vector<16x32xf32>
    %938 = tpu.matmul %936, %937, %cst_248 {dimension_numbers = #tpu.dot_dimension_numbers<[1], [0], [0], [1], [0, 0, 1, 1], [], []>} : vector<16x64xf32>, vector<64x32xf32>, vector<16x32xf32> -> vector<16x32xf32>
    %939 = arith.addf %902, %938 : vector<16x32xf32>
    %c552 = arith.constant 552 : index
    %c0_249 = arith.constant 0 : index
    %940 = vector.load %arg4[%c552, %c0_249] : memref<592x128xf32, #tpu.memory_space<vmem>>, vector<1x32xf32>
    %941 = vector.broadcast %940 : vector<1x32xf32> to vector<16x32xf32>
    %942 = arith.addf %939, %941 : vector<16x32xf32>
    %c576 = arith.constant 576 : index
    %c0_250 = arith.constant 0 : index
    %943 = vector.load %arg4[%c576, %c0_250] : memref<592x128xf32, #tpu.memory_space<vmem>>, vector<1x32xf32>
    %c584 = arith.constant 584 : index
    %c0_251 = arith.constant 0 : index
    %944 = vector.load %arg4[%c584, %c0_251] : memref<592x128xf32, #tpu.memory_space<vmem>>, vector<1x32xf32>
    %cst_252 = arith.constant dense<0.000000e+00> : vector<16xf32>
    %945 = vector.multi_reduction <add>, %942, %cst_252 [1] : vector<16x32xf32> to vector<16xf32>
    %946 = vector.shape_cast %945 : vector<16xf32> to vector<16x1xf32>
    %cst_253 = arith.constant 3.200000e+01 : f32
    %947 = vector.broadcast %cst_253 : f32 to vector<16x1xf32>
    %948 = arith.divf %946, %947 : vector<16x1xf32>
    %949 = vector.broadcast %948 : vector<16x1xf32> to vector<16x32xf32>
    %950 = arith.subf %942, %949 : vector<16x32xf32>
    %951 = arith.mulf %950, %950 : vector<16x32xf32>
    %cst_254 = arith.constant dense<0.000000e+00> : vector<16xf32>
    %952 = vector.multi_reduction <add>, %951, %cst_254 [1] : vector<16x32xf32> to vector<16xf32>
    %953 = vector.shape_cast %952 : vector<16xf32> to vector<16x1xf32>
    %cst_255 = arith.constant 0.0322580636 : f32
    %954 = vector.broadcast %cst_255 : f32 to vector<16x1xf32>
    %955 = arith.mulf %953, %954 : vector<16x1xf32>
    %956 = math.sqrt %955 : vector<16x1xf32>
    %957 = vector.broadcast %943 : vector<1x32xf32> to vector<16x32xf32>
    %958 = arith.mulf %957, %950 : vector<16x32xf32>
    %cst_256 = arith.constant 9.99999997E-7 : f32
    %959 = vector.broadcast %cst_256 : f32 to vector<16x1xf32>
    %960 = arith.addf %956, %959 : vector<16x1xf32>
    %961 = tpu.reciprocal %960 {approx = true} : vector<16x1xf32> -> vector<16x1xf32>
    %962 = arith.mulf %960, %961 : vector<16x1xf32>
    %cst_257 = arith.constant 2.000000e+00 : f32
    %963 = vector.broadcast %cst_257 : f32 to vector<16x1xf32>
    %964 = arith.subf %963, %962 : vector<16x1xf32>
    %965 = arith.mulf %961, %964 : vector<16x1xf32>
    %966 = vector.broadcast %965 : vector<16x1xf32> to vector<16x32xf32>
    %967 = arith.mulf %958, %966 : vector<16x32xf32>
    %968 = vector.broadcast %944 : vector<1x32xf32> to vector<16x32xf32>
    %969 = arith.addf %967, %968 : vector<16x32xf32>
    %c0_258 = arith.constant 0 : index
    %c0_259 = arith.constant 0 : index
    %970 = vector.load %arg5[%c0_258, %c0_259] : memref<16x32xf32, #tpu.memory_space<vmem>>, vector<16x32xf32>
    tpu.vector_store %arg5[%c0_258, %c0_259], %969 {strides = array<i32>} : memref<16x32xf32, #tpu.memory_space<vmem>>, vector<16x32xf32>,
    return
  }
}

</mosaic_0001>

<llo_original>
// kernel: tpu_custom_call.1
$region0: #{tpu_custom_call.1}
  #allocation0 [shape = 'u32[]', space=smem, size = 0x4, offset = 0x4, fixed_abs, tag = 'smem constant byte address 0x4 - core index']
  #allocation1 [shape = 'u32[144,128]{1,0:T(1,128)}', space=vmem, size = 0x12000, scoped, tag = 'internal scratch']
  %s0 = inlined_call_operand.hbm [shape: f32[16,32], index: 0, kind: input, shape index: {}]
  %s1 = inlined_call_operand.hbm [shape: f32[20,32], index: 1, kind: input, shape index: {}]
  %s2 = inlined_call_operand.hbm [shape: f32[8,8], index: 2, kind: input, shape index: {}]
  %s3 = inlined_call_operand.hbm [shape: f32[2,8,10], index: 3, kind: input, shape index: {}]
  %s4 = inlined_call_operand.hbm [shape: f32[592,128], index: 4, kind: input, shape index: {}]
  %s5 = inlined_call_operand.hbm [shape: f32[16,32], index: 5, kind: output, shape index: {}]
  %s6 = sld [smem:[#allocation0]]
  $region50: #{tpu_custom_call.1} parent=0
    _
  %s8 = ssub.s32 1, %s6
  %s9 = scalar_select 0, %s8, %s6
  $region1: #{tpu_custom_call.1} parent=0
    #allocation2 [shape = 'u8[8192]{0}', space=vmem, size = 0x2000, scoped, tag = 'input window, operand 0, single buffered']
    #allocation3 [shape = 's32[1]{0}', space=sflag, size = 0x4, scoped, tag = 'scoped memory for tpu_custom_call.1']
    #allocation4 [shape = 's32[1]{0}', space=sflag, size = 0x4, scoped, tag = 'scoped memory for tpu_custom_call.1']
    #allocation5 [shape = 'u8[12288]{0}', space=vmem, size = 0x3000, scoped, tag = 'input window, operand 1, single buffered']
    #allocation6 [shape = 's32[1]{0}', space=sflag, size = 0x4, scoped, tag = 'scoped memory for tpu_custom_call.1']
    #allocation7 [shape = 'u8[4096]{0}', space=vmem, size = 0x1000, scoped, tag = 'input window, operand 2, single buffered']
    #allocation8 [shape = 'u8[8192]{0}', space=vmem, size = 0x2000, scoped, tag = 'input window, operand 3, single buffered']
    #allocation9 [shape = 's32[1]{0}', space=sflag, size = 0x4, scoped, tag = 'scoped memory for tpu_custom_call.1']
    #allocation10 [shape = 'u8[303104]{0}', space=vmem, size = 0x4a000, scoped, tag = 'input window, operand 4, single buffered']
    #allocation11 [shape = 'u8[8192]{0}', space=vmem, size = 0x2000, scoped, tag = 'output window, operand 0, single buffered']
    %10 = vsyncpa [#allocation3], 0
    %11 = vsyncpa [#allocation6], 0
    %12 = vsyncpa [#allocation9], 0
    %13 = vsyncpa [#allocation4], 0
    // Predicated region
    $region2: #{tpu_custom_call.1} parent=1 // pred_check
      _
    $region3: #{tpu_custom_call.1} parent=1 // pred_check_branch
      %15 = sbr.rel (0) target = $region5
    $region4: #{tpu_custom_call.1} parent=1 // pred_region
      %s17 = ssub.s32 256, 256
      %18 = vsyncadd [#allocation3], %s17
      %s19 = sshll.u32 [#allocation2], 4
      %s20 = int_to_ptr.vmem [resolvable:$true] %s19
      %25 = dma.hbm_to_vmem [thread:$0]  %s0, 256, %s20, [#allocation3], 128, 128, 8
    $region5: #{tpu_custom_call.1} parent=1 // pred_fallthru
      _
    // Predicated region
    $region6: #{tpu_custom_call.1} parent=1 // pred_check
      _
    $region7: #{tpu_custom_call.1} parent=1 // pred_check_branch
      %27 = sbr.rel (0) target = $region9
    $region8: #{tpu_custom_call.1} parent=1 // pred_region
      %s29 = ssub.s32 384, 384
      %30 = vsyncadd [#allocation6], %s29
      %s31 = sshll.u32 [#allocation5], 4
      %s32 = int_to_ptr.vmem [resolvable:$true] %s31
      %37 = dma.hbm_to_vmem [thread:$0]  %s1, 384, %s32, [#allocation6], 128, 128, 8
    $region9: #{tpu_custom_call.1} parent=1 // pred_fallthru
      _
    // Predicated region
    $region10: #{tpu_custom_call.1} parent=1 // pred_check
      _
    $region11: #{tpu_custom_call.1} parent=1 // pred_check_branch
      %39 = sbr.rel (0) target = $region13
    $region12: #{tpu_custom_call.1} parent=1 // pred_region
      %s41 = ssub.s32 128, 128
      %42 = vsyncadd [#allocation6], %s41
      %s44 = sshll.u32 [#allocation7], 4
      %s45 = int_to_ptr.vmem [resolvable:$true] %s44
      %47 = dma.hbm_to_vmem [thread:$0]  %s2, 128, %s45, [#allocation6]
    $region13: #{tpu_custom_call.1} parent=1 // pred_fallthru
      _
    // Predicated region
    $region14: #{tpu_custom_call.1} parent=1 // pred_check
      _
    $region15: #{tpu_custom_call.1} parent=1 // pred_check_branch
      %49 = sbr.rel (0) target = $region17
    $region16: #{tpu_custom_call.1} parent=1 // pred_region
      %s51 = ssub.s32 256, 256
      %52 = vsyncadd [#allocation9], %s51
      %s53 = sshll.u32 [#allocation8], 4
      %s54 = int_to_ptr.vmem [resolvable:$true] %s53
      %59 = dma.hbm_to_vmem [thread:$0]  %s3, 256, %s54, [#allocation9], 128, 128, 8
    $region17: #{tpu_custom_call.1} parent=1 // pred_fallthru
      _
    // Predicated region
    $region18: #{tpu_custom_call.1} parent=1 // pred_check
      _
    $region19: #{tpu_custom_call.1} parent=1 // pred_check_branch
      %61 = sbr.rel (0) target = $region21
    $region20: #{tpu_custom_call.1} parent=1 // pred_region
      %s63 = ssub.s32 9472, 9472
      %64 = vsyncadd [#allocation9], %s63
      %s65 = sshll.u32 [#allocation10], 4
      %s66 = int_to_ptr.vmem [resolvable:$true] %s65
      %71 = dma.hbm_to_vmem [thread:$0]  %s4, 9472, %s66, [#allocation9], 128, 128, 8
    $region21: #{tpu_custom_call.1} parent=1 // pred_fallthru
      _
    // Predicated region
    $region22: #{tpu_custom_call.1} parent=1 // pred_check
      _
    $region23: #{tpu_custom_call.1} parent=1 // pred_check_branch
      %73 = sbr.rel (0) target = $region25
    $region24: #{tpu_custom_call.1} parent=1 // pred_region
      %74 = dma.done [#allocation3], 256
    $region25: #{tpu_custom_call.1} parent=1 // pred_fallthru
      _
    // Predicated region
    $region26: #{tpu_custom_call.1} parent=1 // pred_check
      _
    $region27: #{tpu_custom_call.1} parent=1 // pred_check_branch
      %76 = sbr.rel (0) target = $region29
    $region28: #{tpu_custom_call.1} parent=1 // pred_region
      %77 = dma.done [#allocation6], 384
    $region29: #{tpu_custom_call.1} parent=1 // pred_fallthru
      _
    // Predicated region
    $region30: #{tpu_custom_call.1} parent=1 // pred_check
      _
    $region31: #{tpu_custom_call.1} parent=1 // pred_check_branch
      %79 = sbr.rel (0) target = $region33
    $region32: #{tpu_custom_call.1} parent=1 // pred_region
      %80 = dma.done [#allocation6], 128
    $region33: #{tpu_custom_call.1} parent=1 // pred_fallthru
      _
    // Predicated region
    $region34: #{tpu_custom_call.1} parent=1 // pred_check
      _
    $region35: #{tpu_custom_call.1} parent=1 // pred_check_branch
      %82 = sbr.rel (0) target = $region37
    $region36: #{tpu_custom_call.1} parent=1 // pred_region
      %83 = dma.done [#allocation9], 256
    $region37: #{tpu_custom_call.1} parent=1 // pred_fallthru
      _
    // Predicated region
    $region38: #{tpu_custom_call.1} parent=1 // pred_check
      _
    $region39: #{tpu_custom_call.1} parent=1 // pred_check_branch
      %85 = sbr.rel (0) target = $region41
    $region40: #{tpu_custom_call.1} parent=1 // pred_region
      %86 = dma.done [#allocation9], 9472
    $region41: #{tpu_custom_call.1} parent=1 // pred_fallthru
      _
    %v87 = vld [vmem:[#allocation2] sm:$0xff]
    %v88 = vld [vmem:[#allocation2 + $0x8] sm:$0xff]
    %v89 = vld [vmem:[#allocation5] sm:$0xff]
    %v90 = vld [vmem:[#allocation5 + $0x8] sm:$0xff]
    %v91 = vld [vmem:[#allocation5 + $0x10] sm:$0xf]
    %v92 = vld [vmem:[#allocation7] sm:$0xff]
    %v93 = vld [vmem:[#allocation8] sm:$0xff]
    %s94 = scalar_lea.vmem [#allocation8], 8
    %v95 = vld [vmem:[%s94] sm:$0xff]
    %v96 = vld [vmem:[#allocation10 + $0x110] sm:$0x7]
    %v97 = vld [vmem:[#allocation10 + $0x118] sm:$0x7]
    %vm98 = vcmask 261120
    %v99 = vsel %vm98, %v87, 0.0
    %100 = vadd.xlane.f32.xlu0 %v99
    %v101 = vpop.xlane.xlu0 %100
    %v102 = vsel %vm98, %v88, 0.0
    %103 = vadd.xlane.f32.xlu0 %v102
    %v104 = vpop.xlane.xlu0 %103
    %v105 = vrcp.pop 32.0
    %v106 = vmul.f32 %v101, %v105
    %v107 = vmul.f32 %v104, %v105
    %v108 = vsub.f32 %v87, %v106
    %v109 = vsub.f32 %v88, %v107
    %v110 = vmul.f32 %v108, %v108
    %v111 = vmul.f32 %v109, %v109
    %v112 = vsel %vm98, %v110, 0.0
    %113 = vadd.xlane.f32.xlu0 %v112
    %v114 = vpop.xlane.xlu0 %113
    %v115 = vsel %vm98, %v111, 0.0
    %116 = vadd.xlane.f32.xlu0 %v115
    %v117 = vpop.xlane.xlu0 %116
    %v118 = vmul.f32 %v114, 0.032258064
    %v119 = vmul.f32 %v117, 0.032258064
    %v120 = vrsqrt.pop %v118
    %v121 = vmul.f32 %v118, %v120
    %vm122 = vcmp.eq.f32.partialorder %v118, inf
    %v123 = vsel %vm122, %v118, %v121
    %vm124 = vcmp.eq.f32.partialorder %v118, 0.0
    %v125 = vand.u32 %v118, 2147483648
    %v126 = vsel %vm124, %v125, %v123
    %v127 = vrsqrt.pop %v119
    %v128 = vmul.f32 %v119, %v127
    %vm129 = vcmp.eq.f32.partialorder %v119, inf
    %v130 = vsel %vm129, %v119, %v128
    %vm131 = vcmp.eq.f32.partialorder %v119, 0.0
    %v132 = vand.u32 %v119, 2147483648
    %v133 = vsel %vm131, %v132, %v130
    %v134 = vlaneseq
    %v135 = vshrl.u32 %v134, 7
    %v136 = vsub.s32 0, %v135
    %v137 = vrot.slane %v96, %v136
    %v138 = vmul.f32 %v137, %v108
    %v139 = vmul.f32 %v137, %v109
    %v140 = vadd.f32 %v126, 1e-06
    %v141 = vadd.f32 %v133, 1e-06
    %v142 = vrcp.pop %v140
    %v143 = vrcp.pop %v141
    %v144 = vmul.f32 %v140, %v142
    %v145 = vmul.f32 %v141, %v143
    %v146 = vsub.f32 2.0, %v144
    %v147 = vsub.f32 2.0, %v145
    %v148 = vmul.f32 %v142, %v146
    %v149 = vmul.f32 %v143, %v147
    %v150 = vmul.f32 %v138, %v148
    %v151 = vmul.f32 %v139, %v149
    %v152 = vlaneseq
    %v153 = vshrl.u32 %v152, 7
    %v154 = vsub.s32 0, %v153
    %v155 = vrot.slane %v97, %v154
    %v156 = vadd.f32 %v150, %v155
    %v157 = vadd.f32 %v151, %v155
    %v158 = vld [vmem:[#allocation10] sm:$0xff]
    %v159 = vld [vmem:[#allocation10 + $0x8] sm:$0xff]
    %v160 = vld [vmem:[#allocation10 + $0x10] sm:$0xff]
    %v161 = vld [vmem:[#allocation10 + $0x18] sm:$0xff]
    %v162 = vld [vmem:[#allocation10 + $0x20] sm:$0x1]
    %v163 = vlaneseq
    %v164 = vshrl.u32 %v163, 7
    %v165 = vsub.s32 0, %v164
    %v166 = vrot.slane %v162, %v165
    %v168 = vsel %vm98, %v156, 0
    %v171 = vsel %vm98, %v157, 0
    %173 = vmatprep.subr.mxu0 0.0
    %174 = vmatpush1.msra.mxu0 %v158
    %175 = vmatprep.subr.mxu0 0.0
    %176 = vmatpush1.msra.mxu0 %v159
    %177 = vmatprep.subr.mxu0 0.0
    %178 = vmatpush1.msra.mxu0 %v160
    %179 = vmatprep.subr.mxu0 0.0
    %180 = vmatpush1.msra.mxu0 %v161
    %181 = vmatprep.subr.mxu0 0.0
    %182 = vmatpush1.msra.mxu0 0.0
    %183 = vmatprep.subr.mxu0 0.0
    %184 = vmatpush1.msra.mxu0 0.0
    %185 = vmatprep.subr.mxu0 0.0
    %186 = vmatpush1.msra.mxu0 0.0
    %187 = vmatprep.subr.mxu0 0.0
    %188 = vmatpush1.msra.mxu0 0.0
    %189 = vmatprep.subr.mxu0 0.0
    %190 = vmatpush1.msra.mxu0 0.0
    %191 = vmatprep.subr.mxu0 0.0
    %192 = vmatpush1.msra.mxu0 0.0
    %193 = vmatprep.subr.mxu0 0.0
    %194 = vmatpush1.msra.mxu0 0.0
    %195 = vmatprep.subr.mxu0 0.0
    %196 = vmatpush1.msra.mxu0 0.0
    %197 = vmatprep.subr.mxu0 0.0
    %198 = vmatpush1.msra.mxu0 0.0
    %199 = vmatprep.subr.mxu0 0.0
    %200 = vmatpush1.msra.mxu0 0.0
    %201 = vmatprep.subr.mxu0 0.0
    %202 = vmatpush1.msra.mxu0 0.0
    %203 = vmatprep.subr.mxu0 0.0
    %204 = vmatpush1.msra.mxu0 0.0
    %205 = vmatprep.subr.mxu0 0.0
    %206 = vmatpush1.msra.mxu0 0.0
    %207 = vmatprep.subr.mxu0 0.0
    %208 = vmatpush1.msra.mxu0 0.0
    %209 = vmatprep.subr.mxu0 0.0
    %210 = vmatpush1.msra.mxu0 0.0
    %211 = vmatprep.subr.mxu0 0.0
    %212 = vmatpush1.msra.mxu0 0.0
    %213 = vmatprep.subr.mxu0 0.0
    %214 = vmatpush1.msra.mxu0 0.0
    %215 = vmatprep.subr.mxu0 0.0
    %216 = vmatpush1.msra.mxu0 0.0
    %217 = vmatprep.subr.mxu0 0.0
    %218 = vmatpush1.msra.mxu0 0.0
    %219 = vmatprep.subr.mxu0 0.0
    %220 = vmatpush1.msra.mxu0 0.0
    %221 = vmatprep.subr.mxu0 0.0
    %222 = vmatpush1.msra.mxu0 0.0
    %223 = vmatprep.subr.mxu0 0.0
    %224 = vmatpush1.msra.mxu0 0.0
    %225 = vmatprep.subr.mxu0 0.0
    %226 = vmatpush1.msra.mxu0 0.0
    %227 = vmatprep.subr.mxu0 0.0
    %228 = vmatpush1.msra.mxu0 0.0
    %229 = vmatprep.subr.mxu0 0.0
    %230 = vmatpush1.msra.mxu0 0.0
    %231 = vmatprep.subr.mxu0 0.0
    %232 = vmatpush1.msra.mxu0 0.0
    %233 = vmatprep.subr.mxu0 0.0
    %234 = vmatpush1.msra.mxu0 0.0
    %235 = vmatprep.subr.mxu0 0.0
    %236 = vmatpush1.msra.mxu0 0.0
    %237 = vmatprep.mubr.f32.mxu0 0.0
    %238 = vmatmul.mubr.f32.gmra.mrb[0].mxu0 %v168
    %v239 = vpop.f32.mrb[0].mxu0
    %v240 = vadd.f32 %v166, %v239
    %v241 = vpop.f32.mrb[0].mxu0
    %242 = vmatprep.mubr.f32.mxu0 0.0
    %243 = vmatmul.mubr.f32.gmra.mrb[0].mxu0 %v171
    %v244 = vpop.f32.mrb[0].mxu0
    %v245 = vadd.f32 %v166, %v244
    %v246 = vpop.f32.mrb[0].mxu0
    %247 = vdwg.mxu0
    %v248 = vld [vmem:[#allocation10 + $0x28] sm:$0xff]
    %v249 = vld [vmem:[#allocation10 + $0x30] sm:$0xff]
    %v250 = vld [vmem:[#allocation10 + $0x38] sm:$0xff]
    %v251 = vld [vmem:[#allocation10 + $0x40] sm:$0xff]
    %v252 = vld [vmem:[#allocation10 + $0x48] sm:$0x1]
    %254 = vrot.lane.b32.xlu0 %v240, 96
    %v255 = vpop.permute.xlu0 %254
    %vm256 = vcmask 64512
    %v257 = vsel %vm256, %v240, 0
    %v259 = vsel %vm256, %v255, 0
    %261 = vmatprep.subr.mxu0 0.0
    %262 = vmatpush1.xpose.msra.mxu0 %v259
    %263 = vmatprep.subr.mxu0 0.0
    %264 = vmatpush1.xpose.msra.mxu0 0.0
    %265 = vmatprep.subr.mxu0 0.0
    %266 = vmatpush1.xpose.msra.mxu0 0.0
    %267 = vmatprep.subr.mxu0 0.0
    %268 = vmatpush1.xpose.msra.mxu0 0.0
    %269 = vmatprep.subr.mxu0 0.0
    %270 = vmatpush1.xpose.msra.mxu0 0.0
    %271 = vmatprep.subr.mxu0 0.0
    %272 = vmatpush1.xpose.msra.mxu0 0.0
    %273 = vmatprep.subr.mxu0 0.0
    %274 = vmatpush1.xpose.msra.mxu0 0.0
    %275 = vmatprep.subr.mxu0 0.0
    %276 = vmatpush1.xpose.msra.mxu0 0.0
    %277 = vmatprep.subr.mxu0 0.0
    %278 = vmatpush1.xpose.msra.mxu0 0.0
    %279 = vmatprep.subr.mxu0 0.0
    %280 = vmatpush1.xpose.msra.mxu0 0.0
    %281 = vmatprep.subr.mxu0 0.0
    %282 = vmatpush1.xpose.msra.mxu0 0.0
    %283 = vmatprep.subr.mxu0 0.0
    %284 = vmatpush1.xpose.msra.mxu0 0.0
    %285 = vmatprep.subr.mxu0 0.0
    %286 = vmatpush1.xpose.msra.mxu0 0.0
    %287 = vmatprep.subr.mxu0 0.0
    %288 = vmatpush1.xpose.msra.mxu0 0.0
    %289 = vmatprep.subr.mxu0 0.0
    %290 = vmatpush1.xpose.msra.mxu0 0.0
    %291 = vmatprep.subr.mxu0 0.0
    %292 = vmatpush1.xpose.msra.mxu0 0.0
    %293 = vmatprep.subr.mxu0 0.0
    %294 = vmatpush1.xpose.msra.mxu0 0.0
    %295 = vmatprep.subr.mxu0 0.0
    %296 = vmatpush1.xpose.msra.mxu0 0.0
    %297 = vmatprep.subr.mxu0 0.0
    %298 = vmatpush1.xpose.msra.mxu0 0.0
    %299 = vmatprep.subr.mxu0 0.0
    %300 = vmatpush1.xpose.msra.mxu0 0.0
    %301 = vmatprep.subr.mxu0 0.0
    %302 = vmatpush1.xpose.msra.mxu0 0.0
    %303 = vmatprep.subr.mxu0 0.0
    %304 = vmatpush1.xpose.msra.mxu0 0.0
    %305 = vmatprep.subr.mxu0 0.0
    %306 = vmatpush1.xpose.msra.mxu0 0.0
    %307 = vmatprep.subr.mxu0 0.0
    %308 = vmatpush1.xpose.msra.mxu0 0.0
    %309 = vmatprep.subr.mxu0 0.0
    %310 = vmatpush1.xpose.msra.mxu0 0.0
    %311 = vmatprep.subr.mxu0 0.0
    %312 = vmatpush1.xpose.msra.mxu0 0.0
    %313 = vmatprep.subr.mxu0 0.0
    %314 = vmatpush1.xpose.msra.mxu0 0.0
    %315 = vmatprep.subr.mxu0 0.0
    %316 = vmatpush1.xpose.msra.mxu0 0.0
    %317 = vmatprep.subr.mxu0 0.0
    %318 = vmatpush1.xpose.msra.mxu0 0.0
    %319 = vmatprep.subr.mxu0 0.0
    %320 = vmatpush1.xpose.msra.mxu0 0.0
    %321 = vmatprep.subr.mxu0 0.0
    %322 = vmatpush1.xpose.msra.mxu0 0.0
    %323 = vmatprep.subr.mxu0 0.0
    %324 = vmatpush1.xpose.msra.mxu0 0.0
    %325 = vmatprep.mubr.f32.mxu0 0.0
    %326 = vmatmul.mubr.f32.gmra.mrb[0].mxu0 %v257
    %v327 = vpop.f32.mrb[0].mxu0
    %v328 = vadd.f32 %v92, %v327
    %v329 = vpop.f32.mrb[0].mxu0
    %330 = vdwg.mxu0
    %v331 = vsel %vm256, %v328, -inf
    %332 = vmax.xlane.f32.xlu0 %v331
    %v333 = vpop.xlane.xlu0 %332
    %v334 = vsub.f32 %v328, %v333
    %v335 = vmul.f32 %v334, 1.442695
    %v336 = vpow.pop %v335
    %v337 = vsel %vm256, %v336, 0.0
    %338 = vadd.xlane.f32.xlu0 %v337
    %v339 = vpop.xlane.xlu0 %338
    %v340 = vrcp.pop %v339
    %v341 = vmul.f32 %v339, %v340
    %v342 = vsub.f32 2.0, %v341
    %v343 = vmul.f32 %v340, %v342
    %v344 = vmul.f32 %v336, %v343
    %345 = vrot.lane.b32.xlu0 %v240, 64
    %v346 = vpop.permute.xlu0 %345
    %v349 = vsel %vm256, %v344, 0
    %351 = vmatprep.subr.mxu0 0.0
    %352 = vmatpush1.msra.mxu0 %v346
    %353 = vmatprep.subr.mxu0 0.0
    %354 = vmatpush1.msra.mxu0 0.0
    %355 = vmatprep.subr.mxu0 0.0
    %356 = vmatpush1.msra.mxu0 0.0
    %357 = vmatprep.subr.mxu0 0.0
    %358 = vmatpush1.msra.mxu0 0.0
    %359 = vmatprep.subr.mxu0 0.0
    %360 = vmatpush1.msra.mxu0 0.0
    %361 = vmatprep.subr.mxu0 0.0
    %362 = vmatpush1.msra.mxu0 0.0
    %363 = vmatprep.subr.mxu0 0.0
    %364 = vmatpush1.msra.mxu0 0.0
    %365 = vmatprep.subr.mxu0 0.0
    %366 = vmatpush1.msra.mxu0 0.0
    %367 = vmatprep.subr.mxu0 0.0
    %368 = vmatpush1.msra.mxu0 0.0
    %369 = vmatprep.subr.mxu0 0.0
    %370 = vmatpush1.msra.mxu0 0.0
    %371 = vmatprep.subr.mxu0 0.0
    %372 = vmatpush1.msra.mxu0 0.0
    %373 = vmatprep.subr.mxu0 0.0
    %374 = vmatpush1.msra.mxu0 0.0
    %375 = vmatprep.subr.mxu0 0.0
    %376 = vmatpush1.msra.mxu0 0.0
    %377 = vmatprep.subr.mxu0 0.0
    %378 = vmatpush1.msra.mxu0 0.0
    %379 = vmatprep.subr.mxu0 0.0
    %380 = vmatpush1.msra.mxu0 0.0
    %381 = vmatprep.subr.mxu0 0.0
    %382 = vmatpush1.msra.mxu0 0.0
    %383 = vmatprep.subr.mxu0 0.0
    %384 = vmatpush1.msra.mxu0 0.0
    %385 = vmatprep.subr.mxu0 0.0
    %386 = vmatpush1.msra.mxu0 0.0
    %387 = vmatprep.subr.mxu0 0.0
    %388 = vmatpush1.msra.mxu0 0.0
    %389 = vmatprep.subr.mxu0 0.0
    %390 = vmatpush1.msra.mxu0 0.0
    %391 = vmatprep.subr.mxu0 0.0
    %392 = vmatpush1.msra.mxu0 0.0
    %393 = vmatprep.subr.mxu0 0.0
    %394 = vmatpush1.msra.mxu0 0.0
    %395 = vmatprep.subr.mxu0 0.0
    %396 = vmatpush1.msra.mxu0 0.0
    %397 = vmatprep.subr.mxu0 0.0
    %398 = vmatpush1.msra.mxu0 0.0
    %399 = vmatprep.subr.mxu0 0.0
    %400 = vmatpush1.msra.mxu0 0.0
    %401 = vmatprep.subr.mxu0 0.0
    %402 = vmatpush1.msra.mxu0 0.0
    %403 = vmatprep.subr.mxu0 0.0
    %404 = vmatpush1.msra.mxu0 0.0
    %405 = vmatprep.subr.mxu0 0.0
    %406 = vmatpush1.msra.mxu0 0.0
    %407 = vmatprep.subr.mxu0 0.0
    %408 = vmatpush1.msra.mxu0 0.0
    %409 = vmatprep.subr.mxu0 0.0
    %410 = vmatpush1.msra.mxu0 0.0
    %411 = vmatprep.subr.mxu0 0.0
    %412 = vmatpush1.msra.mxu0 0.0
    %413 = vmatprep.subr.mxu0 0.0
    %414 = vmatpush1.msra.mxu0 0.0
    %415 = vmatprep.mubr.f32.mxu0 0.0
    %416 = vmatmul.mubr.f32.gmra.mrb[0].mxu0 %v349
    %v417 = vpop.f32.mrb[0].mxu0
    %v418 = vadd.f32 0.0, %v417
    %v419 = vpop.f32.mrb[0].mxu0
    %420 = vdwg.mxu0
    %421 = vrot.lane.b32.xlu0 %v240, 120
    %v422 = vpop.permute.xlu0 %421
    %423 = vrot.lane.b32.xlu0 %v240, 88
    %v424 = vpop.permute.xlu0 %423
    %v425 = vsel %vm256, %v422, 0
    %v427 = vsel %vm256, %v424, 0
    %429 = vmatprep.subr.mxu0 0.0
    %430 = vmatpush1.xpose.msra.mxu0 %v427
    %431 = vmatprep.subr.mxu0 0.0
    %432 = vmatpush1.xpose.msra.mxu0 0.0
    %433 = vmatprep.subr.mxu0 0.0
    %434 = vmatpush1.xpose.msra.mxu0 0.0
    %435 = vmatprep.subr.mxu0 0.0
    %436 = vmatpush1.xpose.msra.mxu0 0.0
    %437 = vmatprep.subr.mxu0 0.0
    %438 = vmatpush1.xpose.msra.mxu0 0.0
    %439 = vmatprep.subr.mxu0 0.0
    %440 = vmatpush1.xpose.msra.mxu0 0.0
    %441 = vmatprep.subr.mxu0 0.0
    %442 = vmatpush1.xpose.msra.mxu0 0.0
    %443 = vmatprep.subr.mxu0 0.0
    %444 = vmatpush1.xpose.msra.mxu0 0.0
    %445 = vmatprep.subr.mxu0 0.0
    %446 = vmatpush1.xpose.msra.mxu0 0.0
    %447 = vmatprep.subr.mxu0 0.0
    %448 = vmatpush1.xpose.msra.mxu0 0.0
    %449 = vmatprep.subr.mxu0 0.0
    %450 = vmatpush1.xpose.msra.mxu0 0.0
    %451 = vmatprep.subr.mxu0 0.0
    %452 = vmatpush1.xpose.msra.mxu0 0.0
    %453 = vmatprep.subr.mxu0 0.0
    %454 = vmatpush1.xpose.msra.mxu0 0.0
    %455 = vmatprep.subr.mxu0 0.0
    %456 = vmatpush1.xpose.msra.mxu0 0.0
    %457 = vmatprep.subr.mxu0 0.0
    %458 = vmatpush1.xpose.msra.mxu0 0.0
    %459 = vmatprep.subr.mxu0 0.0
    %460 = vmatpush1.xpose.msra.mxu0 0.0
    %461 = vmatprep.subr.mxu0 0.0
    %462 = vmatpush1.xpose.msra.mxu0 0.0
    %463 = vmatprep.subr.mxu0 0.0
    %464 = vmatpush1.xpose.msra.mxu0 0.0
    %465 = vmatprep.subr.mxu0 0.0
    %466 = vmatpush1.xpose.msra.mxu0 0.0
    %467 = vmatprep.subr.mxu0 0.0
    %468 = vmatpush1.xpose.msra.mxu0 0.0
    %469 = vmatprep.subr.mxu0 0.0
    %470 = vmatpush1.xpose.msra.mxu0 0.0
    %471 = vmatprep.subr.mxu0 0.0
    %472 = vmatpush1.xpose.msra.mxu0 0.0
    %473 = vmatprep.subr.mxu0 0.0
    %474 = vmatpush1.xpose.msra.mxu0 0.0
    %475 = vmatprep.subr.mxu0 0.0
    %476 = vmatpush1.xpose.msra.mxu0 0.0
    %477 = vmatprep.subr.mxu0 0.0
    %478 = vmatpush1.xpose.msra.mxu0 0.0
    %479 = vmatprep.subr.mxu0 0.0
    %480 = vmatpush1.xpose.msra.mxu0 0.0
    %481 = vmatprep.subr.mxu0 0.0
    %482 = vmatpush1.xpose.msra.mxu0 0.0
    %483 = vmatprep.subr.mxu0 0.0
    %484 = vmatpush1.xpose.msra.mxu0 0.0
    %485 = vmatprep.subr.mxu0 0.0
    %486 = vmatpush1.xpose.msra.mxu0 0.0
    %487 = vmatprep.subr.mxu0 0.0
    %488 = vmatpush1.xpose.msra.mxu0 0.0
    %489 = vmatprep.subr.mxu0 0.0
    %490 = vmatpush1.xpose.msra.mxu0 0.0
    %491 = vmatprep.subr.mxu0 0.0
    %492 = vmatpush1.xpose.msra.mxu0 0.0
    %493 = vmatprep.mubr.f32.mxu0 0.0
    %494 = vmatmul.mubr.f32.gmra.mrb[0].mxu0 %v425
    %v495 = vpop.f32.mrb[0].mxu0
    %v496 = vadd.f32 %v92, %v495
    %v497 = vpop.f32.mrb[0].mxu0
    %498 = vdwg.mxu0
    %v499 = vsel %vm256, %v496, -inf
    %500 = vmax.xlane.f32.xlu0 %v499
    %v501 = vpop.xlane.xlu0 %500
    %v502 = vsub.f32 %v496, %v501
    %v503 = vmul.f32 %v502, 1.442695
    %v504 = vpow.pop %v503
    %v505 = vsel %vm256, %v504, 0.0
    %506 = vadd.xlane.f32.xlu0 %v505
    %v507 = vpop.xlane.xlu0 %506
    %v508 = vrcp.pop %v507
    %v509 = vmul.f32 %v507, %v508
    %v510 = vsub.f32 2.0, %v509
    %v511 = vmul.f32 %v508, %v510
    %v512 = vmul.f32 %v504, %v511
    %513 = vrot.lane.b32.xlu0 %v240, 56
    %v514 = vpop.permute.xlu0 %513
    %v517 = vsel %vm256, %v512, 0
    %519 = vmatprep.subr.mxu0 0.0
    %520 = vmatpush1.msra.mxu0 %v514
    %521 = vmatprep.subr.mxu0 0.0
    %522 = vmatpush1.msra.mxu0 0.0
    %523 = vmatprep.subr.mxu0 0.0
    %524 = vmatpush1.msra.mxu0 0.0
    %525 = vmatprep.subr.mxu0 0.0
    %526 = vmatpush1.msra.mxu0 0.0
    %527 = vmatprep.subr.mxu0 0.0
    %528 = vmatpush1.msra.mxu0 0.0
    %529 = vmatprep.subr.mxu0 0.0
    %530 = vmatpush1.msra.mxu0 0.0
    %531 = vmatprep.subr.mxu0 0.0
    %532 = vmatpush1.msra.mxu0 0.0
    %533 = vmatprep.subr.mxu0 0.0
    %534 = vmatpush1.msra.mxu0 0.0
    %535 = vmatprep.subr.mxu0 0.0
    %536 = vmatpush1.msra.mxu0 0.0
    %537 = vmatprep.subr.mxu0 0.0
    %538 = vmatpush1.msra.mxu0 0.0
    %539 = vmatprep.subr.mxu0 0.0
    %540 = vmatpush1.msra.mxu0 0.0
    %541 = vmatprep.subr.mxu0 0.0
    %542 = vmatpush1.msra.mxu0 0.0
    %543 = vmatprep.subr.mxu0 0.0
    %544 = vmatpush1.msra.mxu0 0.0
    %545 = vmatprep.subr.mxu0 0.0
    %546 = vmatpush1.msra.mxu0 0.0
    %547 = vmatprep.subr.mxu0 0.0
    %548 = vmatpush1.msra.mxu0 0.0
    %549 = vmatprep.subr.mxu0 0.0
    %550 = vmatpush1.msra.mxu0 0.0
    %551 = vmatprep.subr.mxu0 0.0
    %552 = vmatpush1.msra.mxu0 0.0
    %553 = vmatprep.subr.mxu0 0.0
    %554 = vmatpush1.msra.mxu0 0.0
    %555 = vmatprep.subr.mxu0 0.0
    %556 = vmatpush1.msra.mxu0 0.0
    %557 = vmatprep.subr.mxu0 0.0
    %558 = vmatpush1.msra.mxu0 0.0
    %559 = vmatprep.subr.mxu0 0.0
    %560 = vmatpush1.msra.mxu0 0.0
    %561 = vmatprep.subr.mxu0 0.0
    %562 = vmatpush1.msra.mxu0 0.0
    %563 = vmatprep.subr.mxu0 0.0
    %564 = vmatpush1.msra.mxu0 0.0
    %565 = vmatprep.subr.mxu0 0.0
    %566 = vmatpush1.msra.mxu0 0.0
    %567 = vmatprep.subr.mxu0 0.0
    %568 = vmatpush1.msra.mxu0 0.0
    %569 = vmatprep.subr.mxu0 0.0
    %570 = vmatpush1.msra.mxu0 0.0
    %571 = vmatprep.subr.mxu0 0.0
    %572 = vmatpush1.msra.mxu0 0.0
    %573 = vmatprep.subr.mxu0 0.0
    %574 = vmatpush1.msra.mxu0 0.0
    %575 = vmatprep.subr.mxu0 0.0
    %576 = vmatpush1.msra.mxu0 0.0
    %577 = vmatprep.subr.mxu0 0.0
    %578 = vmatpush1.msra.mxu0 0.0
    %579 = vmatprep.subr.mxu0 0.0
    %580 = vmatpush1.msra.mxu0 0.0
    %581 = vmatprep.subr.mxu0 0.0
    %582 = vmatpush1.msra.mxu0 0.0
    %583 = vmatprep.mubr.f32.mxu0 0.0
    %584 = vmatmul.mubr.f32.gmra.mrb[0].mxu0 %v517
    %v585 = vpop.f32.mrb[0].mxu0
    %v586 = vadd.f32 0.0, %v585
    %v587 = vpop.f32.mrb[0].mxu0
    %588 = vdwg.mxu0
    %589 = vrot.lane.b32.xlu0 %v240, 112
    %v590 = vpop.permute.xlu0 %589
    %591 = vrot.lane.b32.xlu0 %v240, 80
    %v592 = vpop.permute.xlu0 %591
    %v593 = vsel %vm256, %v590, 0
    %v595 = vsel %vm256, %v592, 0
    %597 = vmatprep.subr.mxu0 0.0
    %598 = vmatpush1.xpose.msra.mxu0 %v595
    %599 = vmatprep.subr.mxu0 0.0
    %600 = vmatpush1.xpose.msra.mxu0 0.0
    %601 = vmatprep.subr.mxu0 0.0
    %602 = vmatpush1.xpose.msra.mxu0 0.0
    %603 = vmatprep.subr.mxu0 0.0
    %604 = vmatpush1.xpose.msra.mxu0 0.0
    %605 = vmatprep.subr.mxu0 0.0
    %606 = vmatpush1.xpose.msra.mxu0 0.0
    %607 = vmatprep.subr.mxu0 0.0
    %608 = vmatpush1.xpose.msra.mxu0 0.0
    %609 = vmatprep.subr.mxu0 0.0
    %610 = vmatpush1.xpose.msra.mxu0 0.0
    %611 = vmatprep.subr.mxu0 0.0
    %612 = vmatpush1.xpose.msra.mxu0 0.0
    %613 = vmatprep.subr.mxu0 0.0
    %614 = vmatpush1.xpose.msra.mxu0 0.0
    %615 = vmatprep.subr.mxu0 0.0
    %616 = vmatpush1.xpose.msra.mxu0 0.0
    %617 = vmatprep.subr.mxu0 0.0
    %618 = vmatpush1.xpose.msra.mxu0 0.0
    %619 = vmatprep.subr.mxu0 0.0
    %620 = vmatpush1.xpose.msra.mxu0 0.0
    %621 = vmatprep.subr.mxu0 0.0
    %622 = vmatpush1.xpose.msra.mxu0 0.0
    %623 = vmatprep.subr.mxu0 0.0
    %624 = vmatpush1.xpose.msra.mxu0 0.0
    %625 = vmatprep.subr.mxu0 0.0
    %626 = vmatpush1.xpose.msra.mxu0 0.0
    %627 = vmatprep.subr.mxu0 0.0
    %628 = vmatpush1.xpose.msra.mxu0 0.0
    %629 = vmatprep.subr.mxu0 0.0
    %630 = vmatpush1.xpose.msra.mxu0 0.0
    %631 = vmatprep.subr.mxu0 0.0
    %632 = vmatpush1.xpose.msra.mxu0 0.0
    %633 = vmatprep.subr.mxu0 0.0
    %634 = vmatpush1.xpose.msra.mxu0 0.0
    %635 = vmatprep.subr.mxu0 0.0
    %636 = vmatpush1.xpose.msra.mxu0 0.0
    %637 = vmatprep.subr.mxu0 0.0
    %638 = vmatpush1.xpose.msra.mxu0 0.0
    %639 = vmatprep.subr.mxu0 0.0
    %640 = vmatpush1.xpose.msra.mxu0 0.0
    %641 = vmatprep.subr.mxu0 0.0
    %642 = vmatpush1.xpose.msra.mxu0 0.0
    %643 = vmatprep.subr.mxu0 0.0
    %644 = vmatpush1.xpose.msra.mxu0 0.0
    %645 = vmatprep.subr.mxu0 0.0
    %646 = vmatpush1.xpose.msra.mxu0 0.0
    %647 = vmatprep.subr.mxu0 0.0
    %648 = vmatpush1.xpose.msra.mxu0 0.0
    %649 = vmatprep.subr.mxu0 0.0
    %650 = vmatpush1.xpose.msra.mxu0 0.0
    %651 = vmatprep.subr.mxu0 0.0
    %652 = vmatpush1.xpose.msra.mxu0 0.0
    %653 = vmatprep.subr.mxu0 0.0
    %654 = vmatpush1.xpose.msra.mxu0 0.0
    %655 = vmatprep.subr.mxu0 0.0
    %656 = vmatpush1.xpose.msra.mxu0 0.0
    %657 = vmatprep.subr.mxu0 0.0
    %658 = vmatpush1.xpose.msra.mxu0 0.0
    %659 = vmatprep.subr.mxu0 0.0
    %660 = vmatpush1.xpose.msra.mxu0 0.0
    %661 = vmatprep.mubr.f32.mxu0 0.0
    %662 = vmatmul.mubr.f32.gmra.mrb[0].mxu0 %v593
    %v663 = vpop.f32.mrb[0].mxu0
    %v664 = vadd.f32 %v92, %v663
    %v665 = vpop.f32.mrb[0].mxu0
    %666 = vdwg.mxu0
    %v667 = vsel %vm256, %v664, -inf
    %668 = vmax.xlane.f32.xlu0 %v667
    %v669 = vpop.xlane.xlu0 %668
    %v670 = vsub.f32 %v664, %v669
    %v671 = vmul.f32 %v670, 1.442695
    %v672 = vpow.pop %v671
    %v673 = vsel %vm256, %v672, 0.0
    %674 = vadd.xlane.f32.xlu0 %v673
    %v675 = vpop.xlane.xlu0 %674
    %v676 = vrcp.pop %v675
    %v677 = vmul.f32 %v675, %v676
    %v678 = vsub.f32 2.0, %v677
    %v679 = vmul.f32 %v676, %v678
    %v680 = vmul.f32 %v672, %v679
    %681 = vrot.lane.b32.xlu0 %v240, 48
    %v682 = vpop.permute.xlu0 %681
    %v685 = vsel %vm256, %v680, 0
    %687 = vmatprep.subr.mxu0 0.0
    %688 = vmatpush1.msra.mxu0 %v682
    %689 = vmatprep.subr.mxu0 0.0
    %690 = vmatpush1.msra.mxu0 0.0
    %691 = vmatprep.subr.mxu0 0.0
    %692 = vmatpush1.msra.mxu0 0.0
    %693 = vmatprep.subr.mxu0 0.0
    %694 = vmatpush1.msra.mxu0 0.0
    %695 = vmatprep.subr.mxu0 0.0
    %696 = vmatpush1.msra.mxu0 0.0
    %697 = vmatprep.subr.mxu0 0.0
    %698 = vmatpush1.msra.mxu0 0.0
    %699 = vmatprep.subr.mxu0 0.0
    %700 = vmatpush1.msra.mxu0 0.0
    %701 = vmatprep.subr.mxu0 0.0
    %702 = vmatpush1.msra.mxu0 0.0
    %703 = vmatprep.subr.mxu0 0.0
    %704 = vmatpush1.msra.mxu0 0.0
    %705 = vmatprep.subr.mxu0 0.0
    %706 = vmatpush1.msra.mxu0 0.0
    %707 = vmatprep.subr.mxu0 0.0
    %708 = vmatpush1.msra.mxu0 0.0
    %709 = vmatprep.subr.mxu0 0.0
    %710 = vmatpush1.msra.mxu0 0.0
    %711 = vmatprep.subr.mxu0 0.0
    %712 = vmatpush1.msra.mxu0 0.0
    %713 = vmatprep.subr.mxu0 0.0
    %714 = vmatpush1.msra.mxu0 0.0
    %715 = vmatprep.subr.mxu0 0.0
    %716 = vmatpush1.msra.mxu0 0.0
    %717 = vmatprep.subr.mxu0 0.0
    %718 = vmatpush1.msra.mxu0 0.0
    %719 = vmatprep.subr.mxu0 0.0
    %720 = vmatpush1.msra.mxu0 0.0
    %721 = vmatprep.subr.mxu0 0.0
    %722 = vmatpush1.msra.mxu0 0.0
    %723 = vmatprep.subr.mxu0 0.0
    %724 = vmatpush1.msra.mxu0 0.0
    %725 = vmatprep.subr.mxu0 0.0
    %726 = vmatpush1.msra.mxu0 0.0
    %727 = vmatprep.subr.mxu0 0.0
    %728 = vmatpush1.msra.mxu0 0.0
    %729 = vmatprep.subr.mxu0 0.0
    %730 = vmatpush1.msra.mxu0 0.0
    %731 = vmatprep.subr.mxu0 0.0
    %732 = vmatpush1.msra.mxu0 0.0
    %733 = vmatprep.subr.mxu0 0.0
    %734 = vmatpush1.msra.mxu0 0.0
    %735 = vmatprep.subr.mxu0 0.0
    %736 = vmatpush1.msra.mxu0 0.0
    %737 = vmatprep.subr.mxu0 0.0
    %738 = vmatpush1.msra.mxu0 0.0
    %739 = vmatprep.subr.mxu0 0.0
    %740 = vmatpush1.msra.mxu0 0.0
    %741 = vmatprep.subr.mxu0 0.0
    %742 = vmatpush1.msra.mxu0 0.0
    %743 = vmatprep.subr.mxu0 0.0
    %744 = vmatpush1.msra.mxu0 0.0
    %745 = vmatprep.subr.mxu0 0.0
    %746 = vmatpush1.msra.mxu0 0.0
    %747 = vmatprep.subr.mxu0 0.0
    %748 = vmatpush1.msra.mxu0 0.0
    %749 = vmatprep.subr.mxu0 0.0
    %750 = vmatpush1.msra.mxu0 0.0
    %751 = vmatprep.mubr.f32.mxu0 0.0
    %752 = vmatmul.mubr.f32.gmra.mrb[0].mxu0 %v685
    %v753 = vpop.f32.mrb[0].mxu0
    %v754 = vadd.f32 0.0, %v753
    %v755 = vpop.f32.mrb[0].mxu0
    %756 = vdwg.mxu0
    %757 = vrot.lane.b32.xlu0 %v240, 104
    %v758 = vpop.permute.xlu0 %757
    %759 = vrot.lane.b32.xlu0 %v240, 72
    %v760 = vpop.permute.xlu0 %759
    %v761 = vsel %vm256, %v758, 0
    %v763 = vsel %vm256, %v760, 0
    %765 = vmatprep.subr.mxu0 0.0
    %766 = vmatpush1.xpose.msra.mxu0 %v763
    %767 = vmatprep.subr.mxu0 0.0
    %768 = vmatpush1.xpose.msra.mxu0 0.0
    %769 = vmatprep.subr.mxu0 0.0
    %770 = vmatpush1.xpose.msra.mxu0 0.0
    %771 = vmatprep.subr.mxu0 0.0
    %772 = vmatpush1.xpose.msra.mxu0 0.0
    %773 = vmatprep.subr.mxu0 0.0
    %774 = vmatpush1.xpose.msra.mxu0 0.0
    %775 = vmatprep.subr.mxu0 0.0
    %776 = vmatpush1.xpose.msra.mxu0 0.0
    %777 = vmatprep.subr.mxu0 0.0
    %778 = vmatpush1.xpose.msra.mxu0 0.0
    %779 = vmatprep.subr.mxu0 0.0
    %780 = vmatpush1.xpose.msra.mxu0 0.0
    %781 = vmatprep.subr.mxu0 0.0
    %782 = vmatpush1.xpose.msra.mxu0 0.0
    %783 = vmatprep.subr.mxu0 0.0
    %784 = vmatpush1.xpose.msra.mxu0 0.0
    %785 = vmatprep.subr.mxu0 0.0
    %786 = vmatpush1.xpose.msra.mxu0 0.0
    %787 = vmatprep.subr.mxu0 0.0
    %788 = vmatpush1.xpose.msra.mxu0 0.0
    %789 = vmatprep.subr.mxu0 0.0
    %790 = vmatpush1.xpose.msra.mxu0 0.0
    %791 = vmatprep.subr.mxu0 0.0
    %792 = vmatpush1.xpose.msra.mxu0 0.0
    %793 = vmatprep.subr.mxu0 0.0
    %794 = vmatpush1.xpose.msra.mxu0 0.0
    %795 = vmatprep.subr.mxu0 0.0
    %796 = vmatpush1.xpose.msra.mxu0 0.0
    %797 = vmatprep.subr.mxu0 0.0
    %798 = vmatpush1.xpose.msra.mxu0 0.0
    %799 = vmatprep.subr.mxu0 0.0
    %800 = vmatpush1.xpose.msra.mxu0 0.0
    %801 = vmatprep.subr.mxu0 0.0
    %802 = vmatpush1.xpose.msra.mxu0 0.0
    %803 = vmatprep.subr.mxu0 0.0
    %804 = vmatpush1.xpose.msra.mxu0 0.0
    %805 = vmatprep.subr.mxu0 0.0
    %806 = vmatpush1.xpose.msra.mxu0 0.0
    %807 = vmatprep.subr.mxu0 0.0
    %808 = vmatpush1.xpose.msra.mxu0 0.0
    %809 = vmatprep.subr.mxu0 0.0
    %810 = vmatpush1.xpose.msra.mxu0 0.0
    %811 = vmatprep.subr.mxu0 0.0
    %812 = vmatpush1.xpose.msra.mxu0 0.0
    %813 = vmatprep.subr.mxu0 0.0
    %814 = vmatpush1.xpose.msra.mxu0 0.0
    %815 = vmatprep.subr.mxu0 0.0
    %816 = vmatpush1.xpose.msra.mxu0 0.0
    %817 = vmatprep.subr.mxu0 0.0
    %818 = vmatpush1.xpose.msra.mxu0 0.0
    %819 = vmatprep.subr.mxu0 0.0
    %820 = vmatpush1.xpose.msra.mxu0 0.0
    %821 = vmatprep.subr.mxu0 0.0
    %822 = vmatpush1.xpose.msra.mxu0 0.0
    %823 = vmatprep.subr.mxu0 0.0
    %824 = vmatpush1.xpose.msra.mxu0 0.0
    %825 = vmatprep.subr.mxu0 0.0
    %826 = vmatpush1.xpose.msra.mxu0 0.0
    %827 = vmatprep.subr.mxu0 0.0
    %828 = vmatpush1.xpose.msra.mxu0 0.0
    %829 = vmatprep.mubr.f32.mxu0 0.0
    %830 = vmatmul.mubr.f32.gmra.mrb[0].mxu0 %v761
    %v831 = vpop.f32.mrb[0].mxu0
    %v832 = vadd.f32 %v92, %v831
    %v833 = vpop.f32.mrb[0].mxu0
    %834 = vdwg.mxu0
    %v835 = vsel %vm256, %v832, -inf
    %836 = vmax.xlane.f32.xlu0 %v835
    %v837 = vpop.xlane.xlu0 %836
    %v838 = vsub.f32 %v832, %v837
    %v839 = vmul.f32 %v838, 1.442695
    %v840 = vpow.pop %v839
    %v841 = vsel %vm256, %v840, 0.0
    %842 = vadd.xlane.f32.xlu0 %v841
    %v843 = vpop.xlane.xlu0 %842
    %v844 = vrcp.pop %v843
    %v845 = vmul.f32 %v843, %v844
    %v846 = vsub.f32 2.0, %v845
    %v847 = vmul.f32 %v844, %v846
    %v848 = vmul.f32 %v840, %v847
    %849 = vrot.lane.b32.xlu0 %v240, 40
    %v850 = vpop.permute.xlu0 %849
    %v853 = vsel %vm256, %v848, 0
    %855 = vmatprep.subr.mxu0 0.0
    %856 = vmatpush1.msra.mxu0 %v850
    %857 = vmatprep.subr.mxu0 0.0
    %858 = vmatpush1.msra.mxu0 0.0
    %859 = vmatprep.subr.mxu0 0.0
    %860 = vmatpush1.msra.mxu0 0.0
    %861 = vmatprep.subr.mxu0 0.0
    %862 = vmatpush1.msra.mxu0 0.0
    %863 = vmatprep.subr.mxu0 0.0
    %864 = vmatpush1.msra.mxu0 0.0
    %865 = vmatprep.subr.mxu0 0.0
    %866 = vmatpush1.msra.mxu0 0.0
    %867 = vmatprep.subr.mxu0 0.0
    %868 = vmatpush1.msra.mxu0 0.0
    %869 = vmatprep.subr.mxu0 0.0
    %870 = vmatpush1.msra.mxu0 0.0
    %871 = vmatprep.subr.mxu0 0.0
    %872 = vmatpush1.msra.mxu0 0.0
    %873 = vmatprep.subr.mxu0 0.0
    %874 = vmatpush1.msra.mxu0 0.0
    %875 = vmatprep.subr.mxu0 0.0
    %876 = vmatpush1.msra.mxu0 0.0
    %877 = vmatprep.subr.mxu0 0.0
    %878 = vmatpush1.msra.mxu0 0.0
    %879 = vmatprep.subr.mxu0 0.0
    %880 = vmatpush1.msra.mxu0 0.0
    %881 = vmatprep.subr.mxu0 0.0
    %882 = vmatpush1.msra.mxu0 0.0
    %883 = vmatprep.subr.mxu0 0.0
    %884 = vmatpush1.msra.mxu0 0.0
    %885 = vmatprep.subr.mxu0 0.0
    %886 = vmatpush1.msra.mxu0 0.0
    %887 = vmatprep.subr.mxu0 0.0
    %888 = vmatpush1.msra.mxu0 0.0
    %889 = vmatprep.subr.mxu0 0.0
    %890 = vmatpush1.msra.mxu0 0.0
    %891 = vmatprep.subr.mxu0 0.0
    %892 = vmatpush1.msra.mxu0 0.0
    %893 = vmatprep.subr.mxu0 0.0
    %894 = vmatpush1.msra.mxu0 0.0
    %895 = vmatprep.subr.mxu0 0.0
    %896 = vmatpush1.msra.mxu0 0.0
    %897 = vmatprep.subr.mxu0 0.0
    %898 = vmatpush1.msra.mxu0 0.0
    %899 = vmatprep.subr.mxu0 0.0
    %900 = vmatpush1.msra.mxu0 0.0
    %901 = vmatprep.subr.mxu0 0.0
    %902 = vmatpush1.msra.mxu0 0.0
    %903 = vmatprep.subr.mxu0 0.0
    %904 = vmatpush1.msra.mxu0 0.0
    %905 = vmatprep.subr.mxu0 0.0
    %906 = vmatpush1.msra.mxu0 0.0
    %907 = vmatprep.subr.mxu0 0.0
    %908 = vmatpush1.msra.mxu0 0.0
    %909 = vmatprep.subr.mxu0 0.0
    %910 = vmatpush1.msra.mxu0 0.0
    %911 = vmatprep.subr.mxu0 0.0
    %912 = vmatpush1.msra.mxu0 0.0
    %913 = vmatprep.subr.mxu0 0.0
    %914 = vmatpush1.msra.mxu0 0.0
    %915 = vmatprep.subr.mxu0 0.0
    %916 = vmatpush1.msra.mxu0 0.0
    %917 = vmatprep.subr.mxu0 0.0
    %918 = vmatpush1.msra.mxu0 0.0
    %919 = vmatprep.mubr.f32.mxu0 0.0
    %920 = vmatmul.mubr.f32.gmra.mrb[0].mxu0 %v853
    %v921 = vpop.f32.mrb[0].mxu0
    %v922 = vadd.f32 0.0, %v921
    %v923 = vpop.f32.mrb[0].mxu0
    %924 = vdwg.mxu0
    %926 = vrot.lane.b32.xlu0 %v586, 8
    %v927 = vpop.permute.xlu0 %926
    %930 = vrot.lane.b32.xlu0 %v754, 16
    %v931 = vpop.permute.xlu0 %930
    %934 = vrot.lane.b32.xlu0 %v922, 24
    %v935 = vpop.permute.xlu0 %934
    %v937 = vsel %vm256, %v418, %v927
    %vm938 = vcmask 130048
    %v939 = vsel %vm938, %v937, %v931
    %vm940 = vcmask 195584
    %v941 = vsel %vm940, %v939, %v935
    %943 = vrot.lane.b32.xlu0 %v245, 96
    %v944 = vpop.permute.xlu0 %943
    %v945 = vsel %vm256, %v245, 0
    %v947 = vsel %vm256, %v944, 0
    %949 = vmatprep.subr.mxu0 0.0
    %950 = vmatpush1.xpose.msra.mxu0 %v947
    %951 = vmatprep.subr.mxu0 0.0
    %952 = vmatpush1.xpose.msra.mxu0 0.0
    %953 = vmatprep.subr.mxu0 0.0
    %954 = vmatpush1.xpose.msra.mxu0 0.0
    %955 = vmatprep.subr.mxu0 0.0
    %956 = vmatpush1.xpose.msra.mxu0 0.0
    %957 = vmatprep.subr.mxu0 0.0
    %958 = vmatpush1.xpose.msra.mxu0 0.0
    %959 = vmatprep.subr.mxu0 0.0
    %960 = vmatpush1.xpose.msra.mxu0 0.0
    %961 = vmatprep.subr.mxu0 0.0
    %962 = vmatpush1.xpose.msra.mxu0 0.0
    %963 = vmatprep.subr.mxu0 0.0
    %964 = vmatpush1.xpose.msra.mxu0 0.0
    %965 = vmatprep.subr.mxu0 0.0
    %966 = vmatpush1.xpose.msra.mxu0 0.0
    %967 = vmatprep.subr.mxu0 0.0
    %968 = vmatpush1.xpose.msra.mxu0 0.0
    %969 = vmatprep.subr.mxu0 0.0
    %970 = vmatpush1.xpose.msra.mxu0 0.0
    %971 = vmatprep.subr.mxu0 0.0
    %972 = vmatpush1.xpose.msra.mxu0 0.0
    %973 = vmatprep.subr.mxu0 0.0
    %974 = vmatpush1.xpose.msra.mxu0 0.0
    %975 = vmatprep.subr.mxu0 0.0
    %976 = vmatpush1.xpose.msra.mxu0 0.0
    %977 = vmatprep.subr.mxu0 0.0
    %978 = vmatpush1.xpose.msra.mxu0 0.0
    %979 = vmatprep.subr.mxu0 0.0
    %980 = vmatpush1.xpose.msra.mxu0 0.0
    %981 = vmatprep.subr.mxu0 0.0
    %982 = vmatpush1.xpose.msra.mxu0 0.0
    %983 = vmatprep.subr.mxu0 0.0
    %984 = vmatpush1.xpose.msra.mxu0 0.0
    %985 = vmatprep.subr.mxu0 0.0
    %986 = vmatpush1.xpose.msra.mxu0 0.0
    %987 = vmatprep.subr.mxu0 0.0
    %988 = vmatpush1.xpose.msra.mxu0 0.0
    %989 = vmatprep.subr.mxu0 0.0
    %990 = vmatpush1.xpose.msra.mxu0 0.0
    %991 = vmatprep.subr.mxu0 0.0
    %992 = vmatpush1.xpose.msra.mxu0 0.0
    %993 = vmatprep.subr.mxu0 0.0
    %994 = vmatpush1.xpose.msra.mxu0 0.0
    %995 = vmatprep.subr.mxu0 0.0
    %996 = vmatpush1.xpose.msra.mxu0 0.0
    %997 = vmatprep.subr.mxu0 0.0
    %998 = vmatpush1.xpose.msra.mxu0 0.0
    %999 = vmatprep.subr.mxu0 0.0
    %1000 = vmatpush1.xpose.msra.mxu0 0.0
    %1001 = vmatprep.subr.mxu0 0.0
    %1002 = vmatpush1.xpose.msra.mxu0 0.0
    %1003 = vmatprep.subr.mxu0 0.0
    %1004 = vmatpush1.xpose.msra.mxu0 0.0
    %1005 = vmatprep.subr.mxu0 0.0
    %1006 = vmatpush1.xpose.msra.mxu0 0.0
    %1007 = vmatprep.subr.mxu0 0.0
    %1008 = vmatpush1.xpose.msra.mxu0 0.0
    %1009 = vmatprep.subr.mxu0 0.0
    %1010 = vmatpush1.xpose.msra.mxu0 0.0
    %1011 = vmatprep.subr.mxu0 0.0
    %1012 = vmatpush1.xpose.msra.mxu0 0.0
    %1013 = vmatprep.mubr.f32.mxu0 0.0
    %1014 = vmatmul.mubr.f32.gmra.mrb[0].mxu0 %v945
    %v1015 = vpop.f32.mrb[0].mxu0
    %v1016 = vadd.f32 %v92, %v1015
    %v1017 = vpop.f32.mrb[0].mxu0
    %1018 = vdwg.mxu0
    %v1019 = vsel %vm256, %v1016, -inf
    %1020 = vmax.xlane.f32.xlu0 %v1019
    %v1021 = vpop.xlane.xlu0 %1020
    %v1022 = vsub.f32 %v1016, %v1021
    %v1023 = vmul.f32 %v1022, 1.442695
    %v1024 = vpow.pop %v1023
    %v1025 = vsel %vm256, %v1024, 0.0
    %1026 = vadd.xlane.f32.xlu0 %v1025
    %v1027 = vpop.xlane.xlu0 %1026
    %v1028 = vrcp.pop %v1027
    %v1029 = vmul.f32 %v1027, %v1028
    %v1030 = vsub.f32 2.0, %v1029
    %v1031 = vmul.f32 %v1028, %v1030
    %v1032 = vmul.f32 %v1024, %v1031
    %1033 = vrot.lane.b32.xlu0 %v245, 64
    %v1034 = vpop.permute.xlu0 %1033
    %v1037 = vsel %vm256, %v1032, 0
    %1039 = vmatprep.subr.mxu0 0.0
    %1040 = vmatpush1.msra.mxu0 %v1034
    %1041 = vmatprep.subr.mxu0 0.0
    %1042 = vmatpush1.msra.mxu0 0.0
    %1043 = vmatprep.subr.mxu0 0.0
    %1044 = vmatpush1.msra.mxu0 0.0
    %1045 = vmatprep.subr.mxu0 0.0
    %1046 = vmatpush1.msra.mxu0 0.0
    %1047 = vmatprep.subr.mxu0 0.0
    %1048 = vmatpush1.msra.mxu0 0.0
    %1049 = vmatprep.subr.mxu0 0.0
    %1050 = vmatpush1.msra.mxu0 0.0
    %1051 = vmatprep.subr.mxu0 0.0
    %1052 = vmatpush1.msra.mxu0 0.0
    %1053 = vmatprep.subr.mxu0 0.0
    %1054 = vmatpush1.msra.mxu0 0.0
    %1055 = vmatprep.subr.mxu0 0.0
    %1056 = vmatpush1.msra.mxu0 0.0
    %1057 = vmatprep.subr.mxu0 0.0
    %1058 = vmatpush1.msra.mxu0 0.0
    %1059 = vmatprep.subr.mxu0 0.0
    %1060 = vmatpush1.msra.mxu0 0.0
    %1061 = vmatprep.subr.mxu0 0.0
    %1062 = vmatpush1.msra.mxu0 0.0
    %1063 = vmatprep.subr.mxu0 0.0
    %1064 = vmatpush1.msra.mxu0 0.0
    %1065 = vmatprep.subr.mxu0 0.0
    %1066 = vmatpush1.msra.mxu0 0.0
    %1067 = vmatprep.subr.mxu0 0.0
    %1068 = vmatpush1.msra.mxu0 0.0
    %1069 = vmatprep.subr.mxu0 0.0
    %1070 = vmatpush1.msra.mxu0 0.0
    %1071 = vmatprep.subr.mxu0 0.0
    %1072 = vmatpush1.msra.mxu0 0.0
    %1073 = vmatprep.subr.mxu0 0.0
    %1074 = vmatpush1.msra.mxu0 0.0
    %1075 = vmatprep.subr.mxu0 0.0
    %1076 = vmatpush1.msra.mxu0 0.0
    %1077 = vmatprep.subr.mxu0 0.0
    %1078 = vmatpush1.msra.mxu0 0.0
    %1079 = vmatprep.subr.mxu0 0.0
    %1080 = vmatpush1.msra.mxu0 0.0
    %1081 = vmatprep.subr.mxu0 0.0
    %1082 = vmatpush1.msra.mxu0 0.0
    %1083 = vmatprep.subr.mxu0 0.0
    %1084 = vmatpush1.msra.mxu0 0.0
    %1085 = vmatprep.subr.mxu0 0.0
    %1086 = vmatpush1.msra.mxu0 0.0
    %1087 = vmatprep.subr.mxu0 0.0
    %1088 = vmatpush1.msra.mxu0 0.0
    %1089 = vmatprep.subr.mxu0 0.0
    %1090 = vmatpush1.msra.mxu0 0.0
    %1091 = vmatprep.subr.mxu0 0.0
    %1092 = vmatpush1.msra.mxu0 0.0
    %1093 = vmatprep.subr.mxu0 0.0
    %1094 = vmatpush1.msra.mxu0 0.0
    %1095 = vmatprep.subr.mxu0 0.0
    %1096 = vmatpush1.msra.mxu0 0.0
    %1097 = vmatprep.subr.mxu0 0.0
    %1098 = vmatpush1.msra.mxu0 0.0
    %1099 = vmatprep.subr.mxu0 0.0
    %1100 = vmatpush1.msra.mxu0 0.0
    %1101 = vmatprep.subr.mxu0 0.0
    %1102 = vmatpush1.msra.mxu0 0.0
    %1103 = vmatprep.mubr.f32.mxu0 0.0
    %1104 = vmatmul.mubr.f32.gmra.mrb[0].mxu0 %v1037
    %v1105 = vpop.f32.mrb[0].mxu0
    %v1106 = vadd.f32 0.0, %v1105
    %v1107 = vpop.f32.mrb[0].mxu0
    %1108 = vdwg.mxu0
    %1109 = vrot.lane.b32.xlu0 %v245, 120
    %v1110 = vpop.permute.xlu0 %1109
    %1111 = vrot.lane.b32.xlu0 %v245, 88
    %v1112 = vpop.permute.xlu0 %1111
    %v1113 = vsel %vm256, %v1110, 0
    %v1115 = vsel %vm256, %v1112, 0
    %1117 = vmatprep.subr.mxu0 0.0
    %1118 = vmatpush1.xpose.msra.mxu0 %v1115
    %1119 = vmatprep.subr.mxu0 0.0
    %1120 = vmatpush1.xpose.msra.mxu0 0.0
    %1121 = vmatprep.subr.mxu0 0.0
    %1122 = vmatpush1.xpose.msra.mxu0 0.0
    %1123 = vmatprep.subr.mxu0 0.0
    %1124 = vmatpush1.xpose.msra.mxu0 0.0
    %1125 = vmatprep.subr.mxu0 0.0
    %1126 = vmatpush1.xpose.msra.mxu0 0.0
    %1127 = vmatprep.subr.mxu0 0.0
    %1128 = vmatpush1.xpose.msra.mxu0 0.0
    %1129 = vmatprep.subr.mxu0 0.0
    %1130 = vmatpush1.xpose.msra.mxu0 0.0
    %1131 = vmatprep.subr.mxu0 0.0
    %1132 = vmatpush1.xpose.msra.mxu0 0.0
    %1133 = vmatprep.subr.mxu0 0.0
    %1134 = vmatpush1.xpose.msra.mxu0 0.0
    %1135 = vmatprep.subr.mxu0 0.0
    %1136 = vmatpush1.xpose.msra.mxu0 0.0
    %1137 = vmatprep.subr.mxu0 0.0
    %1138 = vmatpush1.xpose.msra.mxu0 0.0
    %1139 = vmatprep.subr.mxu0 0.0
    %1140 = vmatpush1.xpose.msra.mxu0 0.0
    %1141 = vmatprep.subr.mxu0 0.0
    %1142 = vmatpush1.xpose.msra.mxu0 0.0
    %1143 = vmatprep.subr.mxu0 0.0
    %1144 = vmatpush1.xpose.msra.mxu0 0.0
    %1145 = vmatprep.subr.mxu0 0.0
    %1146 = vmatpush1.xpose.msra.mxu0 0.0
    %1147 = vmatprep.subr.mxu0 0.0
    %1148 = vmatpush1.xpose.msra.mxu0 0.0
    %1149 = vmatprep.subr.mxu0 0.0
    %1150 = vmatpush1.xpose.msra.mxu0 0.0
    %1151 = vmatprep.subr.mxu0 0.0
    %1152 = vmatpush1.xpose.msra.mxu0 0.0
    %1153 = vmatprep.subr.mxu0 0.0
    %1154 = vmatpush1.xpose.msra.mxu0 0.0
    %1155 = vmatprep.subr.mxu0 0.0
    %1156 = vmatpush1.xpose.msra.mxu0 0.0
    %1157 = vmatprep.subr.mxu0 0.0
    %1158 = vmatpush1.xpose.msra.mxu0 0.0
    %1159 = vmatprep.subr.mxu0 0.0
    %1160 = vmatpush1.xpose.msra.mxu0 0.0
    %1161 = vmatprep.subr.mxu0 0.0
    %1162 = vmatpush1.xpose.msra.mxu0 0.0
    %1163 = vmatprep.subr.mxu0 0.0
    %1164 = vmatpush1.xpose.msra.mxu0 0.0
    %1165 = vmatprep.subr.mxu0 0.0
    %1166 = vmatpush1.xpose.msra.mxu0 0.0
    %1167 = vmatprep.subr.mxu0 0.0
    %1168 = vmatpush1.xpose.msra.mxu0 0.0
    %1169 = vmatprep.subr.mxu0 0.0
    %1170 = vmatpush1.xpose.msra.mxu0 0.0
    %1171 = vmatprep.subr.mxu0 0.0
    %1172 = vmatpush1.xpose.msra.mxu0 0.0
    %1173 = vmatprep.subr.mxu0 0.0
    %1174 = vmatpush1.xpose.msra.mxu0 0.0
    %1175 = vmatprep.subr.mxu0 0.0
    %1176 = vmatpush1.xpose.msra.mxu0 0.0
    %1177 = vmatprep.subr.mxu0 0.0
    %1178 = vmatpush1.xpose.msra.mxu0 0.0
    %1179 = vmatprep.subr.mxu0 0.0
    %1180 = vmatpush1.xpose.msra.mxu0 0.0
    %1181 = vmatprep.mubr.f32.mxu0 0.0
    %1182 = vmatmul.mubr.f32.gmra.mrb[0].mxu0 %v1113
    %v1183 = vpop.f32.mrb[0].mxu0
    %v1184 = vadd.f32 %v92, %v1183
    %v1185 = vpop.f32.mrb[0].mxu0
    %1186 = vdwg.mxu0
    %v1187 = vsel %vm256, %v1184, -inf
    %1188 = vmax.xlane.f32.xlu0 %v1187
    %v1189 = vpop.xlane.xlu0 %1188
    %v1190 = vsub.f32 %v1184, %v1189
    %v1191 = vmul.f32 %v1190, 1.442695
    %v1192 = vpow.pop %v1191
    %v1193 = vsel %vm256, %v1192, 0.0
    %1194 = vadd.xlane.f32.xlu0 %v1193
    %v1195 = vpop.xlane.xlu0 %1194
    %v1196 = vrcp.pop %v1195
    %v1197 = vmul.f32 %v1195, %v1196
    %v1198 = vsub.f32 2.0, %v1197
    %v1199 = vmul.f32 %v1196, %v1198
    %v1200 = vmul.f32 %v1192, %v1199
    %1201 = vrot.lane.b32.xlu0 %v245, 56
    %v1202 = vpop.permute.xlu0 %1201
    %v1205 = vsel %vm256, %v1200, 0
    %1207 = vmatprep.subr.mxu0 0.0
    %1208 = vmatpush1.msra.mxu0 %v1202
    %1209 = vmatprep.subr.mxu0 0.0
    %1210 = vmatpush1.msra.mxu0 0.0
    %1211 = vmatprep.subr.mxu0 0.0
    %1212 = vmatpush1.msra.mxu0 0.0
    %1213 = vmatprep.subr.mxu0 0.0
    %1214 = vmatpush1.msra.mxu0 0.0
    %1215 = vmatprep.subr.mxu0 0.0
    %1216 = vmatpush1.msra.mxu0 0.0
    %1217 = vmatprep.subr.mxu0 0.0
    %1218 = vmatpush1.msra.mxu0 0.0
    %1219 = vmatprep.subr.mxu0 0.0
    %1220 = vmatpush1.msra.mxu0 0.0
    %1221 = vmatprep.subr.mxu0 0.0
    %1222 = vmatpush1.msra.mxu0 0.0
    %1223 = vmatprep.subr.mxu0 0.0
    %1224 = vmatpush1.msra.mxu0 0.0
    %1225 = vmatprep.subr.mxu0 0.0
    %1226 = vmatpush1.msra.mxu0 0.0
    %1227 = vmatprep.subr.mxu0 0.0
    %1228 = vmatpush1.msra.mxu0 0.0
    %1229 = vmatprep.subr.mxu0 0.0
    %1230 = vmatpush1.msra.mxu0 0.0
    %1231 = vmatprep.subr.mxu0 0.0
    %1232 = vmatpush1.msra.mxu0 0.0
    %1233 = vmatprep.subr.mxu0 0.0
    %1234 = vmatpush1.msra.mxu0 0.0
    %1235 = vmatprep.subr.mxu0 0.0
    %1236 = vmatpush1.msra.mxu0 0.0
    %1237 = vmatprep.subr.mxu0 0.0
    %1238 = vmatpush1.msra.mxu0 0.0
    %1239 = vmatprep.subr.mxu0 0.0
    %1240 = vmatpush1.msra.mxu0 0.0
    %1241 = vmatprep.subr.mxu0 0.0
    %1242 = vmatpush1.msra.mxu0 0.0
    %1243 = vmatprep.subr.mxu0 0.0
    %1244 = vmatpush1.msra.mxu0 0.0
    %1245 = vmatprep.subr.mxu0 0.0
    %1246 = vmatpush1.msra.mxu0 0.0
    %1247 = vmatprep.subr.mxu0 0.0
    %1248 = vmatpush1.msra.mxu0 0.0
    %1249 = vmatprep.subr.mxu0 0.0
    %1250 = vmatpush1.msra.mxu0 0.0
    %1251 = vmatprep.subr.mxu0 0.0
    %1252 = vmatpush1.msra.mxu0 0.0
    %1253 = vmatprep.subr.mxu0 0.0
    %1254 = vmatpush1.msra.mxu0 0.0
    %1255 = vmatprep.subr.mxu0 0.0
    %1256 = vmatpush1.msra.mxu0 0.0
    %1257 = vmatprep.subr.mxu0 0.0
    %1258 = vmatpush1.msra.mxu0 0.0
    %1259 = vmatprep.subr.mxu0 0.0
    %1260 = vmatpush1.msra.mxu0 0.0
    %1261 = vmatprep.subr.mxu0 0.0
    %1262 = vmatpush1.msra.mxu0 0.0
    %1263 = vmatprep.subr.mxu0 0.0
    %1264 = vmatpush1.msra.mxu0 0.0
    %1265 = vmatprep.subr.mxu0 0.0
    %1266 = vmatpush1.msra.mxu0 0.0
    %1267 = vmatprep.subr.mxu0 0.0
    %1268 = vmatpush1.msra.mxu0 0.0
    %1269 = vmatprep.subr.mxu0 0.0
    %1270 = vmatpush1.msra.mxu0 0.0
    %1271 = vmatprep.mubr.f32.mxu0 0.0
    %1272 = vmatmul.mubr.f32.gmra.mrb[0].mxu0 %v1205
    %v1273 = vpop.f32.mrb[0].mxu0
    %v1274 = vadd.f32 0.0, %v1273
    %v1275 = vpop.f32.mrb[0].mxu0
    %1276 = vdwg.mxu0
    %1277 = vrot.lane.b32.xlu0 %v245, 112
    %v1278 = vpop.permute.xlu0 %1277
    %1279 = vrot.lane.b32.xlu0 %v245, 80
    %v1280 = vpop.permute.xlu0 %1279
    %v1281 = vsel %vm256, %v1278, 0
    %v1283 = vsel %vm256, %v1280, 0
    %1285 = vmatprep.subr.mxu0 0.0
    %1286 = vmatpush1.xpose.msra.mxu0 %v1283
    %1287 = vmatprep.subr.mxu0 0.0
    %1288 = vmatpush1.xpose.msra.mxu0 0.0
    %1289 = vmatprep.subr.mxu0 0.0
    %1290 = vmatpush1.xpose.msra.mxu0 0.0
    %1291 = vmatprep.subr.mxu0 0.0
    %1292 = vmatpush1.xpose.msra.mxu0 0.0
    %1293 = vmatprep.subr.mxu0 0.0
    %1294 = vmatpush1.xpose.msra.mxu0 0.0
    %1295 = vmatprep.subr.mxu0 0.0
    %1296 = vmatpush1.xpose.msra.mxu0 0.0
    %1297 = vmatprep.subr.mxu0 0.0
    %1298 = vmatpush1.xpose.msra.mxu0 0.0
    %1299 = vmatprep.subr.mxu0 0.0
    %1300 = vmatpush1.xpose.msra.mxu0 0.0
    %1301 = vmatprep.subr.mxu0 0.0
    %1302 = vmatpush1.xpose.msra.mxu0 0.0
    %1303 = vmatprep.subr.mxu0 0.0
    %1304 = vmatpush1.xpose.msra.mxu0 0.0
    %1305 = vmatprep.subr.mxu0 0.0
    %1306 = vmatpush1.xpose.msra.mxu0 0.0
    %1307 = vmatprep.subr.mxu0 0.0
    %1308 = vmatpush1.xpose.msra.mxu0 0.0
    %1309 = vmatprep.subr.mxu0 0.0
    %1310 = vmatpush1.xpose.msra.mxu0 0.0
    %1311 = vmatprep.subr.mxu0 0.0
    %1312 = vmatpush1.xpose.msra.mxu0 0.0
    %1313 = vmatprep.subr.mxu0 0.0
    %1314 = vmatpush1.xpose.msra.mxu0 0.0
    %1315 = vmatprep.subr.mxu0 0.0
    %1316 = vmatpush1.xpose.msra.mxu0 0.0
    %1317 = vmatprep.subr.mxu0 0.0
    %1318 = vmatpush1.xpose.msra.mxu0 0.0
    %1319 = vmatprep.subr.mxu0 0.0
    %1320 = vmatpush1.xpose.msra.mxu0 0.0
    %1321 = vmatprep.subr.mxu0 0.0
    %1322 = vmatpush1.xpose.msra.mxu0 0.0
    %1323 = vmatprep.subr.mxu0 0.0
    %1324 = vmatpush1.xpose.msra.mxu0 0.0
    %1325 = vmatprep.subr.mxu0 0.0
    %1326 = vmatpush1.xpose.msra.mxu0 0.0
    %1327 = vmatprep.subr.mxu0 0.0
    %1328 = vmatpush1.xpose.msra.mxu0 0.0
    %1329 = vmatprep.subr.mxu0 0.0
    %1330 = vmatpush1.xpose.msra.mxu0 0.0
    %1331 = vmatprep.subr.mxu0 0.0
    %1332 = vmatpush1.xpose.msra.mxu0 0.0
    %1333 = vmatprep.subr.mxu0 0.0
    %1334 = vmatpush1.xpose.msra.mxu0 0.0
    %1335 = vmatprep.subr.mxu0 0.0
    %1336 = vmatpush1.xpose.msra.mxu0 0.0
    %1337 = vmatprep.subr.mxu0 0.0
    %1338 = vmatpush1.xpose.msra.mxu0 0.0
    %1339 = vmatprep.subr.mxu0 0.0
    %1340 = vmatpush1.xpose.msra.mxu0 0.0
    %1341 = vmatprep.subr.mxu0 0.0
    %1342 = vmatpush1.xpose.msra.mxu0 0.0
    %1343 = vmatprep.subr.mxu0 0.0
    %1344 = vmatpush1.xpose.msra.mxu0 0.0
    %1345 = vmatprep.subr.mxu0 0.0
    %1346 = vmatpush1.xpose.msra.mxu0 0.0
    %1347 = vmatprep.subr.mxu0 0.0
    %1348 = vmatpush1.xpose.msra.mxu0 0.0
    %1349 = vmatprep.mubr.f32.mxu0 0.0
    %1350 = vmatmul.mubr.f32.gmra.mrb[0].mxu0 %v1281
    %v1351 = vpop.f32.mrb[0].mxu0
    %v1352 = vadd.f32 %v92, %v1351
    %v1353 = vpop.f32.mrb[0].mxu0
    %1354 = vdwg.mxu0
    %v1355 = vsel %vm256, %v1352, -inf
    %1356 = vmax.xlane.f32.xlu0 %v1355
    %v1357 = vpop.xlane.xlu0 %1356
    %v1358 = vsub.f32 %v1352, %v1357
    %v1359 = vmul.f32 %v1358, 1.442695
    %v1360 = vpow.pop %v1359
    %v1361 = vsel %vm256, %v1360, 0.0
    %1362 = vadd.xlane.f32.xlu0 %v1361
    %v1363 = vpop.xlane.xlu0 %1362
    %v1364 = vrcp.pop %v1363
    %v1365 = vmul.f32 %v1363, %v1364
    %v1366 = vsub.f32 2.0, %v1365
    %v1367 = vmul.f32 %v1364, %v1366
    %v1368 = vmul.f32 %v1360, %v1367
    %1369 = vrot.lane.b32.xlu0 %v245, 48
    %v1370 = vpop.permute.xlu0 %1369
    %v1373 = vsel %vm256, %v1368, 0
    %1375 = vmatprep.subr.mxu0 0.0
    %1376 = vmatpush1.msra.mxu0 %v1370
    %1377 = vmatprep.subr.mxu0 0.0
    %1378 = vmatpush1.msra.mxu0 0.0
    %1379 = vmatprep.subr.mxu0 0.0
    %1380 = vmatpush1.msra.mxu0 0.0
    %1381 = vmatprep.subr.mxu0 0.0
    %1382 = vmatpush1.msra.mxu0 0.0
    %1383 = vmatprep.subr.mxu0 0.0
    %1384 = vmatpush1.msra.mxu0 0.0
    %1385 = vmatprep.subr.mxu0 0.0
    %1386 = vmatpush1.msra.mxu0 0.0
    %1387 = vmatprep.subr.mxu0 0.0
    %1388 = vmatpush1.msra.mxu0 0.0
    %1389 = vmatprep.subr.mxu0 0.0
    %1390 = vmatpush1.msra.mxu0 0.0
    %1391 = vmatprep.subr.mxu0 0.0
    %1392 = vmatpush1.msra.mxu0 0.0
    %1393 = vmatprep.subr.mxu0 0.0
    %1394 = vmatpush1.msra.mxu0 0.0
    %1395 = vmatprep.subr.mxu0 0.0
    %1396 = vmatpush1.msra.mxu0 0.0
    %1397 = vmatprep.subr.mxu0 0.0
    %1398 = vmatpush1.msra.mxu0 0.0
    %1399 = vmatprep.subr.mxu0 0.0
    %1400 = vmatpush1.msra.mxu0 0.0
    %1401 = vmatprep.subr.mxu0 0.0
    %1402 = vmatpush1.msra.mxu0 0.0
    %1403 = vmatprep.subr.mxu0 0.0
    %1404 = vmatpush1.msra.mxu0 0.0
    %1405 = vmatprep.subr.mxu0 0.0
    %1406 = vmatpush1.msra.mxu0 0.0
    %1407 = vmatprep.subr.mxu0 0.0
    %1408 = vmatpush1.msra.mxu0 0.0
    %1409 = vmatprep.subr.mxu0 0.0
    %1410 = vmatpush1.msra.mxu0 0.0
    %1411 = vmatprep.subr.mxu0 0.0
    %1412 = vmatpush1.msra.mxu0 0.0
    %1413 = vmatprep.subr.mxu0 0.0
    %1414 = vmatpush1.msra.mxu0 0.0
    %1415 = vmatprep.subr.mxu0 0.0
    %1416 = vmatpush1.msra.mxu0 0.0
    %1417 = vmatprep.subr.mxu0 0.0
    %1418 = vmatpush1.msra.mxu0 0.0
    %1419 = vmatprep.subr.mxu0 0.0
    %1420 = vmatpush1.msra.mxu0 0.0
    %1421 = vmatprep.subr.mxu0 0.0
    %1422 = vmatpush1.msra.mxu0 0.0
    %1423 = vmatprep.subr.mxu0 0.0
    %1424 = vmatpush1.msra.mxu0 0.0
    %1425 = vmatprep.subr.mxu0 0.0
    %1426 = vmatpush1.msra.mxu0 0.0
    %1427 = vmatprep.subr.mxu0 0.0
    %1428 = vmatpush1.msra.mxu0 0.0
    %1429 = vmatprep.subr.mxu0 0.0
    %1430 = vmatpush1.msra.mxu0 0.0
    %1431 = vmatprep.subr.mxu0 0.0
    %1432 = vmatpush1.msra.mxu0 0.0
    %1433 = vmatprep.subr.mxu0 0.0
    %1434 = vmatpush1.msra.mxu0 0.0
    %1435 = vmatprep.subr.mxu0 0.0
    %1436 = vmatpush1.msra.mxu0 0.0
    %1437 = vmatprep.subr.mxu0 0.0
    %1438 = vmatpush1.msra.mxu0 0.0
    %1439 = vmatprep.mubr.f32.mxu0 0.0
    %1440 = vmatmul.mubr.f32.gmra.mrb[0].mxu0 %v1373
    %v1441 = vpop.f32.mrb[0].mxu0
    %v1442 = vadd.f32 0.0, %v1441
    %v1443 = vpop.f32.mrb[0].mxu0
    %1444 = vdwg.mxu0
    %1445 = vrot.lane.b32.xlu0 %v245, 104
    %v1446 = vpop.permute.xlu0 %1445
    %1447 = vrot.lane.b32.xlu0 %v245, 72
    %v1448 = vpop.permute.xlu0 %1447
    %v1449 = vsel %vm256, %v1446, 0
    %v1451 = vsel %vm256, %v1448, 0
    %1453 = vmatprep.subr.mxu0 0.0
    %1454 = vmatpush1.xpose.msra.mxu0 %v1451
    %1455 = vmatprep.subr.mxu0 0.0
    %1456 = vmatpush1.xpose.msra.mxu0 0.0
    %1457 = vmatprep.subr.mxu0 0.0
    %1458 = vmatpush1.xpose.msra.mxu0 0.0
    %1459 = vmatprep.subr.mxu0 0.0
    %1460 = vmatpush1.xpose.msra.mxu0 0.0
    %1461 = vmatprep.subr.mxu0 0.0
    %1462 = vmatpush1.xpose.msra.mxu0 0.0
    %1463 = vmatprep.subr.mxu0 0.0
    %1464 = vmatpush1.xpose.msra.mxu0 0.0
    %1465 = vmatprep.subr.mxu0 0.0
    %1466 = vmatpush1.xpose.msra.mxu0 0.0
    %1467 = vmatprep.subr.mxu0 0.0
    %1468 = vmatpush1.xpose.msra.mxu0 0.0
    %1469 = vmatprep.subr.mxu0 0.0
    %1470 = vmatpush1.xpose.msra.mxu0 0.0
    %1471 = vmatprep.subr.mxu0 0.0
    %1472 = vmatpush1.xpose.msra.mxu0 0.0
    %1473 = vmatprep.subr.mxu0 0.0
    %1474 = vmatpush1.xpose.msra.mxu0 0.0
    %1475 = vmatprep.subr.mxu0 0.0
    %1476 = vmatpush1.xpose.msra.mxu0 0.0
    %1477 = vmatprep.subr.mxu0 0.0
    %1478 = vmatpush1.xpose.msra.mxu0 0.0
    %1479 = vmatprep.subr.mxu0 0.0
    %1480 = vmatpush1.xpose.msra.mxu0 0.0
    %1481 = vmatprep.subr.mxu0 0.0
    %1482 = vmatpush1.xpose.msra.mxu0 0.0
    %1483 = vmatprep.subr.mxu0 0.0
    %1484 = vmatpush1.xpose.msra.mxu0 0.0
    %1485 = vmatprep.subr.mxu0 0.0
    %1486 = vmatpush1.xpose.msra.mxu0 0.0
    %1487 = vmatprep.subr.mxu0 0.0
    %1488 = vmatpush1.xpose.msra.mxu0 0.0
    %1489 = vmatprep.subr.mxu0 0.0
    %1490 = vmatpush1.xpose.msra.mxu0 0.0
    %1491 = vmatprep.subr.mxu0 0.0
    %1492 = vmatpush1.xpose.msra.mxu0 0.0
    %1493 = vmatprep.subr.mxu0 0.0
    %1494 = vmatpush1.xpose.msra.mxu0 0.0
    %1495 = vmatprep.subr.mxu0 0.0
    %1496 = vmatpush1.xpose.msra.mxu0 0.0
    %1497 = vmatprep.subr.mxu0 0.0
    %1498 = vmatpush1.xpose.msra.mxu0 0.0
    %1499 = vmatprep.subr.mxu0 0.0
    %1500 = vmatpush1.xpose.msra.mxu0 0.0
    %1501 = vmatprep.subr.mxu0 0.0
    %1502 = vmatpush1.xpose.msra.mxu0 0.0
    %1503 = vmatprep.subr.mxu0 0.0
    %1504 = vmatpush1.xpose.msra.mxu0 0.0
    %1505 = vmatprep.subr.mxu0 0.0
    %1506 = vmatpush1.xpose.msra.mxu0 0.0
    %1507 = vmatprep.subr.mxu0 0.0
    %1508 = vmatpush1.xpose.msra.mxu0 0.0
    %1509 = vmatprep.subr.mxu0 0.0
    %1510 = vmatpush1.xpose.msra.mxu0 0.0
    %1511 = vmatprep.subr.mxu0 0.0
    %1512 = vmatpush1.xpose.msra.mxu0 0.0
    %1513 = vmatprep.subr.mxu0 0.0
    %1514 = vmatpush1.xpose.msra.mxu0 0.0
    %1515 = vmatprep.subr.mxu0 0.0
    %1516 = vmatpush1.xpose.msra.mxu0 0.0
    %1517 = vmatprep.mubr.f32.mxu0 0.0
    %1518 = vmatmul.mubr.f32.gmra.mrb[0].mxu0 %v1449
    %v1519 = vpop.f32.mrb[0].mxu0
    %v1520 = vadd.f32 %v92, %v1519
    %v1521 = vpop.f32.mrb[0].mxu0
    %1522 = vdwg.mxu0
    %v1523 = vsel %vm256, %v1520, -inf
    %1524 = vmax.xlane.f32.xlu0 %v1523
    %v1525 = vpop.xlane.xlu0 %1524
    %v1526 = vsub.f32 %v1520, %v1525
    %v1527 = vmul.f32 %v1526, 1.442695
    %v1528 = vpow.pop %v1527
    %v1529 = vsel %vm256, %v1528, 0.0
    %1530 = vadd.xlane.f32.xlu0 %v1529
    %v1531 = vpop.xlane.xlu0 %1530
    %v1532 = vrcp.pop %v1531
    %v1533 = vmul.f32 %v1531, %v1532
    %v1534 = vsub.f32 2.0, %v1533
    %v1535 = vmul.f32 %v1532, %v1534
    %v1536 = vmul.f32 %v1528, %v1535
    %1537 = vrot.lane.b32.xlu0 %v245, 40
    %v1538 = vpop.permute.xlu0 %1537
    %v1541 = vsel %vm256, %v1536, 0
    %1543 = vmatprep.subr.mxu0 0.0
    %1544 = vmatpush1.msra.mxu0 %v1538
    %1545 = vmatprep.subr.mxu0 0.0
    %1546 = vmatpush1.msra.mxu0 0.0
    %1547 = vmatprep.subr.mxu0 0.0
    %1548 = vmatpush1.msra.mxu0 0.0
    %1549 = vmatprep.subr.mxu0 0.0
    %1550 = vmatpush1.msra.mxu0 0.0
    %1551 = vmatprep.subr.mxu0 0.0
    %1552 = vmatpush1.msra.mxu0 0.0
    %1553 = vmatprep.subr.mxu0 0.0
    %1554 = vmatpush1.msra.mxu0 0.0
    %1555 = vmatprep.subr.mxu0 0.0
    %1556 = vmatpush1.msra.mxu0 0.0
    %1557 = vmatprep.subr.mxu0 0.0
    %1558 = vmatpush1.msra.mxu0 0.0
    %1559 = vmatprep.subr.mxu0 0.0
    %1560 = vmatpush1.msra.mxu0 0.0
    %1561 = vmatprep.subr.mxu0 0.0
    %1562 = vmatpush1.msra.mxu0 0.0
    %1563 = vmatprep.subr.mxu0 0.0
    %1564 = vmatpush1.msra.mxu0 0.0
    %1565 = vmatprep.subr.mxu0 0.0
    %1566 = vmatpush1.msra.mxu0 0.0
    %1567 = vmatprep.subr.mxu0 0.0
    %1568 = vmatpush1.msra.mxu0 0.0
    %1569 = vmatprep.subr.mxu0 0.0
    %1570 = vmatpush1.msra.mxu0 0.0
    %1571 = vmatprep.subr.mxu0 0.0
    %1572 = vmatpush1.msra.mxu0 0.0
    %1573 = vmatprep.subr.mxu0 0.0
    %1574 = vmatpush1.msra.mxu0 0.0
    %1575 = vmatprep.subr.mxu0 0.0
    %1576 = vmatpush1.msra.mxu0 0.0
    %1577 = vmatprep.subr.mxu0 0.0
    %1578 = vmatpush1.msra.mxu0 0.0
    %1579 = vmatprep.subr.mxu0 0.0
    %1580 = vmatpush1.msra.mxu0 0.0
    %1581 = vmatprep.subr.mxu0 0.0
    %1582 = vmatpush1.msra.mxu0 0.0
    %1583 = vmatprep.subr.mxu0 0.0
    %1584 = vmatpush1.msra.mxu0 0.0
    %1585 = vmatprep.subr.mxu0 0.0
    %1586 = vmatpush1.msra.mxu0 0.0
    %1587 = vmatprep.subr.mxu0 0.0
    %1588 = vmatpush1.msra.mxu0 0.0
    %1589 = vmatprep.subr.mxu0 0.0
    %1590 = vmatpush1.msra.mxu0 0.0
    %1591 = vmatprep.subr.mxu0 0.0
    %1592 = vmatpush1.msra.mxu0 0.0
    %1593 = vmatprep.subr.mxu0 0.0
    %1594 = vmatpush1.msra.mxu0 0.0
    %1595 = vmatprep.subr.mxu0 0.0
    %1596 = vmatpush1.msra.mxu0 0.0
    %1597 = vmatprep.subr.mxu0 0.0
    %1598 = vmatpush1.msra.mxu0 0.0
    %1599 = vmatprep.subr.mxu0 0.0
    %1600 = vmatpush1.msra.mxu0 0.0
    %1601 = vmatprep.subr.mxu0 0.0
    %1602 = vmatpush1.msra.mxu0 0.0
    %1603 = vmatprep.subr.mxu0 0.0
    %1604 = vmatpush1.msra.mxu0 0.0
    %1605 = vmatprep.subr.mxu0 0.0
    %1606 = vmatpush1.msra.mxu0 0.0
    %1607 = vmatprep.mubr.f32.mxu0 0.0
    %1608 = vmatmul.mubr.f32.gmra.mrb[0].mxu0 %v1541
    %v1609 = vpop.f32.mrb[0].mxu0
    %v1610 = vadd.f32 0.0, %v1609
    %v1611 = vpop.f32.mrb[0].mxu0
    %1612 = vdwg.mxu0
    %1614 = vrot.lane.b32.xlu0 %v1274, 8
    %v1615 = vpop.permute.xlu0 %1614
    %1618 = vrot.lane.b32.xlu0 %v1442, 16
    %v1619 = vpop.permute.xlu0 %1618
    %1622 = vrot.lane.b32.xlu0 %v1610, 24
    %v1623 = vpop.permute.xlu0 %1622
    %v1625 = vsel %vm256, %v1106, %v1615
    %v1626 = vsel %vm938, %v1625, %v1619
    %v1627 = vsel %vm940, %v1626, %v1623
    %v1628 = vlaneseq
    %v1629 = vshrl.u32 %v1628, 7
    %v1630 = vsub.s32 0, %v1629
    %v1631 = vrot.slane %v252, %v1630
    %v1633 = vsel %vm98, %v941, 0
    %v1636 = vsel %vm98, %v1627, 0
    %1638 = vmatprep.subr.mxu0 0.0
    %1639 = vmatpush1.msra.mxu0 %v248
    %1640 = vmatprep.subr.mxu0 0.0
    %1641 = vmatpush1.msra.mxu0 %v249
    %1642 = vmatprep.subr.mxu0 0.0
    %1643 = vmatpush1.msra.mxu0 %v250
    %1644 = vmatprep.subr.mxu0 0.0
    %1645 = vmatpush1.msra.mxu0 %v251
    %1646 = vmatprep.subr.mxu0 0.0
    %1647 = vmatpush1.msra.mxu0 0.0
    %1648 = vmatprep.subr.mxu0 0.0
    %1649 = vmatpush1.msra.mxu0 0.0
    %1650 = vmatprep.subr.mxu0 0.0
    %1651 = vmatpush1.msra.mxu0 0.0
    %1652 = vmatprep.subr.mxu0 0.0
    %1653 = vmatpush1.msra.mxu0 0.0
    %1654 = vmatprep.subr.mxu0 0.0
    %1655 = vmatpush1.msra.mxu0 0.0
    %1656 = vmatprep.subr.mxu0 0.0
    %1657 = vmatpush1.msra.mxu0 0.0
    %1658 = vmatprep.subr.mxu0 0.0
    %1659 = vmatpush1.msra.mxu0 0.0
    %1660 = vmatprep.subr.mxu0 0.0
    %1661 = vmatpush1.msra.mxu0 0.0
    %1662 = vmatprep.subr.mxu0 0.0
    %1663 = vmatpush1.msra.mxu0 0.0
    %1664 = vmatprep.subr.mxu0 0.0
    %1665 = vmatpush1.msra.mxu0 0.0
    %1666 = vmatprep.subr.mxu0 0.0
    %1667 = vmatpush1.msra.mxu0 0.0
    %1668 = vmatprep.subr.mxu0 0.0
    %1669 = vmatpush1.msra.mxu0 0.0
    %1670 = vmatprep.subr.mxu0 0.0
    %1671 = vmatpush1.msra.mxu0 0.0
    %1672 = vmatprep.subr.mxu0 0.0
    %1673 = vmatpush1.msra.mxu0 0.0
    %1674 = vmatprep.subr.mxu0 0.0
    %1675 = vmatpush1.msra.mxu0 0.0
    %1676 = vmatprep.subr.mxu0 0.0
    %1677 = vmatpush1.msra.mxu0 0.0
    %1678 = vmatprep.subr.mxu0 0.0
    %1679 = vmatpush1.msra.mxu0 0.0
    %1680 = vmatprep.subr.mxu0 0.0
    %1681 = vmatpush1.msra.mxu0 0.0
    %1682 = vmatprep.subr.mxu0 0.0
    %1683 = vmatpush1.msra.mxu0 0.0
    %1684 = vmatprep.subr.mxu0 0.0
    %1685 = vmatpush1.msra.mxu0 0.0
    %1686 = vmatprep.subr.mxu0 0.0
    %1687 = vmatpush1.msra.mxu0 0.0
    %1688 = vmatprep.subr.mxu0 0.0
    %1689 = vmatpush1.msra.mxu0 0.0
    %1690 = vmatprep.subr.mxu0 0.0
    %1691 = vmatpush1.msra.mxu0 0.0
    %1692 = vmatprep.subr.mxu0 0.0
    %1693 = vmatpush1.msra.mxu0 0.0
    %1694 = vmatprep.subr.mxu0 0.0
    %1695 = vmatpush1.msra.mxu0 0.0
    %1696 = vmatprep.subr.mxu0 0.0
    %1697 = vmatpush1.msra.mxu0 0.0
    %1698 = vmatprep.subr.mxu0 0.0
    %1699 = vmatpush1.msra.mxu0 0.0
    %1700 = vmatprep.subr.mxu0 0.0
    %1701 = vmatpush1.msra.mxu0 0.0
    %1702 = vmatprep.mubr.f32.mxu0 0.0
    %1703 = vmatmul.mubr.f32.gmra.mrb[0].mxu0 %v1633
    %v1704 = vpop.f32.mrb[0].mxu0
    %v1705 = vadd.f32 %v1631, %v1704
    %v1706 = vpop.f32.mrb[0].mxu0
    %1707 = vmatprep.mubr.f32.mxu0 0.0
    %1708 = vmatmul.mubr.f32.gmra.mrb[0].mxu0 %v1636
    %v1709 = vpop.f32.mrb[0].mxu0
    %v1710 = vadd.f32 %v1631, %v1709
    %v1711 = vpop.f32.mrb[0].mxu0
    %1712 = vdwg.mxu0
    %v1713 = vadd.f32 %v87, %v1705
    %v1714 = vadd.f32 %v88, %v1710
    %v1715 = vsel %vm98, %v1713, 0.0
    %1716 = vadd.xlane.f32.xlu0 %v1715
    %v1717 = vpop.xlane.xlu0 %1716
    %v1718 = vsel %vm98, %v1714, 0.0
    %1719 = vadd.xlane.f32.xlu0 %v1718
    %v1720 = vpop.xlane.xlu0 %1719
    %v1721 = vmul.f32 %v1717, %v105
    %v1722 = vmul.f32 %v1720, %v105
    %v1723 = vsub.f32 %v1713, %v1721
    %v1724 = vsub.f32 %v1714, %v1722
    %v1725 = vmul.f32 %v1723, %v1723
    %v1726 = vmul.f32 %v1724, %v1724
    %v1727 = vsel %vm98, %v1725, 0.0
    %1728 = vadd.xlane.f32.xlu0 %v1727
    %v1729 = vpop.xlane.xlu0 %1728
    %v1730 = vsel %vm98, %v1726, 0.0
    %1731 = vadd.xlane.f32.xlu0 %v1730
    %v1732 = vpop.xlane.xlu0 %1731
    %v1733 = vmul.f32 %v1729, 0.032258064
    %v1734 = vmul.f32 %v1732, 0.032258064
    %v1735 = vrsqrt.pop %v1733
    %v1736 = vmul.f32 %v1733, %v1735
    %vm1737 = vcmp.eq.f32.partialorder %v1733, inf
    %v1738 = vsel %vm1737, %v1733, %v1736
    %vm1739 = vcmp.eq.f32.partialorder %v1733, 0.0
    %v1740 = vand.u32 %v1733, 2147483648
    %v1741 = vsel %vm1739, %v1740, %v1738
    %v1742 = vrsqrt.pop %v1734
    %v1743 = vmul.f32 %v1734, %v1742
    %vm1744 = vcmp.eq.f32.partialorder %v1734, inf
    %v1745 = vsel %vm1744, %v1734, %v1743
    %vm1746 = vcmp.eq.f32.partialorder %v1734, 0.0
    %v1747 = vand.u32 %v1734, 2147483648
    %v1748 = vsel %vm1746, %v1747, %v1745
    %v1749 = vlaneseq
    %v1750 = vshrl.u32 %v1749, 7
    %v1751 = vsub.s32 1, %v1750
    %v1752 = vrot.slane %v96, %v1751
    %v1753 = vmul.f32 %v1752, %v1723
    %v1754 = vmul.f32 %v1752, %v1724
    %v1755 = vadd.f32 %v1741, 1e-06
    %v1756 = vadd.f32 %v1748, 1e-06
    %v1757 = vrcp.pop %v1755
    %v1758 = vrcp.pop %v1756
    %v1759 = vmul.f32 %v1755, %v1757
    %v1760 = vmul.f32 %v1756, %v1758
    %v1761 = vsub.f32 2.0, %v1759
    %v1762 = vsub.f32 2.0, %v1760
    %v1763 = vmul.f32 %v1757, %v1761
    %v1764 = vmul.f32 %v1758, %v1762
    %v1765 = vmul.f32 %v1753, %v1763
    %v1766 = vmul.f32 %v1754, %v1764
    %v1767 = vlaneseq
    %v1768 = vshrl.u32 %v1767, 7
    %v1769 = vsub.s32 1, %v1768
    %v1770 = vrot.slane %v97, %v1769
    %v1771 = vadd.f32 %v1765, %v1770
    %v1772 = vadd.f32 %v1766, %v1770
    %v1773 = vld [vmem:[#allocation10 + $0x50] sm:$0xff]
    %v1774 = vld [vmem:[#allocation10 + $0x58] sm:$0xff]
    %v1775 = vld [vmem:[#allocation10 + $0x60] sm:$0xff]
    %v1776 = vld [vmem:[#allocation10 + $0x68] sm:$0xff]
    %v1777 = vld [vmem:[#allocation10 + $0x70] sm:$0x1]
    %v1778 = vlaneseq
    %v1779 = vshrl.u32 %v1778, 7
    %v1780 = vsub.s32 0, %v1779
    %v1781 = vrot.slane %v1777, %v1780
    %v1783 = vsel %vm98, %v1771, 0
    %v1786 = vsel %vm98, %v1772, 0
    %1788 = vmatprep.subr.mxu0 0.0
    %1789 = vmatpush1.msra.mxu0 %v1773
    %1790 = vmatprep.subr.mxu0 0.0
    %1791 = vmatpush1.msra.mxu0 %v1774
    %1792 = vmatprep.subr.mxu0 0.0
    %1793 = vmatpush1.msra.mxu0 %v1775
    %1794 = vmatprep.subr.mxu0 0.0
    %1795 = vmatpush1.msra.mxu0 %v1776
    %1796 = vmatprep.subr.mxu0 0.0
    %1797 = vmatpush1.msra.mxu0 0.0
    %1798 = vmatprep.subr.mxu0 0.0
    %1799 = vmatpush1.msra.mxu0 0.0
    %1800 = vmatprep.subr.mxu0 0.0
    %1801 = vmatpush1.msra.mxu0 0.0
    %1802 = vmatprep.subr.mxu0 0.0
    %1803 = vmatpush1.msra.mxu0 0.0
    %1804 = vmatprep.subr.mxu0 0.0
    %1805 = vmatpush1.msra.mxu0 0.0
    %1806 = vmatprep.subr.mxu0 0.0
    %1807 = vmatpush1.msra.mxu0 0.0
    %1808 = vmatprep.subr.mxu0 0.0
    %1809 = vmatpush1.msra.mxu0 0.0
    %1810 = vmatprep.subr.mxu0 0.0
    %1811 = vmatpush1.msra.mxu0 0.0
    %1812 = vmatprep.subr.mxu0 0.0
    %1813 = vmatpush1.msra.mxu0 0.0
    %1814 = vmatprep.subr.mxu0 0.0
    %1815 = vmatpush1.msra.mxu0 0.0
    %1816 = vmatprep.subr.mxu0 0.0
    %1817 = vmatpush1.msra.mxu0 0.0
    %1818 = vmatprep.subr.mxu0 0.0
    %1819 = vmatpush1.msra.mxu0 0.0
    %1820 = vmatprep.subr.mxu0 0.0
    %1821 = vmatpush1.msra.mxu0 0.0
    %1822 = vmatprep.subr.mxu0 0.0
    %1823 = vmatpush1.msra.mxu0 0.0
    %1824 = vmatprep.subr.mxu0 0.0
    %1825 = vmatpush1.msra.mxu0 0.0
    %1826 = vmatprep.subr.mxu0 0.0
    %1827 = vmatpush1.msra.mxu0 0.0
    %1828 = vmatprep.subr.mxu0 0.0
    %1829 = vmatpush1.msra.mxu0 0.0
    %1830 = vmatprep.subr.mxu0 0.0
    %1831 = vmatpush1.msra.mxu0 0.0
    %1832 = vmatprep.subr.mxu0 0.0
    %1833 = vmatpush1.msra.mxu0 0.0
    %1834 = vmatprep.subr.mxu0 0.0
    %1835 = vmatpush1.msra.mxu0 0.0
    %1836 = vmatprep.subr.mxu0 0.0
    %1837 = vmatpush1.msra.mxu0 0.0
    %1838 = vmatprep.subr.mxu0 0.0
    %1839 = vmatpush1.msra.mxu0 0.0
    %1840 = vmatprep.subr.mxu0 0.0
    %1841 = vmatpush1.msra.mxu0 0.0
    %1842 = vmatprep.subr.mxu0 0.0
    %1843 = vmatpush1.msra.mxu0 0.0
    %1844 = vmatprep.subr.mxu0 0.0
    %1845 = vmatpush1.msra.mxu0 0.0
    %1846 = vmatprep.subr.mxu0 0.0
    %1847 = vmatpush1.msra.mxu0 0.0
    %1848 = vmatprep.subr.mxu0 0.0
    %1849 = vmatpush1.msra.mxu0 0.0
    %1850 = vmatprep.subr.mxu0 0.0
    %1851 = vmatpush1.msra.mxu0 0.0
    %1852 = vmatprep.mubr.f32.mxu0 0.0
    %1853 = vmatmul.mubr.f32.gmra.mrb[0].mxu0 %v1783
    %v1854 = vpop.f32.mrb[0].mxu0
    %v1855 = vadd.f32 %v1781, %v1854
    %v1856 = vpop.f32.mrb[0].mxu0
    %1857 = vmatprep.mubr.f32.mxu0 0.0
    %1858 = vmatmul.mubr.f32.gmra.mrb[0].mxu0 %v1786
    %v1859 = vpop.f32.mrb[0].mxu0
    %v1860 = vadd.f32 %v1781, %v1859
    %v1861 = vpop.f32.mrb[0].mxu0
    %1862 = vdwg.mxu0
    %1867 = vrot.lane.b32.xlu0 %v1773, 96
    %v1868 = vpop.permute.xlu0 %1867
    %1869 = vrot.lane.b32.xlu0 %v1774, 96
    %v1870 = vpop.permute.xlu0 %1869
    %1871 = vrot.lane.b32.xlu0 %v1775, 96
    %v1872 = vpop.permute.xlu0 %1871
    %1873 = vrot.lane.b32.xlu0 %v1776, 96
    %v1874 = vpop.permute.xlu0 %1873
    %1880 = vrot.lane.b32.xlu0 %v1781, 96
    %v1881 = vpop.permute.xlu0 %1880
    %v1884 = vsel %vm98, %v89, 0
    %v1887 = vsel %vm98, %v90, 0
    %v1890 = vsel %vm98, %v91, 0
    %1892 = vmatprep.subr.mxu0 0.0
    %1893 = vmatpush1.msra.mxu0 %v1868
    %1894 = vmatprep.subr.mxu0 0.0
    %1895 = vmatpush1.msra.mxu0 %v1870
    %1896 = vmatprep.subr.mxu0 0.0
    %1897 = vmatpush1.msra.mxu0 %v1872
    %1898 = vmatprep.subr.mxu0 0.0
    %1899 = vmatpush1.msra.mxu0 %v1874
    %1900 = vmatprep.subr.mxu0 0.0
    %1901 = vmatpush1.msra.mxu0 0.0
    %1902 = vmatprep.subr.mxu0 0.0
    %1903 = vmatpush1.msra.mxu0 0.0
    %1904 = vmatprep.subr.mxu0 0.0
    %1905 = vmatpush1.msra.mxu0 0.0
    %1906 = vmatprep.subr.mxu0 0.0
    %1907 = vmatpush1.msra.mxu0 0.0
    %1908 = vmatprep.subr.mxu0 0.0
    %1909 = vmatpush1.msra.mxu0 0.0
    %1910 = vmatprep.subr.mxu0 0.0
    %1911 = vmatpush1.msra.mxu0 0.0
    %1912 = vmatprep.subr.mxu0 0.0
    %1913 = vmatpush1.msra.mxu0 0.0
    %1914 = vmatprep.subr.mxu0 0.0
    %1915 = vmatpush1.msra.mxu0 0.0
    %1916 = vmatprep.subr.mxu0 0.0
    %1917 = vmatpush1.msra.mxu0 0.0
    %1918 = vmatprep.subr.mxu0 0.0
    %1919 = vmatpush1.msra.mxu0 0.0
    %1920 = vmatprep.subr.mxu0 0.0
    %1921 = vmatpush1.msra.mxu0 0.0
    %1922 = vmatprep.subr.mxu0 0.0
    %1923 = vmatpush1.msra.mxu0 0.0
    %1924 = vmatprep.subr.mxu0 0.0
    %1925 = vmatpush1.msra.mxu0 0.0
    %1926 = vmatprep.subr.mxu0 0.0
    %1927 = vmatpush1.msra.mxu0 0.0
    %1928 = vmatprep.subr.mxu0 0.0
    %1929 = vmatpush1.msra.mxu0 0.0
    %1930 = vmatprep.subr.mxu0 0.0
    %1931 = vmatpush1.msra.mxu0 0.0
    %1932 = vmatprep.subr.mxu0 0.0
    %1933 = vmatpush1.msra.mxu0 0.0
    %1934 = vmatprep.subr.mxu0 0.0
    %1935 = vmatpush1.msra.mxu0 0.0
    %1936 = vmatprep.subr.mxu0 0.0
    %1937 = vmatpush1.msra.mxu0 0.0
    %1938 = vmatprep.subr.mxu0 0.0
    %1939 = vmatpush1.msra.mxu0 0.0
    %1940 = vmatprep.subr.mxu0 0.0
    %1941 = vmatpush1.msra.mxu0 0.0
    %1942 = vmatprep.subr.mxu0 0.0
    %1943 = vmatpush1.msra.mxu0 0.0
    %1944 = vmatprep.subr.mxu0 0.0
    %1945 = vmatpush1.msra.mxu0 0.0
    %1946 = vmatprep.subr.mxu0 0.0
    %1947 = vmatpush1.msra.mxu0 0.0
    %1948 = vmatprep.subr.mxu0 0.0
    %1949 = vmatpush1.msra.mxu0 0.0
    %1950 = vmatprep.subr.mxu0 0.0
    %1951 = vmatpush1.msra.mxu0 0.0
    %1952 = vmatprep.subr.mxu0 0.0
    %1953 = vmatpush1.msra.mxu0 0.0
    %1954 = vmatprep.subr.mxu0 0.0
    %1955 = vmatpush1.msra.mxu0 0.0
    %1956 = vmatprep.mubr.f32.mxu0 0.0
    %1957 = vmatmul.mubr.f32.gmra.mrb[0].mxu0 %v1884
    %v1958 = vpop.f32.mrb[0].mxu0
    %v1959 = vadd.f32 %v1881, %v1958
    %v1960 = vpop.f32.mrb[0].mxu0
    %1961 = vmatprep.mubr.f32.mxu0 0.0
    %1962 = vmatmul.mubr.f32.gmra.mrb[0].mxu0 %v1887
    %v1963 = vpop.f32.mrb[0].mxu0
    %v1964 = vadd.f32 %v1881, %v1963
    %v1965 = vpop.f32.mrb[0].mxu0
    %1966 = vmatprep.mubr.f32.mxu0 0.0
    %1967 = vmatmul.mubr.f32.gmra.mrb[0].mxu0 %v1890
    %v1968 = vpop.f32.mrb[0].mxu0
    %v1969 = vadd.f32 %v1881, %v1968
    %v1970 = vpop.f32.mrb[0].mxu0
    %1971 = vdwg.mxu0
    %v1972 = vld [vmem:[#allocation10 + $0x78] sm:$0xff]
    %v1973 = vld [vmem:[#allocation10 + $0x80] sm:$0xff]
    %v1974 = vld [vmem:[#allocation10 + $0x88] sm:$0xff]
    %v1975 = vld [vmem:[#allocation10 + $0x90] sm:$0xff]
    %v1976 = vld [vmem:[#allocation10 + $0x98] sm:$0x1]
    %v1978 = vsel %vm256, %v1855, 0
    %v1981 = vsel %vm256, %v1959, 0
    %v1984 = vsel %vm256, %v1964, 0
    %1986 = vmatprep.subr.mxu0 0.0
    %1987 = vmatpush1.xpose.msra.mxu0 %v1981
    %1988 = vmatprep.subr.mxu0 0.0
    %1989 = vmatpush1.xpose.msra.mxu0 %v1984
    %1990 = vmatprep.subr.mxu0 0.0
    %1991 = vmatpush1.xpose.msra.mxu0 0.0
    %1992 = vmatprep.subr.mxu0 0.0
    %1993 = vmatpush1.xpose.msra.mxu0 0.0
    %1994 = vmatprep.subr.mxu0 0.0
    %1995 = vmatpush1.xpose.msra.mxu0 0.0
    %1996 = vmatprep.subr.mxu0 0.0
    %1997 = vmatpush1.xpose.msra.mxu0 0.0
    %1998 = vmatprep.subr.mxu0 0.0
    %1999 = vmatpush1.xpose.msra.mxu0 0.0
    %2000 = vmatprep.subr.mxu0 0.0
    %2001 = vmatpush1.xpose.msra.mxu0 0.0
    %2002 = vmatprep.subr.mxu0 0.0
    %2003 = vmatpush1.xpose.msra.mxu0 0.0
    %2004 = vmatprep.subr.mxu0 0.0
    %2005 = vmatpush1.xpose.msra.mxu0 0.0
    %2006 = vmatprep.subr.mxu0 0.0
    %2007 = vmatpush1.xpose.msra.mxu0 0.0
    %2008 = vmatprep.subr.mxu0 0.0
    %2009 = vmatpush1.xpose.msra.mxu0 0.0
    %2010 = vmatprep.subr.mxu0 0.0
    %2011 = vmatpush1.xpose.msra.mxu0 0.0
    %2012 = vmatprep.subr.mxu0 0.0
    %2013 = vmatpush1.xpose.msra.mxu0 0.0
    %2014 = vmatprep.subr.mxu0 0.0
    %2015 = vmatpush1.xpose.msra.mxu0 0.0
    %2016 = vmatprep.subr.mxu0 0.0
    %2017 = vmatpush1.xpose.msra.mxu0 0.0
    %2018 = vmatprep.subr.mxu0 0.0
    %2019 = vmatpush1.xpose.msra.mxu0 0.0
    %2020 = vmatprep.subr.mxu0 0.0
    %2021 = vmatpush1.xpose.msra.mxu0 0.0
    %2022 = vmatprep.subr.mxu0 0.0
    %2023 = vmatpush1.xpose.msra.mxu0 0.0
    %2024 = vmatprep.subr.mxu0 0.0
    %2025 = vmatpush1.xpose.msra.mxu0 0.0
    %2026 = vmatprep.subr.mxu0 0.0
    %2027 = vmatpush1.xpose.msra.mxu0 0.0
    %2028 = vmatprep.subr.mxu0 0.0
    %2029 = vmatpush1.xpose.msra.mxu0 0.0
    %2030 = vmatprep.subr.mxu0 0.0
    %2031 = vmatpush1.xpose.msra.mxu0 0.0
    %2032 = vmatprep.subr.mxu0 0.0
    %2033 = vmatpush1.xpose.msra.mxu0 0.0
    %2034 = vmatprep.subr.mxu0 0.0
    %2035 = vmatpush1.xpose.msra.mxu0 0.0
    %2036 = vmatprep.subr.mxu0 0.0
    %2037 = vmatpush1.xpose.msra.mxu0 0.0
    %2038 = vmatprep.subr.mxu0 0.0
    %2039 = vmatpush1.xpose.msra.mxu0 0.0
    %2040 = vmatprep.subr.mxu0 0.0
    %2041 = vmatpush1.xpose.msra.mxu0 0.0
    %2042 = vmatprep.subr.mxu0 0.0
    %2043 = vmatpush1.xpose.msra.mxu0 0.0
    %2044 = vmatprep.subr.mxu0 0.0
    %2045 = vmatpush1.xpose.msra.mxu0 0.0
    %2046 = vmatprep.subr.mxu0 0.0
    %2047 = vmatpush1.xpose.msra.mxu0 0.0
    %2048 = vmatprep.subr.mxu0 0.0
    %2049 = vmatpush1.xpose.msra.mxu0 0.0
    %2050 = vmatprep.mubr.f32.mxu0 0.0
    %2051 = vmatmul.mubr.f32.gmra.mrb[0].mxu0 %v1978
    %v2052 = vpop.f32.mrb[0].mxu0
    %v2053 = vadd.f32 %v93, %v2052
    %v2054 = vpop.f32.mrb[0].mxu0
    %2055 = vdwg.mxu0
    %vm2056 = vcmask 80896
    %v2057 = vsel %vm2056, %v2053, -inf
    %2058 = vmax.xlane.f32.xlu0 %v2057
    %v2059 = vpop.xlane.xlu0 %2058
    %v2060 = vsub.f32 %v2053, %v2059
    %v2061 = vmul.f32 %v2060, 1.442695
    %v2062 = vpow.pop %v2061
    %v2063 = vsel %vm2056, %v2062, 0.0
    %2064 = vadd.xlane.f32.xlu0 %v2063
    %v2065 = vpop.xlane.xlu0 %2064
    %v2066 = vrcp.pop %v2065
    %v2067 = vmul.f32 %v2065, %v2066
    %v2068 = vsub.f32 2.0, %v2067
    %v2069 = vmul.f32 %v2066, %v2068
    %v2070 = vmul.f32 %v2062, %v2069
    %2071 = vrot.lane.b32.xlu0 %v1959, 96
    %v2072 = vpop.permute.xlu0 %2071
    %2073 = vrot.lane.b32.xlu0 %v1964, 96
    %v2074 = vpop.permute.xlu0 %2073
    %v2077 = vsel %vm2056, %v2070, 0
    %vm2079 = vcmask 1041408
    %v2080 = vsel %vm2079, %v2074, 0
    %2082 = vmatprep.subr.mxu0 0.0
    %2083 = vmatpush1.msra.mxu0 %v2072
    %2084 = vmatprep.subr.mxu0 0.0
    %2085 = vmatpush1.msra.mxu0 %v2080
    %2086 = vmatprep.subr.mxu0 0.0
    %2087 = vmatpush1.msra.mxu0 0.0
    %2088 = vmatprep.subr.mxu0 0.0
    %2089 = vmatpush1.msra.mxu0 0.0
    %2090 = vmatprep.subr.mxu0 0.0
    %2091 = vmatpush1.msra.mxu0 0.0
    %2092 = vmatprep.subr.mxu0 0.0
    %2093 = vmatpush1.msra.mxu0 0.0
    %2094 = vmatprep.subr.mxu0 0.0
    %2095 = vmatpush1.msra.mxu0 0.0
    %2096 = vmatprep.subr.mxu0 0.0
    %2097 = vmatpush1.msra.mxu0 0.0
    %2098 = vmatprep.subr.mxu0 0.0
    %2099 = vmatpush1.msra.mxu0 0.0
    %2100 = vmatprep.subr.mxu0 0.0
    %2101 = vmatpush1.msra.mxu0 0.0
    %2102 = vmatprep.subr.mxu0 0.0
    %2103 = vmatpush1.msra.mxu0 0.0
    %2104 = vmatprep.subr.mxu0 0.0
    %2105 = vmatpush1.msra.mxu0 0.0
    %2106 = vmatprep.subr.mxu0 0.0
    %2107 = vmatpush1.msra.mxu0 0.0
    %2108 = vmatprep.subr.mxu0 0.0
    %2109 = vmatpush1.msra.mxu0 0.0
    %2110 = vmatprep.subr.mxu0 0.0
    %2111 = vmatpush1.msra.mxu0 0.0
    %2112 = vmatprep.subr.mxu0 0.0
    %2113 = vmatpush1.msra.mxu0 0.0
    %2114 = vmatprep.subr.mxu0 0.0
    %2115 = vmatpush1.msra.mxu0 0.0
    %2116 = vmatprep.subr.mxu0 0.0
    %2117 = vmatpush1.msra.mxu0 0.0
    %2118 = vmatprep.subr.mxu0 0.0
    %2119 = vmatpush1.msra.mxu0 0.0
    %2120 = vmatprep.subr.mxu0 0.0
    %2121 = vmatpush1.msra.mxu0 0.0
    %2122 = vmatprep.subr.mxu0 0.0
    %2123 = vmatpush1.msra.mxu0 0.0
    %2124 = vmatprep.subr.mxu0 0.0
    %2125 = vmatpush1.msra.mxu0 0.0
    %2126 = vmatprep.subr.mxu0 0.0
    %2127 = vmatpush1.msra.mxu0 0.0
    %2128 = vmatprep.subr.mxu0 0.0
    %2129 = vmatpush1.msra.mxu0 0.0
    %2130 = vmatprep.subr.mxu0 0.0
    %2131 = vmatpush1.msra.mxu0 0.0
    %2132 = vmatprep.subr.mxu0 0.0
    %2133 = vmatpush1.msra.mxu0 0.0
    %2134 = vmatprep.subr.mxu0 0.0
    %2135 = vmatpush1.msra.mxu0 0.0
    %2136 = vmatprep.subr.mxu0 0.0
    %2137 = vmatpush1.msra.mxu0 0.0
    %2138 = vmatprep.subr.mxu0 0.0
    %2139 = vmatpush1.msra.mxu0 0.0
    %2140 = vmatprep.subr.mxu0 0.0
    %2141 = vmatpush1.msra.mxu0 0.0
    %2142 = vmatprep.subr.mxu0 0.0
    %2143 = vmatpush1.msra.mxu0 0.0
    %2144 = vmatprep.subr.mxu0 0.0
    %2145 = vmatpush1.msra.mxu0 0.0
    %2146 = vmatprep.mubr.f32.mxu0 0.0
    %2147 = vmatmul.mubr.f32.gmra.mrb[0].mxu0 %v2077
    %v2148 = vpop.f32.mrb[0].mxu0
    %v2149 = vadd.f32 0.0, %v2148
    %v2150 = vpop.f32.mrb[0].mxu0
    %2151 = vdwg.mxu0
    %2152 = vrot.lane.b32.xlu0 %v1855, 120
    %v2153 = vpop.permute.xlu0 %2152
    %2154 = vrot.lane.b32.xlu0 %v1959, 120
    %v2155 = vpop.permute.xlu0 %2154
    %2156 = vrot.lane.b32.xlu0 %v1964, 120
    %v2157 = vpop.permute.xlu0 %2156
    %v2158 = vsel %vm256, %v2153, 0
    %v2160 = vsel %vm256, %v2155, 0
    %v2162 = vsel %vm256, %v2157, 0
    %2164 = vmatprep.subr.mxu0 0.0
    %2165 = vmatpush1.xpose.msra.mxu0 %v2160
    %2166 = vmatprep.subr.mxu0 0.0
    %2167 = vmatpush1.xpose.msra.mxu0 %v2162
    %2168 = vmatprep.subr.mxu0 0.0
    %2169 = vmatpush1.xpose.msra.mxu0 0.0
    %2170 = vmatprep.subr.mxu0 0.0
    %2171 = vmatpush1.xpose.msra.mxu0 0.0
    %2172 = vmatprep.subr.mxu0 0.0
    %2173 = vmatpush1.xpose.msra.mxu0 0.0
    %2174 = vmatprep.subr.mxu0 0.0
    %2175 = vmatpush1.xpose.msra.mxu0 0.0
    %2176 = vmatprep.subr.mxu0 0.0
    %2177 = vmatpush1.xpose.msra.mxu0 0.0
    %2178 = vmatprep.subr.mxu0 0.0
    %2179 = vmatpush1.xpose.msra.mxu0 0.0
    %2180 = vmatprep.subr.mxu0 0.0
    %2181 = vmatpush1.xpose.msra.mxu0 0.0
    %2182 = vmatprep.subr.mxu0 0.0
    %2183 = vmatpush1.xpose.msra.mxu0 0.0
    %2184 = vmatprep.subr.mxu0 0.0
    %2185 = vmatpush1.xpose.msra.mxu0 0.0
    %2186 = vmatprep.subr.mxu0 0.0
    %2187 = vmatpush1.xpose.msra.mxu0 0.0
    %2188 = vmatprep.subr.mxu0 0.0
    %2189 = vmatpush1.xpose.msra.mxu0 0.0
    %2190 = vmatprep.subr.mxu0 0.0
    %2191 = vmatpush1.xpose.msra.mxu0 0.0
    %2192 = vmatprep.subr.mxu0 0.0
    %2193 = vmatpush1.xpose.msra.mxu0 0.0
    %2194 = vmatprep.subr.mxu0 0.0
    %2195 = vmatpush1.xpose.msra.mxu0 0.0
    %2196 = vmatprep.subr.mxu0 0.0
    %2197 = vmatpush1.xpose.msra.mxu0 0.0
    %2198 = vmatprep.subr.mxu0 0.0
    %2199 = vmatpush1.xpose.msra.mxu0 0.0
    %2200 = vmatprep.subr.mxu0 0.0
    %2201 = vmatpush1.xpose.msra.mxu0 0.0
    %2202 = vmatprep.subr.mxu0 0.0
    %2203 = vmatpush1.xpose.msra.mxu0 0.0
    %2204 = vmatprep.subr.mxu0 0.0
    %2205 = vmatpush1.xpose.msra.mxu0 0.0
    %2206 = vmatprep.subr.mxu0 0.0
    %2207 = vmatpush1.xpose.msra.mxu0 0.0
    %2208 = vmatprep.subr.mxu0 0.0
    %2209 = vmatpush1.xpose.msra.mxu0 0.0
    %2210 = vmatprep.subr.mxu0 0.0
    %2211 = vmatpush1.xpose.msra.mxu0 0.0
    %2212 = vmatprep.subr.mxu0 0.0
    %2213 = vmatpush1.xpose.msra.mxu0 0.0
    %2214 = vmatprep.subr.mxu0 0.0
    %2215 = vmatpush1.xpose.msra.mxu0 0.0
    %2216 = vmatprep.subr.mxu0 0.0
    %2217 = vmatpush1.xpose.msra.mxu0 0.0
    %2218 = vmatprep.subr.mxu0 0.0
    %2219 = vmatpush1.xpose.msra.mxu0 0.0
    %2220 = vmatprep.subr.mxu0 0.0
    %2221 = vmatpush1.xpose.msra.mxu0 0.0
    %2222 = vmatprep.subr.mxu0 0.0
    %2223 = vmatpush1.xpose.msra.mxu0 0.0
    %2224 = vmatprep.subr.mxu0 0.0
    %2225 = vmatpush1.xpose.msra.mxu0 0.0
    %2226 = vmatprep.subr.mxu0 0.0
    %2227 = vmatpush1.xpose.msra.mxu0 0.0
    %2228 = vmatprep.mubr.f32.mxu0 0.0
    %2229 = vmatmul.mubr.f32.gmra.mrb[0].mxu0 %v2158
    %v2230 = vpop.f32.mrb[0].mxu0
    %v2231 = vadd.f32 %v93, %v2230
    %v2232 = vpop.f32.mrb[0].mxu0
    %2233 = vdwg.mxu0
    %v2234 = vsel %vm2056, %v2231, -inf
    %2235 = vmax.xlane.f32.xlu0 %v2234
    %v2236 = vpop.xlane.xlu0 %2235
    %v2237 = vsub.f32 %v2231, %v2236
    %v2238 = vmul.f32 %v2237, 1.442695
    %v2239 = vpow.pop %v2238
    %v2240 = vsel %vm2056, %v2239, 0.0
    %2241 = vadd.xlane.f32.xlu0 %v2240
    %v2242 = vpop.xlane.xlu0 %2241
    %v2243 = vrcp.pop %v2242
    %v2244 = vmul.f32 %v2242, %v2243
    %v2245 = vsub.f32 2.0, %v2244
    %v2246 = vmul.f32 %v2243, %v2245
    %v2247 = vmul.f32 %v2239, %v2246
    %2248 = vrot.lane.b32.xlu0 %v1959, 88
    %v2249 = vpop.permute.xlu0 %2248
    %2250 = vrot.lane.b32.xlu0 %v1964, 88
    %v2251 = vpop.permute.xlu0 %2250
    %v2254 = vsel %vm2056, %v2247, 0
    %v2256 = vsel %vm2079, %v2251, 0
    %2258 = vmatprep.subr.mxu0 0.0
    %2259 = vmatpush1.msra.mxu0 %v2249
    %2260 = vmatprep.subr.mxu0 0.0
    %2261 = vmatpush1.msra.mxu0 %v2256
    %2262 = vmatprep.subr.mxu0 0.0
    %2263 = vmatpush1.msra.mxu0 0.0
    %2264 = vmatprep.subr.mxu0 0.0
    %2265 = vmatpush1.msra.mxu0 0.0
    %2266 = vmatprep.subr.mxu0 0.0
    %2267 = vmatpush1.msra.mxu0 0.0
    %2268 = vmatprep.subr.mxu0 0.0
    %2269 = vmatpush1.msra.mxu0 0.0
    %2270 = vmatprep.subr.mxu0 0.0
    %2271 = vmatpush1.msra.mxu0 0.0
    %2272 = vmatprep.subr.mxu0 0.0
    %2273 = vmatpush1.msra.mxu0 0.0
    %2274 = vmatprep.subr.mxu0 0.0
    %2275 = vmatpush1.msra.mxu0 0.0
    %2276 = vmatprep.subr.mxu0 0.0
    %2277 = vmatpush1.msra.mxu0 0.0
    %2278 = vmatprep.subr.mxu0 0.0
    %2279 = vmatpush1.msra.mxu0 0.0
    %2280 = vmatprep.subr.mxu0 0.0
    %2281 = vmatpush1.msra.mxu0 0.0
    %2282 = vmatprep.subr.mxu0 0.0
    %2283 = vmatpush1.msra.mxu0 0.0
    %2284 = vmatprep.subr.mxu0 0.0
    %2285 = vmatpush1.msra.mxu0 0.0
    %2286 = vmatprep.subr.mxu0 0.0
    %2287 = vmatpush1.msra.mxu0 0.0
    %2288 = vmatprep.subr.mxu0 0.0
    %2289 = vmatpush1.msra.mxu0 0.0
    %2290 = vmatprep.subr.mxu0 0.0
    %2291 = vmatpush1.msra.mxu0 0.0
    %2292 = vmatprep.subr.mxu0 0.0
    %2293 = vmatpush1.msra.mxu0 0.0
    %2294 = vmatprep.subr.mxu0 0.0
    %2295 = vmatpush1.msra.mxu0 0.0
    %2296 = vmatprep.subr.mxu0 0.0
    %2297 = vmatpush1.msra.mxu0 0.0
    %2298 = vmatprep.subr.mxu0 0.0
    %2299 = vmatpush1.msra.mxu0 0.0
    %2300 = vmatprep.subr.mxu0 0.0
    %2301 = vmatpush1.msra.mxu0 0.0
    %2302 = vmatprep.subr.mxu0 0.0
    %2303 = vmatpush1.msra.mxu0 0.0
    %2304 = vmatprep.subr.mxu0 0.0
    %2305 = vmatpush1.msra.mxu0 0.0
    %2306 = vmatprep.subr.mxu0 0.0
    %2307 = vmatpush1.msra.mxu0 0.0
    %2308 = vmatprep.subr.mxu0 0.0
    %2309 = vmatpush1.msra.mxu0 0.0
    %2310 = vmatprep.subr.mxu0 0.0
    %2311 = vmatpush1.msra.mxu0 0.0
    %2312 = vmatprep.subr.mxu0 0.0
    %2313 = vmatpush1.msra.mxu0 0.0
    %2314 = vmatprep.subr.mxu0 0.0
    %2315 = vmatpush1.msra.mxu0 0.0
    %2316 = vmatprep.subr.mxu0 0.0
    %2317 = vmatpush1.msra.mxu0 0.0
    %2318 = vmatprep.subr.mxu0 0.0
    %2319 = vmatpush1.msra.mxu0 0.0
    %2320 = vmatprep.subr.mxu0 0.0
    %2321 = vmatpush1.msra.mxu0 0.0
    %2322 = vmatprep.mubr.f32.mxu0 0.0
    %2323 = vmatmul.mubr.f32.gmra.mrb[0].mxu0 %v2254
    %v2324 = vpop.f32.mrb[0].mxu0
    %v2325 = vadd.f32 0.0, %v2324
    %v2326 = vpop.f32.mrb[0].mxu0
    %2327 = vdwg.mxu0
    %2328 = vrot.lane.b32.xlu0 %v1855, 112
    %v2329 = vpop.permute.xlu0 %2328
    %2330 = vrot.lane.b32.xlu0 %v1959, 112
    %v2331 = vpop.permute.xlu0 %2330
    %2332 = vrot.lane.b32.xlu0 %v1964, 112
    %v2333 = vpop.permute.xlu0 %2332
    %v2334 = vsel %vm256, %v2329, 0
    %v2336 = vsel %vm256, %v2331, 0
    %v2338 = vsel %vm256, %v2333, 0
    %2340 = vmatprep.subr.mxu0 0.0
    %2341 = vmatpush1.xpose.msra.mxu0 %v2336
    %2342 = vmatprep.subr.mxu0 0.0
    %2343 = vmatpush1.xpose.msra.mxu0 %v2338
    %2344 = vmatprep.subr.mxu0 0.0
    %2345 = vmatpush1.xpose.msra.mxu0 0.0
    %2346 = vmatprep.subr.mxu0 0.0
    %2347 = vmatpush1.xpose.msra.mxu0 0.0
    %2348 = vmatprep.subr.mxu0 0.0
    %2349 = vmatpush1.xpose.msra.mxu0 0.0
    %2350 = vmatprep.subr.mxu0 0.0
    %2351 = vmatpush1.xpose.msra.mxu0 0.0
    %2352 = vmatprep.subr.mxu0 0.0
    %2353 = vmatpush1.xpose.msra.mxu0 0.0
    %2354 = vmatprep.subr.mxu0 0.0
    %2355 = vmatpush1.xpose.msra.mxu0 0.0
    %2356 = vmatprep.subr.mxu0 0.0
    %2357 = vmatpush1.xpose.msra.mxu0 0.0
    %2358 = vmatprep.subr.mxu0 0.0
    %2359 = vmatpush1.xpose.msra.mxu0 0.0
    %2360 = vmatprep.subr.mxu0 0.0
    %2361 = vmatpush1.xpose.msra.mxu0 0.0
    %2362 = vmatprep.subr.mxu0 0.0
    %2363 = vmatpush1.xpose.msra.mxu0 0.0
    %2364 = vmatprep.subr.mxu0 0.0
    %2365 = vmatpush1.xpose.msra.mxu0 0.0
    %2366 = vmatprep.subr.mxu0 0.0
    %2367 = vmatpush1.xpose.msra.mxu0 0.0
    %2368 = vmatprep.subr.mxu0 0.0
    %2369 = vmatpush1.xpose.msra.mxu0 0.0
    %2370 = vmatprep.subr.mxu0 0.0
    %2371 = vmatpush1.xpose.msra.mxu0 0.0
    %2372 = vmatprep.subr.mxu0 0.0
    %2373 = vmatpush1.xpose.msra.mxu0 0.0
    %2374 = vmatprep.subr.mxu0 0.0
    %2375 = vmatpush1.xpose.msra.mxu0 0.0
    %2376 = vmatprep.subr.mxu0 0.0
    %2377 = vmatpush1.xpose.msra.mxu0 0.0
    %2378 = vmatprep.subr.mxu0 0.0
    %2379 = vmatpush1.xpose.msra.mxu0 0.0
    %2380 = vmatprep.subr.mxu0 0.0
    %2381 = vmatpush1.xpose.msra.mxu0 0.0
    %2382 = vmatprep.subr.mxu0 0.0
    %2383 = vmatpush1.xpose.msra.mxu0 0.0
    %2384 = vmatprep.subr.mxu0 0.0
    %2385 = vmatpush1.xpose.msra.mxu0 0.0
    %2386 = vmatprep.subr.mxu0 0.0
    %2387 = vmatpush1.xpose.msra.mxu0 0.0
    %2388 = vmatprep.subr.mxu0 0.0
    %2389 = vmatpush1.xpose.msra.mxu0 0.0
    %2390 = vmatprep.subr.mxu0 0.0
    %2391 = vmatpush1.xpose.msra.mxu0 0.0
    %2392 = vmatprep.subr.mxu0 0.0
    %2393 = vmatpush1.xpose.msra.mxu0 0.0
    %2394 = vmatprep.subr.mxu0 0.0
    %2395 = vmatpush1.xpose.msra.mxu0 0.0
    %2396 = vmatprep.subr.mxu0 0.0
    %2397 = vmatpush1.xpose.msra.mxu0 0.0
    %2398 = vmatprep.subr.mxu0 0.0
    %2399 = vmatpush1.xpose.msra.mxu0 0.0
    %2400 = vmatprep.subr.mxu0 0.0
    %2401 = vmatpush1.xpose.msra.mxu0 0.0
    %2402 = vmatprep.subr.mxu0 0.0
    %2403 = vmatpush1.xpose.msra.mxu0 0.0
    %2404 = vmatprep.mubr.f32.mxu0 0.0
    %2405 = vmatmul.mubr.f32.gmra.mrb[0].mxu0 %v2334
    %v2406 = vpop.f32.mrb[0].mxu0
    %v2407 = vadd.f32 %v93, %v2406
    %v2408 = vpop.f32.mrb[0].mxu0
    %2409 = vdwg.mxu0
    %v2410 = vsel %vm2056, %v2407, -inf
    %2411 = vmax.xlane.f32.xlu0 %v2410
    %v2412 = vpop.xlane.xlu0 %2411
    %v2413 = vsub.f32 %v2407, %v2412
    %v2414 = vmul.f32 %v2413, 1.442695
    %v2415 = vpow.pop %v2414
    %v2416 = vsel %vm2056, %v2415, 0.0
    %2417 = vadd.xlane.f32.xlu0 %v2416
    %v2418 = vpop.xlane.xlu0 %2417
    %v2419 = vrcp.pop %v2418
    %v2420 = vmul.f32 %v2418, %v2419
    %v2421 = vsub.f32 2.0, %v2420
    %v2422 = vmul.f32 %v2419, %v2421
    %v2423 = vmul.f32 %v2415, %v2422
    %2424 = vrot.lane.b32.xlu0 %v1959, 80
    %v2425 = vpop.permute.xlu0 %2424
    %2426 = vrot.lane.b32.xlu0 %v1964, 80
    %v2427 = vpop.permute.xlu0 %2426
    %v2430 = vsel %vm2056, %v2423, 0
    %v2432 = vsel %vm2079, %v2427, 0
    %2434 = vmatprep.subr.mxu0 0.0
    %2435 = vmatpush1.msra.mxu0 %v2425
    %2436 = vmatprep.subr.mxu0 0.0
    %2437 = vmatpush1.msra.mxu0 %v2432
    %2438 = vmatprep.subr.mxu0 0.0
    %2439 = vmatpush1.msra.mxu0 0.0
    %2440 = vmatprep.subr.mxu0 0.0
    %2441 = vmatpush1.msra.mxu0 0.0
    %2442 = vmatprep.subr.mxu0 0.0
    %2443 = vmatpush1.msra.mxu0 0.0
    %2444 = vmatprep.subr.mxu0 0.0
    %2445 = vmatpush1.msra.mxu0 0.0
    %2446 = vmatprep.subr.mxu0 0.0
    %2447 = vmatpush1.msra.mxu0 0.0
    %2448 = vmatprep.subr.mxu0 0.0
    %2449 = vmatpush1.msra.mxu0 0.0
    %2450 = vmatprep.subr.mxu0 0.0
    %2451 = vmatpush1.msra.mxu0 0.0
    %2452 = vmatprep.subr.mxu0 0.0
    %2453 = vmatpush1.msra.mxu0 0.0
    %2454 = vmatprep.subr.mxu0 0.0
    %2455 = vmatpush1.msra.mxu0 0.0
    %2456 = vmatprep.subr.mxu0 0.0
    %2457 = vmatpush1.msra.mxu0 0.0
    %2458 = vmatprep.subr.mxu0 0.0
    %2459 = vmatpush1.msra.mxu0 0.0
    %2460 = vmatprep.subr.mxu0 0.0
    %2461 = vmatpush1.msra.mxu0 0.0
    %2462 = vmatprep.subr.mxu0 0.0
    %2463 = vmatpush1.msra.mxu0 0.0
    %2464 = vmatprep.subr.mxu0 0.0
    %2465 = vmatpush1.msra.mxu0 0.0
    %2466 = vmatprep.subr.mxu0 0.0
    %2467 = vmatpush1.msra.mxu0 0.0
    %2468 = vmatprep.subr.mxu0 0.0
    %2469 = vmatpush1.msra.mxu0 0.0
    %2470 = vmatprep.subr.mxu0 0.0
    %2471 = vmatpush1.msra.mxu0 0.0
    %2472 = vmatprep.subr.mxu0 0.0
    %2473 = vmatpush1.msra.mxu0 0.0
    %2474 = vmatprep.subr.mxu0 0.0
    %2475 = vmatpush1.msra.mxu0 0.0
    %2476 = vmatprep.subr.mxu0 0.0
    %2477 = vmatpush1.msra.mxu0 0.0
    %2478 = vmatprep.subr.mxu0 0.0
    %2479 = vmatpush1.msra.mxu0 0.0
    %2480 = vmatprep.subr.mxu0 0.0
    %2481 = vmatpush1.msra.mxu0 0.0
    %2482 = vmatprep.subr.mxu0 0.0
    %2483 = vmatpush1.msra.mxu0 0.0
    %2484 = vmatprep.subr.mxu0 0.0
    %2485 = vmatpush1.msra.mxu0 0.0
    %2486 = vmatprep.subr.mxu0 0.0
    %2487 = vmatpush1.msra.mxu0 0.0
    %2488 = vmatprep.subr.mxu0 0.0
    %2489 = vmatpush1.msra.mxu0 0.0
    %2490 = vmatprep.subr.mxu0 0.0
    %2491 = vmatpush1.msra.mxu0 0.0
    %2492 = vmatprep.subr.mxu0 0.0
    %2493 = vmatpush1.msra.mxu0 0.0
    %2494 = vmatprep.subr.mxu0 0.0
    %2495 = vmatpush1.msra.mxu0 0.0
    %2496 = vmatprep.subr.mxu0 0.0
    %2497 = vmatpush1.msra.mxu0 0.0
    %2498 = vmatprep.mubr.f32.mxu0 0.0
    %2499 = vmatmul.mubr.f32.gmra.mrb[0].mxu0 %v2430
    %v2500 = vpop.f32.mrb[0].mxu0
    %v2501 = vadd.f32 0.0, %v2500
    %v2502 = vpop.f32.mrb[0].mxu0
    %2503 = vdwg.mxu0
    %2504 = vrot.lane.b32.xlu0 %v1855, 104
    %v2505 = vpop.permute.xlu0 %2504
    %2506 = vrot.lane.b32.xlu0 %v1959, 104
    %v2507 = vpop.permute.xlu0 %2506
    %2508 = vrot.lane.b32.xlu0 %v1964, 104
    %v2509 = vpop.permute.xlu0 %2508
    %v2510 = vsel %vm256, %v2505, 0
    %v2512 = vsel %vm256, %v2507, 0
    %v2514 = vsel %vm256, %v2509, 0
    %2516 = vmatprep.subr.mxu0 0.0
    %2517 = vmatpush1.xpose.msra.mxu0 %v2512
    %2518 = vmatprep.subr.mxu0 0.0
    %2519 = vmatpush1.xpose.msra.mxu0 %v2514
    %2520 = vmatprep.subr.mxu0 0.0
    %2521 = vmatpush1.xpose.msra.mxu0 0.0
    %2522 = vmatprep.subr.mxu0 0.0
    %2523 = vmatpush1.xpose.msra.mxu0 0.0
    %2524 = vmatprep.subr.mxu0 0.0
    %2525 = vmatpush1.xpose.msra.mxu0 0.0
    %2526 = vmatprep.subr.mxu0 0.0
    %2527 = vmatpush1.xpose.msra.mxu0 0.0
    %2528 = vmatprep.subr.mxu0 0.0
    %2529 = vmatpush1.xpose.msra.mxu0 0.0
    %2530 = vmatprep.subr.mxu0 0.0
    %2531 = vmatpush1.xpose.msra.mxu0 0.0
    %2532 = vmatprep.subr.mxu0 0.0
    %2533 = vmatpush1.xpose.msra.mxu0 0.0
    %2534 = vmatprep.subr.mxu0 0.0
    %2535 = vmatpush1.xpose.msra.mxu0 0.0
    %2536 = vmatprep.subr.mxu0 0.0
    %2537 = vmatpush1.xpose.msra.mxu0 0.0
    %2538 = vmatprep.subr.mxu0 0.0
    %2539 = vmatpush1.xpose.msra.mxu0 0.0
    %2540 = vmatprep.subr.mxu0 0.0
    %2541 = vmatpush1.xpose.msra.mxu0 0.0
    %2542 = vmatprep.subr.mxu0 0.0
    %2543 = vmatpush1.xpose.msra.mxu0 0.0
    %2544 = vmatprep.subr.mxu0 0.0
    %2545 = vmatpush1.xpose.msra.mxu0 0.0
    %2546 = vmatprep.subr.mxu0 0.0
    %2547 = vmatpush1.xpose.msra.mxu0 0.0
    %2548 = vmatprep.subr.mxu0 0.0
    %2549 = vmatpush1.xpose.msra.mxu0 0.0
    %2550 = vmatprep.subr.mxu0 0.0
    %2551 = vmatpush1.xpose.msra.mxu0 0.0
    %2552 = vmatprep.subr.mxu0 0.0
    %2553 = vmatpush1.xpose.msra.mxu0 0.0
    %2554 = vmatprep.subr.mxu0 0.0
    %2555 = vmatpush1.xpose.msra.mxu0 0.0
    %2556 = vmatprep.subr.mxu0 0.0
    %2557 = vmatpush1.xpose.msra.mxu0 0.0
    %2558 = vmatprep.subr.mxu0 0.0
    %2559 = vmatpush1.xpose.msra.mxu0 0.0
    %2560 = vmatprep.subr.mxu0 0.0
    %2561 = vmatpush1.xpose.msra.mxu0 0.0
    %2562 = vmatprep.subr.mxu0 0.0
    %2563 = vmatpush1.xpose.msra.mxu0 0.0
    %2564 = vmatprep.subr.mxu0 0.0
    %2565 = vmatpush1.xpose.msra.mxu0 0.0
    %2566 = vmatprep.subr.mxu0 0.0
    %2567 = vmatpush1.xpose.msra.mxu0 0.0
    %2568 = vmatprep.subr.mxu0 0.0
    %2569 = vmatpush1.xpose.msra.mxu0 0.0
    %2570 = vmatprep.subr.mxu0 0.0
    %2571 = vmatpush1.xpose.msra.mxu0 0.0
    %2572 = vmatprep.subr.mxu0 0.0
    %2573 = vmatpush1.xpose.msra.mxu0 0.0
    %2574 = vmatprep.subr.mxu0 0.0
    %2575 = vmatpush1.xpose.msra.mxu0 0.0
    %2576 = vmatprep.subr.mxu0 0.0
    %2577 = vmatpush1.xpose.msra.mxu0 0.0
    %2578 = vmatprep.subr.mxu0 0.0
    %2579 = vmatpush1.xpose.msra.mxu0 0.0
    %2580 = vmatprep.mubr.f32.mxu0 0.0
    %2581 = vmatmul.mubr.f32.gmra.mrb[0].mxu0 %v2510
    %v2582 = vpop.f32.mrb[0].mxu0
    %v2583 = vadd.f32 %v93, %v2582
    %v2584 = vpop.f32.mrb[0].mxu0
    %2585 = vdwg.mxu0
    %v2586 = vsel %vm2056, %v2583, -inf
    %2587 = vmax.xlane.f32.xlu0 %v2586
    %v2588 = vpop.xlane.xlu0 %2587
    %v2589 = vsub.f32 %v2583, %v2588
    %v2590 = vmul.f32 %v2589, 1.442695
    %v2591 = vpow.pop %v2590
    %v2592 = vsel %vm2056, %v2591, 0.0
    %2593 = vadd.xlane.f32.xlu0 %v2592
    %v2594 = vpop.xlane.xlu0 %2593
    %v2595 = vrcp.pop %v2594
    %v2596 = vmul.f32 %v2594, %v2595
    %v2597 = vsub.f32 2.0, %v2596
    %v2598 = vmul.f32 %v2595, %v2597
    %v2599 = vmul.f32 %v2591, %v2598
    %2600 = vrot.lane.b32.xlu0 %v1959, 72
    %v2601 = vpop.permute.xlu0 %2600
    %2602 = vrot.lane.b32.xlu0 %v1964, 72
    %v2603 = vpop.permute.xlu0 %2602
    %v2606 = vsel %vm2056, %v2599, 0
    %v2608 = vsel %vm2079, %v2603, 0
    %2610 = vmatprep.subr.mxu0 0.0
    %2611 = vmatpush1.msra.mxu0 %v2601
    %2612 = vmatprep.subr.mxu0 0.0
    %2613 = vmatpush1.msra.mxu0 %v2608
    %2614 = vmatprep.subr.mxu0 0.0
    %2615 = vmatpush1.msra.mxu0 0.0
    %2616 = vmatprep.subr.mxu0 0.0
    %2617 = vmatpush1.msra.mxu0 0.0
    %2618 = vmatprep.subr.mxu0 0.0
    %2619 = vmatpush1.msra.mxu0 0.0
    %2620 = vmatprep.subr.mxu0 0.0
    %2621 = vmatpush1.msra.mxu0 0.0
    %2622 = vmatprep.subr.mxu0 0.0
    %2623 = vmatpush1.msra.mxu0 0.0
    %2624 = vmatprep.subr.mxu0 0.0
    %2625 = vmatpush1.msra.mxu0 0.0
    %2626 = vmatprep.subr.mxu0 0.0
    %2627 = vmatpush1.msra.mxu0 0.0
    %2628 = vmatprep.subr.mxu0 0.0
    %2629 = vmatpush1.msra.mxu0 0.0
    %2630 = vmatprep.subr.mxu0 0.0
    %2631 = vmatpush1.msra.mxu0 0.0
    %2632 = vmatprep.subr.mxu0 0.0
    %2633 = vmatpush1.msra.mxu0 0.0
    %2634 = vmatprep.subr.mxu0 0.0
    %2635 = vmatpush1.msra.mxu0 0.0
    %2636 = vmatprep.subr.mxu0 0.0
    %2637 = vmatpush1.msra.mxu0 0.0
    %2638 = vmatprep.subr.mxu0 0.0
    %2639 = vmatpush1.msra.mxu0 0.0
    %2640 = vmatprep.subr.mxu0 0.0
    %2641 = vmatpush1.msra.mxu0 0.0
    %2642 = vmatprep.subr.mxu0 0.0
    %2643 = vmatpush1.msra.mxu0 0.0
    %2644 = vmatprep.subr.mxu0 0.0
    %2645 = vmatpush1.msra.mxu0 0.0
    %2646 = vmatprep.subr.mxu0 0.0
    %2647 = vmatpush1.msra.mxu0 0.0
    %2648 = vmatprep.subr.mxu0 0.0
    %2649 = vmatpush1.msra.mxu0 0.0
    %2650 = vmatprep.subr.mxu0 0.0
    %2651 = vmatpush1.msra.mxu0 0.0
    %2652 = vmatprep.subr.mxu0 0.0
    %2653 = vmatpush1.msra.mxu0 0.0
    %2654 = vmatprep.subr.mxu0 0.0
    %2655 = vmatpush1.msra.mxu0 0.0
    %2656 = vmatprep.subr.mxu0 0.0
    %2657 = vmatpush1.msra.mxu0 0.0
    %2658 = vmatprep.subr.mxu0 0.0
    %2659 = vmatpush1.msra.mxu0 0.0
    %2660 = vmatprep.subr.mxu0 0.0
    %2661 = vmatpush1.msra.mxu0 0.0
    %2662 = vmatprep.subr.mxu0 0.0
    %2663 = vmatpush1.msra.mxu0 0.0
    %2664 = vmatprep.subr.mxu0 0.0
    %2665 = vmatpush1.msra.mxu0 0.0
    %2666 = vmatprep.subr.mxu0 0.0
    %2667 = vmatpush1.msra.mxu0 0.0
    %2668 = vmatprep.subr.mxu0 0.0
    %2669 = vmatpush1.msra.mxu0 0.0
    %2670 = vmatprep.subr.mxu0 0.0
    %2671 = vmatpush1.msra.mxu0 0.0
    %2672 = vmatprep.subr.mxu0 0.0
    %2673 = vmatpush1.msra.mxu0 0.0
    %2674 = vmatprep.mubr.f32.mxu0 0.0
    %2675 = vmatmul.mubr.f32.gmra.mrb[0].mxu0 %v2606
    %v2676 = vpop.f32.mrb[0].mxu0
    %v2677 = vadd.f32 0.0, %v2676
    %v2678 = vpop.f32.mrb[0].mxu0
    %2679 = vdwg.mxu0
    %2681 = vrot.lane.b32.xlu0 %v2325, 8
    %v2682 = vpop.permute.xlu0 %2681
    %2685 = vrot.lane.b32.xlu0 %v2501, 16
    %v2686 = vpop.permute.xlu0 %2685
    %2689 = vrot.lane.b32.xlu0 %v2677, 24
    %v2690 = vpop.permute.xlu0 %2689
    %v2692 = vsel %vm256, %v2149, %v2682
    %v2693 = vsel %vm938, %v2692, %v2686
    %v2694 = vsel %vm940, %v2693, %v2690
    %vm2696 = vcmask 1045504
    %v2697 = vrot.slane %v1964, 2
    %v2698 = vrot.slane %v1969, 2
    %v2699 = vsel %vm2696, %v2697, %v2698
    %v2701 = vsel %vm256, %v1860, 0
    %v2703 = vsel %vm256, %v2699, 0
    %v2705 = vsel %vm256, %v2698, 0
    %2707 = vmatprep.subr.mxu0 0.0
    %2708 = vmatpush1.xpose.msra.mxu0 %v2703
    %2709 = vmatprep.subr.mxu0 0.0
    %2710 = vmatpush1.xpose.msra.mxu0 %v2705
    %2711 = vmatprep.subr.mxu0 0.0
    %2712 = vmatpush1.xpose.msra.mxu0 0.0
    %2713 = vmatprep.subr.mxu0 0.0
    %2714 = vmatpush1.xpose.msra.mxu0 0.0
    %2715 = vmatprep.subr.mxu0 0.0
    %2716 = vmatpush1.xpose.msra.mxu0 0.0
    %2717 = vmatprep.subr.mxu0 0.0
    %2718 = vmatpush1.xpose.msra.mxu0 0.0
    %2719 = vmatprep.subr.mxu0 0.0
    %2720 = vmatpush1.xpose.msra.mxu0 0.0
    %2721 = vmatprep.subr.mxu0 0.0
    %2722 = vmatpush1.xpose.msra.mxu0 0.0
    %2723 = vmatprep.subr.mxu0 0.0
    %2724 = vmatpush1.xpose.msra.mxu0 0.0
    %2725 = vmatprep.subr.mxu0 0.0
    %2726 = vmatpush1.xpose.msra.mxu0 0.0
    %2727 = vmatprep.subr.mxu0 0.0
    %2728 = vmatpush1.xpose.msra.mxu0 0.0
    %2729 = vmatprep.subr.mxu0 0.0
    %2730 = vmatpush1.xpose.msra.mxu0 0.0
    %2731 = vmatprep.subr.mxu0 0.0
    %2732 = vmatpush1.xpose.msra.mxu0 0.0
    %2733 = vmatprep.subr.mxu0 0.0
    %2734 = vmatpush1.xpose.msra.mxu0 0.0
    %2735 = vmatprep.subr.mxu0 0.0
    %2736 = vmatpush1.xpose.msra.mxu0 0.0
    %2737 = vmatprep.subr.mxu0 0.0
    %2738 = vmatpush1.xpose.msra.mxu0 0.0
    %2739 = vmatprep.subr.mxu0 0.0
    %2740 = vmatpush1.xpose.msra.mxu0 0.0
    %2741 = vmatprep.subr.mxu0 0.0
    %2742 = vmatpush1.xpose.msra.mxu0 0.0
    %2743 = vmatprep.subr.mxu0 0.0
    %2744 = vmatpush1.xpose.msra.mxu0 0.0
    %2745 = vmatprep.subr.mxu0 0.0
    %2746 = vmatpush1.xpose.msra.mxu0 0.0
    %2747 = vmatprep.subr.mxu0 0.0
    %2748 = vmatpush1.xpose.msra.mxu0 0.0
    %2749 = vmatprep.subr.mxu0 0.0
    %2750 = vmatpush1.xpose.msra.mxu0 0.0
    %2751 = vmatprep.subr.mxu0 0.0
    %2752 = vmatpush1.xpose.msra.mxu0 0.0
    %2753 = vmatprep.subr.mxu0 0.0
    %2754 = vmatpush1.xpose.msra.mxu0 0.0
    %2755 = vmatprep.subr.mxu0 0.0
    %2756 = vmatpush1.xpose.msra.mxu0 0.0
    %2757 = vmatprep.subr.mxu0 0.0
    %2758 = vmatpush1.xpose.msra.mxu0 0.0
    %2759 = vmatprep.subr.mxu0 0.0
    %2760 = vmatpush1.xpose.msra.mxu0 0.0
    %2761 = vmatprep.subr.mxu0 0.0
    %2762 = vmatpush1.xpose.msra.mxu0 0.0
    %2763 = vmatprep.subr.mxu0 0.0
    %2764 = vmatpush1.xpose.msra.mxu0 0.0
    %2765 = vmatprep.subr.mxu0 0.0
    %2766 = vmatpush1.xpose.msra.mxu0 0.0
    %2767 = vmatprep.subr.mxu0 0.0
    %2768 = vmatpush1.xpose.msra.mxu0 0.0
    %2769 = vmatprep.subr.mxu0 0.0
    %2770 = vmatpush1.xpose.msra.mxu0 0.0
    %2771 = vmatprep.mubr.f32.mxu0 0.0
    %2772 = vmatmul.mubr.f32.gmra.mrb[0].mxu0 %v2701
    %v2773 = vpop.f32.mrb[0].mxu0
    %v2774 = vadd.f32 %v95, %v2773
    %v2775 = vpop.f32.mrb[0].mxu0
    %2776 = vdwg.mxu0
    %v2777 = vsel %vm2056, %v2774, -inf
    %2778 = vmax.xlane.f32.xlu0 %v2777
    %v2779 = vpop.xlane.xlu0 %2778
    %v2780 = vsub.f32 %v2774, %v2779
    %v2781 = vmul.f32 %v2780, 1.442695
    %v2782 = vpow.pop %v2781
    %v2783 = vsel %vm2056, %v2782, 0.0
    %2784 = vadd.xlane.f32.xlu0 %v2783
    %v2785 = vpop.xlane.xlu0 %2784
    %v2786 = vrcp.pop %v2785
    %v2787 = vmul.f32 %v2785, %v2786
    %v2788 = vsub.f32 2.0, %v2787
    %v2789 = vmul.f32 %v2786, %v2788
    %v2790 = vmul.f32 %v2782, %v2789
    %2791 = vrot.lane.b32.xlu0 %v2699, 96
    %v2792 = vpop.permute.xlu0 %2791
    %2793 = vrot.lane.b32.xlu0 %v2698, 96
    %v2794 = vpop.permute.xlu0 %2793
    %v2797 = vsel %vm2056, %v2790, 0
    %v2799 = vsel %vm2079, %v2794, 0
    %2801 = vmatprep.subr.mxu0 0.0
    %2802 = vmatpush1.msra.mxu0 %v2792
    %2803 = vmatprep.subr.mxu0 0.0
    %2804 = vmatpush1.msra.mxu0 %v2799
    %2805 = vmatprep.subr.mxu0 0.0
    %2806 = vmatpush1.msra.mxu0 0.0
    %2807 = vmatprep.subr.mxu0 0.0
    %2808 = vmatpush1.msra.mxu0 0.0
    %2809 = vmatprep.subr.mxu0 0.0
    %2810 = vmatpush1.msra.mxu0 0.0
    %2811 = vmatprep.subr.mxu0 0.0
    %2812 = vmatpush1.msra.mxu0 0.0
    %2813 = vmatprep.subr.mxu0 0.0
    %2814 = vmatpush1.msra.mxu0 0.0
    %2815 = vmatprep.subr.mxu0 0.0
    %2816 = vmatpush1.msra.mxu0 0.0
    %2817 = vmatprep.subr.mxu0 0.0
    %2818 = vmatpush1.msra.mxu0 0.0
    %2819 = vmatprep.subr.mxu0 0.0
    %2820 = vmatpush1.msra.mxu0 0.0
    %2821 = vmatprep.subr.mxu0 0.0
    %2822 = vmatpush1.msra.mxu0 0.0
    %2823 = vmatprep.subr.mxu0 0.0
    %2824 = vmatpush1.msra.mxu0 0.0
    %2825 = vmatprep.subr.mxu0 0.0
    %2826 = vmatpush1.msra.mxu0 0.0
    %2827 = vmatprep.subr.mxu0 0.0
    %2828 = vmatpush1.msra.mxu0 0.0
    %2829 = vmatprep.subr.mxu0 0.0
    %2830 = vmatpush1.msra.mxu0 0.0
    %2831 = vmatprep.subr.mxu0 0.0
    %2832 = vmatpush1.msra.mxu0 0.0
    %2833 = vmatprep.subr.mxu0 0.0
    %2834 = vmatpush1.msra.mxu0 0.0
    %2835 = vmatprep.subr.mxu0 0.0
    %2836 = vmatpush1.msra.mxu0 0.0
    %2837 = vmatprep.subr.mxu0 0.0
    %2838 = vmatpush1.msra.mxu0 0.0
    %2839 = vmatprep.subr.mxu0 0.0
    %2840 = vmatpush1.msra.mxu0 0.0
    %2841 = vmatprep.subr.mxu0 0.0
    %2842 = vmatpush1.msra.mxu0 0.0
    %2843 = vmatprep.subr.mxu0 0.0
    %2844 = vmatpush1.msra.mxu0 0.0
    %2845 = vmatprep.subr.mxu0 0.0
    %2846 = vmatpush1.msra.mxu0 0.0
    %2847 = vmatprep.subr.mxu0 0.0
    %2848 = vmatpush1.msra.mxu0 0.0
    %2849 = vmatprep.subr.mxu0 0.0
    %2850 = vmatpush1.msra.mxu0 0.0
    %2851 = vmatprep.subr.mxu0 0.0
    %2852 = vmatpush1.msra.mxu0 0.0
    %2853 = vmatprep.subr.mxu0 0.0
    %2854 = vmatpush1.msra.mxu0 0.0
    %2855 = vmatprep.subr.mxu0 0.0
    %2856 = vmatpush1.msra.mxu0 0.0
    %2857 = vmatprep.subr.mxu0 0.0
    %2858 = vmatpush1.msra.mxu0 0.0
    %2859 = vmatprep.subr.mxu0 0.0
    %2860 = vmatpush1.msra.mxu0 0.0
    %2861 = vmatprep.subr.mxu0 0.0
    %2862 = vmatpush1.msra.mxu0 0.0
    %2863 = vmatprep.subr.mxu0 0.0
    %2864 = vmatpush1.msra.mxu0 0.0
    %2865 = vmatprep.mubr.f32.mxu0 0.0
    %2866 = vmatmul.mubr.f32.gmra.mrb[0].mxu0 %v2797
    %v2867 = vpop.f32.mrb[0].mxu0
    %v2868 = vadd.f32 0.0, %v2867
    %v2869 = vpop.f32.mrb[0].mxu0
    %2870 = vdwg.mxu0
    %2871 = vrot.lane.b32.xlu0 %v1860, 120
    %v2872 = vpop.permute.xlu0 %2871
    %2873 = vrot.lane.b32.xlu0 %v2699, 120
    %v2874 = vpop.permute.xlu0 %2873
    %2875 = vrot.lane.b32.xlu0 %v2698, 120
    %v2876 = vpop.permute.xlu0 %2875
    %v2877 = vsel %vm256, %v2872, 0
    %v2879 = vsel %vm256, %v2874, 0
    %v2881 = vsel %vm256, %v2876, 0
    %2883 = vmatprep.subr.mxu0 0.0
    %2884 = vmatpush1.xpose.msra.mxu0 %v2879
    %2885 = vmatprep.subr.mxu0 0.0
    %2886 = vmatpush1.xpose.msra.mxu0 %v2881
    %2887 = vmatprep.subr.mxu0 0.0
    %2888 = vmatpush1.xpose.msra.mxu0 0.0
    %2889 = vmatprep.subr.mxu0 0.0
    %2890 = vmatpush1.xpose.msra.mxu0 0.0
    %2891 = vmatprep.subr.mxu0 0.0
    %2892 = vmatpush1.xpose.msra.mxu0 0.0
    %2893 = vmatprep.subr.mxu0 0.0
    %2894 = vmatpush1.xpose.msra.mxu0 0.0
    %2895 = vmatprep.subr.mxu0 0.0
    %2896 = vmatpush1.xpose.msra.mxu0 0.0
    %2897 = vmatprep.subr.mxu0 0.0
    %2898 = vmatpush1.xpose.msra.mxu0 0.0
    %2899 = vmatprep.subr.mxu0 0.0
    %2900 = vmatpush1.xpose.msra.mxu0 0.0
    %2901 = vmatprep.subr.mxu0 0.0
    %2902 = vmatpush1.xpose.msra.mxu0 0.0
    %2903 = vmatprep.subr.mxu0 0.0
    %2904 = vmatpush1.xpose.msra.mxu0 0.0
    %2905 = vmatprep.subr.mxu0 0.0
    %2906 = vmatpush1.xpose.msra.mxu0 0.0
    %2907 = vmatprep.subr.mxu0 0.0
    %2908 = vmatpush1.xpose.msra.mxu0 0.0
    %2909 = vmatprep.subr.mxu0 0.0
    %2910 = vmatpush1.xpose.msra.mxu0 0.0
    %2911 = vmatprep.subr.mxu0 0.0
    %2912 = vmatpush1.xpose.msra.mxu0 0.0
    %2913 = vmatprep.subr.mxu0 0.0
    %2914 = vmatpush1.xpose.msra.mxu0 0.0
    %2915 = vmatprep.subr.mxu0 0.0
    %2916 = vmatpush1.xpose.msra.mxu0 0.0
    %2917 = vmatprep.subr.mxu0 0.0
    %2918 = vmatpush1.xpose.msra.mxu0 0.0
    %2919 = vmatprep.subr.mxu0 0.0
    %2920 = vmatpush1.xpose.msra.mxu0 0.0
    %2921 = vmatprep.subr.mxu0 0.0
    %2922 = vmatpush1.xpose.msra.mxu0 0.0
    %2923 = vmatprep.subr.mxu0 0.0
    %2924 = vmatpush1.xpose.msra.mxu0 0.0
    %2925 = vmatprep.subr.mxu0 0.0
    %2926 = vmatpush1.xpose.msra.mxu0 0.0
    %2927 = vmatprep.subr.mxu0 0.0
    %2928 = vmatpush1.xpose.msra.mxu0 0.0
    %2929 = vmatprep.subr.mxu0 0.0
    %2930 = vmatpush1.xpose.msra.mxu0 0.0
    %2931 = vmatprep.subr.mxu0 0.0
    %2932 = vmatpush1.xpose.msra.mxu0 0.0
    %2933 = vmatprep.subr.mxu0 0.0
    %2934 = vmatpush1.xpose.msra.mxu0 0.0
    %2935 = vmatprep.subr.mxu0 0.0
    %2936 = vmatpush1.xpose.msra.mxu0 0.0
    %2937 = vmatprep.subr.mxu0 0.0
    %2938 = vmatpush1.xpose.msra.mxu0 0.0
    %2939 = vmatprep.subr.mxu0 0.0
    %2940 = vmatpush1.xpose.msra.mxu0 0.0
    %2941 = vmatprep.subr.mxu0 0.0
    %2942 = vmatpush1.xpose.msra.mxu0 0.0
    %2943 = vmatprep.subr.mxu0 0.0
    %2944 = vmatpush1.xpose.msra.mxu0 0.0
    %2945 = vmatprep.subr.mxu0 0.0
    %2946 = vmatpush1.xpose.msra.mxu0 0.0
    %2947 = vmatprep.mubr.f32.mxu0 0.0
    %2948 = vmatmul.mubr.f32.gmra.mrb[0].mxu0 %v2877
    %v2949 = vpop.f32.mrb[0].mxu0
    %v2950 = vadd.f32 %v95, %v2949
    %v2951 = vpop.f32.mrb[0].mxu0
    %2952 = vdwg.mxu0
    %v2953 = vsel %vm2056, %v2950, -inf
    %2954 = vmax.xlane.f32.xlu0 %v2953
    %v2955 = vpop.xlane.xlu0 %2954
    %v2956 = vsub.f32 %v2950, %v2955
    %v2957 = vmul.f32 %v2956, 1.442695
    %v2958 = vpow.pop %v2957
    %v2959 = vsel %vm2056, %v2958, 0.0
    %2960 = vadd.xlane.f32.xlu0 %v2959
    %v2961 = vpop.xlane.xlu0 %2960
    %v2962 = vrcp.pop %v2961
    %v2963 = vmul.f32 %v2961, %v2962
    %v2964 = vsub.f32 2.0, %v2963
    %v2965 = vmul.f32 %v2962, %v2964
    %v2966 = vmul.f32 %v2958, %v2965
    %2967 = vrot.lane.b32.xlu0 %v2699, 88
    %v2968 = vpop.permute.xlu0 %2967
    %2969 = vrot.lane.b32.xlu0 %v2698, 88
    %v2970 = vpop.permute.xlu0 %2969
    %v2973 = vsel %vm2056, %v2966, 0
    %v2975 = vsel %vm2079, %v2970, 0
    %2977 = vmatprep.subr.mxu0 0.0
    %2978 = vmatpush1.msra.mxu0 %v2968
    %2979 = vmatprep.subr.mxu0 0.0
    %2980 = vmatpush1.msra.mxu0 %v2975
    %2981 = vmatprep.subr.mxu0 0.0
    %2982 = vmatpush1.msra.mxu0 0.0
    %2983 = vmatprep.subr.mxu0 0.0
    %2984 = vmatpush1.msra.mxu0 0.0
    %2985 = vmatprep.subr.mxu0 0.0
    %2986 = vmatpush1.msra.mxu0 0.0
    %2987 = vmatprep.subr.mxu0 0.0
    %2988 = vmatpush1.msra.mxu0 0.0
    %2989 = vmatprep.subr.mxu0 0.0
    %2990 = vmatpush1.msra.mxu0 0.0
    %2991 = vmatprep.subr.mxu0 0.0
    %2992 = vmatpush1.msra.mxu0 0.0
    %2993 = vmatprep.subr.mxu0 0.0
    %2994 = vmatpush1.msra.mxu0 0.0
    %2995 = vmatprep.subr.mxu0 0.0
    %2996 = vmatpush1.msra.mxu0 0.0
    %2997 = vmatprep.subr.mxu0 0.0
    %2998 = vmatpush1.msra.mxu0 0.0
    %2999 = vmatprep.subr.mxu0 0.0
    %3000 = vmatpush1.msra.mxu0 0.0
    %3001 = vmatprep.subr.mxu0 0.0
    %3002 = vmatpush1.msra.mxu0 0.0
    %3003 = vmatprep.subr.mxu0 0.0
    %3004 = vmatpush1.msra.mxu0 0.0
    %3005 = vmatprep.subr.mxu0 0.0
    %3006 = vmatpush1.msra.mxu0 0.0
    %3007 = vmatprep.subr.mxu0 0.0
    %3008 = vmatpush1.msra.mxu0 0.0
    %3009 = vmatprep.subr.mxu0 0.0
    %3010 = vmatpush1.msra.mxu0 0.0
    %3011 = vmatprep.subr.mxu0 0.0
    %3012 = vmatpush1.msra.mxu0 0.0
    %3013 = vmatprep.subr.mxu0 0.0
    %3014 = vmatpush1.msra.mxu0 0.0
    %3015 = vmatprep.subr.mxu0 0.0
    %3016 = vmatpush1.msra.mxu0 0.0
    %3017 = vmatprep.subr.mxu0 0.0
    %3018 = vmatpush1.msra.mxu0 0.0
    %3019 = vmatprep.subr.mxu0 0.0
    %3020 = vmatpush1.msra.mxu0 0.0
    %3021 = vmatprep.subr.mxu0 0.0
    %3022 = vmatpush1.msra.mxu0 0.0
    %3023 = vmatprep.subr.mxu0 0.0
    %3024 = vmatpush1.msra.mxu0 0.0
    %3025 = vmatprep.subr.mxu0 0.0
    %3026 = vmatpush1.msra.mxu0 0.0
    %3027 = vmatprep.subr.mxu0 0.0
    %3028 = vmatpush1.msra.mxu0 0.0
    %3029 = vmatprep.subr.mxu0 0.0
    %3030 = vmatpush1.msra.mxu0 0.0
    %3031 = vmatprep.subr.mxu0 0.0
    %3032 = vmatpush1.msra.mxu0 0.0
    %3033 = vmatprep.subr.mxu0 0.0
    %3034 = vmatpush1.msra.mxu0 0.0
    %3035 = vmatprep.subr.mxu0 0.0
    %3036 = vmatpush1.msra.mxu0 0.0
    %3037 = vmatprep.subr.mxu0 0.0
    %3038 = vmatpush1.msra.mxu0 0.0
    %3039 = vmatprep.subr.mxu0 0.0
    %3040 = vmatpush1.msra.mxu0 0.0
    %3041 = vmatprep.mubr.f32.mxu0 0.0
    %3042 = vmatmul.mubr.f32.gmra.mrb[0].mxu0 %v2973
    %v3043 = vpop.f32.mrb[0].mxu0
    %v3044 = vadd.f32 0.0, %v3043
    %v3045 = vpop.f32.mrb[0].mxu0
    %3046 = vdwg.mxu0
    %3047 = vrot.lane.b32.xlu0 %v1860, 112
    %v3048 = vpop.permute.xlu0 %3047
    %3049 = vrot.lane.b32.xlu0 %v2699, 112
    %v3050 = vpop.permute.xlu0 %3049
    %3051 = vrot.lane.b32.xlu0 %v2698, 112
    %v3052 = vpop.permute.xlu0 %3051
    %v3053 = vsel %vm256, %v3048, 0
    %v3055 = vsel %vm256, %v3050, 0
    %v3057 = vsel %vm256, %v3052, 0
    %3059 = vmatprep.subr.mxu0 0.0
    %3060 = vmatpush1.xpose.msra.mxu0 %v3055
    %3061 = vmatprep.subr.mxu0 0.0
    %3062 = vmatpush1.xpose.msra.mxu0 %v3057
    %3063 = vmatprep.subr.mxu0 0.0
    %3064 = vmatpush1.xpose.msra.mxu0 0.0
    %3065 = vmatprep.subr.mxu0 0.0
    %3066 = vmatpush1.xpose.msra.mxu0 0.0
    %3067 = vmatprep.subr.mxu0 0.0
    %3068 = vmatpush1.xpose.msra.mxu0 0.0
    %3069 = vmatprep.subr.mxu0 0.0
    %3070 = vmatpush1.xpose.msra.mxu0 0.0
    %3071 = vmatprep.subr.mxu0 0.0
    %3072 = vmatpush1.xpose.msra.mxu0 0.0
    %3073 = vmatprep.subr.mxu0 0.0
    %3074 = vmatpush1.xpose.msra.mxu0 0.0
    %3075 = vmatprep.subr.mxu0 0.0
    %3076 = vmatpush1.xpose.msra.mxu0 0.0
    %3077 = vmatprep.subr.mxu0 0.0
    %3078 = vmatpush1.xpose.msra.mxu0 0.0
    %3079 = vmatprep.subr.mxu0 0.0
    %3080 = vmatpush1.xpose.msra.mxu0 0.0
    %3081 = vmatprep.subr.mxu0 0.0
    %3082 = vmatpush1.xpose.msra.mxu0 0.0
    %3083 = vmatprep.subr.mxu0 0.0
    %3084 = vmatpush1.xpose.msra.mxu0 0.0
    %3085 = vmatprep.subr.mxu0 0.0
    %3086 = vmatpush1.xpose.msra.mxu0 0.0
    %3087 = vmatprep.subr.mxu0 0.0
    %3088 = vmatpush1.xpose.msra.mxu0 0.0
    %3089 = vmatprep.subr.mxu0 0.0
    %3090 = vmatpush1.xpose.msra.mxu0 0.0
    %3091 = vmatprep.subr.mxu0 0.0
    %3092 = vmatpush1.xpose.msra.mxu0 0.0
    %3093 = vmatprep.subr.mxu0 0.0
    %3094 = vmatpush1.xpose.msra.mxu0 0.0
    %3095 = vmatprep.subr.mxu0 0.0
    %3096 = vmatpush1.xpose.msra.mxu0 0.0
    %3097 = vmatprep.subr.mxu0 0.0
    %3098 = vmatpush1.xpose.msra.mxu0 0.0
    %3099 = vmatprep.subr.mxu0 0.0
    %3100 = vmatpush1.xpose.msra.mxu0 0.0
    %3101 = vmatprep.subr.mxu0 0.0
    %3102 = vmatpush1.xpose.msra.mxu0 0.0
    %3103 = vmatprep.subr.mxu0 0.0
    %3104 = vmatpush1.xpose.msra.mxu0 0.0
    %3105 = vmatprep.subr.mxu0 0.0
    %3106 = vmatpush1.xpose.msra.mxu0 0.0
    %3107 = vmatprep.subr.mxu0 0.0
    %3108 = vmatpush1.xpose.msra.mxu0 0.0
    %3109 = vmatprep.subr.mxu0 0.0
    %3110 = vmatpush1.xpose.msra.mxu0 0.0
    %3111 = vmatprep.subr.mxu0 0.0
    %3112 = vmatpush1.xpose.msra.mxu0 0.0
    %3113 = vmatprep.subr.mxu0 0.0
    %3114 = vmatpush1.xpose.msra.mxu0 0.0
    %3115 = vmatprep.subr.mxu0 0.0
    %3116 = vmatpush1.xpose.msra.mxu0 0.0
    %3117 = vmatprep.subr.mxu0 0.0
    %3118 = vmatpush1.xpose.msra.mxu0 0.0
    %3119 = vmatprep.subr.mxu0 0.0
    %3120 = vmatpush1.xpose.msra.mxu0 0.0
    %3121 = vmatprep.subr.mxu0 0.0
    %3122 = vmatpush1.xpose.msra.mxu0 0.0
    %3123 = vmatprep.mubr.f32.mxu0 0.0
    %3124 = vmatmul.mubr.f32.gmra.mrb[0].mxu0 %v3053
    %v3125 = vpop.f32.mrb[0].mxu0
    %v3126 = vadd.f32 %v95, %v3125
    %v3127 = vpop.f32.mrb[0].mxu0
    %3128 = vdwg.mxu0
    %v3129 = vsel %vm2056, %v3126, -inf
    %3130 = vmax.xlane.f32.xlu0 %v3129
    %v3131 = vpop.xlane.xlu0 %3130
    %v3132 = vsub.f32 %v3126, %v3131
    %v3133 = vmul.f32 %v3132, 1.442695
    %v3134 = vpow.pop %v3133
    %v3135 = vsel %vm2056, %v3134, 0.0
    %3136 = vadd.xlane.f32.xlu0 %v3135
    %v3137 = vpop.xlane.xlu0 %3136
    %v3138 = vrcp.pop %v3137
    %v3139 = vmul.f32 %v3137, %v3138
    %v3140 = vsub.f32 2.0, %v3139
    %v3141 = vmul.f32 %v3138, %v3140
    %v3142 = vmul.f32 %v3134, %v3141
    %3143 = vrot.lane.b32.xlu0 %v2699, 80
    %v3144 = vpop.permute.xlu0 %3143
    %3145 = vrot.lane.b32.xlu0 %v2698, 80
    %v3146 = vpop.permute.xlu0 %3145
    %v3149 = vsel %vm2056, %v3142, 0
    %v3151 = vsel %vm2079, %v3146, 0
    %3153 = vmatprep.subr.mxu0 0.0
    %3154 = vmatpush1.msra.mxu0 %v3144
    %3155 = vmatprep.subr.mxu0 0.0
    %3156 = vmatpush1.msra.mxu0 %v3151
    %3157 = vmatprep.subr.mxu0 0.0
    %3158 = vmatpush1.msra.mxu0 0.0
    %3159 = vmatprep.subr.mxu0 0.0
    %3160 = vmatpush1.msra.mxu0 0.0
    %3161 = vmatprep.subr.mxu0 0.0
    %3162 = vmatpush1.msra.mxu0 0.0
    %3163 = vmatprep.subr.mxu0 0.0
    %3164 = vmatpush1.msra.mxu0 0.0
    %3165 = vmatprep.subr.mxu0 0.0
    %3166 = vmatpush1.msra.mxu0 0.0
    %3167 = vmatprep.subr.mxu0 0.0
    %3168 = vmatpush1.msra.mxu0 0.0
    %3169 = vmatprep.subr.mxu0 0.0
    %3170 = vmatpush1.msra.mxu0 0.0
    %3171 = vmatprep.subr.mxu0 0.0
    %3172 = vmatpush1.msra.mxu0 0.0
    %3173 = vmatprep.subr.mxu0 0.0
    %3174 = vmatpush1.msra.mxu0 0.0
    %3175 = vmatprep.subr.mxu0 0.0
    %3176 = vmatpush1.msra.mxu0 0.0
    %3177 = vmatprep.subr.mxu0 0.0
    %3178 = vmatpush1.msra.mxu0 0.0
    %3179 = vmatprep.subr.mxu0 0.0
    %3180 = vmatpush1.msra.mxu0 0.0
    %3181 = vmatprep.subr.mxu0 0.0
    %3182 = vmatpush1.msra.mxu0 0.0
    %3183 = vmatprep.subr.mxu0 0.0
    %3184 = vmatpush1.msra.mxu0 0.0
    %3185 = vmatprep.subr.mxu0 0.0
    %3186 = vmatpush1.msra.mxu0 0.0
    %3187 = vmatprep.subr.mxu0 0.0
    %3188 = vmatpush1.msra.mxu0 0.0
    %3189 = vmatprep.subr.mxu0 0.0
    %3190 = vmatpush1.msra.mxu0 0.0
    %3191 = vmatprep.subr.mxu0 0.0
    %3192 = vmatpush1.msra.mxu0 0.0
    %3193 = vmatprep.subr.mxu0 0.0
    %3194 = vmatpush1.msra.mxu0 0.0
    %3195 = vmatprep.subr.mxu0 0.0
    %3196 = vmatpush1.msra.mxu0 0.0
    %3197 = vmatprep.subr.mxu0 0.0
    %3198 = vmatpush1.msra.mxu0 0.0
    %3199 = vmatprep.subr.mxu0 0.0
    %3200 = vmatpush1.msra.mxu0 0.0
    %3201 = vmatprep.subr.mxu0 0.0
    %3202 = vmatpush1.msra.mxu0 0.0
    %3203 = vmatprep.subr.mxu0 0.0
    %3204 = vmatpush1.msra.mxu0 0.0
    %3205 = vmatprep.subr.mxu0 0.0
    %3206 = vmatpush1.msra.mxu0 0.0
    %3207 = vmatprep.subr.mxu0 0.0
    %3208 = vmatpush1.msra.mxu0 0.0
    %3209 = vmatprep.subr.mxu0 0.0
    %3210 = vmatpush1.msra.mxu0 0.0
    %3211 = vmatprep.subr.mxu0 0.0
    %3212 = vmatpush1.msra.mxu0 0.0
    %3213 = vmatprep.subr.mxu0 0.0
    %3214 = vmatpush1.msra.mxu0 0.0
    %3215 = vmatprep.subr.mxu0 0.0
    %3216 = vmatpush1.msra.mxu0 0.0
    %3217 = vmatprep.mubr.f32.mxu0 0.0
    %3218 = vmatmul.mubr.f32.gmra.mrb[0].mxu0 %v3149
    %v3219 = vpop.f32.mrb[0].mxu0
    %v3220 = vadd.f32 0.0, %v3219
    %v3221 = vpop.f32.mrb[0].mxu0
    %3222 = vdwg.mxu0
    %3223 = vrot.lane.b32.xlu0 %v1860, 104
    %v3224 = vpop.permute.xlu0 %3223
    %3225 = vrot.lane.b32.xlu0 %v2699, 104
    %v3226 = vpop.permute.xlu0 %3225
    %3227 = vrot.lane.b32.xlu0 %v2698, 104
    %v3228 = vpop.permute.xlu0 %3227
    %v3229 = vsel %vm256, %v3224, 0
    %v3231 = vsel %vm256, %v3226, 0
    %v3233 = vsel %vm256, %v3228, 0
    %3235 = vmatprep.subr.mxu0 0.0
    %3236 = vmatpush1.xpose.msra.mxu0 %v3231
    %3237 = vmatprep.subr.mxu0 0.0
    %3238 = vmatpush1.xpose.msra.mxu0 %v3233
    %3239 = vmatprep.subr.mxu0 0.0
    %3240 = vmatpush1.xpose.msra.mxu0 0.0
    %3241 = vmatprep.subr.mxu0 0.0
    %3242 = vmatpush1.xpose.msra.mxu0 0.0
    %3243 = vmatprep.subr.mxu0 0.0
    %3244 = vmatpush1.xpose.msra.mxu0 0.0
    %3245 = vmatprep.subr.mxu0 0.0
    %3246 = vmatpush1.xpose.msra.mxu0 0.0
    %3247 = vmatprep.subr.mxu0 0.0
    %3248 = vmatpush1.xpose.msra.mxu0 0.0
    %3249 = vmatprep.subr.mxu0 0.0
    %3250 = vmatpush1.xpose.msra.mxu0 0.0
    %3251 = vmatprep.subr.mxu0 0.0
    %3252 = vmatpush1.xpose.msra.mxu0 0.0
    %3253 = vmatprep.subr.mxu0 0.0
    %3254 = vmatpush1.xpose.msra.mxu0 0.0
    %3255 = vmatprep.subr.mxu0 0.0
    %3256 = vmatpush1.xpose.msra.mxu0 0.0
    %3257 = vmatprep.subr.mxu0 0.0
    %3258 = vmatpush1.xpose.msra.mxu0 0.0
    %3259 = vmatprep.subr.mxu0 0.0
    %3260 = vmatpush1.xpose.msra.mxu0 0.0
    %3261 = vmatprep.subr.mxu0 0.0
    %3262 = vmatpush1.xpose.msra.mxu0 0.0
    %3263 = vmatprep.subr.mxu0 0.0
    %3264 = vmatpush1.xpose.msra.mxu0 0.0
    %3265 = vmatprep.subr.mxu0 0.0
    %3266 = vmatpush1.xpose.msra.mxu0 0.0
    %3267 = vmatprep.subr.mxu0 0.0
    %3268 = vmatpush1.xpose.msra.mxu0 0.0
    %3269 = vmatprep.subr.mxu0 0.0
    %3270 = vmatpush1.xpose.msra.mxu0 0.0
    %3271 = vmatprep.subr.mxu0 0.0
    %3272 = vmatpush1.xpose.msra.mxu0 0.0
    %3273 = vmatprep.subr.mxu0 0.0
    %3274 = vmatpush1.xpose.msra.mxu0 0.0
    %3275 = vmatprep.subr.mxu0 0.0
    %3276 = vmatpush1.xpose.msra.mxu0 0.0
    %3277 = vmatprep.subr.mxu0 0.0
    %3278 = vmatpush1.xpose.msra.mxu0 0.0
    %3279 = vmatprep.subr.mxu0 0.0
    %3280 = vmatpush1.xpose.msra.mxu0 0.0
    %3281 = vmatprep.subr.mxu0 0.0
    %3282 = vmatpush1.xpose.msra.mxu0 0.0
    %3283 = vmatprep.subr.mxu0 0.0
    %3284 = vmatpush1.xpose.msra.mxu0 0.0
    %3285 = vmatprep.subr.mxu0 0.0
    %3286 = vmatpush1.xpose.msra.mxu0 0.0
    %3287 = vmatprep.subr.mxu0 0.0
    %3288 = vmatpush1.xpose.msra.mxu0 0.0
    %3289 = vmatprep.subr.mxu0 0.0
    %3290 = vmatpush1.xpose.msra.mxu0 0.0
    %3291 = vmatprep.subr.mxu0 0.0
    %3292 = vmatpush1.xpose.msra.mxu0 0.0
    %3293 = vmatprep.subr.mxu0 0.0
    %3294 = vmatpush1.xpose.msra.mxu0 0.0
    %3295 = vmatprep.subr.mxu0 0.0
    %3296 = vmatpush1.xpose.msra.mxu0 0.0
    %3297 = vmatprep.subr.mxu0 0.0
    %3298 = vmatpush1.xpose.msra.mxu0 0.0
    %3299 = vmatprep.mubr.f32.mxu0 0.0
    %3300 = vmatmul.mubr.f32.gmra.mrb[0].mxu0 %v3229
    %v3301 = vpop.f32.mrb[0].mxu0
    %v3302 = vadd.f32 %v95, %v3301
    %v3303 = vpop.f32.mrb[0].mxu0
    %3304 = vdwg.mxu0
    %v3305 = vsel %vm2056, %v3302, -inf
    %3306 = vmax.xlane.f32.xlu0 %v3305
    %v3307 = vpop.xlane.xlu0 %3306
    %v3308 = vsub.f32 %v3302, %v3307
    %v3309 = vmul.f32 %v3308, 1.442695
    %v3310 = vpow.pop %v3309
    %v3311 = vsel %vm2056, %v3310, 0.0
    %3312 = vadd.xlane.f32.xlu0 %v3311
    %v3313 = vpop.xlane.xlu0 %3312
    %v3314 = vrcp.pop %v3313
    %v3315 = vmul.f32 %v3313, %v3314
    %v3316 = vsub.f32 2.0, %v3315
    %v3317 = vmul.f32 %v3314, %v3316
    %v3318 = vmul.f32 %v3310, %v3317
    %3319 = vrot.lane.b32.xlu0 %v2699, 72
    %v3320 = vpop.permute.xlu0 %3319
    %3321 = vrot.lane.b32.xlu0 %v2698, 72
    %v3322 = vpop.permute.xlu0 %3321
    %v3325 = vsel %vm2056, %v3318, 0
    %v3327 = vsel %vm2079, %v3322, 0
    %3329 = vmatprep.subr.mxu0 0.0
    %3330 = vmatpush1.msra.mxu0 %v3320
    %3331 = vmatprep.subr.mxu0 0.0
    %3332 = vmatpush1.msra.mxu0 %v3327
    %3333 = vmatprep.subr.mxu0 0.0
    %3334 = vmatpush1.msra.mxu0 0.0
    %3335 = vmatprep.subr.mxu0 0.0
    %3336 = vmatpush1.msra.mxu0 0.0
    %3337 = vmatprep.subr.mxu0 0.0
    %3338 = vmatpush1.msra.mxu0 0.0
    %3339 = vmatprep.subr.mxu0 0.0
    %3340 = vmatpush1.msra.mxu0 0.0
    %3341 = vmatprep.subr.mxu0 0.0
    %3342 = vmatpush1.msra.mxu0 0.0
    %3343 = vmatprep.subr.mxu0 0.0
    %3344 = vmatpush1.msra.mxu0 0.0
    %3345 = vmatprep.subr.mxu0 0.0
    %3346 = vmatpush1.msra.mxu0 0.0
    %3347 = vmatprep.subr.mxu0 0.0
    %3348 = vmatpush1.msra.mxu0 0.0
    %3349 = vmatprep.subr.mxu0 0.0
    %3350 = vmatpush1.msra.mxu0 0.0
    %3351 = vmatprep.subr.mxu0 0.0
    %3352 = vmatpush1.msra.mxu0 0.0
    %3353 = vmatprep.subr.mxu0 0.0
    %3354 = vmatpush1.msra.mxu0 0.0
    %3355 = vmatprep.subr.mxu0 0.0
    %3356 = vmatpush1.msra.mxu0 0.0
    %3357 = vmatprep.subr.mxu0 0.0
    %3358 = vmatpush1.msra.mxu0 0.0
    %3359 = vmatprep.subr.mxu0 0.0
    %3360 = vmatpush1.msra.mxu0 0.0
    %3361 = vmatprep.subr.mxu0 0.0
    %3362 = vmatpush1.msra.mxu0 0.0
    %3363 = vmatprep.subr.mxu0 0.0
    %3364 = vmatpush1.msra.mxu0 0.0
    %3365 = vmatprep.subr.mxu0 0.0
    %3366 = vmatpush1.msra.mxu0 0.0
    %3367 = vmatprep.subr.mxu0 0.0
    %3368 = vmatpush1.msra.mxu0 0.0
    %3369 = vmatprep.subr.mxu0 0.0
    %3370 = vmatpush1.msra.mxu0 0.0
    %3371 = vmatprep.subr.mxu0 0.0
    %3372 = vmatpush1.msra.mxu0 0.0
    %3373 = vmatprep.subr.mxu0 0.0
    %3374 = vmatpush1.msra.mxu0 0.0
    %3375 = vmatprep.subr.mxu0 0.0
    %3376 = vmatpush1.msra.mxu0 0.0
    %3377 = vmatprep.subr.mxu0 0.0
    %3378 = vmatpush1.msra.mxu0 0.0
    %3379 = vmatprep.subr.mxu0 0.0
    %3380 = vmatpush1.msra.mxu0 0.0
    %3381 = vmatprep.subr.mxu0 0.0
    %3382 = vmatpush1.msra.mxu0 0.0
    %3383 = vmatprep.subr.mxu0 0.0
    %3384 = vmatpush1.msra.mxu0 0.0
    %3385 = vmatprep.subr.mxu0 0.0
    %3386 = vmatpush1.msra.mxu0 0.0
    %3387 = vmatprep.subr.mxu0 0.0
    %3388 = vmatpush1.msra.mxu0 0.0
    %3389 = vmatprep.subr.mxu0 0.0
    %3390 = vmatpush1.msra.mxu0 0.0
    %3391 = vmatprep.subr.mxu0 0.0
    %3392 = vmatpush1.msra.mxu0 0.0
    %3393 = vmatprep.mubr.f32.mxu0 0.0
    %3394 = vmatmul.mubr.f32.gmra.mrb[0].mxu0 %v3325
    %v3395 = vpop.f32.mrb[0].mxu0
    %v3396 = vadd.f32 0.0, %v3395
    %v3397 = vpop.f32.mrb[0].mxu0
    %3398 = vdwg.mxu0
    %3400 = vrot.lane.b32.xlu0 %v3044, 8
    %v3401 = vpop.permute.xlu0 %3400
    %3404 = vrot.lane.b32.xlu0 %v3220, 16
    %v3405 = vpop.permute.xlu0 %3404
    %3408 = vrot.lane.b32.xlu0 %v3396, 24
    %v3409 = vpop.permute.xlu0 %3408
    %v3411 = vsel %vm256, %v2868, %v3401
    %v3412 = vsel %vm938, %v3411, %v3405
    %v3413 = vsel %vm940, %v3412, %v3409
    %v3414 = vlaneseq
    %v3415 = vshrl.u32 %v3414, 7
    %v3416 = vsub.s32 0, %v3415
    %v3417 = vrot.slane %v1976, %v3416
    %v3419 = vsel %vm98, %v2694, 0
    %v3422 = vsel %vm98, %v3413, 0
    %3424 = vmatprep.subr.mxu0 0.0
    %3425 = vmatpush1.msra.mxu0 %v1972
    %3426 = vmatprep.subr.mxu0 0.0
    %3427 = vmatpush1.msra.mxu0 %v1973
    %3428 = vmatprep.subr.mxu0 0.0
    %3429 = vmatpush1.msra.mxu0 %v1974
    %3430 = vmatprep.subr.mxu0 0.0
    %3431 = vmatpush1.msra.mxu0 %v1975
    %3432 = vmatprep.subr.mxu0 0.0
    %3433 = vmatpush1.msra.mxu0 0.0
    %3434 = vmatprep.subr.mxu0 0.0
    %3435 = vmatpush1.msra.mxu0 0.0
    %3436 = vmatprep.subr.mxu0 0.0
    %3437 = vmatpush1.msra.mxu0 0.0
    %3438 = vmatprep.subr.mxu0 0.0
    %3439 = vmatpush1.msra.mxu0 0.0
    %3440 = vmatprep.subr.mxu0 0.0
    %3441 = vmatpush1.msra.mxu0 0.0
    %3442 = vmatprep.subr.mxu0 0.0
    %3443 = vmatpush1.msra.mxu0 0.0
    %3444 = vmatprep.subr.mxu0 0.0
    %3445 = vmatpush1.msra.mxu0 0.0
    %3446 = vmatprep.subr.mxu0 0.0
    %3447 = vmatpush1.msra.mxu0 0.0
    %3448 = vmatprep.subr.mxu0 0.0
    %3449 = vmatpush1.msra.mxu0 0.0
    %3450 = vmatprep.subr.mxu0 0.0
    %3451 = vmatpush1.msra.mxu0 0.0
    %3452 = vmatprep.subr.mxu0 0.0
    %3453 = vmatpush1.msra.mxu0 0.0
    %3454 = vmatprep.subr.mxu0 0.0
    %3455 = vmatpush1.msra.mxu0 0.0
    %3456 = vmatprep.subr.mxu0 0.0
    %3457 = vmatpush1.msra.mxu0 0.0
    %3458 = vmatprep.subr.mxu0 0.0
    %3459 = vmatpush1.msra.mxu0 0.0
    %3460 = vmatprep.subr.mxu0 0.0
    %3461 = vmatpush1.msra.mxu0 0.0
    %3462 = vmatprep.subr.mxu0 0.0
    %3463 = vmatpush1.msra.mxu0 0.0
    %3464 = vmatprep.subr.mxu0 0.0
    %3465 = vmatpush1.msra.mxu0 0.0
    %3466 = vmatprep.subr.mxu0 0.0
    %3467 = vmatpush1.msra.mxu0 0.0
    %3468 = vmatprep.subr.mxu0 0.0
    %3469 = vmatpush1.msra.mxu0 0.0
    %3470 = vmatprep.subr.mxu0 0.0
    %3471 = vmatpush1.msra.mxu0 0.0
    %3472 = vmatprep.subr.mxu0 0.0
    %3473 = vmatpush1.msra.mxu0 0.0
    %3474 = vmatprep.subr.mxu0 0.0
    %3475 = vmatpush1.msra.mxu0 0.0
    %3476 = vmatprep.subr.mxu0 0.0
    %3477 = vmatpush1.msra.mxu0 0.0
    %3478 = vmatprep.subr.mxu0 0.0
    %3479 = vmatpush1.msra.mxu0 0.0
    %3480 = vmatprep.subr.mxu0 0.0
    %3481 = vmatpush1.msra.mxu0 0.0
    %3482 = vmatprep.subr.mxu0 0.0
    %3483 = vmatpush1.msra.mxu0 0.0
    %3484 = vmatprep.subr.mxu0 0.0
    %3485 = vmatpush1.msra.mxu0 0.0
    %3486 = vmatprep.subr.mxu0 0.0
    %3487 = vmatpush1.msra.mxu0 0.0
    %3488 = vmatprep.mubr.f32.mxu0 0.0
    %3489 = vmatmul.mubr.f32.gmra.mrb[0].mxu0 %v3419
    %v3490 = vpop.f32.mrb[0].mxu0
    %v3491 = vadd.f32 %v3417, %v3490
    %v3492 = vpop.f32.mrb[0].mxu0
    %3493 = vmatprep.mubr.f32.mxu0 0.0
    %3494 = vmatmul.mubr.f32.gmra.mrb[0].mxu0 %v3422
    %v3495 = vpop.f32.mrb[0].mxu0
    %v3496 = vadd.f32 %v3417, %v3495
    %v3497 = vpop.f32.mrb[0].mxu0
    %3498 = vdwg.mxu0
    %v3499 = vadd.f32 %v1713, %v3491
    %v3500 = vadd.f32 %v1714, %v3496
    %v3501 = vsel %vm98, %v3499, 0.0
    %3502 = vadd.xlane.f32.xlu0 %v3501
    %v3503 = vpop.xlane.xlu0 %3502
    %v3504 = vsel %vm98, %v3500, 0.0
    %3505 = vadd.xlane.f32.xlu0 %v3504
    %v3506 = vpop.xlane.xlu0 %3505
    %v3507 = vmul.f32 %v3503, %v105
    %v3508 = vmul.f32 %v3506, %v105
    %v3509 = vsub.f32 %v3499, %v3507
    %v3510 = vsub.f32 %v3500, %v3508
    %v3511 = vmul.f32 %v3509, %v3509
    %v3512 = vmul.f32 %v3510, %v3510
    %v3513 = vsel %vm98, %v3511, 0.0
    %3514 = vadd.xlane.f32.xlu0 %v3513
    %v3515 = vpop.xlane.xlu0 %3514
    %v3516 = vsel %vm98, %v3512, 0.0
    %3517 = vadd.xlane.f32.xlu0 %v3516
    %v3518 = vpop.xlane.xlu0 %3517
    %v3519 = vmul.f32 %v3515, 0.032258064
    %v3520 = vmul.f32 %v3518, 0.032258064
    %v3521 = vrsqrt.pop %v3519
    %v3522 = vmul.f32 %v3519, %v3521
    %vm3523 = vcmp.eq.f32.partialorder %v3519, inf
    %v3524 = vsel %vm3523, %v3519, %v3522
    %vm3525 = vcmp.eq.f32.partialorder %v3519, 0.0
    %v3526 = vand.u32 %v3519, 2147483648
    %v3527 = vsel %vm3525, %v3526, %v3524
    %v3528 = vrsqrt.pop %v3520
    %v3529 = vmul.f32 %v3520, %v3528
    %vm3530 = vcmp.eq.f32.partialorder %v3520, inf
    %v3531 = vsel %vm3530, %v3520, %v3529
    %vm3532 = vcmp.eq.f32.partialorder %v3520, 0.0
    %v3533 = vand.u32 %v3520, 2147483648
    %v3534 = vsel %vm3532, %v3533, %v3531
    %v3535 = vlaneseq
    %v3536 = vshrl.u32 %v3535, 7
    %v3537 = vsub.s32 2, %v3536
    %v3538 = vrot.slane %v96, %v3537
    %v3539 = vmul.f32 %v3538, %v3509
    %v3540 = vmul.f32 %v3538, %v3510
    %v3541 = vadd.f32 %v3527, 1e-06
    %v3542 = vadd.f32 %v3534, 1e-06
    %v3543 = vrcp.pop %v3541
    %v3544 = vrcp.pop %v3542
    %v3545 = vmul.f32 %v3541, %v3543
    %v3546 = vmul.f32 %v3542, %v3544
    %v3547 = vsub.f32 2.0, %v3545
    %v3548 = vsub.f32 2.0, %v3546
    %v3549 = vmul.f32 %v3543, %v3547
    %v3550 = vmul.f32 %v3544, %v3548
    %v3551 = vmul.f32 %v3539, %v3549
    %v3552 = vmul.f32 %v3540, %v3550
    %v3553 = vlaneseq
    %v3554 = vshrl.u32 %v3553, 7
    %v3555 = vsub.s32 2, %v3554
    %v3556 = vrot.slane %v97, %v3555
    %v3557 = vadd.f32 %v3551, %v3556
    %v3558 = vadd.f32 %v3552, %v3556
    %v3559 = vld [vmem:[#allocation10 + $0xa0] sm:$0xff]
    %v3560 = vld [vmem:[#allocation10 + $0xa8] sm:$0xff]
    %v3561 = vld [vmem:[#allocation10 + $0xb0] sm:$0xff]
    %v3562 = vld [vmem:[#allocation10 + $0xb8] sm:$0xff]
    %v3563 = vld [vmem:[#allocation10 + $0xc0] sm:$0x1]
    %v3564 = vlaneseq
    %v3565 = vshrl.u32 %v3564, 7
    %v3566 = vsub.s32 0, %v3565
    %v3567 = vrot.slane %v3563, %v3566
    %v3569 = vsel %vm98, %v3557, 0
    %v3572 = vsel %vm98, %v3558, 0
    %3574 = vmatprep.subr.mxu0 0.0
    %3575 = vmatpush1.msra.mxu0 %v3559
    %3576 = vmatprep.subr.mxu0 0.0
    %3577 = vmatpush1.msra.mxu0 %v3560
    %3578 = vmatprep.subr.mxu0 0.0
    %3579 = vmatpush1.msra.mxu0 %v3561
    %3580 = vmatprep.subr.mxu0 0.0
    %3581 = vmatpush1.msra.mxu0 %v3562
    %3582 = vmatprep.subr.mxu0 0.0
    %3583 = vmatpush1.msra.mxu0 0.0
    %3584 = vmatprep.subr.mxu0 0.0
    %3585 = vmatpush1.msra.mxu0 0.0
    %3586 = vmatprep.subr.mxu0 0.0
    %3587 = vmatpush1.msra.mxu0 0.0
    %3588 = vmatprep.subr.mxu0 0.0
    %3589 = vmatpush1.msra.mxu0 0.0
    %3590 = vmatprep.subr.mxu0 0.0
    %3591 = vmatpush1.msra.mxu0 0.0
    %3592 = vmatprep.subr.mxu0 0.0
    %3593 = vmatpush1.msra.mxu0 0.0
    %3594 = vmatprep.subr.mxu0 0.0
    %3595 = vmatpush1.msra.mxu0 0.0
    %3596 = vmatprep.subr.mxu0 0.0
    %3597 = vmatpush1.msra.mxu0 0.0
    %3598 = vmatprep.subr.mxu0 0.0
    %3599 = vmatpush1.msra.mxu0 0.0
    %3600 = vmatprep.subr.mxu0 0.0
    %3601 = vmatpush1.msra.mxu0 0.0
    %3602 = vmatprep.subr.mxu0 0.0
    %3603 = vmatpush1.msra.mxu0 0.0
    %3604 = vmatprep.subr.mxu0 0.0
    %3605 = vmatpush1.msra.mxu0 0.0
    %3606 = vmatprep.subr.mxu0 0.0
    %3607 = vmatpush1.msra.mxu0 0.0
    %3608 = vmatprep.subr.mxu0 0.0
    %3609 = vmatpush1.msra.mxu0 0.0
    %3610 = vmatprep.subr.mxu0 0.0
    %3611 = vmatpush1.msra.mxu0 0.0
    %3612 = vmatprep.subr.mxu0 0.0
    %3613 = vmatpush1.msra.mxu0 0.0
    %3614 = vmatprep.subr.mxu0 0.0
    %3615 = vmatpush1.msra.mxu0 0.0
    %3616 = vmatprep.subr.mxu0 0.0
    %3617 = vmatpush1.msra.mxu0 0.0
    %3618 = vmatprep.subr.mxu0 0.0
    %3619 = vmatpush1.msra.mxu0 0.0
    %3620 = vmatprep.subr.mxu0 0.0
    %3621 = vmatpush1.msra.mxu0 0.0
    %3622 = vmatprep.subr.mxu0 0.0
    %3623 = vmatpush1.msra.mxu0 0.0
    %3624 = vmatprep.subr.mxu0 0.0
    %3625 = vmatpush1.msra.mxu0 0.0
    %3626 = vmatprep.subr.mxu0 0.0
    %3627 = vmatpush1.msra.mxu0 0.0
    %3628 = vmatprep.subr.mxu0 0.0
    %3629 = vmatpush1.msra.mxu0 0.0
    %3630 = vmatprep.subr.mxu0 0.0
    %3631 = vmatpush1.msra.mxu0 0.0
    %3632 = vmatprep.subr.mxu0 0.0
    %3633 = vmatpush1.msra.mxu0 0.0
    %3634 = vmatprep.subr.mxu0 0.0
    %3635 = vmatpush1.msra.mxu0 0.0
    %3636 = vmatprep.subr.mxu0 0.0
    %3637 = vmatpush1.msra.mxu0 0.0
    %3638 = vmatprep.mubr.f32.mxu0 0.0
    %3639 = vmatmul.mubr.f32.gmra.mrb[0].mxu0 %v3569
    %v3640 = vpop.f32.mrb[0].mxu0
    %v3641 = vadd.f32 %v3567, %v3640
    %v3642 = vpop.f32.mrb[0].mxu0
    %3643 = vmatprep.mubr.f32.mxu0 0.0
    %3644 = vmatmul.mubr.f32.gmra.mrb[0].mxu0 %v3572
    %v3645 = vpop.f32.mrb[0].mxu0
    %v3646 = vadd.f32 %v3567, %v3645
    %v3647 = vpop.f32.mrb[0].mxu0
    %3648 = vdwg.mxu0
    %v3649 = vmax.f32 %v3641, 0.0
    %v3650 = vmax.f32 %v3646, 0.0
    %v3651 = vld [vmem:[#allocation10 + $0xc8] sm:$0xff]
    %v3652 = vld [vmem:[#allocation10 + $0xd0] sm:$0xff]
    %v3653 = vld [vmem:[#allocation10 + $0xd8] sm:$0xff]
    %v3654 = vld [vmem:[#allocation10 + $0xe0] sm:$0xff]
    %v3655 = vld [vmem:[#allocation10 + $0xe8] sm:$0xff]
    %v3656 = vld [vmem:[#allocation10 + $0xf0] sm:$0xff]
    %v3657 = vld [vmem:[#allocation10 + $0xf8] sm:$0xff]
    %v3658 = vld [vmem:[#allocation10 + $0x100] sm:$0xff]
    %vm3659 = vcmask 523264
    %v3661 = vsel %vm3659, %v3649, 0
    %v3664 = vsel %vm3659, %v3650, 0
    %3666 = vmatprep.subr.mxu0 0.0
    %3667 = vmatpush1.msra.mxu0 %v3651
    %3668 = vmatprep.subr.mxu0 0.0
    %3669 = vmatpush1.msra.mxu0 %v3652
    %3670 = vmatprep.subr.mxu0 0.0
    %3671 = vmatpush1.msra.mxu0 %v3653
    %3672 = vmatprep.subr.mxu0 0.0
    %3673 = vmatpush1.msra.mxu0 %v3654
    %3674 = vmatprep.subr.mxu0 0.0
    %3675 = vmatpush1.msra.mxu0 %v3655
    %3676 = vmatprep.subr.mxu0 0.0
    %3677 = vmatpush1.msra.mxu0 %v3656
    %3678 = vmatprep.subr.mxu0 0.0
    %3679 = vmatpush1.msra.mxu0 %v3657
    %3680 = vmatprep.subr.mxu0 0.0
    %3681 = vmatpush1.msra.mxu0 %v3658
    %3682 = vmatprep.subr.mxu0 0.0
    %3683 = vmatpush1.msra.mxu0 0.0
    %3684 = vmatprep.subr.mxu0 0.0
    %3685 = vmatpush1.msra.mxu0 0.0
    %3686 = vmatprep.subr.mxu0 0.0
    %3687 = vmatpush1.msra.mxu0 0.0
    %3688 = vmatprep.subr.mxu0 0.0
    %3689 = vmatpush1.msra.mxu0 0.0
    %3690 = vmatprep.subr.mxu0 0.0
    %3691 = vmatpush1.msra.mxu0 0.0
    %3692 = vmatprep.subr.mxu0 0.0
    %3693 = vmatpush1.msra.mxu0 0.0
    %3694 = vmatprep.subr.mxu0 0.0
    %3695 = vmatpush1.msra.mxu0 0.0
    %3696 = vmatprep.subr.mxu0 0.0
    %3697 = vmatpush1.msra.mxu0 0.0
    %3698 = vmatprep.subr.mxu0 0.0
    %3699 = vmatpush1.msra.mxu0 0.0
    %3700 = vmatprep.subr.mxu0 0.0
    %3701 = vmatpush1.msra.mxu0 0.0
    %3702 = vmatprep.subr.mxu0 0.0
    %3703 = vmatpush1.msra.mxu0 0.0
    %3704 = vmatprep.subr.mxu0 0.0
    %3705 = vmatpush1.msra.mxu0 0.0
    %3706 = vmatprep.subr.mxu0 0.0
    %3707 = vmatpush1.msra.mxu0 0.0
    %3708 = vmatprep.subr.mxu0 0.0
    %3709 = vmatpush1.msra.mxu0 0.0
    %3710 = vmatprep.subr.mxu0 0.0
    %3711 = vmatpush1.msra.mxu0 0.0
    %3712 = vmatprep.subr.mxu0 0.0
    %3713 = vmatpush1.msra.mxu0 0.0
    %3714 = vmatprep.subr.mxu0 0.0
    %3715 = vmatpush1.msra.mxu0 0.0
    %3716 = vmatprep.subr.mxu0 0.0
    %3717 = vmatpush1.msra.mxu0 0.0
    %3718 = vmatprep.subr.mxu0 0.0
    %3719 = vmatpush1.msra.mxu0 0.0
    %3720 = vmatprep.subr.mxu0 0.0
    %3721 = vmatpush1.msra.mxu0 0.0
    %3722 = vmatprep.subr.mxu0 0.0
    %3723 = vmatpush1.msra.mxu0 0.0
    %3724 = vmatprep.subr.mxu0 0.0
    %3725 = vmatpush1.msra.mxu0 0.0
    %3726 = vmatprep.subr.mxu0 0.0
    %3727 = vmatpush1.msra.mxu0 0.0
    %3728 = vmatprep.subr.mxu0 0.0
    %3729 = vmatpush1.msra.mxu0 0.0
    %3730 = vmatprep.mubr.f32.mxu0 0.0
    %3731 = vmatmul.mubr.f32.gmra.mrb[0].mxu0 %v3661
    %v3732 = vpop.f32.mrb[0].mxu0
    %v3733 = vadd.f32 0.0, %v3732
    %v3734 = vpop.f32.mrb[0].mxu0
    %3735 = vmatprep.mubr.f32.mxu0 0.0
    %3736 = vmatmul.mubr.f32.gmra.mrb[0].mxu0 %v3664
    %v3737 = vpop.f32.mrb[0].mxu0
    %v3738 = vadd.f32 0.0, %v3737
    %v3739 = vpop.f32.mrb[0].mxu0
    %3740 = vdwg.mxu0
    %v3741 = vadd.f32 %v3499, %v3733
    %v3742 = vadd.f32 %v3500, %v3738
    %v3743 = vld [vmem:[#allocation10 + $0x108] sm:$0x1]
    %v3744 = vlaneseq
    %v3745 = vshrl.u32 %v3744, 7
    %v3746 = vsub.s32 0, %v3745
    %v3747 = vrot.slane %v3743, %v3746
    %v3748 = vadd.f32 %v3741, %v3747
    %v3749 = vadd.f32 %v3742, %v3747
    %v3750 = vld [vmem:[#allocation10 + $0x230] sm:$0x7]
    %v3751 = vld [vmem:[#allocation10 + $0x238] sm:$0x7]
    %v3752 = vsel %vm98, %v3748, 0.0
    %3753 = vadd.xlane.f32.xlu0 %v3752
    %v3754 = vpop.xlane.xlu0 %3753
    %v3755 = vsel %vm98, %v3749, 0.0
    %3756 = vadd.xlane.f32.xlu0 %v3755
    %v3757 = vpop.xlane.xlu0 %3756
    %v3758 = vmul.f32 %v3754, %v105
    %v3759 = vmul.f32 %v3757, %v105
    %v3760 = vsub.f32 %v3748, %v3758
    %v3761 = vsub.f32 %v3749, %v3759
    %v3762 = vmul.f32 %v3760, %v3760
    %v3763 = vmul.f32 %v3761, %v3761
    %v3764 = vsel %vm98, %v3762, 0.0
    %3765 = vadd.xlane.f32.xlu0 %v3764
    %v3766 = vpop.xlane.xlu0 %3765
    %v3767 = vsel %vm98, %v3763, 0.0
    %3768 = vadd.xlane.f32.xlu0 %v3767
    %v3769 = vpop.xlane.xlu0 %3768
    %v3770 = vmul.f32 %v3766, 0.032258064
    %v3771 = vmul.f32 %v3769, 0.032258064
    %v3772 = vrsqrt.pop %v3770
    %v3773 = vmul.f32 %v3770, %v3772
    %vm3774 = vcmp.eq.f32.partialorder %v3770, inf
    %v3775 = vsel %vm3774, %v3770, %v3773
    %vm3776 = vcmp.eq.f32.partialorder %v3770, 0.0
    %v3777 = vand.u32 %v3770, 2147483648
    %v3778 = vsel %vm3776, %v3777, %v3775
    %v3779 = vrsqrt.pop %v3771
    %v3780 = vmul.f32 %v3771, %v3779
    %vm3781 = vcmp.eq.f32.partialorder %v3771, inf
    %v3782 = vsel %vm3781, %v3771, %v3780
    %vm3783 = vcmp.eq.f32.partialorder %v3771, 0.0
    %v3784 = vand.u32 %v3771, 2147483648
    %v3785 = vsel %vm3783, %v3784, %v3782
    %v3786 = vlaneseq
    %v3787 = vshrl.u32 %v3786, 7
    %v3788 = vsub.s32 0, %v3787
    %v3789 = vrot.slane %v3750, %v3788
    %v3790 = vmul.f32 %v3789, %v3760
    %v3791 = vmul.f32 %v3789, %v3761
    %v3792 = vadd.f32 %v3778, 1e-06
    %v3793 = vadd.f32 %v3785, 1e-06
    %v3794 = vrcp.pop %v3792
    %v3795 = vrcp.pop %v3793
    %v3796 = vmul.f32 %v3792, %v3794
    %v3797 = vmul.f32 %v3793, %v3795
    %v3798 = vsub.f32 2.0, %v3796
    %v3799 = vsub.f32 2.0, %v3797
    %v3800 = vmul.f32 %v3794, %v3798
    %v3801 = vmul.f32 %v3795, %v3799
    %v3802 = vmul.f32 %v3790, %v3800
    %v3803 = vmul.f32 %v3791, %v3801
    %v3804 = vlaneseq
    %v3805 = vshrl.u32 %v3804, 7
    %v3806 = vsub.s32 0, %v3805
    %v3807 = vrot.slane %v3751, %v3806
    %v3808 = vadd.f32 %v3802, %v3807
    %v3809 = vadd.f32 %v3803, %v3807
    %v3810 = vld [vmem:[#allocation10 + $0x120] sm:$0xff]
    %v3811 = vld [vmem:[#allocation10 + $0x128] sm:$0xff]
    %v3812 = vld [vmem:[#allocation10 + $0x130] sm:$0xff]
    %v3813 = vld [vmem:[#allocation10 + $0x138] sm:$0xff]
    %v3814 = vld [vmem:[#allocation10 + $0x140] sm:$0x1]
    %v3815 = vlaneseq
    %v3816 = vshrl.u32 %v3815, 7
    %v3817 = vsub.s32 0, %v3816
    %v3818 = vrot.slane %v3814, %v3817
    %v3820 = vsel %vm98, %v3808, 0
    %v3823 = vsel %vm98, %v3809, 0
    %3825 = vmatprep.subr.mxu0 0.0
    %3826 = vmatpush1.msra.mxu0 %v3810
    %3827 = vmatprep.subr.mxu0 0.0
    %3828 = vmatpush1.msra.mxu0 %v3811
    %3829 = vmatprep.subr.mxu0 0.0
    %3830 = vmatpush1.msra.mxu0 %v3812
    %3831 = vmatprep.subr.mxu0 0.0
    %3832 = vmatpush1.msra.mxu0 %v3813
    %3833 = vmatprep.subr.mxu0 0.0
    %3834 = vmatpush1.msra.mxu0 0.0
    %3835 = vmatprep.subr.mxu0 0.0
    %3836 = vmatpush1.msra.mxu0 0.0
    %3837 = vmatprep.subr.mxu0 0.0
    %3838 = vmatpush1.msra.mxu0 0.0
    %3839 = vmatprep.subr.mxu0 0.0
    %3840 = vmatpush1.msra.mxu0 0.0
    %3841 = vmatprep.subr.mxu0 0.0
    %3842 = vmatpush1.msra.mxu0 0.0
    %3843 = vmatprep.subr.mxu0 0.0
    %3844 = vmatpush1.msra.mxu0 0.0
    %3845 = vmatprep.subr.mxu0 0.0
    %3846 = vmatpush1.msra.mxu0 0.0
    %3847 = vmatprep.subr.mxu0 0.0
    %3848 = vmatpush1.msra.mxu0 0.0
    %3849 = vmatprep.subr.mxu0 0.0
    %3850 = vmatpush1.msra.mxu0 0.0
    %3851 = vmatprep.subr.mxu0 0.0
    %3852 = vmatpush1.msra.mxu0 0.0
    %3853 = vmatprep.subr.mxu0 0.0
    %3854 = vmatpush1.msra.mxu0 0.0
    %3855 = vmatprep.subr.mxu0 0.0
    %3856 = vmatpush1.msra.mxu0 0.0
    %3857 = vmatprep.subr.mxu0 0.0
    %3858 = vmatpush1.msra.mxu0 0.0
    %3859 = vmatprep.subr.mxu0 0.0
    %3860 = vmatpush1.msra.mxu0 0.0
    %3861 = vmatprep.subr.mxu0 0.0
    %3862 = vmatpush1.msra.mxu0 0.0
    %3863 = vmatprep.subr.mxu0 0.0
    %3864 = vmatpush1.msra.mxu0 0.0
    %3865 = vmatprep.subr.mxu0 0.0
    %3866 = vmatpush1.msra.mxu0 0.0
    %3867 = vmatprep.subr.mxu0 0.0
    %3868 = vmatpush1.msra.mxu0 0.0
    %3869 = vmatprep.subr.mxu0 0.0
    %3870 = vmatpush1.msra.mxu0 0.0
    %3871 = vmatprep.subr.mxu0 0.0
    %3872 = vmatpush1.msra.mxu0 0.0
    %3873 = vmatprep.subr.mxu0 0.0
    %3874 = vmatpush1.msra.mxu0 0.0
    %3875 = vmatprep.subr.mxu0 0.0
    %3876 = vmatpush1.msra.mxu0 0.0
    %3877 = vmatprep.subr.mxu0 0.0
    %3878 = vmatpush1.msra.mxu0 0.0
    %3879 = vmatprep.subr.mxu0 0.0
    %3880 = vmatpush1.msra.mxu0 0.0
    %3881 = vmatprep.subr.mxu0 0.0
    %3882 = vmatpush1.msra.mxu0 0.0
    %3883 = vmatprep.subr.mxu0 0.0
    %3884 = vmatpush1.msra.mxu0 0.0
    %3885 = vmatprep.subr.mxu0 0.0
    %3886 = vmatpush1.msra.mxu0 0.0
    %3887 = vmatprep.subr.mxu0 0.0
    %3888 = vmatpush1.msra.mxu0 0.0
    %3889 = vmatprep.mubr.f32.mxu0 0.0
    %3890 = vmatmul.mubr.f32.gmra.mrb[0].mxu0 %v3820
    %v3891 = vpop.f32.mrb[0].mxu0
    %v3892 = vadd.f32 %v3818, %v3891
    %v3893 = vpop.f32.mrb[0].mxu0
    %3894 = vmatprep.mubr.f32.mxu0 0.0
    %3895 = vmatmul.mubr.f32.gmra.mrb[0].mxu0 %v3823
    %v3896 = vpop.f32.mrb[0].mxu0
    %v3897 = vadd.f32 %v3818, %v3896
    %v3898 = vpop.f32.mrb[0].mxu0
    %3899 = vdwg.mxu0
    %v3900 = vld [vmem:[#allocation10 + $0x148] sm:$0xff]
    %v3901 = vld [vmem:[#allocation10 + $0x150] sm:$0xff]
    %v3902 = vld [vmem:[#allocation10 + $0x158] sm:$0xff]
    %v3903 = vld [vmem:[#allocation10 + $0x160] sm:$0xff]
    %v3904 = vld [vmem:[#allocation10 + $0x168] sm:$0x1]
    %3906 = vrot.lane.b32.xlu0 %v3892, 96
    %v3907 = vpop.permute.xlu0 %3906
    %v3908 = vsel %vm256, %v3892, 0
    %v3910 = vsel %vm256, %v3907, 0
    %3912 = vmatprep.subr.mxu0 0.0
    %3913 = vmatpush1.xpose.msra.mxu0 %v3910
    %3914 = vmatprep.subr.mxu0 0.0
    %3915 = vmatpush1.xpose.msra.mxu0 0.0
    %3916 = vmatprep.subr.mxu0 0.0
    %3917 = vmatpush1.xpose.msra.mxu0 0.0
    %3918 = vmatprep.subr.mxu0 0.0
    %3919 = vmatpush1.xpose.msra.mxu0 0.0
    %3920 = vmatprep.subr.mxu0 0.0
    %3921 = vmatpush1.xpose.msra.mxu0 0.0
    %3922 = vmatprep.subr.mxu0 0.0
    %3923 = vmatpush1.xpose.msra.mxu0 0.0
    %3924 = vmatprep.subr.mxu0 0.0
    %3925 = vmatpush1.xpose.msra.mxu0 0.0
    %3926 = vmatprep.subr.mxu0 0.0
    %3927 = vmatpush1.xpose.msra.mxu0 0.0
    %3928 = vmatprep.subr.mxu0 0.0
    %3929 = vmatpush1.xpose.msra.mxu0 0.0
    %3930 = vmatprep.subr.mxu0 0.0
    %3931 = vmatpush1.xpose.msra.mxu0 0.0
    %3932 = vmatprep.subr.mxu0 0.0
    %3933 = vmatpush1.xpose.msra.mxu0 0.0
    %3934 = vmatprep.subr.mxu0 0.0
    %3935 = vmatpush1.xpose.msra.mxu0 0.0
    %3936 = vmatprep.subr.mxu0 0.0
    %3937 = vmatpush1.xpose.msra.mxu0 0.0
    %3938 = vmatprep.subr.mxu0 0.0
    %3939 = vmatpush1.xpose.msra.mxu0 0.0
    %3940 = vmatprep.subr.mxu0 0.0
    %3941 = vmatpush1.xpose.msra.mxu0 0.0
    %3942 = vmatprep.subr.mxu0 0.0
    %3943 = vmatpush1.xpose.msra.mxu0 0.0
    %3944 = vmatprep.subr.mxu0 0.0
    %3945 = vmatpush1.xpose.msra.mxu0 0.0
    %3946 = vmatprep.subr.mxu0 0.0
    %3947 = vmatpush1.xpose.msra.mxu0 0.0
    %3948 = vmatprep.subr.mxu0 0.0
    %3949 = vmatpush1.xpose.msra.mxu0 0.0
    %3950 = vmatprep.subr.mxu0 0.0
    %3951 = vmatpush1.xpose.msra.mxu0 0.0
    %3952 = vmatprep.subr.mxu0 0.0
    %3953 = vmatpush1.xpose.msra.mxu0 0.0
    %3954 = vmatprep.subr.mxu0 0.0
    %3955 = vmatpush1.xpose.msra.mxu0 0.0
    %3956 = vmatprep.subr.mxu0 0.0
    %3957 = vmatpush1.xpose.msra.mxu0 0.0
    %3958 = vmatprep.subr.mxu0 0.0
    %3959 = vmatpush1.xpose.msra.mxu0 0.0
    %3960 = vmatprep.subr.mxu0 0.0
    %3961 = vmatpush1.xpose.msra.mxu0 0.0
    %3962 = vmatprep.subr.mxu0 0.0
    %3963 = vmatpush1.xpose.msra.mxu0 0.0
    %3964 = vmatprep.subr.mxu0 0.0
    %3965 = vmatpush1.xpose.msra.mxu0 0.0
    %3966 = vmatprep.subr.mxu0 0.0
    %3967 = vmatpush1.xpose.msra.mxu0 0.0
    %3968 = vmatprep.subr.mxu0 0.0
    %3969 = vmatpush1.xpose.msra.mxu0 0.0
    %3970 = vmatprep.subr.mxu0 0.0
    %3971 = vmatpush1.xpose.msra.mxu0 0.0
    %3972 = vmatprep.subr.mxu0 0.0
    %3973 = vmatpush1.xpose.msra.mxu0 0.0
    %3974 = vmatprep.subr.mxu0 0.0
    %3975 = vmatpush1.xpose.msra.mxu0 0.0
    %3976 = vmatprep.mubr.f32.mxu0 0.0
    %3977 = vmatmul.mubr.f32.gmra.mrb[0].mxu0 %v3908
    %v3978 = vpop.f32.mrb[0].mxu0
    %v3979 = vadd.f32 %v92, %v3978
    %v3980 = vpop.f32.mrb[0].mxu0
    %3981 = vdwg.mxu0
    %v3982 = vsel %vm256, %v3979, -inf
    %3983 = vmax.xlane.f32.xlu0 %v3982
    %v3984 = vpop.xlane.xlu0 %3983
    %v3985 = vsub.f32 %v3979, %v3984
    %v3986 = vmul.f32 %v3985, 1.442695
    %v3987 = vpow.pop %v3986
    %v3988 = vsel %vm256, %v3987, 0.0
    %3989 = vadd.xlane.f32.xlu0 %v3988
    %v3990 = vpop.xlane.xlu0 %3989
    %v3991 = vrcp.pop %v3990
    %v3992 = vmul.f32 %v3990, %v3991
    %v3993 = vsub.f32 2.0, %v3992
    %v3994 = vmul.f32 %v3991, %v3993
    %v3995 = vmul.f32 %v3987, %v3994
    %3996 = vrot.lane.b32.xlu0 %v3892, 64
    %v3997 = vpop.permute.xlu0 %3996
    %v4000 = vsel %vm256, %v3995, 0
    %4002 = vmatprep.subr.mxu0 0.0
    %4003 = vmatpush1.msra.mxu0 %v3997
    %4004 = vmatprep.subr.mxu0 0.0
    %4005 = vmatpush1.msra.mxu0 0.0
    %4006 = vmatprep.subr.mxu0 0.0
    %4007 = vmatpush1.msra.mxu0 0.0
    %4008 = vmatprep.subr.mxu0 0.0
    %4009 = vmatpush1.msra.mxu0 0.0
    %4010 = vmatprep.subr.mxu0 0.0
    %4011 = vmatpush1.msra.mxu0 0.0
    %4012 = vmatprep.subr.mxu0 0.0
    %4013 = vmatpush1.msra.mxu0 0.0
    %4014 = vmatprep.subr.mxu0 0.0
    %4015 = vmatpush1.msra.mxu0 0.0
    %4016 = vmatprep.subr.mxu0 0.0
    %4017 = vmatpush1.msra.mxu0 0.0
    %4018 = vmatprep.subr.mxu0 0.0
    %4019 = vmatpush1.msra.mxu0 0.0
    %4020 = vmatprep.subr.mxu0 0.0
    %4021 = vmatpush1.msra.mxu0 0.0
    %4022 = vmatprep.subr.mxu0 0.0
    %4023 = vmatpush1.msra.mxu0 0.0
    %4024 = vmatprep.subr.mxu0 0.0
    %4025 = vmatpush1.msra.mxu0 0.0
    %4026 = vmatprep.subr.mxu0 0.0
    %4027 = vmatpush1.msra.mxu0 0.0
    %4028 = vmatprep.subr.mxu0 0.0
    %4029 = vmatpush1.msra.mxu0 0.0
    %4030 = vmatprep.subr.mxu0 0.0
    %4031 = vmatpush1.msra.mxu0 0.0
    %4032 = vmatprep.subr.mxu0 0.0
    %4033 = vmatpush1.msra.mxu0 0.0
    %4034 = vmatprep.subr.mxu0 0.0
    %4035 = vmatpush1.msra.mxu0 0.0
    %4036 = vmatprep.subr.mxu0 0.0
    %4037 = vmatpush1.msra.mxu0 0.0
    %4038 = vmatprep.subr.mxu0 0.0
    %4039 = vmatpush1.msra.mxu0 0.0
    %4040 = vmatprep.subr.mxu0 0.0
    %4041 = vmatpush1.msra.mxu0 0.0
    %4042 = vmatprep.subr.mxu0 0.0
    %4043 = vmatpush1.msra.mxu0 0.0
    %4044 = vmatprep.subr.mxu0 0.0
    %4045 = vmatpush1.msra.mxu0 0.0
    %4046 = vmatprep.subr.mxu0 0.0
    %4047 = vmatpush1.msra.mxu0 0.0
    %4048 = vmatprep.subr.mxu0 0.0
    %4049 = vmatpush1.msra.mxu0 0.0
    %4050 = vmatprep.subr.mxu0 0.0
    %4051 = vmatpush1.msra.mxu0 0.0
    %4052 = vmatprep.subr.mxu0 0.0
    %4053 = vmatpush1.msra.mxu0 0.0
    %4054 = vmatprep.subr.mxu0 0.0
    %4055 = vmatpush1.msra.mxu0 0.0
    %4056 = vmatprep.subr.mxu0 0.0
    %4057 = vmatpush1.msra.mxu0 0.0
    %4058 = vmatprep.subr.mxu0 0.0
    %4059 = vmatpush1.msra.mxu0 0.0
    %4060 = vmatprep.subr.mxu0 0.0
    %4061 = vmatpush1.msra.mxu0 0.0
    %4062 = vmatprep.subr.mxu0 0.0
    %4063 = vmatpush1.msra.mxu0 0.0
    %4064 = vmatprep.subr.mxu0 0.0
    %4065 = vmatpush1.msra.mxu0 0.0
    %4066 = vmatprep.mubr.f32.mxu0 0.0
    %4067 = vmatmul.mubr.f32.gmra.mrb[0].mxu0 %v4000
    %v4068 = vpop.f32.mrb[0].mxu0
    %v4069 = vadd.f32 0.0, %v4068
    %v4070 = vpop.f32.mrb[0].mxu0
    %4071 = vdwg.mxu0
    %4072 = vrot.lane.b32.xlu0 %v3892, 120
    %v4073 = vpop.permute.xlu0 %4072
    %4074 = vrot.lane.b32.xlu0 %v3892, 88
    %v4075 = vpop.permute.xlu0 %4074
    %v4076 = vsel %vm256, %v4073, 0
    %v4078 = vsel %vm256, %v4075, 0
    %4080 = vmatprep.subr.mxu0 0.0
    %4081 = vmatpush1.xpose.msra.mxu0 %v4078
    %4082 = vmatprep.subr.mxu0 0.0
    %4083 = vmatpush1.xpose.msra.mxu0 0.0
    %4084 = vmatprep.subr.mxu0 0.0
    %4085 = vmatpush1.xpose.msra.mxu0 0.0
    %4086 = vmatprep.subr.mxu0 0.0
    %4087 = vmatpush1.xpose.msra.mxu0 0.0
    %4088 = vmatprep.subr.mxu0 0.0
    %4089 = vmatpush1.xpose.msra.mxu0 0.0
    %4090 = vmatprep.subr.mxu0 0.0
    %4091 = vmatpush1.xpose.msra.mxu0 0.0
    %4092 = vmatprep.subr.mxu0 0.0
    %4093 = vmatpush1.xpose.msra.mxu0 0.0
    %4094 = vmatprep.subr.mxu0 0.0
    %4095 = vmatpush1.xpose.msra.mxu0 0.0
    %4096 = vmatprep.subr.mxu0 0.0
    %4097 = vmatpush1.xpose.msra.mxu0 0.0
    %4098 = vmatprep.subr.mxu0 0.0
    %4099 = vmatpush1.xpose.msra.mxu0 0.0
    %4100 = vmatprep.subr.mxu0 0.0
    %4101 = vmatpush1.xpose.msra.mxu0 0.0
    %4102 = vmatprep.subr.mxu0 0.0
    %4103 = vmatpush1.xpose.msra.mxu0 0.0
    %4104 = vmatprep.subr.mxu0 0.0
    %4105 = vmatpush1.xpose.msra.mxu0 0.0
    %4106 = vmatprep.subr.mxu0 0.0
    %4107 = vmatpush1.xpose.msra.mxu0 0.0
    %4108 = vmatprep.subr.mxu0 0.0
    %4109 = vmatpush1.xpose.msra.mxu0 0.0
    %4110 = vmatprep.subr.mxu0 0.0
    %4111 = vmatpush1.xpose.msra.mxu0 0.0
    %4112 = vmatprep.subr.mxu0 0.0
    %4113 = vmatpush1.xpose.msra.mxu0 0.0
    %4114 = vmatprep.subr.mxu0 0.0
    %4115 = vmatpush1.xpose.msra.mxu0 0.0
    %4116 = vmatprep.subr.mxu0 0.0
    %4117 = vmatpush1.xpose.msra.mxu0 0.0
    %4118 = vmatprep.subr.mxu0 0.0
    %4119 = vmatpush1.xpose.msra.mxu0 0.0
    %4120 = vmatprep.subr.mxu0 0.0
    %4121 = vmatpush1.xpose.msra.mxu0 0.0
    %4122 = vmatprep.subr.mxu0 0.0
    %4123 = vmatpush1.xpose.msra.mxu0 0.0
    %4124 = vmatprep.subr.mxu0 0.0
    %4125 = vmatpush1.xpose.msra.mxu0 0.0
    %4126 = vmatprep.subr.mxu0 0.0
    %4127 = vmatpush1.xpose.msra.mxu0 0.0
    %4128 = vmatprep.subr.mxu0 0.0
    %4129 = vmatpush1.xpose.msra.mxu0 0.0
    %4130 = vmatprep.subr.mxu0 0.0
    %4131 = vmatpush1.xpose.msra.mxu0 0.0
    %4132 = vmatprep.subr.mxu0 0.0
    %4133 = vmatpush1.xpose.msra.mxu0 0.0
    %4134 = vmatprep.subr.mxu0 0.0
    %4135 = vmatpush1.xpose.msra.mxu0 0.0
    %4136 = vmatprep.subr.mxu0 0.0
    %4137 = vmatpush1.xpose.msra.mxu0 0.0
    %4138 = vmatprep.subr.mxu0 0.0
    %4139 = vmatpush1.xpose.msra.mxu0 0.0
    %4140 = vmatprep.subr.mxu0 0.0
    %4141 = vmatpush1.xpose.msra.mxu0 0.0
    %4142 = vmatprep.subr.mxu0 0.0
    %4143 = vmatpush1.xpose.msra.mxu0 0.0
    %4144 = vmatprep.mubr.f32.mxu0 0.0
    %4145 = vmatmul.mubr.f32.gmra.mrb[0].mxu0 %v4076
    %v4146 = vpop.f32.mrb[0].mxu0
    %v4147 = vadd.f32 %v92, %v4146
    %v4148 = vpop.f32.mrb[0].mxu0
    %4149 = vdwg.mxu0
    %v4150 = vsel %vm256, %v4147, -inf
    %4151 = vmax.xlane.f32.xlu0 %v4150
    %v4152 = vpop.xlane.xlu0 %4151
    %v4153 = vsub.f32 %v4147, %v4152
    %v4154 = vmul.f32 %v4153, 1.442695
    %v4155 = vpow.pop %v4154
    %v4156 = vsel %vm256, %v4155, 0.0
    %4157 = vadd.xlane.f32.xlu0 %v4156
    %v4158 = vpop.xlane.xlu0 %4157
    %v4159 = vrcp.pop %v4158
    %v4160 = vmul.f32 %v4158, %v4159
    %v4161 = vsub.f32 2.0, %v4160
    %v4162 = vmul.f32 %v4159, %v4161
    %v4163 = vmul.f32 %v4155, %v4162
    %4164 = vrot.lane.b32.xlu0 %v3892, 56
    %v4165 = vpop.permute.xlu0 %4164
    %v4168 = vsel %vm256, %v4163, 0
    %4170 = vmatprep.subr.mxu0 0.0
    %4171 = vmatpush1.msra.mxu0 %v4165
    %4172 = vmatprep.subr.mxu0 0.0
    %4173 = vmatpush1.msra.mxu0 0.0
    %4174 = vmatprep.subr.mxu0 0.0
    %4175 = vmatpush1.msra.mxu0 0.0
    %4176 = vmatprep.subr.mxu0 0.0
    %4177 = vmatpush1.msra.mxu0 0.0
    %4178 = vmatprep.subr.mxu0 0.0
    %4179 = vmatpush1.msra.mxu0 0.0
    %4180 = vmatprep.subr.mxu0 0.0
    %4181 = vmatpush1.msra.mxu0 0.0
    %4182 = vmatprep.subr.mxu0 0.0
    %4183 = vmatpush1.msra.mxu0 0.0
    %4184 = vmatprep.subr.mxu0 0.0
    %4185 = vmatpush1.msra.mxu0 0.0
    %4186 = vmatprep.subr.mxu0 0.0
    %4187 = vmatpush1.msra.mxu0 0.0
    %4188 = vmatprep.subr.mxu0 0.0
    %4189 = vmatpush1.msra.mxu0 0.0
    %4190 = vmatprep.subr.mxu0 0.0
    %4191 = vmatpush1.msra.mxu0 0.0
    %4192 = vmatprep.subr.mxu0 0.0
    %4193 = vmatpush1.msra.mxu0 0.0
    %4194 = vmatprep.subr.mxu0 0.0
    %4195 = vmatpush1.msra.mxu0 0.0
    %4196 = vmatprep.subr.mxu0 0.0
    %4197 = vmatpush1.msra.mxu0 0.0
    %4198 = vmatprep.subr.mxu0 0.0
    %4199 = vmatpush1.msra.mxu0 0.0
    %4200 = vmatprep.subr.mxu0 0.0
    %4201 = vmatpush1.msra.mxu0 0.0
    %4202 = vmatprep.subr.mxu0 0.0
    %4203 = vmatpush1.msra.mxu0 0.0
    %4204 = vmatprep.subr.mxu0 0.0
    %4205 = vmatpush1.msra.mxu0 0.0
    %4206 = vmatprep.subr.mxu0 0.0
    %4207 = vmatpush1.msra.mxu0 0.0
    %4208 = vmatprep.subr.mxu0 0.0
    %4209 = vmatpush1.msra.mxu0 0.0
    %4210 = vmatprep.subr.mxu0 0.0
    %4211 = vmatpush1.msra.mxu0 0.0
    %4212 = vmatprep.subr.mxu0 0.0
    %4213 = vmatpush1.msra.mxu0 0.0
    %4214 = vmatprep.subr.mxu0 0.0
    %4215 = vmatpush1.msra.mxu0 0.0
    %4216 = vmatprep.subr.mxu0 0.0
    %4217 = vmatpush1.msra.mxu0 0.0
    %4218 = vmatprep.subr.mxu0 0.0
    %4219 = vmatpush1.msra.mxu0 0.0
    %4220 = vmatprep.subr.mxu0 0.0
    %4221 = vmatpush1.msra.mxu0 0.0
    %4222 = vmatprep.subr.mxu0 0.0
    %4223 = vmatpush1.msra.mxu0 0.0
    %4224 = vmatprep.subr.mxu0 0.0
    %4225 = vmatpush1.msra.mxu0 0.0
    %4226 = vmatprep.subr.mxu0 0.0
    %4227 = vmatpush1.msra.mxu0 0.0
    %4228 = vmatprep.subr.mxu0 0.0
    %4229 = vmatpush1.msra.mxu0 0.0
    %4230 = vmatprep.subr.mxu0 0.0
    %4231 = vmatpush1.msra.mxu0 0.0
    %4232 = vmatprep.subr.mxu0 0.0
    %4233 = vmatpush1.msra.mxu0 0.0
    %4234 = vmatprep.mubr.f32.mxu0 0.0
    %4235 = vmatmul.mubr.f32.gmra.mrb[0].mxu0 %v4168
    %v4236 = vpop.f32.mrb[0].mxu0
    %v4237 = vadd.f32 0.0, %v4236
    %v4238 = vpop.f32.mrb[0].mxu0
    %4239 = vdwg.mxu0
    %4240 = vrot.lane.b32.xlu0 %v3892, 112
    %v4241 = vpop.permute.xlu0 %4240
    %4242 = vrot.lane.b32.xlu0 %v3892, 80
    %v4243 = vpop.permute.xlu0 %4242
    %v4244 = vsel %vm256, %v4241, 0
    %v4246 = vsel %vm256, %v4243, 0
    %4248 = vmatprep.subr.mxu0 0.0
    %4249 = vmatpush1.xpose.msra.mxu0 %v4246
    %4250 = vmatprep.subr.mxu0 0.0
    %4251 = vmatpush1.xpose.msra.mxu0 0.0
    %4252 = vmatprep.subr.mxu0 0.0
    %4253 = vmatpush1.xpose.msra.mxu0 0.0
    %4254 = vmatprep.subr.mxu0 0.0
    %4255 = vmatpush1.xpose.msra.mxu0 0.0
    %4256 = vmatprep.subr.mxu0 0.0
    %4257 = vmatpush1.xpose.msra.mxu0 0.0
    %4258 = vmatprep.subr.mxu0 0.0
    %4259 = vmatpush1.xpose.msra.mxu0 0.0
    %4260 = vmatprep.subr.mxu0 0.0
    %4261 = vmatpush1.xpose.msra.mxu0 0.0
    %4262 = vmatprep.subr.mxu0 0.0
    %4263 = vmatpush1.xpose.msra.mxu0 0.0
    %4264 = vmatprep.subr.mxu0 0.0
    %4265 = vmatpush1.xpose.msra.mxu0 0.0
    %4266 = vmatprep.subr.mxu0 0.0
    %4267 = vmatpush1.xpose.msra.mxu0 0.0
    %4268 = vmatprep.subr.mxu0 0.0
    %4269 = vmatpush1.xpose.msra.mxu0 0.0
    %4270 = vmatprep.subr.mxu0 0.0
    %4271 = vmatpush1.xpose.msra.mxu0 0.0
    %4272 = vmatprep.subr.mxu0 0.0
    %4273 = vmatpush1.xpose.msra.mxu0 0.0
    %4274 = vmatprep.subr.mxu0 0.0
    %4275 = vmatpush1.xpose.msra.mxu0 0.0
    %4276 = vmatprep.subr.mxu0 0.0
    %4277 = vmatpush1.xpose.msra.mxu0 0.0
    %4278 = vmatprep.subr.mxu0 0.0
    %4279 = vmatpush1.xpose.msra.mxu0 0.0
    %4280 = vmatprep.subr.mxu0 0.0
    %4281 = vmatpush1.xpose.msra.mxu0 0.0
    %4282 = vmatprep.subr.mxu0 0.0
    %4283 = vmatpush1.xpose.msra.mxu0 0.0
    %4284 = vmatprep.subr.mxu0 0.0
    %4285 = vmatpush1.xpose.msra.mxu0 0.0
    %4286 = vmatprep.subr.mxu0 0.0
    %4287 = vmatpush1.xpose.msra.mxu0 0.0
    %4288 = vmatprep.subr.mxu0 0.0
    %4289 = vmatpush1.xpose.msra.mxu0 0.0
    %4290 = vmatprep.subr.mxu0 0.0
    %4291 = vmatpush1.xpose.msra.mxu0 0.0
    %4292 = vmatprep.subr.mxu0 0.0
    %4293 = vmatpush1.xpose.msra.mxu0 0.0
    %4294 = vmatprep.subr.mxu0 0.0
    %4295 = vmatpush1.xpose.msra.mxu0 0.0
    %4296 = vmatprep.subr.mxu0 0.0
    %4297 = vmatpush1.xpose.msra.mxu0 0.0
    %4298 = vmatprep.subr.mxu0 0.0
    %4299 = vmatpush1.xpose.msra.mxu0 0.0
    %4300 = vmatprep.subr.mxu0 0.0
    %4301 = vmatpush1.xpose.msra.mxu0 0.0
    %4302 = vmatprep.subr.mxu0 0.0
    %4303 = vmatpush1.xpose.msra.mxu0 0.0
    %4304 = vmatprep.subr.mxu0 0.0
    %4305 = vmatpush1.xpose.msra.mxu0 0.0
    %4306 = vmatprep.subr.mxu0 0.0
    %4307 = vmatpush1.xpose.msra.mxu0 0.0
    %4308 = vmatprep.subr.mxu0 0.0
    %4309 = vmatpush1.xpose.msra.mxu0 0.0
    %4310 = vmatprep.subr.mxu0 0.0
    %4311 = vmatpush1.xpose.msra.mxu0 0.0
    %4312 = vmatprep.mubr.f32.mxu0 0.0
    %4313 = vmatmul.mubr.f32.gmra.mrb[0].mxu0 %v4244
    %v4314 = vpop.f32.mrb[0].mxu0
    %v4315 = vadd.f32 %v92, %v4314
    %v4316 = vpop.f32.mrb[0].mxu0
    %4317 = vdwg.mxu0
    %v4318 = vsel %vm256, %v4315, -inf
    %4319 = vmax.xlane.f32.xlu0 %v4318
    %v4320 = vpop.xlane.xlu0 %4319
    %v4321 = vsub.f32 %v4315, %v4320
    %v4322 = vmul.f32 %v4321, 1.442695
    %v4323 = vpow.pop %v4322
    %v4324 = vsel %vm256, %v4323, 0.0
    %4325 = vadd.xlane.f32.xlu0 %v4324
    %v4326 = vpop.xlane.xlu0 %4325
    %v4327 = vrcp.pop %v4326
    %v4328 = vmul.f32 %v4326, %v4327
    %v4329 = vsub.f32 2.0, %v4328
    %v4330 = vmul.f32 %v4327, %v4329
    %v4331 = vmul.f32 %v4323, %v4330
    %4332 = vrot.lane.b32.xlu0 %v3892, 48
    %v4333 = vpop.permute.xlu0 %4332
    %v4336 = vsel %vm256, %v4331, 0
    %4338 = vmatprep.subr.mxu0 0.0
    %4339 = vmatpush1.msra.mxu0 %v4333
    %4340 = vmatprep.subr.mxu0 0.0
    %4341 = vmatpush1.msra.mxu0 0.0
    %4342 = vmatprep.subr.mxu0 0.0
    %4343 = vmatpush1.msra.mxu0 0.0
    %4344 = vmatprep.subr.mxu0 0.0
    %4345 = vmatpush1.msra.mxu0 0.0
    %4346 = vmatprep.subr.mxu0 0.0
    %4347 = vmatpush1.msra.mxu0 0.0
    %4348 = vmatprep.subr.mxu0 0.0
    %4349 = vmatpush1.msra.mxu0 0.0
    %4350 = vmatprep.subr.mxu0 0.0
    %4351 = vmatpush1.msra.mxu0 0.0
    %4352 = vmatprep.subr.mxu0 0.0
    %4353 = vmatpush1.msra.mxu0 0.0
    %4354 = vmatprep.subr.mxu0 0.0
    %4355 = vmatpush1.msra.mxu0 0.0
    %4356 = vmatprep.subr.mxu0 0.0
    %4357 = vmatpush1.msra.mxu0 0.0
    %4358 = vmatprep.subr.mxu0 0.0
    %4359 = vmatpush1.msra.mxu0 0.0
    %4360 = vmatprep.subr.mxu0 0.0
    %4361 = vmatpush1.msra.mxu0 0.0
    %4362 = vmatprep.subr.mxu0 0.0
    %4363 = vmatpush1.msra.mxu0 0.0
    %4364 = vmatprep.subr.mxu0 0.0
    %4365 = vmatpush1.msra.mxu0 0.0
    %4366 = vmatprep.subr.mxu0 0.0
    %4367 = vmatpush1.msra.mxu0 0.0
    %4368 = vmatprep.subr.mxu0 0.0
    %4369 = vmatpush1.msra.mxu0 0.0
    %4370 = vmatprep.subr.mxu0 0.0
    %4371 = vmatpush1.msra.mxu0 0.0
    %4372 = vmatprep.subr.mxu0 0.0
    %4373 = vmatpush1.msra.mxu0 0.0
    %4374 = vmatprep.subr.mxu0 0.0
    %4375 = vmatpush1.msra.mxu0 0.0
    %4376 = vmatprep.subr.mxu0 0.0
    %4377 = vmatpush1.msra.mxu0 0.0
    %4378 = vmatprep.subr.mxu0 0.0
    %4379 = vmatpush1.msra.mxu0 0.0
    %4380 = vmatprep.subr.mxu0 0.0
    %4381 = vmatpush1.msra.mxu0 0.0
    %4382 = vmatprep.subr.mxu0 0.0
    %4383 = vmatpush1.msra.mxu0 0.0
    %4384 = vmatprep.subr.mxu0 0.0
    %4385 = vmatpush1.msra.mxu0 0.0
    %4386 = vmatprep.subr.mxu0 0.0
    %4387 = vmatpush1.msra.mxu0 0.0
    %4388 = vmatprep.subr.mxu0 0.0
    %4389 = vmatpush1.msra.mxu0 0.0
    %4390 = vmatprep.subr.mxu0 0.0
    %4391 = vmatpush1.msra.mxu0 0.0
    %4392 = vmatprep.subr.mxu0 0.0
    %4393 = vmatpush1.msra.mxu0 0.0
    %4394 = vmatprep.subr.mxu0 0.0
    %4395 = vmatpush1.msra.mxu0 0.0
    %4396 = vmatprep.subr.mxu0 0.0
    %4397 = vmatpush1.msra.mxu0 0.0
    %4398 = vmatprep.subr.mxu0 0.0
    %4399 = vmatpush1.msra.mxu0 0.0
    %4400 = vmatprep.subr.mxu0 0.0
    %4401 = vmatpush1.msra.mxu0 0.0
    %4402 = vmatprep.mubr.f32.mxu0 0.0
    %4403 = vmatmul.mubr.f32.gmra.mrb[0].mxu0 %v4336
    %v4404 = vpop.f32.mrb[0].mxu0
    %v4405 = vadd.f32 0.0, %v4404
    %v4406 = vpop.f32.mrb[0].mxu0
    %4407 = vdwg.mxu0
    %4408 = vrot.lane.b32.xlu0 %v3892, 104
    %v4409 = vpop.permute.xlu0 %4408
    %4410 = vrot.lane.b32.xlu0 %v3892, 72
    %v4411 = vpop.permute.xlu0 %4410
    %v4412 = vsel %vm256, %v4409, 0
    %v4414 = vsel %vm256, %v4411, 0
    %4416 = vmatprep.subr.mxu0 0.0
    %4417 = vmatpush1.xpose.msra.mxu0 %v4414
    %4418 = vmatprep.subr.mxu0 0.0
    %4419 = vmatpush1.xpose.msra.mxu0 0.0
    %4420 = vmatprep.subr.mxu0 0.0
    %4421 = vmatpush1.xpose.msra.mxu0 0.0
    %4422 = vmatprep.subr.mxu0 0.0
    %4423 = vmatpush1.xpose.msra.mxu0 0.0
    %4424 = vmatprep.subr.mxu0 0.0
    %4425 = vmatpush1.xpose.msra.mxu0 0.0
    %4426 = vmatprep.subr.mxu0 0.0
    %4427 = vmatpush1.xpose.msra.mxu0 0.0
    %4428 = vmatprep.subr.mxu0 0.0
    %4429 = vmatpush1.xpose.msra.mxu0 0.0
    %4430 = vmatprep.subr.mxu0 0.0
    %4431 = vmatpush1.xpose.msra.mxu0 0.0
    %4432 = vmatprep.subr.mxu0 0.0
    %4433 = vmatpush1.xpose.msra.mxu0 0.0
    %4434 = vmatprep.subr.mxu0 0.0
    %4435 = vmatpush1.xpose.msra.mxu0 0.0
    %4436 = vmatprep.subr.mxu0 0.0
    %4437 = vmatpush1.xpose.msra.mxu0 0.0
    %4438 = vmatprep.subr.mxu0 0.0
    %4439 = vmatpush1.xpose.msra.mxu0 0.0
    %4440 = vmatprep.subr.mxu0 0.0
    %4441 = vmatpush1.xpose.msra.mxu0 0.0
    %4442 = vmatprep.subr.mxu0 0.0
    %4443 = vmatpush1.xpose.msra.mxu0 0.0
    %4444 = vmatprep.subr.mxu0 0.0
    %4445 = vmatpush1.xpose.msra.mxu0 0.0
    %4446 = vmatprep.subr.mxu0 0.0
    %4447 = vmatpush1.xpose.msra.mxu0 0.0
    %4448 = vmatprep.subr.mxu0 0.0
    %4449 = vmatpush1.xpose.msra.mxu0 0.0
    %4450 = vmatprep.subr.mxu0 0.0
    %4451 = vmatpush1.xpose.msra.mxu0 0.0
    %4452 = vmatprep.subr.mxu0 0.0
    %4453 = vmatpush1.xpose.msra.mxu0 0.0
    %4454 = vmatprep.subr.mxu0 0.0
    %4455 = vmatpush1.xpose.msra.mxu0 0.0
    %4456 = vmatprep.subr.mxu0 0.0
    %4457 = vmatpush1.xpose.msra.mxu0 0.0
    %4458 = vmatprep.subr.mxu0 0.0
    %4459 = vmatpush1.xpose.msra.mxu0 0.0
    %4460 = vmatprep.subr.mxu0 0.0
    %4461 = vmatpush1.xpose.msra.mxu0 0.0
    %4462 = vmatprep.subr.mxu0 0.0
    %4463 = vmatpush1.xpose.msra.mxu0 0.0
    %4464 = vmatprep.subr.mxu0 0.0
    %4465 = vmatpush1.xpose.msra.mxu0 0.0
    %4466 = vmatprep.subr.mxu0 0.0
    %4467 = vmatpush1.xpose.msra.mxu0 0.0
    %4468 = vmatprep.subr.mxu0 0.0
    %4469 = vmatpush1.xpose.msra.mxu0 0.0
    %4470 = vmatprep.subr.mxu0 0.0
    %4471 = vmatpush1.xpose.msra.mxu0 0.0
    %4472 = vmatprep.subr.mxu0 0.0
    %4473 = vmatpush1.xpose.msra.mxu0 0.0
    %4474 = vmatprep.subr.mxu0 0.0
    %4475 = vmatpush1.xpose.msra.mxu0 0.0
    %4476 = vmatprep.subr.mxu0 0.0
    %4477 = vmatpush1.xpose.msra.mxu0 0.0
    %4478 = vmatprep.subr.mxu0 0.0
    %4479 = vmatpush1.xpose.msra.mxu0 0.0
    %4480 = vmatprep.mubr.f32.mxu0 0.0
    %4481 = vmatmul.mubr.f32.gmra.mrb[0].mxu0 %v4412
    %v4482 = vpop.f32.mrb[0].mxu0
    %v4483 = vadd.f32 %v92, %v4482
    %v4484 = vpop.f32.mrb[0].mxu0
    %4485 = vdwg.mxu0
    %v4486 = vsel %vm256, %v4483, -inf
    %4487 = vmax.xlane.f32.xlu0 %v4486
    %v4488 = vpop.xlane.xlu0 %4487
    %v4489 = vsub.f32 %v4483, %v4488
    %v4490 = vmul.f32 %v4489, 1.442695
    %v4491 = vpow.pop %v4490
    %v4492 = vsel %vm256, %v4491, 0.0
    %4493 = vadd.xlane.f32.xlu0 %v4492
    %v4494 = vpop.xlane.xlu0 %4493
    %v4495 = vrcp.pop %v4494
    %v4496 = vmul.f32 %v4494, %v4495
    %v4497 = vsub.f32 2.0, %v4496
    %v4498 = vmul.f32 %v4495, %v4497
    %v4499 = vmul.f32 %v4491, %v4498
    %4500 = vrot.lane.b32.xlu0 %v3892, 40
    %v4501 = vpop.permute.xlu0 %4500
    %v4504 = vsel %vm256, %v4499, 0
    %4506 = vmatprep.subr.mxu0 0.0
    %4507 = vmatpush1.msra.mxu0 %v4501
    %4508 = vmatprep.subr.mxu0 0.0
    %4509 = vmatpush1.msra.mxu0 0.0
    %4510 = vmatprep.subr.mxu0 0.0
    %4511 = vmatpush1.msra.mxu0 0.0
    %4512 = vmatprep.subr.mxu0 0.0
    %4513 = vmatpush1.msra.mxu0 0.0
    %4514 = vmatprep.subr.mxu0 0.0
    %4515 = vmatpush1.msra.mxu0 0.0
    %4516 = vmatprep.subr.mxu0 0.0
    %4517 = vmatpush1.msra.mxu0 0.0
    %4518 = vmatprep.subr.mxu0 0.0
    %4519 = vmatpush1.msra.mxu0 0.0
    %4520 = vmatprep.subr.mxu0 0.0
    %4521 = vmatpush1.msra.mxu0 0.0
    %4522 = vmatprep.subr.mxu0 0.0
    %4523 = vmatpush1.msra.mxu0 0.0
    %4524 = vmatprep.subr.mxu0 0.0
    %4525 = vmatpush1.msra.mxu0 0.0
    %4526 = vmatprep.subr.mxu0 0.0
    %4527 = vmatpush1.msra.mxu0 0.0
    %4528 = vmatprep.subr.mxu0 0.0
    %4529 = vmatpush1.msra.mxu0 0.0
    %4530 = vmatprep.subr.mxu0 0.0
    %4531 = vmatpush1.msra.mxu0 0.0
    %4532 = vmatprep.subr.mxu0 0.0
    %4533 = vmatpush1.msra.mxu0 0.0
    %4534 = vmatprep.subr.mxu0 0.0
    %4535 = vmatpush1.msra.mxu0 0.0
    %4536 = vmatprep.subr.mxu0 0.0
    %4537 = vmatpush1.msra.mxu0 0.0
    %4538 = vmatprep.subr.mxu0 0.0
    %4539 = vmatpush1.msra.mxu0 0.0
    %4540 = vmatprep.subr.mxu0 0.0
    %4541 = vmatpush1.msra.mxu0 0.0
    %4542 = vmatprep.subr.mxu0 0.0
    %4543 = vmatpush1.msra.mxu0 0.0
    %4544 = vmatprep.subr.mxu0 0.0
    %4545 = vmatpush1.msra.mxu0 0.0
    %4546 = vmatprep.subr.mxu0 0.0
    %4547 = vmatpush1.msra.mxu0 0.0
    %4548 = vmatprep.subr.mxu0 0.0
    %4549 = vmatpush1.msra.mxu0 0.0
    %4550 = vmatprep.subr.mxu0 0.0
    %4551 = vmatpush1.msra.mxu0 0.0
    %4552 = vmatprep.subr.mxu0 0.0
    %4553 = vmatpush1.msra.mxu0 0.0
    %4554 = vmatprep.subr.mxu0 0.0
    %4555 = vmatpush1.msra.mxu0 0.0
    %4556 = vmatprep.subr.mxu0 0.0
    %4557 = vmatpush1.msra.mxu0 0.0
    %4558 = vmatprep.subr.mxu0 0.0
    %4559 = vmatpush1.msra.mxu0 0.0
    %4560 = vmatprep.subr.mxu0 0.0
    %4561 = vmatpush1.msra.mxu0 0.0
    %4562 = vmatprep.subr.mxu0 0.0
    %4563 = vmatpush1.msra.mxu0 0.0
    %4564 = vmatprep.subr.mxu0 0.0
    %4565 = vmatpush1.msra.mxu0 0.0
    %4566 = vmatprep.subr.mxu0 0.0
    %4567 = vmatpush1.msra.mxu0 0.0
    %4568 = vmatprep.subr.mxu0 0.0
    %4569 = vmatpush1.msra.mxu0 0.0
    %4570 = vmatprep.mubr.f32.mxu0 0.0
    %4571 = vmatmul.mubr.f32.gmra.mrb[0].mxu0 %v4504
    %v4572 = vpop.f32.mrb[0].mxu0
    %v4573 = vadd.f32 0.0, %v4572
    %v4574 = vpop.f32.mrb[0].mxu0
    %4575 = vdwg.mxu0
    %4577 = vrot.lane.b32.xlu0 %v4237, 8
    %v4578 = vpop.permute.xlu0 %4577
    %4581 = vrot.lane.b32.xlu0 %v4405, 16
    %v4582 = vpop.permute.xlu0 %4581
    %4585 = vrot.lane.b32.xlu0 %v4573, 24
    %v4586 = vpop.permute.xlu0 %4585
    %v4588 = vsel %vm256, %v4069, %v4578
    %v4589 = vsel %vm938, %v4588, %v4582
    %v4590 = vsel %vm940, %v4589, %v4586
    %4592 = vrot.lane.b32.xlu0 %v3897, 96
    %v4593 = vpop.permute.xlu0 %4592
    %v4594 = vsel %vm256, %v3897, 0
    %v4596 = vsel %vm256, %v4593, 0
    %4598 = vmatprep.subr.mxu0 0.0
    %4599 = vmatpush1.xpose.msra.mxu0 %v4596
    %4600 = vmatprep.subr.mxu0 0.0
    %4601 = vmatpush1.xpose.msra.mxu0 0.0
    %4602 = vmatprep.subr.mxu0 0.0
    %4603 = vmatpush1.xpose.msra.mxu0 0.0
    %4604 = vmatprep.subr.mxu0 0.0
    %4605 = vmatpush1.xpose.msra.mxu0 0.0
    %4606 = vmatprep.subr.mxu0 0.0
    %4607 = vmatpush1.xpose.msra.mxu0 0.0
    %4608 = vmatprep.subr.mxu0 0.0
    %4609 = vmatpush1.xpose.msra.mxu0 0.0
    %4610 = vmatprep.subr.mxu0 0.0
    %4611 = vmatpush1.xpose.msra.mxu0 0.0
    %4612 = vmatprep.subr.mxu0 0.0
    %4613 = vmatpush1.xpose.msra.mxu0 0.0
    %4614 = vmatprep.subr.mxu0 0.0
    %4615 = vmatpush1.xpose.msra.mxu0 0.0
    %4616 = vmatprep.subr.mxu0 0.0
    %4617 = vmatpush1.xpose.msra.mxu0 0.0
    %4618 = vmatprep.subr.mxu0 0.0
    %4619 = vmatpush1.xpose.msra.mxu0 0.0
    %4620 = vmatprep.subr.mxu0 0.0
    %4621 = vmatpush1.xpose.msra.mxu0 0.0
    %4622 = vmatprep.subr.mxu0 0.0
    %4623 = vmatpush1.xpose.msra.mxu0 0.0
    %4624 = vmatprep.subr.mxu0 0.0
    %4625 = vmatpush1.xpose.msra.mxu0 0.0
    %4626 = vmatprep.subr.mxu0 0.0
    %4627 = vmatpush1.xpose.msra.mxu0 0.0
    %4628 = vmatprep.subr.mxu0 0.0
    %4629 = vmatpush1.xpose.msra.mxu0 0.0
    %4630 = vmatprep.subr.mxu0 0.0
    %4631 = vmatpush1.xpose.msra.mxu0 0.0
    %4632 = vmatprep.subr.mxu0 0.0
    %4633 = vmatpush1.xpose.msra.mxu0 0.0
    %4634 = vmatprep.subr.mxu0 0.0
    %4635 = vmatpush1.xpose.msra.mxu0 0.0
    %4636 = vmatprep.subr.mxu0 0.0
    %4637 = vmatpush1.xpose.msra.mxu0 0.0
    %4638 = vmatprep.subr.mxu0 0.0
    %4639 = vmatpush1.xpose.msra.mxu0 0.0
    %4640 = vmatprep.subr.mxu0 0.0
    %4641 = vmatpush1.xpose.msra.mxu0 0.0
    %4642 = vmatprep.subr.mxu0 0.0
    %4643 = vmatpush1.xpose.msra.mxu0 0.0
    %4644 = vmatprep.subr.mxu0 0.0
    %4645 = vmatpush1.xpose.msra.mxu0 0.0
    %4646 = vmatprep.subr.mxu0 0.0
    %4647 = vmatpush1.xpose.msra.mxu0 0.0
    %4648 = vmatprep.subr.mxu0 0.0
    %4649 = vmatpush1.xpose.msra.mxu0 0.0
    %4650 = vmatprep.subr.mxu0 0.0
    %4651 = vmatpush1.xpose.msra.mxu0 0.0
    %4652 = vmatprep.subr.mxu0 0.0
    %4653 = vmatpush1.xpose.msra.mxu0 0.0
    %4654 = vmatprep.subr.mxu0 0.0
    %4655 = vmatpush1.xpose.msra.mxu0 0.0
    %4656 = vmatprep.subr.mxu0 0.0
    %4657 = vmatpush1.xpose.msra.mxu0 0.0
    %4658 = vmatprep.subr.mxu0 0.0
    %4659 = vmatpush1.xpose.msra.mxu0 0.0
    %4660 = vmatprep.subr.mxu0 0.0
    %4661 = vmatpush1.xpose.msra.mxu0 0.0
    %4662 = vmatprep.mubr.f32.mxu0 0.0
    %4663 = vmatmul.mubr.f32.gmra.mrb[0].mxu0 %v4594
    %v4664 = vpop.f32.mrb[0].mxu0
    %v4665 = vadd.f32 %v92, %v4664
    %v4666 = vpop.f32.mrb[0].mxu0
    %4667 = vdwg.mxu0
    %v4668 = vsel %vm256, %v4665, -inf
    %4669 = vmax.xlane.f32.xlu0 %v4668
    %v4670 = vpop.xlane.xlu0 %4669
    %v4671 = vsub.f32 %v4665, %v4670
    %v4672 = vmul.f32 %v4671, 1.442695
    %v4673 = vpow.pop %v4672
    %v4674 = vsel %vm256, %v4673, 0.0
    %4675 = vadd.xlane.f32.xlu0 %v4674
    %v4676 = vpop.xlane.xlu0 %4675
    %v4677 = vrcp.pop %v4676
    %v4678 = vmul.f32 %v4676, %v4677
    %v4679 = vsub.f32 2.0, %v4678
    %v4680 = vmul.f32 %v4677, %v4679
    %v4681 = vmul.f32 %v4673, %v4680
    %4682 = vrot.lane.b32.xlu0 %v3897, 64
    %v4683 = vpop.permute.xlu0 %4682
    %v4686 = vsel %vm256, %v4681, 0
    %4688 = vmatprep.subr.mxu0 0.0
    %4689 = vmatpush1.msra.mxu0 %v4683
    %4690 = vmatprep.subr.mxu0 0.0
    %4691 = vmatpush1.msra.mxu0 0.0
    %4692 = vmatprep.subr.mxu0 0.0
    %4693 = vmatpush1.msra.mxu0 0.0
    %4694 = vmatprep.subr.mxu0 0.0
    %4695 = vmatpush1.msra.mxu0 0.0
    %4696 = vmatprep.subr.mxu0 0.0
    %4697 = vmatpush1.msra.mxu0 0.0
    %4698 = vmatprep.subr.mxu0 0.0
    %4699 = vmatpush1.msra.mxu0 0.0
    %4700 = vmatprep.subr.mxu0 0.0
    %4701 = vmatpush1.msra.mxu0 0.0
    %4702 = vmatprep.subr.mxu0 0.0
    %4703 = vmatpush1.msra.mxu0 0.0
    %4704 = vmatprep.subr.mxu0 0.0
    %4705 = vmatpush1.msra.mxu0 0.0
    %4706 = vmatprep.subr.mxu0 0.0
    %4707 = vmatpush1.msra.mxu0 0.0
    %4708 = vmatprep.subr.mxu0 0.0
    %4709 = vmatpush1.msra.mxu0 0.0
    %4710 = vmatprep.subr.mxu0 0.0
    %4711 = vmatpush1.msra.mxu0 0.0
    %4712 = vmatprep.subr.mxu0 0.0
    %4713 = vmatpush1.msra.mxu0 0.0
    %4714 = vmatprep.subr.mxu0 0.0
    %4715 = vmatpush1.msra.mxu0 0.0
    %4716 = vmatprep.subr.mxu0 0.0
    %4717 = vmatpush1.msra.mxu0 0.0
    %4718 = vmatprep.subr.mxu0 0.0
    %4719 = vmatpush1.msra.mxu0 0.0
    %4720 = vmatprep.subr.mxu0 0.0
    %4721 = vmatpush1.msra.mxu0 0.0
    %4722 = vmatprep.subr.mxu0 0.0
    %4723 = vmatpush1.msra.mxu0 0.0
    %4724 = vmatprep.subr.mxu0 0.0
    %4725 = vmatpush1.msra.mxu0 0.0
    %4726 = vmatprep.subr.mxu0 0.0
    %4727 = vmatpush1.msra.mxu0 0.0
    %4728 = vmatprep.subr.mxu0 0.0
    %4729 = vmatpush1.msra.mxu0 0.0
    %4730 = vmatprep.subr.mxu0 0.0
    %4731 = vmatpush1.msra.mxu0 0.0
    %4732 = vmatprep.subr.mxu0 0.0
    %4733 = vmatpush1.msra.mxu0 0.0
    %4734 = vmatprep.subr.mxu0 0.0
    %4735 = vmatpush1.msra.mxu0 0.0
    %4736 = vmatprep.subr.mxu0 0.0
    %4737 = vmatpush1.msra.mxu0 0.0
    %4738 = vmatprep.subr.mxu0 0.0
    %4739 = vmatpush1.msra.mxu0 0.0
    %4740 = vmatprep.subr.mxu0 0.0
    %4741 = vmatpush1.msra.mxu0 0.0
    %4742 = vmatprep.subr.mxu0 0.0
    %4743 = vmatpush1.msra.mxu0 0.0
    %4744 = vmatprep.subr.mxu0 0.0
    %4745 = vmatpush1.msra.mxu0 0.0
    %4746 = vmatprep.subr.mxu0 0.0
    %4747 = vmatpush1.msra.mxu0 0.0
    %4748 = vmatprep.subr.mxu0 0.0
    %4749 = vmatpush1.msra.mxu0 0.0
    %4750 = vmatprep.subr.mxu0 0.0
    %4751 = vmatpush1.msra.mxu0 0.0
    %4752 = vmatprep.mubr.f32.mxu0 0.0
    %4753 = vmatmul.mubr.f32.gmra.mrb[0].mxu0 %v4686
    %v4754 = vpop.f32.mrb[0].mxu0
    %v4755 = vadd.f32 0.0, %v4754
    %v4756 = vpop.f32.mrb[0].mxu0
    %4757 = vdwg.mxu0
    %4758 = vrot.lane.b32.xlu0 %v3897, 120
    %v4759 = vpop.permute.xlu0 %4758
    %4760 = vrot.lane.b32.xlu0 %v3897, 88
    %v4761 = vpop.permute.xlu0 %4760
    %v4762 = vsel %vm256, %v4759, 0
    %v4764 = vsel %vm256, %v4761, 0
    %4766 = vmatprep.subr.mxu0 0.0
    %4767 = vmatpush1.xpose.msra.mxu0 %v4764
    %4768 = vmatprep.subr.mxu0 0.0
    %4769 = vmatpush1.xpose.msra.mxu0 0.0
    %4770 = vmatprep.subr.mxu0 0.0
    %4771 = vmatpush1.xpose.msra.mxu0 0.0
    %4772 = vmatprep.subr.mxu0 0.0
    %4773 = vmatpush1.xpose.msra.mxu0 0.0
    %4774 = vmatprep.subr.mxu0 0.0
    %4775 = vmatpush1.xpose.msra.mxu0 0.0
    %4776 = vmatprep.subr.mxu0 0.0
    %4777 = vmatpush1.xpose.msra.mxu0 0.0
    %4778 = vmatprep.subr.mxu0 0.0
    %4779 = vmatpush1.xpose.msra.mxu0 0.0
    %4780 = vmatprep.subr.mxu0 0.0
    %4781 = vmatpush1.xpose.msra.mxu0 0.0
    %4782 = vmatprep.subr.mxu0 0.0
    %4783 = vmatpush1.xpose.msra.mxu0 0.0
    %4784 = vmatprep.subr.mxu0 0.0
    %4785 = vmatpush1.xpose.msra.mxu0 0.0
    %4786 = vmatprep.subr.mxu0 0.0
    %4787 = vmatpush1.xpose.msra.mxu0 0.0
    %4788 = vmatprep.subr.mxu0 0.0
    %4789 = vmatpush1.xpose.msra.mxu0 0.0
    %4790 = vmatprep.subr.mxu0 0.0
    %4791 = vmatpush1.xpose.msra.mxu0 0.0
    %4792 = vmatprep.subr.mxu0 0.0
    %4793 = vmatpush1.xpose.msra.mxu0 0.0
    %4794 = vmatprep.subr.mxu0 0.0
    %4795 = vmatpush1.xpose.msra.mxu0 0.0
    %4796 = vmatprep.subr.mxu0 0.0
    %4797 = vmatpush1.xpose.msra.mxu0 0.0
    %4798 = vmatprep.subr.mxu0 0.0
    %4799 = vmatpush1.xpose.msra.mxu0 0.0
    %4800 = vmatprep.subr.mxu0 0.0
    %4801 = vmatpush1.xpose.msra.mxu0 0.0
    %4802 = vmatprep.subr.mxu0 0.0
    %4803 = vmatpush1.xpose.msra.mxu0 0.0
    %4804 = vmatprep.subr.mxu0 0.0
    %4805 = vmatpush1.xpose.msra.mxu0 0.0
    %4806 = vmatprep.subr.mxu0 0.0
    %4807 = vmatpush1.xpose.msra.mxu0 0.0
    %4808 = vmatprep.subr.mxu0 0.0
    %4809 = vmatpush1.xpose.msra.mxu0 0.0
    %4810 = vmatprep.subr.mxu0 0.0
    %4811 = vmatpush1.xpose.msra.mxu0 0.0
    %4812 = vmatprep.subr.mxu0 0.0
    %4813 = vmatpush1.xpose.msra.mxu0 0.0
    %4814 = vmatprep.subr.mxu0 0.0
    %4815 = vmatpush1.xpose.msra.mxu0 0.0
    %4816 = vmatprep.subr.mxu0 0.0
    %4817 = vmatpush1.xpose.msra.mxu0 0.0
    %4818 = vmatprep.subr.mxu0 0.0
    %4819 = vmatpush1.xpose.msra.mxu0 0.0
    %4820 = vmatprep.subr.mxu0 0.0
    %4821 = vmatpush1.xpose.msra.mxu0 0.0
    %4822 = vmatprep.subr.mxu0 0.0
    %4823 = vmatpush1.xpose.msra.mxu0 0.0
    %4824 = vmatprep.subr.mxu0 0.0
    %4825 = vmatpush1.xpose.msra.mxu0 0.0
    %4826 = vmatprep.subr.mxu0 0.0
    %4827 = vmatpush1.xpose.msra.mxu0 0.0
    %4828 = vmatprep.subr.mxu0 0.0
    %4829 = vmatpush1.xpose.msra.mxu0 0.0
    %4830 = vmatprep.mubr.f32.mxu0 0.0
    %4831 = vmatmul.mubr.f32.gmra.mrb[0].mxu0 %v4762
    %v4832 = vpop.f32.mrb[0].mxu0
    %v4833 = vadd.f32 %v92, %v4832
    %v4834 = vpop.f32.mrb[0].mxu0
    %4835 = vdwg.mxu0
    %v4836 = vsel %vm256, %v4833, -inf
    %4837 = vmax.xlane.f32.xlu0 %v4836
    %v4838 = vpop.xlane.xlu0 %4837
    %v4839 = vsub.f32 %v4833, %v4838
    %v4840 = vmul.f32 %v4839, 1.442695
    %v4841 = vpow.pop %v4840
    %v4842 = vsel %vm256, %v4841, 0.0
    %4843 = vadd.xlane.f32.xlu0 %v4842
    %v4844 = vpop.xlane.xlu0 %4843
    %v4845 = vrcp.pop %v4844
    %v4846 = vmul.f32 %v4844, %v4845
    %v4847 = vsub.f32 2.0, %v4846
    %v4848 = vmul.f32 %v4845, %v4847
    %v4849 = vmul.f32 %v4841, %v4848
    %4850 = vrot.lane.b32.xlu0 %v3897, 56
    %v4851 = vpop.permute.xlu0 %4850
    %v4854 = vsel %vm256, %v4849, 0
    %4856 = vmatprep.subr.mxu0 0.0
    %4857 = vmatpush1.msra.mxu0 %v4851
    %4858 = vmatprep.subr.mxu0 0.0
    %4859 = vmatpush1.msra.mxu0 0.0
    %4860 = vmatprep.subr.mxu0 0.0
    %4861 = vmatpush1.msra.mxu0 0.0
    %4862 = vmatprep.subr.mxu0 0.0
    %4863 = vmatpush1.msra.mxu0 0.0
    %4864 = vmatprep.subr.mxu0 0.0
    %4865 = vmatpush1.msra.mxu0 0.0
    %4866 = vmatprep.subr.mxu0 0.0
    %4867 = vmatpush1.msra.mxu0 0.0
    %4868 = vmatprep.subr.mxu0 0.0
    %4869 = vmatpush1.msra.mxu0 0.0
    %4870 = vmatprep.subr.mxu0 0.0
    %4871 = vmatpush1.msra.mxu0 0.0
    %4872 = vmatprep.subr.mxu0 0.0
    %4873 = vmatpush1.msra.mxu0 0.0
    %4874 = vmatprep.subr.mxu0 0.0
    %4875 = vmatpush1.msra.mxu0 0.0
    %4876 = vmatprep.subr.mxu0 0.0
    %4877 = vmatpush1.msra.mxu0 0.0
    %4878 = vmatprep.subr.mxu0 0.0
    %4879 = vmatpush1.msra.mxu0 0.0
    %4880 = vmatprep.subr.mxu0 0.0
    %4881 = vmatpush1.msra.mxu0 0.0
    %4882 = vmatprep.subr.mxu0 0.0
    %4883 = vmatpush1.msra.mxu0 0.0
    %4884 = vmatprep.subr.mxu0 0.0
    %4885 = vmatpush1.msra.mxu0 0.0
    %4886 = vmatprep.subr.mxu0 0.0
    %4887 = vmatpush1.msra.mxu0 0.0
    %4888 = vmatprep.subr.mxu0 0.0
    %4889 = vmatpush1.msra.mxu0 0.0
    %4890 = vmatprep.subr.mxu0 0.0
    %4891 = vmatpush1.msra.mxu0 0.0
    %4892 = vmatprep.subr.mxu0 0.0
    %4893 = vmatpush1.msra.mxu0 0.0
    %4894 = vmatprep.subr.mxu0 0.0
    %4895 = vmatpush1.msra.mxu0 0.0
    %4896 = vmatprep.subr.mxu0 0.0
    %4897 = vmatpush1.msra.mxu0 0.0
    %4898 = vmatprep.subr.mxu0 0.0
    %4899 = vmatpush1.msra.mxu0 0.0
    %4900 = vmatprep.subr.mxu0 0.0
    %4901 = vmatpush1.msra.mxu0 0.0
    %4902 = vmatprep.subr.mxu0 0.0
    %4903 = vmatpush1.msra.mxu0 0.0
    %4904 = vmatprep.subr.mxu0 0.0
    %4905 = vmatpush1.msra.mxu0 0.0
    %4906 = vmatprep.subr.mxu0 0.0
    %4907 = vmatpush1.msra.mxu0 0.0
    %4908 = vmatprep.subr.mxu0 0.0
    %4909 = vmatpush1.msra.mxu0 0.0
    %4910 = vmatprep.subr.mxu0 0.0
    %4911 = vmatpush1.msra.mxu0 0.0
    %4912 = vmatprep.subr.mxu0 0.0
    %4913 = vmatpush1.msra.mxu0 0.0
    %4914 = vmatprep.subr.mxu0 0.0
    %4915 = vmatpush1.msra.mxu0 0.0
    %4916 = vmatprep.subr.mxu0 0.0
    %4917 = vmatpush1.msra.mxu0 0.0
    %4918 = vmatprep.subr.mxu0 0.0
    %4919 = vmatpush1.msra.mxu0 0.0
    %4920 = vmatprep.mubr.f32.mxu0 0.0
    %4921 = vmatmul.mubr.f32.gmra.mrb[0].mxu0 %v4854
    %v4922 = vpop.f32.mrb[0].mxu0
    %v4923 = vadd.f32 0.0, %v4922
    %v4924 = vpop.f32.mrb[0].mxu0
    %4925 = vdwg.mxu0
    %4926 = vrot.lane.b32.xlu0 %v3897, 112
    %v4927 = vpop.permute.xlu0 %4926
    %4928 = vrot.lane.b32.xlu0 %v3897, 80
    %v4929 = vpop.permute.xlu0 %4928
    %v4930 = vsel %vm256, %v4927, 0
    %v4932 = vsel %vm256, %v4929, 0
    %4934 = vmatprep.subr.mxu0 0.0
    %4935 = vmatpush1.xpose.msra.mxu0 %v4932
    %4936 = vmatprep.subr.mxu0 0.0
    %4937 = vmatpush1.xpose.msra.mxu0 0.0
    %4938 = vmatprep.subr.mxu0 0.0
    %4939 = vmatpush1.xpose.msra.mxu0 0.0
    %4940 = vmatprep.subr.mxu0 0.0
    %4941 = vmatpush1.xpose.msra.mxu0 0.0
    %4942 = vmatprep.subr.mxu0 0.0
    %4943 = vmatpush1.xpose.msra.mxu0 0.0
    %4944 = vmatprep.subr.mxu0 0.0
    %4945 = vmatpush1.xpose.msra.mxu0 0.0
    %4946 = vmatprep.subr.mxu0 0.0
    %4947 = vmatpush1.xpose.msra.mxu0 0.0
    %4948 = vmatprep.subr.mxu0 0.0
    %4949 = vmatpush1.xpose.msra.mxu0 0.0
    %4950 = vmatprep.subr.mxu0 0.0
    %4951 = vmatpush1.xpose.msra.mxu0 0.0
    %4952 = vmatprep.subr.mxu0 0.0
    %4953 = vmatpush1.xpose.msra.mxu0 0.0
    %4954 = vmatprep.subr.mxu0 0.0
    %4955 = vmatpush1.xpose.msra.mxu0 0.0
    %4956 = vmatprep.subr.mxu0 0.0
    %4957 = vmatpush1.xpose.msra.mxu0 0.0
    %4958 = vmatprep.subr.mxu0 0.0
    %4959 = vmatpush1.xpose.msra.mxu0 0.0
    %4960 = vmatprep.subr.mxu0 0.0
    %4961 = vmatpush1.xpose.msra.mxu0 0.0
    %4962 = vmatprep.subr.mxu0 0.0
    %4963 = vmatpush1.xpose.msra.mxu0 0.0
    %4964 = vmatprep.subr.mxu0 0.0
    %4965 = vmatpush1.xpose.msra.mxu0 0.0
    %4966 = vmatprep.subr.mxu0 0.0
    %4967 = vmatpush1.xpose.msra.mxu0 0.0
    %4968 = vmatprep.subr.mxu0 0.0
    %4969 = vmatpush1.xpose.msra.mxu0 0.0
    %4970 = vmatprep.subr.mxu0 0.0
    %4971 = vmatpush1.xpose.msra.mxu0 0.0
    %4972 = vmatprep.subr.mxu0 0.0
    %4973 = vmatpush1.xpose.msra.mxu0 0.0
    %4974 = vmatprep.subr.mxu0 0.0
    %4975 = vmatpush1.xpose.msra.mxu0 0.0
    %4976 = vmatprep.subr.mxu0 0.0
    %4977 = vmatpush1.xpose.msra.mxu0 0.0
    %4978 = vmatprep.subr.mxu0 0.0
    %4979 = vmatpush1.xpose.msra.mxu0 0.0
    %4980 = vmatprep.subr.mxu0 0.0
    %4981 = vmatpush1.xpose.msra.mxu0 0.0
    %4982 = vmatprep.subr.mxu0 0.0
    %4983 = vmatpush1.xpose.msra.mxu0 0.0
    %4984 = vmatprep.subr.mxu0 0.0
    %4985 = vmatpush1.xpose.msra.mxu0 0.0
    %4986 = vmatprep.subr.mxu0 0.0
    %4987 = vmatpush1.xpose.msra.mxu0 0.0
    %4988 = vmatprep.subr.mxu0 0.0
    %4989 = vmatpush1.xpose.msra.mxu0 0.0
    %4990 = vmatprep.subr.mxu0 0.0
    %4991 = vmatpush1.xpose.msra.mxu0 0.0
    %4992 = vmatprep.subr.mxu0 0.0
    %4993 = vmatpush1.xpose.msra.mxu0 0.0
    %4994 = vmatprep.subr.mxu0 0.0
    %4995 = vmatpush1.xpose.msra.mxu0 0.0
    %4996 = vmatprep.subr.mxu0 0.0
    %4997 = vmatpush1.xpose.msra.mxu0 0.0
    %4998 = vmatprep.mubr.f32.mxu0 0.0
    %4999 = vmatmul.mubr.f32.gmra.mrb[0].mxu0 %v4930
    %v5000 = vpop.f32.mrb[0].mxu0
    %v5001 = vadd.f32 %v92, %v5000
    %v5002 = vpop.f32.mrb[0].mxu0
    %5003 = vdwg.mxu0
    %v5004 = vsel %vm256, %v5001, -inf
    %5005 = vmax.xlane.f32.xlu0 %v5004
    %v5006 = vpop.xlane.xlu0 %5005
    %v5007 = vsub.f32 %v5001, %v5006
    %v5008 = vmul.f32 %v5007, 1.442695
    %v5009 = vpow.pop %v5008
    %v5010 = vsel %vm256, %v5009, 0.0
    %5011 = vadd.xlane.f32.xlu0 %v5010
    %v5012 = vpop.xlane.xlu0 %5011
    %v5013 = vrcp.pop %v5012
    %v5014 = vmul.f32 %v5012, %v5013
    %v5015 = vsub.f32 2.0, %v5014
    %v5016 = vmul.f32 %v5013, %v5015
    %v5017 = vmul.f32 %v5009, %v5016
    %5018 = vrot.lane.b32.xlu0 %v3897, 48
    %v5019 = vpop.permute.xlu0 %5018
    %v5022 = vsel %vm256, %v5017, 0
    %5024 = vmatprep.subr.mxu0 0.0
    %5025 = vmatpush1.msra.mxu0 %v5019
    %5026 = vmatprep.subr.mxu0 0.0
    %5027 = vmatpush1.msra.mxu0 0.0
    %5028 = vmatprep.subr.mxu0 0.0
    %5029 = vmatpush1.msra.mxu0 0.0
    %5030 = vmatprep.subr.mxu0 0.0
    %5031 = vmatpush1.msra.mxu0 0.0
    %5032 = vmatprep.subr.mxu0 0.0
    %5033 = vmatpush1.msra.mxu0 0.0
    %5034 = vmatprep.subr.mxu0 0.0
    %5035 = vmatpush1.msra.mxu0 0.0
    %5036 = vmatprep.subr.mxu0 0.0
    %5037 = vmatpush1.msra.mxu0 0.0
    %5038 = vmatprep.subr.mxu0 0.0
    %5039 = vmatpush1.msra.mxu0 0.0
    %5040 = vmatprep.subr.mxu0 0.0
    %5041 = vmatpush1.msra.mxu0 0.0
    %5042 = vmatprep.subr.mxu0 0.0
    %5043 = vmatpush1.msra.mxu0 0.0
    %5044 = vmatprep.subr.mxu0 0.0
    %5045 = vmatpush1.msra.mxu0 0.0
    %5046 = vmatprep.subr.mxu0 0.0
    %5047 = vmatpush1.msra.mxu0 0.0
    %5048 = vmatprep.subr.mxu0 0.0
    %5049 = vmatpush1.msra.mxu0 0.0
    %5050 = vmatprep.subr.mxu0 0.0
    %5051 = vmatpush1.msra.mxu0 0.0
    %5052 = vmatprep.subr.mxu0 0.0
    %5053 = vmatpush1.msra.mxu0 0.0
    %5054 = vmatprep.subr.mxu0 0.0
    %5055 = vmatpush1.msra.mxu0 0.0
    %5056 = vmatprep.subr.mxu0 0.0
    %5057 = vmatpush1.msra.mxu0 0.0
    %5058 = vmatprep.subr.mxu0 0.0
    %5059 = vmatpush1.msra.mxu0 0.0
    %5060 = vmatprep.subr.mxu0 0.0
    %5061 = vmatpush1.msra.mxu0 0.0
    %5062 = vmatprep.subr.mxu0 0.0
    %5063 = vmatpush1.msra.mxu0 0.0
    %5064 = vmatprep.subr.mxu0 0.0
    %5065 = vmatpush1.msra.mxu0 0.0
    %5066 = vmatprep.subr.mxu0 0.0
    %5067 = vmatpush1.msra.mxu0 0.0
    %5068 = vmatprep.subr.mxu0 0.0
    %5069 = vmatpush1.msra.mxu0 0.0
    %5070 = vmatprep.subr.mxu0 0.0
    %5071 = vmatpush1.msra.mxu0 0.0
    %5072 = vmatprep.subr.mxu0 0.0
    %5073 = vmatpush1.msra.mxu0 0.0
    %5074 = vmatprep.subr.mxu0 0.0
    %5075 = vmatpush1.msra.mxu0 0.0
    %5076 = vmatprep.subr.mxu0 0.0
    %5077 = vmatpush1.msra.mxu0 0.0
    %5078 = vmatprep.subr.mxu0 0.0
    %5079 = vmatpush1.msra.mxu0 0.0
    %5080 = vmatprep.subr.mxu0 0.0
    %5081 = vmatpush1.msra.mxu0 0.0
    %5082 = vmatprep.subr.mxu0 0.0
    %5083 = vmatpush1.msra.mxu0 0.0
    %5084 = vmatprep.subr.mxu0 0.0
    %5085 = vmatpush1.msra.mxu0 0.0
    %5086 = vmatprep.subr.mxu0 0.0
    %5087 = vmatpush1.msra.mxu0 0.0
    %5088 = vmatprep.mubr.f32.mxu0 0.0
    %5089 = vmatmul.mubr.f32.gmra.mrb[0].mxu0 %v5022
    %v5090 = vpop.f32.mrb[0].mxu0
    %v5091 = vadd.f32 0.0, %v5090
    %v5092 = vpop.f32.mrb[0].mxu0
    %5093 = vdwg.mxu0
    %5094 = vrot.lane.b32.xlu0 %v3897, 104
    %v5095 = vpop.permute.xlu0 %5094
    %5096 = vrot.lane.b32.xlu0 %v3897, 72
    %v5097 = vpop.permute.xlu0 %5096
    %v5098 = vsel %vm256, %v5095, 0
    %v5100 = vsel %vm256, %v5097, 0
    %5102 = vmatprep.subr.mxu0 0.0
    %5103 = vmatpush1.xpose.msra.mxu0 %v5100
    %5104 = vmatprep.subr.mxu0 0.0
    %5105 = vmatpush1.xpose.msra.mxu0 0.0
    %5106 = vmatprep.subr.mxu0 0.0
    %5107 = vmatpush1.xpose.msra.mxu0 0.0
    %5108 = vmatprep.subr.mxu0 0.0
    %5109 = vmatpush1.xpose.msra.mxu0 0.0
    %5110 = vmatprep.subr.mxu0 0.0
    %5111 = vmatpush1.xpose.msra.mxu0 0.0
    %5112 = vmatprep.subr.mxu0 0.0
    %5113 = vmatpush1.xpose.msra.mxu0 0.0
    %5114 = vmatprep.subr.mxu0 0.0
    %5115 = vmatpush1.xpose.msra.mxu0 0.0
    %5116 = vmatprep.subr.mxu0 0.0
    %5117 = vmatpush1.xpose.msra.mxu0 0.0
    %5118 = vmatprep.subr.mxu0 0.0
    %5119 = vmatpush1.xpose.msra.mxu0 0.0
    %5120 = vmatprep.subr.mxu0 0.0
    %5121 = vmatpush1.xpose.msra.mxu0 0.0
    %5122 = vmatprep.subr.mxu0 0.0
    %5123 = vmatpush1.xpose.msra.mxu0 0.0
    %5124 = vmatprep.subr.mxu0 0.0
    %5125 = vmatpush1.xpose.msra.mxu0 0.0
    %5126 = vmatprep.subr.mxu0 0.0
    %5127 = vmatpush1.xpose.msra.mxu0 0.0
    %5128 = vmatprep.subr.mxu0 0.0
    %5129 = vmatpush1.xpose.msra.mxu0 0.0
    %5130 = vmatprep.subr.mxu0 0.0
    %5131 = vmatpush1.xpose.msra.mxu0 0.0
    %5132 = vmatprep.subr.mxu0 0.0
    %5133 = vmatpush1.xpose.msra.mxu0 0.0
    %5134 = vmatprep.subr.mxu0 0.0
    %5135 = vmatpush1.xpose.msra.mxu0 0.0
    %5136 = vmatprep.subr.mxu0 0.0
    %5137 = vmatpush1.xpose.msra.mxu0 0.0
    %5138 = vmatprep.subr.mxu0 0.0
    %5139 = vmatpush1.xpose.msra.mxu0 0.0
    %5140 = vmatprep.subr.mxu0 0.0
    %5141 = vmatpush1.xpose.msra.mxu0 0.0
    %5142 = vmatprep.subr.mxu0 0.0
    %5143 = vmatpush1.xpose.msra.mxu0 0.0
    %5144 = vmatprep.subr.mxu0 0.0
    %5145 = vmatpush1.xpose.msra.mxu0 0.0
    %5146 = vmatprep.subr.mxu0 0.0
    %5147 = vmatpush1.xpose.msra.mxu0 0.0
    %5148 = vmatprep.subr.mxu0 0.0
    %5149 = vmatpush1.xpose.msra.mxu0 0.0
    %5150 = vmatprep.subr.mxu0 0.0
    %5151 = vmatpush1.xpose.msra.mxu0 0.0
    %5152 = vmatprep.subr.mxu0 0.0
    %5153 = vmatpush1.xpose.msra.mxu0 0.0
    %5154 = vmatprep.subr.mxu0 0.0
    %5155 = vmatpush1.xpose.msra.mxu0 0.0
    %5156 = vmatprep.subr.mxu0 0.0
    %5157 = vmatpush1.xpose.msra.mxu0 0.0
    %5158 = vmatprep.subr.mxu0 0.0
    %5159 = vmatpush1.xpose.msra.mxu0 0.0
    %5160 = vmatprep.subr.mxu0 0.0
    %5161 = vmatpush1.xpose.msra.mxu0 0.0
    %5162 = vmatprep.subr.mxu0 0.0
    %5163 = vmatpush1.xpose.msra.mxu0 0.0
    %5164 = vmatprep.subr.mxu0 0.0
    %5165 = vmatpush1.xpose.msra.mxu0 0.0
    %5166 = vmatprep.mubr.f32.mxu0 0.0
    %5167 = vmatmul.mubr.f32.gmra.mrb[0].mxu0 %v5098
    %v5168 = vpop.f32.mrb[0].mxu0
    %v5169 = vadd.f32 %v92, %v5168
    %v5170 = vpop.f32.mrb[0].mxu0
    %5171 = vdwg.mxu0
    %v5172 = vsel %vm256, %v5169, -inf
    %5173 = vmax.xlane.f32.xlu0 %v5172
    %v5174 = vpop.xlane.xlu0 %5173
    %v5175 = vsub.f32 %v5169, %v5174
    %v5176 = vmul.f32 %v5175, 1.442695
    %v5177 = vpow.pop %v5176
    %v5178 = vsel %vm256, %v5177, 0.0
    %5179 = vadd.xlane.f32.xlu0 %v5178
    %v5180 = vpop.xlane.xlu0 %5179
    %v5181 = vrcp.pop %v5180
    %v5182 = vmul.f32 %v5180, %v5181
    %v5183 = vsub.f32 2.0, %v5182
    %v5184 = vmul.f32 %v5181, %v5183
    %v5185 = vmul.f32 %v5177, %v5184
    %5186 = vrot.lane.b32.xlu0 %v3897, 40
    %v5187 = vpop.permute.xlu0 %5186
    %v5190 = vsel %vm256, %v5185, 0
    %5192 = vmatprep.subr.mxu0 0.0
    %5193 = vmatpush1.msra.mxu0 %v5187
    %5194 = vmatprep.subr.mxu0 0.0
    %5195 = vmatpush1.msra.mxu0 0.0
    %5196 = vmatprep.subr.mxu0 0.0
    %5197 = vmatpush1.msra.mxu0 0.0
    %5198 = vmatprep.subr.mxu0 0.0
    %5199 = vmatpush1.msra.mxu0 0.0
    %5200 = vmatprep.subr.mxu0 0.0
    %5201 = vmatpush1.msra.mxu0 0.0
    %5202 = vmatprep.subr.mxu0 0.0
    %5203 = vmatpush1.msra.mxu0 0.0
    %5204 = vmatprep.subr.mxu0 0.0
    %5205 = vmatpush1.msra.mxu0 0.0
    %5206 = vmatprep.subr.mxu0 0.0
    %5207 = vmatpush1.msra.mxu0 0.0
    %5208 = vmatprep.subr.mxu0 0.0
    %5209 = vmatpush1.msra.mxu0 0.0
    %5210 = vmatprep.subr.mxu0 0.0
    %5211 = vmatpush1.msra.mxu0 0.0
    %5212 = vmatprep.subr.mxu0 0.0
    %5213 = vmatpush1.msra.mxu0 0.0
    %5214 = vmatprep.subr.mxu0 0.0
    %5215 = vmatpush1.msra.mxu0 0.0
    %5216 = vmatprep.subr.mxu0 0.0
    %5217 = vmatpush1.msra.mxu0 0.0
    %5218 = vmatprep.subr.mxu0 0.0
    %5219 = vmatpush1.msra.mxu0 0.0
    %5220 = vmatprep.subr.mxu0 0.0
    %5221 = vmatpush1.msra.mxu0 0.0
    %5222 = vmatprep.subr.mxu0 0.0
    %5223 = vmatpush1.msra.mxu0 0.0
    %5224 = vmatprep.subr.mxu0 0.0
    %5225 = vmatpush1.msra.mxu0 0.0
    %5226 = vmatprep.subr.mxu0 0.0
    %5227 = vmatpush1.msra.mxu0 0.0
    %5228 = vmatprep.subr.mxu0 0.0
    %5229 = vmatpush1.msra.mxu0 0.0
    %5230 = vmatprep.subr.mxu0 0.0
    %5231 = vmatpush1.msra.mxu0 0.0
    %5232 = vmatprep.subr.mxu0 0.0
    %5233 = vmatpush1.msra.mxu0 0.0
    %5234 = vmatprep.subr.mxu0 0.0
    %5235 = vmatpush1.msra.mxu0 0.0
    %5236 = vmatprep.subr.mxu0 0.0
    %5237 = vmatpush1.msra.mxu0 0.0
    %5238 = vmatprep.subr.mxu0 0.0
    %5239 = vmatpush1.msra.mxu0 0.0
    %5240 = vmatprep.subr.mxu0 0.0
    %5241 = vmatpush1.msra.mxu0 0.0
    %5242 = vmatprep.subr.mxu0 0.0
    %5243 = vmatpush1.msra.mxu0 0.0
    %5244 = vmatprep.subr.mxu0 0.0
    %5245 = vmatpush1.msra.mxu0 0.0
    %5246 = vmatprep.subr.mxu0 0.0
    %5247 = vmatpush1.msra.mxu0 0.0
    %5248 = vmatprep.subr.mxu0 0.0
    %5249 = vmatpush1.msra.mxu0 0.0
    %5250 = vmatprep.subr.mxu0 0.0
    %5251 = vmatpush1.msra.mxu0 0.0
    %5252 = vmatprep.subr.mxu0 0.0
    %5253 = vmatpush1.msra.mxu0 0.0
    %5254 = vmatprep.subr.mxu0 0.0
    %5255 = vmatpush1.msra.mxu0 0.0
    %5256 = vmatprep.mubr.f32.mxu0 0.0
    %5257 = vmatmul.mubr.f32.gmra.mrb[0].mxu0 %v5190
    %v5258 = vpop.f32.mrb[0].mxu0
    %v5259 = vadd.f32 0.0, %v5258
    %v5260 = vpop.f32.mrb[0].mxu0
    %5261 = vdwg.mxu0
    %5263 = vrot.lane.b32.xlu0 %v4923, 8
    %v5264 = vpop.permute.xlu0 %5263
    %5267 = vrot.lane.b32.xlu0 %v5091, 16
    %v5268 = vpop.permute.xlu0 %5267
    %5271 = vrot.lane.b32.xlu0 %v5259, 24
    %v5272 = vpop.permute.xlu0 %5271
    %v5274 = vsel %vm256, %v4755, %v5264
    %v5275 = vsel %vm938, %v5274, %v5268
    %v5276 = vsel %vm940, %v5275, %v5272
    %v5277 = vlaneseq
    %v5278 = vshrl.u32 %v5277, 7
    %v5279 = vsub.s32 0, %v5278
    %v5280 = vrot.slane %v3904, %v5279
    %v5282 = vsel %vm98, %v4590, 0
    %v5285 = vsel %vm98, %v5276, 0
    %5287 = vmatprep.subr.mxu0 0.0
    %5288 = vmatpush1.msra.mxu0 %v3900
    %5289 = vmatprep.subr.mxu0 0.0
    %5290 = vmatpush1.msra.mxu0 %v3901
    %5291 = vmatprep.subr.mxu0 0.0
    %5292 = vmatpush1.msra.mxu0 %v3902
    %5293 = vmatprep.subr.mxu0 0.0
    %5294 = vmatpush1.msra.mxu0 %v3903
    %5295 = vmatprep.subr.mxu0 0.0
    %5296 = vmatpush1.msra.mxu0 0.0
    %5297 = vmatprep.subr.mxu0 0.0
    %5298 = vmatpush1.msra.mxu0 0.0
    %5299 = vmatprep.subr.mxu0 0.0
    %5300 = vmatpush1.msra.mxu0 0.0
    %5301 = vmatprep.subr.mxu0 0.0
    %5302 = vmatpush1.msra.mxu0 0.0
    %5303 = vmatprep.subr.mxu0 0.0
    %5304 = vmatpush1.msra.mxu0 0.0
    %5305 = vmatprep.subr.mxu0 0.0
    %5306 = vmatpush1.msra.mxu0 0.0
    %5307 = vmatprep.subr.mxu0 0.0
    %5308 = vmatpush1.msra.mxu0 0.0
    %5309 = vmatprep.subr.mxu0 0.0
    %5310 = vmatpush1.msra.mxu0 0.0
    %5311 = vmatprep.subr.mxu0 0.0
    %5312 = vmatpush1.msra.mxu0 0.0
    %5313 = vmatprep.subr.mxu0 0.0
    %5314 = vmatpush1.msra.mxu0 0.0
    %5315 = vmatprep.subr.mxu0 0.0
    %5316 = vmatpush1.msra.mxu0 0.0
    %5317 = vmatprep.subr.mxu0 0.0
    %5318 = vmatpush1.msra.mxu0 0.0
    %5319 = vmatprep.subr.mxu0 0.0
    %5320 = vmatpush1.msra.mxu0 0.0
    %5321 = vmatprep.subr.mxu0 0.0
    %5322 = vmatpush1.msra.mxu0 0.0
    %5323 = vmatprep.subr.mxu0 0.0
    %5324 = vmatpush1.msra.mxu0 0.0
    %5325 = vmatprep.subr.mxu0 0.0
    %5326 = vmatpush1.msra.mxu0 0.0
    %5327 = vmatprep.subr.mxu0 0.0
    %5328 = vmatpush1.msra.mxu0 0.0
    %5329 = vmatprep.subr.mxu0 0.0
    %5330 = vmatpush1.msra.mxu0 0.0
    %5331 = vmatprep.subr.mxu0 0.0
    %5332 = vmatpush1.msra.mxu0 0.0
    %5333 = vmatprep.subr.mxu0 0.0
    %5334 = vmatpush1.msra.mxu0 0.0
    %5335 = vmatprep.subr.mxu0 0.0
    %5336 = vmatpush1.msra.mxu0 0.0
    %5337 = vmatprep.subr.mxu0 0.0
    %5338 = vmatpush1.msra.mxu0 0.0
    %5339 = vmatprep.subr.mxu0 0.0
    %5340 = vmatpush1.msra.mxu0 0.0
    %5341 = vmatprep.subr.mxu0 0.0
    %5342 = vmatpush1.msra.mxu0 0.0
    %5343 = vmatprep.subr.mxu0 0.0
    %5344 = vmatpush1.msra.mxu0 0.0
    %5345 = vmatprep.subr.mxu0 0.0
    %5346 = vmatpush1.msra.mxu0 0.0
    %5347 = vmatprep.subr.mxu0 0.0
    %5348 = vmatpush1.msra.mxu0 0.0
    %5349 = vmatprep.subr.mxu0 0.0
    %5350 = vmatpush1.msra.mxu0 0.0
    %5351 = vmatprep.mubr.f32.mxu0 0.0
    %5352 = vmatmul.mubr.f32.gmra.mrb[0].mxu0 %v5282
    %v5353 = vpop.f32.mrb[0].mxu0
    %v5354 = vadd.f32 %v5280, %v5353
    %v5355 = vpop.f32.mrb[0].mxu0
    %5356 = vmatprep.mubr.f32.mxu0 0.0
    %5357 = vmatmul.mubr.f32.gmra.mrb[0].mxu0 %v5285
    %v5358 = vpop.f32.mrb[0].mxu0
    %v5359 = vadd.f32 %v5280, %v5358
    %v5360 = vpop.f32.mrb[0].mxu0
    %5361 = vdwg.mxu0
    %v5362 = vadd.f32 %v3748, %v5354
    %v5363 = vadd.f32 %v3749, %v5359
    %v5364 = vsel %vm98, %v5362, 0.0
    %5365 = vadd.xlane.f32.xlu0 %v5364
    %v5366 = vpop.xlane.xlu0 %5365
    %v5367 = vsel %vm98, %v5363, 0.0
    %5368 = vadd.xlane.f32.xlu0 %v5367
    %v5369 = vpop.xlane.xlu0 %5368
    %v5370 = vmul.f32 %v5366, %v105
    %v5371 = vmul.f32 %v5369, %v105
    %v5372 = vsub.f32 %v5362, %v5370
    %v5373 = vsub.f32 %v5363, %v5371
    %v5374 = vmul.f32 %v5372, %v5372
    %v5375 = vmul.f32 %v5373, %v5373
    %v5376 = vsel %vm98, %v5374, 0.0
    %5377 = vadd.xlane.f32.xlu0 %v5376
    %v5378 = vpop.xlane.xlu0 %5377
    %v5379 = vsel %vm98, %v5375, 0.0
    %5380 = vadd.xlane.f32.xlu0 %v5379
    %v5381 = vpop.xlane.xlu0 %5380
    %v5382 = vmul.f32 %v5378, 0.032258064
    %v5383 = vmul.f32 %v5381, 0.032258064
    %v5384 = vrsqrt.pop %v5382
    %v5385 = vmul.f32 %v5382, %v5384
    %vm5386 = vcmp.eq.f32.partialorder %v5382, inf
    %v5387 = vsel %vm5386, %v5382, %v5385
    %vm5388 = vcmp.eq.f32.partialorder %v5382, 0.0
    %v5389 = vand.u32 %v5382, 2147483648
    %v5390 = vsel %vm5388, %v5389, %v5387
    %v5391 = vrsqrt.pop %v5383
    %v5392 = vmul.f32 %v5383, %v5391
    %vm5393 = vcmp.eq.f32.partialorder %v5383, inf
    %v5394 = vsel %vm5393, %v5383, %v5392
    %vm5395 = vcmp.eq.f32.partialorder %v5383, 0.0
    %v5396 = vand.u32 %v5383, 2147483648
    %v5397 = vsel %vm5395, %v5396, %v5394
    %v5398 = vlaneseq
    %v5399 = vshrl.u32 %v5398, 7
    %v5400 = vsub.s32 1, %v5399
    %v5401 = vrot.slane %v3750, %v5400
    %v5402 = vmul.f32 %v5401, %v5372
    %v5403 = vmul.f32 %v5401, %v5373
    %v5404 = vadd.f32 %v5390, 1e-06
    %v5405 = vadd.f32 %v5397, 1e-06
    %v5406 = vrcp.pop %v5404
    %v5407 = vrcp.pop %v5405
    %v5408 = vmul.f32 %v5404, %v5406
    %v5409 = vmul.f32 %v5405, %v5407
    %v5410 = vsub.f32 2.0, %v5408
    %v5411 = vsub.f32 2.0, %v5409
    %v5412 = vmul.f32 %v5406, %v5410
    %v5413 = vmul.f32 %v5407, %v5411
    %v5414 = vmul.f32 %v5402, %v5412
    %v5415 = vmul.f32 %v5403, %v5413
    %v5416 = vlaneseq
    %v5417 = vshrl.u32 %v5416, 7
    %v5418 = vsub.s32 1, %v5417
    %v5419 = vrot.slane %v3751, %v5418
    %v5420 = vadd.f32 %v5414, %v5419
    %v5421 = vadd.f32 %v5415, %v5419
    %v5422 = vld [vmem:[#allocation10 + $0x170] sm:$0xff]
    %v5423 = vld [vmem:[#allocation10 + $0x178] sm:$0xff]
    %v5424 = vld [vmem:[#allocation10 + $0x180] sm:$0xff]
    %v5425 = vld [vmem:[#allocation10 + $0x188] sm:$0xff]
    %v5426 = vld [vmem:[#allocation10 + $0x190] sm:$0x1]
    %v5427 = vlaneseq
    %v5428 = vshrl.u32 %v5427, 7
    %v5429 = vsub.s32 0, %v5428
    %v5430 = vrot.slane %v5426, %v5429
    %v5432 = vsel %vm98, %v5420, 0
    %v5435 = vsel %vm98, %v5421, 0
    %5437 = vmatprep.subr.mxu0 0.0
    %5438 = vmatpush1.msra.mxu0 %v5422
    %5439 = vmatprep.subr.mxu0 0.0
    %5440 = vmatpush1.msra.mxu0 %v5423
    %5441 = vmatprep.subr.mxu0 0.0
    %5442 = vmatpush1.msra.mxu0 %v5424
    %5443 = vmatprep.subr.mxu0 0.0
    %5444 = vmatpush1.msra.mxu0 %v5425
    %5445 = vmatprep.subr.mxu0 0.0
    %5446 = vmatpush1.msra.mxu0 0.0
    %5447 = vmatprep.subr.mxu0 0.0
    %5448 = vmatpush1.msra.mxu0 0.0
    %5449 = vmatprep.subr.mxu0 0.0
    %5450 = vmatpush1.msra.mxu0 0.0
    %5451 = vmatprep.subr.mxu0 0.0
    %5452 = vmatpush1.msra.mxu0 0.0
    %5453 = vmatprep.subr.mxu0 0.0
    %5454 = vmatpush1.msra.mxu0 0.0
    %5455 = vmatprep.subr.mxu0 0.0
    %5456 = vmatpush1.msra.mxu0 0.0
    %5457 = vmatprep.subr.mxu0 0.0
    %5458 = vmatpush1.msra.mxu0 0.0
    %5459 = vmatprep.subr.mxu0 0.0
    %5460 = vmatpush1.msra.mxu0 0.0
    %5461 = vmatprep.subr.mxu0 0.0
    %5462 = vmatpush1.msra.mxu0 0.0
    %5463 = vmatprep.subr.mxu0 0.0
    %5464 = vmatpush1.msra.mxu0 0.0
    %5465 = vmatprep.subr.mxu0 0.0
    %5466 = vmatpush1.msra.mxu0 0.0
    %5467 = vmatprep.subr.mxu0 0.0
    %5468 = vmatpush1.msra.mxu0 0.0
    %5469 = vmatprep.subr.mxu0 0.0
    %5470 = vmatpush1.msra.mxu0 0.0
    %5471 = vmatprep.subr.mxu0 0.0
    %5472 = vmatpush1.msra.mxu0 0.0
    %5473 = vmatprep.subr.mxu0 0.0
    %5474 = vmatpush1.msra.mxu0 0.0
    %5475 = vmatprep.subr.mxu0 0.0
    %5476 = vmatpush1.msra.mxu0 0.0
    %5477 = vmatprep.subr.mxu0 0.0
    %5478 = vmatpush1.msra.mxu0 0.0
    %5479 = vmatprep.subr.mxu0 0.0
    %5480 = vmatpush1.msra.mxu0 0.0
    %5481 = vmatprep.subr.mxu0 0.0
    %5482 = vmatpush1.msra.mxu0 0.0
    %5483 = vmatprep.subr.mxu0 0.0
    %5484 = vmatpush1.msra.mxu0 0.0
    %5485 = vmatprep.subr.mxu0 0.0
    %5486 = vmatpush1.msra.mxu0 0.0
    %5487 = vmatprep.subr.mxu0 0.0
    %5488 = vmatpush1.msra.mxu0 0.0
    %5489 = vmatprep.subr.mxu0 0.0
    %5490 = vmatpush1.msra.mxu0 0.0
    %5491 = vmatprep.subr.mxu0 0.0
    %5492 = vmatpush1.msra.mxu0 0.0
    %5493 = vmatprep.subr.mxu0 0.0
    %5494 = vmatpush1.msra.mxu0 0.0
    %5495 = vmatprep.subr.mxu0 0.0
    %5496 = vmatpush1.msra.mxu0 0.0
    %5497 = vmatprep.subr.mxu0 0.0
    %5498 = vmatpush1.msra.mxu0 0.0
    %5499 = vmatprep.subr.mxu0 0.0
    %5500 = vmatpush1.msra.mxu0 0.0
    %5501 = vmatprep.mubr.f32.mxu0 0.0
    %5502 = vmatmul.mubr.f32.gmra.mrb[0].mxu0 %v5432
    %v5503 = vpop.f32.mrb[0].mxu0
    %v5504 = vadd.f32 %v5430, %v5503
    %v5505 = vpop.f32.mrb[0].mxu0
    %5506 = vmatprep.mubr.f32.mxu0 0.0
    %5507 = vmatmul.mubr.f32.gmra.mrb[0].mxu0 %v5435
    %v5508 = vpop.f32.mrb[0].mxu0
    %v5509 = vadd.f32 %v5430, %v5508
    %v5510 = vpop.f32.mrb[0].mxu0
    %5511 = vdwg.mxu0
    %5516 = vrot.lane.b32.xlu0 %v5422, 96
    %v5517 = vpop.permute.xlu0 %5516
    %5518 = vrot.lane.b32.xlu0 %v5423, 96
    %v5519 = vpop.permute.xlu0 %5518
    %5520 = vrot.lane.b32.xlu0 %v5424, 96
    %v5521 = vpop.permute.xlu0 %5520
    %5522 = vrot.lane.b32.xlu0 %v5425, 96
    %v5523 = vpop.permute.xlu0 %5522
    %5529 = vrot.lane.b32.xlu0 %v5430, 96
    %v5530 = vpop.permute.xlu0 %5529
    %5532 = vmatprep.subr.mxu0 0.0
    %5533 = vmatpush1.msra.mxu0 %v5517
    %5534 = vmatprep.subr.mxu0 0.0
    %5535 = vmatpush1.msra.mxu0 %v5519
    %5536 = vmatprep.subr.mxu0 0.0
    %5537 = vmatpush1.msra.mxu0 %v5521
    %5538 = vmatprep.subr.mxu0 0.0
    %5539 = vmatpush1.msra.mxu0 %v5523
    %5540 = vmatprep.subr.mxu0 0.0
    %5541 = vmatpush1.msra.mxu0 0.0
    %5542 = vmatprep.subr.mxu0 0.0
    %5543 = vmatpush1.msra.mxu0 0.0
    %5544 = vmatprep.subr.mxu0 0.0
    %5545 = vmatpush1.msra.mxu0 0.0
    %5546 = vmatprep.subr.mxu0 0.0
    %5547 = vmatpush1.msra.mxu0 0.0
    %5548 = vmatprep.subr.mxu0 0.0
    %5549 = vmatpush1.msra.mxu0 0.0
    %5550 = vmatprep.subr.mxu0 0.0
    %5551 = vmatpush1.msra.mxu0 0.0
    %5552 = vmatprep.subr.mxu0 0.0
    %5553 = vmatpush1.msra.mxu0 0.0
    %5554 = vmatprep.subr.mxu0 0.0
    %5555 = vmatpush1.msra.mxu0 0.0
    %5556 = vmatprep.subr.mxu0 0.0
    %5557 = vmatpush1.msra.mxu0 0.0
    %5558 = vmatprep.subr.mxu0 0.0
    %5559 = vmatpush1.msra.mxu0 0.0
    %5560 = vmatprep.subr.mxu0 0.0
    %5561 = vmatpush1.msra.mxu0 0.0
    %5562 = vmatprep.subr.mxu0 0.0
    %5563 = vmatpush1.msra.mxu0 0.0
    %5564 = vmatprep.subr.mxu0 0.0
    %5565 = vmatpush1.msra.mxu0 0.0
    %5566 = vmatprep.subr.mxu0 0.0
    %5567 = vmatpush1.msra.mxu0 0.0
    %5568 = vmatprep.subr.mxu0 0.0
    %5569 = vmatpush1.msra.mxu0 0.0
    %5570 = vmatprep.subr.mxu0 0.0
    %5571 = vmatpush1.msra.mxu0 0.0
    %5572 = vmatprep.subr.mxu0 0.0
    %5573 = vmatpush1.msra.mxu0 0.0
    %5574 = vmatprep.subr.mxu0 0.0
    %5575 = vmatpush1.msra.mxu0 0.0
    %5576 = vmatprep.subr.mxu0 0.0
    %5577 = vmatpush1.msra.mxu0 0.0
    %5578 = vmatprep.subr.mxu0 0.0
    %5579 = vmatpush1.msra.mxu0 0.0
    %5580 = vmatprep.subr.mxu0 0.0
    %5581 = vmatpush1.msra.mxu0 0.0
    %5582 = vmatprep.subr.mxu0 0.0
    %5583 = vmatpush1.msra.mxu0 0.0
    %5584 = vmatprep.subr.mxu0 0.0
    %5585 = vmatpush1.msra.mxu0 0.0
    %5586 = vmatprep.subr.mxu0 0.0
    %5587 = vmatpush1.msra.mxu0 0.0
    %5588 = vmatprep.subr.mxu0 0.0
    %5589 = vmatpush1.msra.mxu0 0.0
    %5590 = vmatprep.subr.mxu0 0.0
    %5591 = vmatpush1.msra.mxu0 0.0
    %5592 = vmatprep.subr.mxu0 0.0
    %5593 = vmatpush1.msra.mxu0 0.0
    %5594 = vmatprep.subr.mxu0 0.0
    %5595 = vmatpush1.msra.mxu0 0.0
    %5596 = vmatprep.mubr.f32.mxu0 0.0
    %5597 = vmatmul.mubr.f32.gmra.mrb[0].mxu0 %v1884
    %v5598 = vpop.f32.mrb[0].mxu0
    %v5599 = vadd.f32 %v5530, %v5598
    %v5600 = vpop.f32.mrb[0].mxu0
    %5601 = vmatprep.mubr.f32.mxu0 0.0
    %5602 = vmatmul.mubr.f32.gmra.mrb[0].mxu0 %v1887
    %v5603 = vpop.f32.mrb[0].mxu0
    %v5604 = vadd.f32 %v5530, %v5603
    %v5605 = vpop.f32.mrb[0].mxu0
    %5606 = vmatprep.mubr.f32.mxu0 0.0
    %5607 = vmatmul.mubr.f32.gmra.mrb[0].mxu0 %v1890
    %v5608 = vpop.f32.mrb[0].mxu0
    %v5609 = vadd.f32 %v5530, %v5608
    %v5610 = vpop.f32.mrb[0].mxu0
    %5611 = vdwg.mxu0
    %v5612 = vld [vmem:[#allocation10 + $0x198] sm:$0xff]
    %v5613 = vld [vmem:[#allocation10 + $0x1a0] sm:$0xff]
    %v5614 = vld [vmem:[#allocation10 + $0x1a8] sm:$0xff]
    %v5615 = vld [vmem:[#allocation10 + $0x1b0] sm:$0xff]
    %v5616 = vld [vmem:[#allocation10 + $0x1b8] sm:$0x1]
    %v5618 = vsel %vm256, %v5504, 0
    %v5621 = vsel %vm256, %v5599, 0
    %v5624 = vsel %vm256, %v5604, 0
    %5626 = vmatprep.subr.mxu0 0.0
    %5627 = vmatpush1.xpose.msra.mxu0 %v5621
    %5628 = vmatprep.subr.mxu0 0.0
    %5629 = vmatpush1.xpose.msra.mxu0 %v5624
    %5630 = vmatprep.subr.mxu0 0.0
    %5631 = vmatpush1.xpose.msra.mxu0 0.0
    %5632 = vmatprep.subr.mxu0 0.0
    %5633 = vmatpush1.xpose.msra.mxu0 0.0
    %5634 = vmatprep.subr.mxu0 0.0
    %5635 = vmatpush1.xpose.msra.mxu0 0.0
    %5636 = vmatprep.subr.mxu0 0.0
    %5637 = vmatpush1.xpose.msra.mxu0 0.0
    %5638 = vmatprep.subr.mxu0 0.0
    %5639 = vmatpush1.xpose.msra.mxu0 0.0
    %5640 = vmatprep.subr.mxu0 0.0
    %5641 = vmatpush1.xpose.msra.mxu0 0.0
    %5642 = vmatprep.subr.mxu0 0.0
    %5643 = vmatpush1.xpose.msra.mxu0 0.0
    %5644 = vmatprep.subr.mxu0 0.0
    %5645 = vmatpush1.xpose.msra.mxu0 0.0
    %5646 = vmatprep.subr.mxu0 0.0
    %5647 = vmatpush1.xpose.msra.mxu0 0.0
    %5648 = vmatprep.subr.mxu0 0.0
    %5649 = vmatpush1.xpose.msra.mxu0 0.0
    %5650 = vmatprep.subr.mxu0 0.0
    %5651 = vmatpush1.xpose.msra.mxu0 0.0
    %5652 = vmatprep.subr.mxu0 0.0
    %5653 = vmatpush1.xpose.msra.mxu0 0.0
    %5654 = vmatprep.subr.mxu0 0.0
    %5655 = vmatpush1.xpose.msra.mxu0 0.0
    %5656 = vmatprep.subr.mxu0 0.0
    %5657 = vmatpush1.xpose.msra.mxu0 0.0
    %5658 = vmatprep.subr.mxu0 0.0
    %5659 = vmatpush1.xpose.msra.mxu0 0.0
    %5660 = vmatprep.subr.mxu0 0.0
    %5661 = vmatpush1.xpose.msra.mxu0 0.0
    %5662 = vmatprep.subr.mxu0 0.0
    %5663 = vmatpush1.xpose.msra.mxu0 0.0
    %5664 = vmatprep.subr.mxu0 0.0
    %5665 = vmatpush1.xpose.msra.mxu0 0.0
    %5666 = vmatprep.subr.mxu0 0.0
    %5667 = vmatpush1.xpose.msra.mxu0 0.0
    %5668 = vmatprep.subr.mxu0 0.0
    %5669 = vmatpush1.xpose.msra.mxu0 0.0
    %5670 = vmatprep.subr.mxu0 0.0
    %5671 = vmatpush1.xpose.msra.mxu0 0.0
    %5672 = vmatprep.subr.mxu0 0.0
    %5673 = vmatpush1.xpose.msra.mxu0 0.0
    %5674 = vmatprep.subr.mxu0 0.0
    %5675 = vmatpush1.xpose.msra.mxu0 0.0
    %5676 = vmatprep.subr.mxu0 0.0
    %5677 = vmatpush1.xpose.msra.mxu0 0.0
    %5678 = vmatprep.subr.mxu0 0.0
    %5679 = vmatpush1.xpose.msra.mxu0 0.0
    %5680 = vmatprep.subr.mxu0 0.0
    %5681 = vmatpush1.xpose.msra.mxu0 0.0
    %5682 = vmatprep.subr.mxu0 0.0
    %5683 = vmatpush1.xpose.msra.mxu0 0.0
    %5684 = vmatprep.subr.mxu0 0.0
    %5685 = vmatpush1.xpose.msra.mxu0 0.0
    %5686 = vmatprep.subr.mxu0 0.0
    %5687 = vmatpush1.xpose.msra.mxu0 0.0
    %5688 = vmatprep.subr.mxu0 0.0
    %5689 = vmatpush1.xpose.msra.mxu0 0.0
    %5690 = vmatprep.mubr.f32.mxu0 0.0
    %5691 = vmatmul.mubr.f32.gmra.mrb[0].mxu0 %v5618
    %v5692 = vpop.f32.mrb[0].mxu0
    %v5693 = vadd.f32 %v93, %v5692
    %v5694 = vpop.f32.mrb[0].mxu0
    %5695 = vdwg.mxu0
    %v5696 = vsel %vm2056, %v5693, -inf
    %5697 = vmax.xlane.f32.xlu0 %v5696
    %v5698 = vpop.xlane.xlu0 %5697
    %v5699 = vsub.f32 %v5693, %v5698
    %v5700 = vmul.f32 %v5699, 1.442695
    %v5701 = vpow.pop %v5700
    %v5702 = vsel %vm2056, %v5701, 0.0
    %5703 = vadd.xlane.f32.xlu0 %v5702
    %v5704 = vpop.xlane.xlu0 %5703
    %v5705 = vrcp.pop %v5704
    %v5706 = vmul.f32 %v5704, %v5705
    %v5707 = vsub.f32 2.0, %v5706
    %v5708 = vmul.f32 %v5705, %v5707
    %v5709 = vmul.f32 %v5701, %v5708
    %5710 = vrot.lane.b32.xlu0 %v5599, 96
    %v5711 = vpop.permute.xlu0 %5710
    %5712 = vrot.lane.b32.xlu0 %v5604, 96
    %v5713 = vpop.permute.xlu0 %5712
    %v5716 = vsel %vm2056, %v5709, 0
    %v5718 = vsel %vm2079, %v5713, 0
    %5720 = vmatprep.subr.mxu0 0.0
    %5721 = vmatpush1.msra.mxu0 %v5711
    %5722 = vmatprep.subr.mxu0 0.0
    %5723 = vmatpush1.msra.mxu0 %v5718
    %5724 = vmatprep.subr.mxu0 0.0
    %5725 = vmatpush1.msra.mxu0 0.0
    %5726 = vmatprep.subr.mxu0 0.0
    %5727 = vmatpush1.msra.mxu0 0.0
    %5728 = vmatprep.subr.mxu0 0.0
    %5729 = vmatpush1.msra.mxu0 0.0
    %5730 = vmatprep.subr.mxu0 0.0
    %5731 = vmatpush1.msra.mxu0 0.0
    %5732 = vmatprep.subr.mxu0 0.0
    %5733 = vmatpush1.msra.mxu0 0.0
    %5734 = vmatprep.subr.mxu0 0.0
    %5735 = vmatpush1.msra.mxu0 0.0
    %5736 = vmatprep.subr.mxu0 0.0
    %5737 = vmatpush1.msra.mxu0 0.0
    %5738 = vmatprep.subr.mxu0 0.0
    %5739 = vmatpush1.msra.mxu0 0.0
    %5740 = vmatprep.subr.mxu0 0.0
    %5741 = vmatpush1.msra.mxu0 0.0
    %5742 = vmatprep.subr.mxu0 0.0
    %5743 = vmatpush1.msra.mxu0 0.0
    %5744 = vmatprep.subr.mxu0 0.0
    %5745 = vmatpush1.msra.mxu0 0.0
    %5746 = vmatprep.subr.mxu0 0.0
    %5747 = vmatpush1.msra.mxu0 0.0
    %5748 = vmatprep.subr.mxu0 0.0
    %5749 = vmatpush1.msra.mxu0 0.0
    %5750 = vmatprep.subr.mxu0 0.0
    %5751 = vmatpush1.msra.mxu0 0.0
    %5752 = vmatprep.subr.mxu0 0.0
    %5753 = vmatpush1.msra.mxu0 0.0
    %5754 = vmatprep.subr.mxu0 0.0
    %5755 = vmatpush1.msra.mxu0 0.0
    %5756 = vmatprep.subr.mxu0 0.0
    %5757 = vmatpush1.msra.mxu0 0.0
    %5758 = vmatprep.subr.mxu0 0.0
    %5759 = vmatpush1.msra.mxu0 0.0
    %5760 = vmatprep.subr.mxu0 0.0
    %5761 = vmatpush1.msra.mxu0 0.0
    %5762 = vmatprep.subr.mxu0 0.0
    %5763 = vmatpush1.msra.mxu0 0.0
    %5764 = vmatprep.subr.mxu0 0.0
    %5765 = vmatpush1.msra.mxu0 0.0
    %5766 = vmatprep.subr.mxu0 0.0
    %5767 = vmatpush1.msra.mxu0 0.0
    %5768 = vmatprep.subr.mxu0 0.0
    %5769 = vmatpush1.msra.mxu0 0.0
    %5770 = vmatprep.subr.mxu0 0.0
    %5771 = vmatpush1.msra.mxu0 0.0
    %5772 = vmatprep.subr.mxu0 0.0
    %5773 = vmatpush1.msra.mxu0 0.0
    %5774 = vmatprep.subr.mxu0 0.0
    %5775 = vmatpush1.msra.mxu0 0.0
    %5776 = vmatprep.subr.mxu0 0.0
    %5777 = vmatpush1.msra.mxu0 0.0
    %5778 = vmatprep.subr.mxu0 0.0
    %5779 = vmatpush1.msra.mxu0 0.0
    %5780 = vmatprep.subr.mxu0 0.0
    %5781 = vmatpush1.msra.mxu0 0.0
    %5782 = vmatprep.subr.mxu0 0.0
    %5783 = vmatpush1.msra.mxu0 0.0
    %5784 = vmatprep.mubr.f32.mxu0 0.0
    %5785 = vmatmul.mubr.f32.gmra.mrb[0].mxu0 %v5716
    %v5786 = vpop.f32.mrb[0].mxu0
    %v5787 = vadd.f32 0.0, %v5786
    %v5788 = vpop.f32.mrb[0].mxu0
    %5789 = vdwg.mxu0
    %5790 = vrot.lane.b32.xlu0 %v5504, 120
    %v5791 = vpop.permute.xlu0 %5790
    %5792 = vrot.lane.b32.xlu0 %v5599, 120
    %v5793 = vpop.permute.xlu0 %5792
    %5794 = vrot.lane.b32.xlu0 %v5604, 120
    %v5795 = vpop.permute.xlu0 %5794
    %v5796 = vsel %vm256, %v5791, 0
    %v5798 = vsel %vm256, %v5793, 0
    %v5800 = vsel %vm256, %v5795, 0
    %5802 = vmatprep.subr.mxu0 0.0
    %5803 = vmatpush1.xpose.msra.mxu0 %v5798
    %5804 = vmatprep.subr.mxu0 0.0
    %5805 = vmatpush1.xpose.msra.mxu0 %v5800
    %5806 = vmatprep.subr.mxu0 0.0
    %5807 = vmatpush1.xpose.msra.mxu0 0.0
    %5808 = vmatprep.subr.mxu0 0.0
    %5809 = vmatpush1.xpose.msra.mxu0 0.0
    %5810 = vmatprep.subr.mxu0 0.0
    %5811 = vmatpush1.xpose.msra.mxu0 0.0
    %5812 = vmatprep.subr.mxu0 0.0
    %5813 = vmatpush1.xpose.msra.mxu0 0.0
    %5814 = vmatprep.subr.mxu0 0.0
    %5815 = vmatpush1.xpose.msra.mxu0 0.0
    %5816 = vmatprep.subr.mxu0 0.0
    %5817 = vmatpush1.xpose.msra.mxu0 0.0
    %5818 = vmatprep.subr.mxu0 0.0
    %5819 = vmatpush1.xpose.msra.mxu0 0.0
    %5820 = vmatprep.subr.mxu0 0.0
    %5821 = vmatpush1.xpose.msra.mxu0 0.0
    %5822 = vmatprep.subr.mxu0 0.0
    %5823 = vmatpush1.xpose.msra.mxu0 0.0
    %5824 = vmatprep.subr.mxu0 0.0
    %5825 = vmatpush1.xpose.msra.mxu0 0.0
    %5826 = vmatprep.subr.mxu0 0.0
    %5827 = vmatpush1.xpose.msra.mxu0 0.0
    %5828 = vmatprep.subr.mxu0 0.0
    %5829 = vmatpush1.xpose.msra.mxu0 0.0
    %5830 = vmatprep.subr.mxu0 0.0
    %5831 = vmatpush1.xpose.msra.mxu0 0.0
    %5832 = vmatprep.subr.mxu0 0.0
    %5833 = vmatpush1.xpose.msra.mxu0 0.0
    %5834 = vmatprep.subr.mxu0 0.0
    %5835 = vmatpush1.xpose.msra.mxu0 0.0
    %5836 = vmatprep.subr.mxu0 0.0
    %5837 = vmatpush1.xpose.msra.mxu0 0.0
    %5838 = vmatprep.subr.mxu0 0.0
    %5839 = vmatpush1.xpose.msra.mxu0 0.0
    %5840 = vmatprep.subr.mxu0 0.0
    %5841 = vmatpush1.xpose.msra.mxu0 0.0
    %5842 = vmatprep.subr.mxu0 0.0
    %5843 = vmatpush1.xpose.msra.mxu0 0.0
    %5844 = vmatprep.subr.mxu0 0.0
    %5845 = vmatpush1.xpose.msra.mxu0 0.0
    %5846 = vmatprep.subr.mxu0 0.0
    %5847 = vmatpush1.xpose.msra.mxu0 0.0
    %5848 = vmatprep.subr.mxu0 0.0
    %5849 = vmatpush1.xpose.msra.mxu0 0.0
    %5850 = vmatprep.subr.mxu0 0.0
    %5851 = vmatpush1.xpose.msra.mxu0 0.0
    %5852 = vmatprep.subr.mxu0 0.0
    %5853 = vmatpush1.xpose.msra.mxu0 0.0
    %5854 = vmatprep.subr.mxu0 0.0
    %5855 = vmatpush1.xpose.msra.mxu0 0.0
    %5856 = vmatprep.subr.mxu0 0.0
    %5857 = vmatpush1.xpose.msra.mxu0 0.0
    %5858 = vmatprep.subr.mxu0 0.0
    %5859 = vmatpush1.xpose.msra.mxu0 0.0
    %5860 = vmatprep.subr.mxu0 0.0
    %5861 = vmatpush1.xpose.msra.mxu0 0.0
    %5862 = vmatprep.subr.mxu0 0.0
    %5863 = vmatpush1.xpose.msra.mxu0 0.0
    %5864 = vmatprep.subr.mxu0 0.0
    %5865 = vmatpush1.xpose.msra.mxu0 0.0
    %5866 = vmatprep.mubr.f32.mxu0 0.0
    %5867 = vmatmul.mubr.f32.gmra.mrb[0].mxu0 %v5796
    %v5868 = vpop.f32.mrb[0].mxu0
    %v5869 = vadd.f32 %v93, %v5868
    %v5870 = vpop.f32.mrb[0].mxu0
    %5871 = vdwg.mxu0
    %v5872 = vsel %vm2056, %v5869, -inf
    %5873 = vmax.xlane.f32.xlu0 %v5872
    %v5874 = vpop.xlane.xlu0 %5873
    %v5875 = vsub.f32 %v5869, %v5874
    %v5876 = vmul.f32 %v5875, 1.442695
    %v5877 = vpow.pop %v5876
    %v5878 = vsel %vm2056, %v5877, 0.0
    %5879 = vadd.xlane.f32.xlu0 %v5878
    %v5880 = vpop.xlane.xlu0 %5879
    %v5881 = vrcp.pop %v5880
    %v5882 = vmul.f32 %v5880, %v5881
    %v5883 = vsub.f32 2.0, %v5882
    %v5884 = vmul.f32 %v5881, %v5883
    %v5885 = vmul.f32 %v5877, %v5884
    %5886 = vrot.lane.b32.xlu0 %v5599, 88
    %v5887 = vpop.permute.xlu0 %5886
    %5888 = vrot.lane.b32.xlu0 %v5604, 88
    %v5889 = vpop.permute.xlu0 %5888
    %v5892 = vsel %vm2056, %v5885, 0
    %v5894 = vsel %vm2079, %v5889, 0
    %5896 = vmatprep.subr.mxu0 0.0
    %5897 = vmatpush1.msra.mxu0 %v5887
    %5898 = vmatprep.subr.mxu0 0.0
    %5899 = vmatpush1.msra.mxu0 %v5894
    %5900 = vmatprep.subr.mxu0 0.0
    %5901 = vmatpush1.msra.mxu0 0.0
    %5902 = vmatprep.subr.mxu0 0.0
    %5903 = vmatpush1.msra.mxu0 0.0
    %5904 = vmatprep.subr.mxu0 0.0
    %5905 = vmatpush1.msra.mxu0 0.0
    %5906 = vmatprep.subr.mxu0 0.0
    %5907 = vmatpush1.msra.mxu0 0.0
    %5908 = vmatprep.subr.mxu0 0.0
    %5909 = vmatpush1.msra.mxu0 0.0
    %5910 = vmatprep.subr.mxu0 0.0
    %5911 = vmatpush1.msra.mxu0 0.0
    %5912 = vmatprep.subr.mxu0 0.0
    %5913 = vmatpush1.msra.mxu0 0.0
    %5914 = vmatprep.subr.mxu0 0.0
    %5915 = vmatpush1.msra.mxu0 0.0
    %5916 = vmatprep.subr.mxu0 0.0
    %5917 = vmatpush1.msra.mxu0 0.0
    %5918 = vmatprep.subr.mxu0 0.0
    %5919 = vmatpush1.msra.mxu0 0.0
    %5920 = vmatprep.subr.mxu0 0.0
    %5921 = vmatpush1.msra.mxu0 0.0
    %5922 = vmatprep.subr.mxu0 0.0
    %5923 = vmatpush1.msra.mxu0 0.0
    %5924 = vmatprep.subr.mxu0 0.0
    %5925 = vmatpush1.msra.mxu0 0.0
    %5926 = vmatprep.subr.mxu0 0.0
    %5927 = vmatpush1.msra.mxu0 0.0
    %5928 = vmatprep.subr.mxu0 0.0
    %5929 = vmatpush1.msra.mxu0 0.0
    %5930 = vmatprep.subr.mxu0 0.0
    %5931 = vmatpush1.msra.mxu0 0.0
    %5932 = vmatprep.subr.mxu0 0.0
    %5933 = vmatpush1.msra.mxu0 0.0
    %5934 = vmatprep.subr.mxu0 0.0
    %5935 = vmatpush1.msra.mxu0 0.0
    %5936 = vmatprep.subr.mxu0 0.0
    %5937 = vmatpush1.msra.mxu0 0.0
    %5938 = vmatprep.subr.mxu0 0.0
    %5939 = vmatpush1.msra.mxu0 0.0
    %5940 = vmatprep.subr.mxu0 0.0
    %5941 = vmatpush1.msra.mxu0 0.0
    %5942 = vmatprep.subr.mxu0 0.0
    %5943 = vmatpush1.msra.mxu0 0.0
    %5944 = vmatprep.subr.mxu0 0.0
    %5945 = vmatpush1.msra.mxu0 0.0
    %5946 = vmatprep.subr.mxu0 0.0
    %5947 = vmatpush1.msra.mxu0 0.0
    %5948 = vmatprep.subr.mxu0 0.0
    %5949 = vmatpush1.msra.mxu0 0.0
    %5950 = vmatprep.subr.mxu0 0.0
    %5951 = vmatpush1.msra.mxu0 0.0
    %5952 = vmatprep.subr.mxu0 0.0
    %5953 = vmatpush1.msra.mxu0 0.0
    %5954 = vmatprep.subr.mxu0 0.0
    %5955 = vmatpush1.msra.mxu0 0.0
    %5956 = vmatprep.subr.mxu0 0.0
    %5957 = vmatpush1.msra.mxu0 0.0
    %5958 = vmatprep.subr.mxu0 0.0
    %5959 = vmatpush1.msra.mxu0 0.0
    %5960 = vmatprep.mubr.f32.mxu0 0.0
    %5961 = vmatmul.mubr.f32.gmra.mrb[0].mxu0 %v5892
    %v5962 = vpop.f32.mrb[0].mxu0
    %v5963 = vadd.f32 0.0, %v5962
    %v5964 = vpop.f32.mrb[0].mxu0
    %5965 = vdwg.mxu0
    %5966 = vrot.lane.b32.xlu0 %v5504, 112
    %v5967 = vpop.permute.xlu0 %5966
    %5968 = vrot.lane.b32.xlu0 %v5599, 112
    %v5969 = vpop.permute.xlu0 %5968
    %5970 = vrot.lane.b32.xlu0 %v5604, 112
    %v5971 = vpop.permute.xlu0 %5970
    %v5972 = vsel %vm256, %v5967, 0
    %v5974 = vsel %vm256, %v5969, 0
    %v5976 = vsel %vm256, %v5971, 0
    %5978 = vmatprep.subr.mxu0 0.0
    %5979 = vmatpush1.xpose.msra.mxu0 %v5974
    %5980 = vmatprep.subr.mxu0 0.0
    %5981 = vmatpush1.xpose.msra.mxu0 %v5976
    %5982 = vmatprep.subr.mxu0 0.0
    %5983 = vmatpush1.xpose.msra.mxu0 0.0
    %5984 = vmatprep.subr.mxu0 0.0
    %5985 = vmatpush1.xpose.msra.mxu0 0.0
    %5986 = vmatprep.subr.mxu0 0.0
    %5987 = vmatpush1.xpose.msra.mxu0 0.0
    %5988 = vmatprep.subr.mxu0 0.0
    %5989 = vmatpush1.xpose.msra.mxu0 0.0
    %5990 = vmatprep.subr.mxu0 0.0
    %5991 = vmatpush1.xpose.msra.mxu0 0.0
    %5992 = vmatprep.subr.mxu0 0.0
    %5993 = vmatpush1.xpose.msra.mxu0 0.0
    %5994 = vmatprep.subr.mxu0 0.0
    %5995 = vmatpush1.xpose.msra.mxu0 0.0
    %5996 = vmatprep.subr.mxu0 0.0
    %5997 = vmatpush1.xpose.msra.mxu0 0.0
    %5998 = vmatprep.subr.mxu0 0.0
    %5999 = vmatpush1.xpose.msra.mxu0 0.0
    %6000 = vmatprep.subr.mxu0 0.0
    %6001 = vmatpush1.xpose.msra.mxu0 0.0
    %6002 = vmatprep.subr.mxu0 0.0
    %6003 = vmatpush1.xpose.msra.mxu0 0.0
    %6004 = vmatprep.subr.mxu0 0.0
    %6005 = vmatpush1.xpose.msra.mxu0 0.0
    %6006 = vmatprep.subr.mxu0 0.0
    %6007 = vmatpush1.xpose.msra.mxu0 0.0
    %6008 = vmatprep.subr.mxu0 0.0
    %6009 = vmatpush1.xpose.msra.mxu0 0.0
    %6010 = vmatprep.subr.mxu0 0.0
    %6011 = vmatpush1.xpose.msra.mxu0 0.0
    %6012 = vmatprep.subr.mxu0 0.0
    %6013 = vmatpush1.xpose.msra.mxu0 0.0
    %6014 = vmatprep.subr.mxu0 0.0
    %6015 = vmatpush1.xpose.msra.mxu0 0.0
    %6016 = vmatprep.subr.mxu0 0.0
    %6017 = vmatpush1.xpose.msra.mxu0 0.0
    %6018 = vmatprep.subr.mxu0 0.0
    %6019 = vmatpush1.xpose.msra.mxu0 0.0
    %6020 = vmatprep.subr.mxu0 0.0
    %6021 = vmatpush1.xpose.msra.mxu0 0.0
    %6022 = vmatprep.subr.mxu0 0.0
    %6023 = vmatpush1.xpose.msra.mxu0 0.0
    %6024 = vmatprep.subr.mxu0 0.0
    %6025 = vmatpush1.xpose.msra.mxu0 0.0
    %6026 = vmatprep.subr.mxu0 0.0
    %6027 = vmatpush1.xpose.msra.mxu0 0.0
    %6028 = vmatprep.subr.mxu0 0.0
    %6029 = vmatpush1.xpose.msra.mxu0 0.0
    %6030 = vmatprep.subr.mxu0 0.0
    %6031 = vmatpush1.xpose.msra.mxu0 0.0
    %6032 = vmatprep.subr.mxu0 0.0
    %6033 = vmatpush1.xpose.msra.mxu0 0.0
    %6034 = vmatprep.subr.mxu0 0.0
    %6035 = vmatpush1.xpose.msra.mxu0 0.0
    %6036 = vmatprep.subr.mxu0 0.0
    %6037 = vmatpush1.xpose.msra.mxu0 0.0
    %6038 = vmatprep.subr.mxu0 0.0
    %6039 = vmatpush1.xpose.msra.mxu0 0.0
    %6040 = vmatprep.subr.mxu0 0.0
    %6041 = vmatpush1.xpose.msra.mxu0 0.0
    %6042 = vmatprep.mubr.f32.mxu0 0.0
    %6043 = vmatmul.mubr.f32.gmra.mrb[0].mxu0 %v5972
    %v6044 = vpop.f32.mrb[0].mxu0
    %v6045 = vadd.f32 %v93, %v6044
    %v6046 = vpop.f32.mrb[0].mxu0
    %6047 = vdwg.mxu0
    %v6048 = vsel %vm2056, %v6045, -inf
    %6049 = vmax.xlane.f32.xlu0 %v6048
    %v6050 = vpop.xlane.xlu0 %6049
    %v6051 = vsub.f32 %v6045, %v6050
    %v6052 = vmul.f32 %v6051, 1.442695
    %v6053 = vpow.pop %v6052
    %v6054 = vsel %vm2056, %v6053, 0.0
    %6055 = vadd.xlane.f32.xlu0 %v6054
    %v6056 = vpop.xlane.xlu0 %6055
    %v6057 = vrcp.pop %v6056
    %v6058 = vmul.f32 %v6056, %v6057
    %v6059 = vsub.f32 2.0, %v6058
    %v6060 = vmul.f32 %v6057, %v6059
    %v6061 = vmul.f32 %v6053, %v6060
    %6062 = vrot.lane.b32.xlu0 %v5599, 80
    %v6063 = vpop.permute.xlu0 %6062
    %6064 = vrot.lane.b32.xlu0 %v5604, 80
    %v6065 = vpop.permute.xlu0 %6064
    %v6068 = vsel %vm2056, %v6061, 0
    %v6070 = vsel %vm2079, %v6065, 0
    %6072 = vmatprep.subr.mxu0 0.0
    %6073 = vmatpush1.msra.mxu0 %v6063
    %6074 = vmatprep.subr.mxu0 0.0
    %6075 = vmatpush1.msra.mxu0 %v6070
    %6076 = vmatprep.subr.mxu0 0.0
    %6077 = vmatpush1.msra.mxu0 0.0
    %6078 = vmatprep.subr.mxu0 0.0
    %6079 = vmatpush1.msra.mxu0 0.0
    %6080 = vmatprep.subr.mxu0 0.0
    %6081 = vmatpush1.msra.mxu0 0.0
    %6082 = vmatprep.subr.mxu0 0.0
    %6083 = vmatpush1.msra.mxu0 0.0
    %6084 = vmatprep.subr.mxu0 0.0
    %6085 = vmatpush1.msra.mxu0 0.0
    %6086 = vmatprep.subr.mxu0 0.0
    %6087 = vmatpush1.msra.mxu0 0.0
    %6088 = vmatprep.subr.mxu0 0.0
    %6089 = vmatpush1.msra.mxu0 0.0
    %6090 = vmatprep.subr.mxu0 0.0
    %6091 = vmatpush1.msra.mxu0 0.0
    %6092 = vmatprep.subr.mxu0 0.0
    %6093 = vmatpush1.msra.mxu0 0.0
    %6094 = vmatprep.subr.mxu0 0.0
    %6095 = vmatpush1.msra.mxu0 0.0
    %6096 = vmatprep.subr.mxu0 0.0
    %6097 = vmatpush1.msra.mxu0 0.0
    %6098 = vmatprep.subr.mxu0 0.0
    %6099 = vmatpush1.msra.mxu0 0.0
    %6100 = vmatprep.subr.mxu0 0.0
    %6101 = vmatpush1.msra.mxu0 0.0
    %6102 = vmatprep.subr.mxu0 0.0
    %6103 = vmatpush1.msra.mxu0 0.0
    %6104 = vmatprep.subr.mxu0 0.0
    %6105 = vmatpush1.msra.mxu0 0.0
    %6106 = vmatprep.subr.mxu0 0.0
    %6107 = vmatpush1.msra.mxu0 0.0
    %6108 = vmatprep.subr.mxu0 0.0
    %6109 = vmatpush1.msra.mxu0 0.0
    %6110 = vmatprep.subr.mxu0 0.0
    %6111 = vmatpush1.msra.mxu0 0.0
    %6112 = vmatprep.subr.mxu0 0.0
    %6113 = vmatpush1.msra.mxu0 0.0
    %6114 = vmatprep.subr.mxu0 0.0
    %6115 = vmatpush1.msra.mxu0 0.0
    %6116 = vmatprep.subr.mxu0 0.0
    %6117 = vmatpush1.msra.mxu0 0.0
    %6118 = vmatprep.subr.mxu0 0.0
    %6119 = vmatpush1.msra.mxu0 0.0
    %6120 = vmatprep.subr.mxu0 0.0
    %6121 = vmatpush1.msra.mxu0 0.0
    %6122 = vmatprep.subr.mxu0 0.0
    %6123 = vmatpush1.msra.mxu0 0.0
    %6124 = vmatprep.subr.mxu0 0.0
    %6125 = vmatpush1.msra.mxu0 0.0
    %6126 = vmatprep.subr.mxu0 0.0
    %6127 = vmatpush1.msra.mxu0 0.0
    %6128 = vmatprep.subr.mxu0 0.0
    %6129 = vmatpush1.msra.mxu0 0.0
    %6130 = vmatprep.subr.mxu0 0.0
    %6131 = vmatpush1.msra.mxu0 0.0
    %6132 = vmatprep.subr.mxu0 0.0
    %6133 = vmatpush1.msra.mxu0 0.0
    %6134 = vmatprep.subr.mxu0 0.0
    %6135 = vmatpush1.msra.mxu0 0.0
    %6136 = vmatprep.mubr.f32.mxu0 0.0
    %6137 = vmatmul.mubr.f32.gmra.mrb[0].mxu0 %v6068
    %v6138 = vpop.f32.mrb[0].mxu0
    %v6139 = vadd.f32 0.0, %v6138
    %v6140 = vpop.f32.mrb[0].mxu0
    %6141 = vdwg.mxu0
    %6142 = vrot.lane.b32.xlu0 %v5504, 104
    %v6143 = vpop.permute.xlu0 %6142
    %6144 = vrot.lane.b32.xlu0 %v5599, 104
    %v6145 = vpop.permute.xlu0 %6144
    %6146 = vrot.lane.b32.xlu0 %v5604, 104
    %v6147 = vpop.permute.xlu0 %6146
    %v6148 = vsel %vm256, %v6143, 0
    %v6150 = vsel %vm256, %v6145, 0
    %v6152 = vsel %vm256, %v6147, 0
    %6154 = vmatprep.subr.mxu0 0.0
    %6155 = vmatpush1.xpose.msra.mxu0 %v6150
    %6156 = vmatprep.subr.mxu0 0.0
    %6157 = vmatpush1.xpose.msra.mxu0 %v6152
    %6158 = vmatprep.subr.mxu0 0.0
    %6159 = vmatpush1.xpose.msra.mxu0 0.0
    %6160 = vmatprep.subr.mxu0 0.0
    %6161 = vmatpush1.xpose.msra.mxu0 0.0
    %6162 = vmatprep.subr.mxu0 0.0
    %6163 = vmatpush1.xpose.msra.mxu0 0.0
    %6164 = vmatprep.subr.mxu0 0.0
    %6165 = vmatpush1.xpose.msra.mxu0 0.0
    %6166 = vmatprep.subr.mxu0 0.0
    %6167 = vmatpush1.xpose.msra.mxu0 0.0
    %6168 = vmatprep.subr.mxu0 0.0
    %6169 = vmatpush1.xpose.msra.mxu0 0.0
    %6170 = vmatprep.subr.mxu0 0.0
    %6171 = vmatpush1.xpose.msra.mxu0 0.0
    %6172 = vmatprep.subr.mxu0 0.0
    %6173 = vmatpush1.xpose.msra.mxu0 0.0
    %6174 = vmatprep.subr.mxu0 0.0
    %6175 = vmatpush1.xpose.msra.mxu0 0.0
    %6176 = vmatprep.subr.mxu0 0.0
    %6177 = vmatpush1.xpose.msra.mxu0 0.0
    %6178 = vmatprep.subr.mxu0 0.0
    %6179 = vmatpush1.xpose.msra.mxu0 0.0
    %6180 = vmatprep.subr.mxu0 0.0
    %6181 = vmatpush1.xpose.msra.mxu0 0.0
    %6182 = vmatprep.subr.mxu0 0.0
    %6183 = vmatpush1.xpose.msra.mxu0 0.0
    %6184 = vmatprep.subr.mxu0 0.0
    %6185 = vmatpush1.xpose.msra.mxu0 0.0
    %6186 = vmatprep.subr.mxu0 0.0
    %6187 = vmatpush1.xpose.msra.mxu0 0.0
    %6188 = vmatprep.subr.mxu0 0.0
    %6189 = vmatpush1.xpose.msra.mxu0 0.0
    %6190 = vmatprep.subr.mxu0 0.0
    %6191 = vmatpush1.xpose.msra.mxu0 0.0
    %6192 = vmatprep.subr.mxu0 0.0
    %6193 = vmatpush1.xpose.msra.mxu0 0.0
    %6194 = vmatprep.subr.mxu0 0.0
    %6195 = vmatpush1.xpose.msra.mxu0 0.0
    %6196 = vmatprep.subr.mxu0 0.0
    %6197 = vmatpush1.xpose.msra.mxu0 0.0
    %6198 = vmatprep.subr.mxu0 0.0
    %6199 = vmatpush1.xpose.msra.mxu0 0.0
    %6200 = vmatprep.subr.mxu0 0.0
    %6201 = vmatpush1.xpose.msra.mxu0 0.0
    %6202 = vmatprep.subr.mxu0 0.0
    %6203 = vmatpush1.xpose.msra.mxu0 0.0
    %6204 = vmatprep.subr.mxu0 0.0
    %6205 = vmatpush1.xpose.msra.mxu0 0.0
    %6206 = vmatprep.subr.mxu0 0.0
    %6207 = vmatpush1.xpose.msra.mxu0 0.0
    %6208 = vmatprep.subr.mxu0 0.0
    %6209 = vmatpush1.xpose.msra.mxu0 0.0
    %6210 = vmatprep.subr.mxu0 0.0
    %6211 = vmatpush1.xpose.msra.mxu0 0.0
    %6212 = vmatprep.subr.mxu0 0.0
    %6213 = vmatpush1.xpose.msra.mxu0 0.0
    %6214 = vmatprep.subr.mxu0 0.0
    %6215 = vmatpush1.xpose.msra.mxu0 0.0
    %6216 = vmatprep.subr.mxu0 0.0
    %6217 = vmatpush1.xpose.msra.mxu0 0.0
    %6218 = vmatprep.mubr.f32.mxu0 0.0
    %6219 = vmatmul.mubr.f32.gmra.mrb[0].mxu0 %v6148
    %v6220 = vpop.f32.mrb[0].mxu0
    %v6221 = vadd.f32 %v93, %v6220
    %v6222 = vpop.f32.mrb[0].mxu0
    %6223 = vdwg.mxu0
    %v6224 = vsel %vm2056, %v6221, -inf
    %6225 = vmax.xlane.f32.xlu0 %v6224
    %v6226 = vpop.xlane.xlu0 %6225
    %v6227 = vsub.f32 %v6221, %v6226
    %v6228 = vmul.f32 %v6227, 1.442695
    %v6229 = vpow.pop %v6228
    %v6230 = vsel %vm2056, %v6229, 0.0
    %6231 = vadd.xlane.f32.xlu0 %v6230
    %v6232 = vpop.xlane.xlu0 %6231
    %v6233 = vrcp.pop %v6232
    %v6234 = vmul.f32 %v6232, %v6233
    %v6235 = vsub.f32 2.0, %v6234
    %v6236 = vmul.f32 %v6233, %v6235
    %v6237 = vmul.f32 %v6229, %v6236
    %6238 = vrot.lane.b32.xlu0 %v5599, 72
    %v6239 = vpop.permute.xlu0 %6238
    %6240 = vrot.lane.b32.xlu0 %v5604, 72
    %v6241 = vpop.permute.xlu0 %6240
    %v6244 = vsel %vm2056, %v6237, 0
    %v6246 = vsel %vm2079, %v6241, 0
    %6248 = vmatprep.subr.mxu0 0.0
    %6249 = vmatpush1.msra.mxu0 %v6239
    %6250 = vmatprep.subr.mxu0 0.0
    %6251 = vmatpush1.msra.mxu0 %v6246
    %6252 = vmatprep.subr.mxu0 0.0
    %6253 = vmatpush1.msra.mxu0 0.0
    %6254 = vmatprep.subr.mxu0 0.0
    %6255 = vmatpush1.msra.mxu0 0.0
    %6256 = vmatprep.subr.mxu0 0.0
    %6257 = vmatpush1.msra.mxu0 0.0
    %6258 = vmatprep.subr.mxu0 0.0
    %6259 = vmatpush1.msra.mxu0 0.0
    %6260 = vmatprep.subr.mxu0 0.0
    %6261 = vmatpush1.msra.mxu0 0.0
    %6262 = vmatprep.subr.mxu0 0.0
    %6263 = vmatpush1.msra.mxu0 0.0
    %6264 = vmatprep.subr.mxu0 0.0
    %6265 = vmatpush1.msra.mxu0 0.0
    %6266 = vmatprep.subr.mxu0 0.0
    %6267 = vmatpush1.msra.mxu0 0.0
    %6268 = vmatprep.subr.mxu0 0.0
    %6269 = vmatpush1.msra.mxu0 0.0
    %6270 = vmatprep.subr.mxu0 0.0
    %6271 = vmatpush1.msra.mxu0 0.0
    %6272 = vmatprep.subr.mxu0 0.0
    %6273 = vmatpush1.msra.mxu0 0.0
    %6274 = vmatprep.subr.mxu0 0.0
    %6275 = vmatpush1.msra.mxu0 0.0
    %6276 = vmatprep.subr.mxu0 0.0
    %6277 = vmatpush1.msra.mxu0 0.0
    %6278 = vmatprep.subr.mxu0 0.0
    %6279 = vmatpush1.msra.mxu0 0.0
    %6280 = vmatprep.subr.mxu0 0.0
    %6281 = vmatpush1.msra.mxu0 0.0
    %6282 = vmatprep.subr.mxu0 0.0
    %6283 = vmatpush1.msra.mxu0 0.0
    %6284 = vmatprep.subr.mxu0 0.0
    %6285 = vmatpush1.msra.mxu0 0.0
    %6286 = vmatprep.subr.mxu0 0.0
    %6287 = vmatpush1.msra.mxu0 0.0
    %6288 = vmatprep.subr.mxu0 0.0
    %6289 = vmatpush1.msra.mxu0 0.0
    %6290 = vmatprep.subr.mxu0 0.0
    %6291 = vmatpush1.msra.mxu0 0.0
    %6292 = vmatprep.subr.mxu0 0.0
    %6293 = vmatpush1.msra.mxu0 0.0
    %6294 = vmatprep.subr.mxu0 0.0
    %6295 = vmatpush1.msra.mxu0 0.0
    %6296 = vmatprep.subr.mxu0 0.0
    %6297 = vmatpush1.msra.mxu0 0.0
    %6298 = vmatprep.subr.mxu0 0.0
    %6299 = vmatpush1.msra.mxu0 0.0
    %6300 = vmatprep.subr.mxu0 0.0
    %6301 = vmatpush1.msra.mxu0 0.0
    %6302 = vmatprep.subr.mxu0 0.0
    %6303 = vmatpush1.msra.mxu0 0.0
    %6304 = vmatprep.subr.mxu0 0.0
    %6305 = vmatpush1.msra.mxu0 0.0
    %6306 = vmatprep.subr.mxu0 0.0
    %6307 = vmatpush1.msra.mxu0 0.0
    %6308 = vmatprep.subr.mxu0 0.0
    %6309 = vmatpush1.msra.mxu0 0.0
    %6310 = vmatprep.subr.mxu0 0.0
    %6311 = vmatpush1.msra.mxu0 0.0
    %6312 = vmatprep.mubr.f32.mxu0 0.0
    %6313 = vmatmul.mubr.f32.gmra.mrb[0].mxu0 %v6244
    %v6314 = vpop.f32.mrb[0].mxu0
    %v6315 = vadd.f32 0.0, %v6314
    %v6316 = vpop.f32.mrb[0].mxu0
    %6317 = vdwg.mxu0
    %6319 = vrot.lane.b32.xlu0 %v5963, 8
    %v6320 = vpop.permute.xlu0 %6319
    %6323 = vrot.lane.b32.xlu0 %v6139, 16
    %v6324 = vpop.permute.xlu0 %6323
    %6327 = vrot.lane.b32.xlu0 %v6315, 24
    %v6328 = vpop.permute.xlu0 %6327
    %v6330 = vsel %vm256, %v5787, %v6320
    %v6331 = vsel %vm938, %v6330, %v6324
    %v6332 = vsel %vm940, %v6331, %v6328
    %v6334 = vrot.slane %v5604, 2
    %v6335 = vrot.slane %v5609, 2
    %v6336 = vsel %vm2696, %v6334, %v6335
    %v6338 = vsel %vm256, %v5509, 0
    %v6340 = vsel %vm256, %v6336, 0
    %v6342 = vsel %vm256, %v6335, 0
    %6344 = vmatprep.subr.mxu0 0.0
    %6345 = vmatpush1.xpose.msra.mxu0 %v6340
    %6346 = vmatprep.subr.mxu0 0.0
    %6347 = vmatpush1.xpose.msra.mxu0 %v6342
    %6348 = vmatprep.subr.mxu0 0.0
    %6349 = vmatpush1.xpose.msra.mxu0 0.0
    %6350 = vmatprep.subr.mxu0 0.0
    %6351 = vmatpush1.xpose.msra.mxu0 0.0
    %6352 = vmatprep.subr.mxu0 0.0
    %6353 = vmatpush1.xpose.msra.mxu0 0.0
    %6354 = vmatprep.subr.mxu0 0.0
    %6355 = vmatpush1.xpose.msra.mxu0 0.0
    %6356 = vmatprep.subr.mxu0 0.0
    %6357 = vmatpush1.xpose.msra.mxu0 0.0
    %6358 = vmatprep.subr.mxu0 0.0
    %6359 = vmatpush1.xpose.msra.mxu0 0.0
    %6360 = vmatprep.subr.mxu0 0.0
    %6361 = vmatpush1.xpose.msra.mxu0 0.0
    %6362 = vmatprep.subr.mxu0 0.0
    %6363 = vmatpush1.xpose.msra.mxu0 0.0
    %6364 = vmatprep.subr.mxu0 0.0
    %6365 = vmatpush1.xpose.msra.mxu0 0.0
    %6366 = vmatprep.subr.mxu0 0.0
    %6367 = vmatpush1.xpose.msra.mxu0 0.0
    %6368 = vmatprep.subr.mxu0 0.0
    %6369 = vmatpush1.xpose.msra.mxu0 0.0
    %6370 = vmatprep.subr.mxu0 0.0
    %6371 = vmatpush1.xpose.msra.mxu0 0.0
    %6372 = vmatprep.subr.mxu0 0.0
    %6373 = vmatpush1.xpose.msra.mxu0 0.0
    %6374 = vmatprep.subr.mxu0 0.0
    %6375 = vmatpush1.xpose.msra.mxu0 0.0
    %6376 = vmatprep.subr.mxu0 0.0
    %6377 = vmatpush1.xpose.msra.mxu0 0.0
    %6378 = vmatprep.subr.mxu0 0.0
    %6379 = vmatpush1.xpose.msra.mxu0 0.0
    %6380 = vmatprep.subr.mxu0 0.0
    %6381 = vmatpush1.xpose.msra.mxu0 0.0
    %6382 = vmatprep.subr.mxu0 0.0
    %6383 = vmatpush1.xpose.msra.mxu0 0.0
    %6384 = vmatprep.subr.mxu0 0.0
    %6385 = vmatpush1.xpose.msra.mxu0 0.0
    %6386 = vmatprep.subr.mxu0 0.0
    %6387 = vmatpush1.xpose.msra.mxu0 0.0
    %6388 = vmatprep.subr.mxu0 0.0
    %6389 = vmatpush1.xpose.msra.mxu0 0.0
    %6390 = vmatprep.subr.mxu0 0.0
    %6391 = vmatpush1.xpose.msra.mxu0 0.0
    %6392 = vmatprep.subr.mxu0 0.0
    %6393 = vmatpush1.xpose.msra.mxu0 0.0
    %6394 = vmatprep.subr.mxu0 0.0
    %6395 = vmatpush1.xpose.msra.mxu0 0.0
    %6396 = vmatprep.subr.mxu0 0.0
    %6397 = vmatpush1.xpose.msra.mxu0 0.0
    %6398 = vmatprep.subr.mxu0 0.0
    %6399 = vmatpush1.xpose.msra.mxu0 0.0
    %6400 = vmatprep.subr.mxu0 0.0
    %6401 = vmatpush1.xpose.msra.mxu0 0.0
    %6402 = vmatprep.subr.mxu0 0.0
    %6403 = vmatpush1.xpose.msra.mxu0 0.0
    %6404 = vmatprep.subr.mxu0 0.0
    %6405 = vmatpush1.xpose.msra.mxu0 0.0
    %6406 = vmatprep.subr.mxu0 0.0
    %6407 = vmatpush1.xpose.msra.mxu0 0.0
    %6408 = vmatprep.mubr.f32.mxu0 0.0
    %6409 = vmatmul.mubr.f32.gmra.mrb[0].mxu0 %v6338
    %v6410 = vpop.f32.mrb[0].mxu0
    %v6411 = vadd.f32 %v95, %v6410
    %v6412 = vpop.f32.mrb[0].mxu0
    %6413 = vdwg.mxu0
    %v6414 = vsel %vm2056, %v6411, -inf
    %6415 = vmax.xlane.f32.xlu0 %v6414
    %v6416 = vpop.xlane.xlu0 %6415
    %v6417 = vsub.f32 %v6411, %v6416
    %v6418 = vmul.f32 %v6417, 1.442695
    %v6419 = vpow.pop %v6418
    %v6420 = vsel %vm2056, %v6419, 0.0
    %6421 = vadd.xlane.f32.xlu0 %v6420
    %v6422 = vpop.xlane.xlu0 %6421
    %v6423 = vrcp.pop %v6422
    %v6424 = vmul.f32 %v6422, %v6423
    %v6425 = vsub.f32 2.0, %v6424
    %v6426 = vmul.f32 %v6423, %v6425
    %v6427 = vmul.f32 %v6419, %v6426
    %6428 = vrot.lane.b32.xlu0 %v6336, 96
    %v6429 = vpop.permute.xlu0 %6428
    %6430 = vrot.lane.b32.xlu0 %v6335, 96
    %v6431 = vpop.permute.xlu0 %6430
    %v6434 = vsel %vm2056, %v6427, 0
    %v6436 = vsel %vm2079, %v6431, 0
    %6438 = vmatprep.subr.mxu0 0.0
    %6439 = vmatpush1.msra.mxu0 %v6429
    %6440 = vmatprep.subr.mxu0 0.0
    %6441 = vmatpush1.msra.mxu0 %v6436
    %6442 = vmatprep.subr.mxu0 0.0
    %6443 = vmatpush1.msra.mxu0 0.0
    %6444 = vmatprep.subr.mxu0 0.0
    %6445 = vmatpush1.msra.mxu0 0.0
    %6446 = vmatprep.subr.mxu0 0.0
    %6447 = vmatpush1.msra.mxu0 0.0
    %6448 = vmatprep.subr.mxu0 0.0
    %6449 = vmatpush1.msra.mxu0 0.0
    %6450 = vmatprep.subr.mxu0 0.0
    %6451 = vmatpush1.msra.mxu0 0.0
    %6452 = vmatprep.subr.mxu0 0.0
    %6453 = vmatpush1.msra.mxu0 0.0
    %6454 = vmatprep.subr.mxu0 0.0
    %6455 = vmatpush1.msra.mxu0 0.0
    %6456 = vmatprep.subr.mxu0 0.0
    %6457 = vmatpush1.msra.mxu0 0.0
    %6458 = vmatprep.subr.mxu0 0.0
    %6459 = vmatpush1.msra.mxu0 0.0
    %6460 = vmatprep.subr.mxu0 0.0
    %6461 = vmatpush1.msra.mxu0 0.0
    %6462 = vmatprep.subr.mxu0 0.0
    %6463 = vmatpush1.msra.mxu0 0.0
    %6464 = vmatprep.subr.mxu0 0.0
    %6465 = vmatpush1.msra.mxu0 0.0
    %6466 = vmatprep.subr.mxu0 0.0
    %6467 = vmatpush1.msra.mxu0 0.0
    %6468 = vmatprep.subr.mxu0 0.0
    %6469 = vmatpush1.msra.mxu0 0.0
    %6470 = vmatprep.subr.mxu0 0.0
    %6471 = vmatpush1.msra.mxu0 0.0
    %6472 = vmatprep.subr.mxu0 0.0
    %6473 = vmatpush1.msra.mxu0 0.0
    %6474 = vmatprep.subr.mxu0 0.0
    %6475 = vmatpush1.msra.mxu0 0.0
    %6476 = vmatprep.subr.mxu0 0.0
    %6477 = vmatpush1.msra.mxu0 0.0
    %6478 = vmatprep.subr.mxu0 0.0
    %6479 = vmatpush1.msra.mxu0 0.0
    %6480 = vmatprep.subr.mxu0 0.0
    %6481 = vmatpush1.msra.mxu0 0.0
    %6482 = vmatprep.subr.mxu0 0.0
    %6483 = vmatpush1.msra.mxu0 0.0
    %6484 = vmatprep.subr.mxu0 0.0
    %6485 = vmatpush1.msra.mxu0 0.0
    %6486 = vmatprep.subr.mxu0 0.0
    %6487 = vmatpush1.msra.mxu0 0.0
    %6488 = vmatprep.subr.mxu0 0.0
    %6489 = vmatpush1.msra.mxu0 0.0
    %6490 = vmatprep.subr.mxu0 0.0
    %6491 = vmatpush1.msra.mxu0 0.0
    %6492 = vmatprep.subr.mxu0 0.0
    %6493 = vmatpush1.msra.mxu0 0.0
    %6494 = vmatprep.subr.mxu0 0.0
    %6495 = vmatpush1.msra.mxu0 0.0
    %6496 = vmatprep.subr.mxu0 0.0
    %6497 = vmatpush1.msra.mxu0 0.0
    %6498 = vmatprep.subr.mxu0 0.0
    %6499 = vmatpush1.msra.mxu0 0.0
    %6500 = vmatprep.subr.mxu0 0.0
    %6501 = vmatpush1.msra.mxu0 0.0
    %6502 = vmatprep.mubr.f32.mxu0 0.0
    %6503 = vmatmul.mubr.f32.gmra.mrb[0].mxu0 %v6434
    %v6504 = vpop.f32.mrb[0].mxu0
    %v6505 = vadd.f32 0.0, %v6504
    %v6506 = vpop.f32.mrb[0].mxu0
    %6507 = vdwg.mxu0
    %6508 = vrot.lane.b32.xlu0 %v5509, 120
    %v6509 = vpop.permute.xlu0 %6508
    %6510 = vrot.lane.b32.xlu0 %v6336, 120
    %v6511 = vpop.permute.xlu0 %6510
    %6512 = vrot.lane.b32.xlu0 %v6335, 120
    %v6513 = vpop.permute.xlu0 %6512
    %v6514 = vsel %vm256, %v6509, 0
    %v6516 = vsel %vm256, %v6511, 0
    %v6518 = vsel %vm256, %v6513, 0
    %6520 = vmatprep.subr.mxu0 0.0
    %6521 = vmatpush1.xpose.msra.mxu0 %v6516
    %6522 = vmatprep.subr.mxu0 0.0
    %6523 = vmatpush1.xpose.msra.mxu0 %v6518
    %6524 = vmatprep.subr.mxu0 0.0
    %6525 = vmatpush1.xpose.msra.mxu0 0.0
    %6526 = vmatprep.subr.mxu0 0.0
    %6527 = vmatpush1.xpose.msra.mxu0 0.0
    %6528 = vmatprep.subr.mxu0 0.0
    %6529 = vmatpush1.xpose.msra.mxu0 0.0
    %6530 = vmatprep.subr.mxu0 0.0
    %6531 = vmatpush1.xpose.msra.mxu0 0.0
    %6532 = vmatprep.subr.mxu0 0.0
    %6533 = vmatpush1.xpose.msra.mxu0 0.0
    %6534 = vmatprep.subr.mxu0 0.0
    %6535 = vmatpush1.xpose.msra.mxu0 0.0
    %6536 = vmatprep.subr.mxu0 0.0
    %6537 = vmatpush1.xpose.msra.mxu0 0.0
    %6538 = vmatprep.subr.mxu0 0.0
    %6539 = vmatpush1.xpose.msra.mxu0 0.0
    %6540 = vmatprep.subr.mxu0 0.0
    %6541 = vmatpush1.xpose.msra.mxu0 0.0
    %6542 = vmatprep.subr.mxu0 0.0
    %6543 = vmatpush1.xpose.msra.mxu0 0.0
    %6544 = vmatprep.subr.mxu0 0.0
    %6545 = vmatpush1.xpose.msra.mxu0 0.0
    %6546 = vmatprep.subr.mxu0 0.0
    %6547 = vmatpush1.xpose.msra.mxu0 0.0
    %6548 = vmatprep.subr.mxu0 0.0
    %6549 = vmatpush1.xpose.msra.mxu0 0.0
    %6550 = vmatprep.subr.mxu0 0.0
    %6551 = vmatpush1.xpose.msra.mxu0 0.0
    %6552 = vmatprep.subr.mxu0 0.0
    %6553 = vmatpush1.xpose.msra.mxu0 0.0
    %6554 = vmatprep.subr.mxu0 0.0
    %6555 = vmatpush1.xpose.msra.mxu0 0.0
    %6556 = vmatprep.subr.mxu0 0.0
    %6557 = vmatpush1.xpose.msra.mxu0 0.0
    %6558 = vmatprep.subr.mxu0 0.0
    %6559 = vmatpush1.xpose.msra.mxu0 0.0
    %6560 = vmatprep.subr.mxu0 0.0
    %6561 = vmatpush1.xpose.msra.mxu0 0.0
    %6562 = vmatprep.subr.mxu0 0.0
    %6563 = vmatpush1.xpose.msra.mxu0 0.0
    %6564 = vmatprep.subr.mxu0 0.0
    %6565 = vmatpush1.xpose.msra.mxu0 0.0
    %6566 = vmatprep.subr.mxu0 0.0
    %6567 = vmatpush1.xpose.msra.mxu0 0.0
    %6568 = vmatprep.subr.mxu0 0.0
    %6569 = vmatpush1.xpose.msra.mxu0 0.0
    %6570 = vmatprep.subr.mxu0 0.0
    %6571 = vmatpush1.xpose.msra.mxu0 0.0
    %6572 = vmatprep.subr.mxu0 0.0
    %6573 = vmatpush1.xpose.msra.mxu0 0.0
    %6574 = vmatprep.subr.mxu0 0.0
    %6575 = vmatpush1.xpose.msra.mxu0 0.0
    %6576 = vmatprep.subr.mxu0 0.0
    %6577 = vmatpush1.xpose.msra.mxu0 0.0
    %6578 = vmatprep.subr.mxu0 0.0
    %6579 = vmatpush1.xpose.msra.mxu0 0.0
    %6580 = vmatprep.subr.mxu0 0.0
    %6581 = vmatpush1.xpose.msra.mxu0 0.0
    %6582 = vmatprep.subr.mxu0 0.0
    %6583 = vmatpush1.xpose.msra.mxu0 0.0
    %6584 = vmatprep.mubr.f32.mxu0 0.0
    %6585 = vmatmul.mubr.f32.gmra.mrb[0].mxu0 %v6514
    %v6586 = vpop.f32.mrb[0].mxu0
    %v6587 = vadd.f32 %v95, %v6586
    %v6588 = vpop.f32.mrb[0].mxu0
    %6589 = vdwg.mxu0
    %v6590 = vsel %vm2056, %v6587, -inf
    %6591 = vmax.xlane.f32.xlu0 %v6590
    %v6592 = vpop.xlane.xlu0 %6591
    %v6593 = vsub.f32 %v6587, %v6592
    %v6594 = vmul.f32 %v6593, 1.442695
    %v6595 = vpow.pop %v6594
    %v6596 = vsel %vm2056, %v6595, 0.0
    %6597 = vadd.xlane.f32.xlu0 %v6596
    %v6598 = vpop.xlane.xlu0 %6597
    %v6599 = vrcp.pop %v6598
    %v6600 = vmul.f32 %v6598, %v6599
    %v6601 = vsub.f32 2.0, %v6600
    %v6602 = vmul.f32 %v6599, %v6601
    %v6603 = vmul.f32 %v6595, %v6602
    %6604 = vrot.lane.b32.xlu0 %v6336, 88
    %v6605 = vpop.permute.xlu0 %6604
    %6606 = vrot.lane.b32.xlu0 %v6335, 88
    %v6607 = vpop.permute.xlu0 %6606
    %v6610 = vsel %vm2056, %v6603, 0
    %v6612 = vsel %vm2079, %v6607, 0
    %6614 = vmatprep.subr.mxu0 0.0
    %6615 = vmatpush1.msra.mxu0 %v6605
    %6616 = vmatprep.subr.mxu0 0.0
    %6617 = vmatpush1.msra.mxu0 %v6612
    %6618 = vmatprep.subr.mxu0 0.0
    %6619 = vmatpush1.msra.mxu0 0.0
    %6620 = vmatprep.subr.mxu0 0.0
    %6621 = vmatpush1.msra.mxu0 0.0
    %6622 = vmatprep.subr.mxu0 0.0
    %6623 = vmatpush1.msra.mxu0 0.0
    %6624 = vmatprep.subr.mxu0 0.0
    %6625 = vmatpush1.msra.mxu0 0.0
    %6626 = vmatprep.subr.mxu0 0.0
    %6627 = vmatpush1.msra.mxu0 0.0
    %6628 = vmatprep.subr.mxu0 0.0
    %6629 = vmatpush1.msra.mxu0 0.0
    %6630 = vmatprep.subr.mxu0 0.0
    %6631 = vmatpush1.msra.mxu0 0.0
    %6632 = vmatprep.subr.mxu0 0.0
    %6633 = vmatpush1.msra.mxu0 0.0
    %6634 = vmatprep.subr.mxu0 0.0
    %6635 = vmatpush1.msra.mxu0 0.0
    %6636 = vmatprep.subr.mxu0 0.0
    %6637 = vmatpush1.msra.mxu0 0.0
    %6638 = vmatprep.subr.mxu0 0.0
    %6639 = vmatpush1.msra.mxu0 0.0
    %6640 = vmatprep.subr.mxu0 0.0
    %6641 = vmatpush1.msra.mxu0 0.0
    %6642 = vmatprep.subr.mxu0 0.0
    %6643 = vmatpush1.msra.mxu0 0.0
    %6644 = vmatprep.subr.mxu0 0.0
    %6645 = vmatpush1.msra.mxu0 0.0
    %6646 = vmatprep.subr.mxu0 0.0
    %6647 = vmatpush1.msra.mxu0 0.0
    %6648 = vmatprep.subr.mxu0 0.0
    %6649 = vmatpush1.msra.mxu0 0.0
    %6650 = vmatprep.subr.mxu0 0.0
    %6651 = vmatpush1.msra.mxu0 0.0
    %6652 = vmatprep.subr.mxu0 0.0
    %6653 = vmatpush1.msra.mxu0 0.0
    %6654 = vmatprep.subr.mxu0 0.0
    %6655 = vmatpush1.msra.mxu0 0.0
    %6656 = vmatprep.subr.mxu0 0.0
    %6657 = vmatpush1.msra.mxu0 0.0
    %6658 = vmatprep.subr.mxu0 0.0
    %6659 = vmatpush1.msra.mxu0 0.0
    %6660 = vmatprep.subr.mxu0 0.0
    %6661 = vmatpush1.msra.mxu0 0.0
    %6662 = vmatprep.subr.mxu0 0.0
    %6663 = vmatpush1.msra.mxu0 0.0
    %6664 = vmatprep.subr.mxu0 0.0
    %6665 = vmatpush1.msra.mxu0 0.0
    %6666 = vmatprep.subr.mxu0 0.0
    %6667 = vmatpush1.msra.mxu0 0.0
    %6668 = vmatprep.subr.mxu0 0.0
    %6669 = vmatpush1.msra.mxu0 0.0
    %6670 = vmatprep.subr.mxu0 0.0
    %6671 = vmatpush1.msra.mxu0 0.0
    %6672 = vmatprep.subr.mxu0 0.0
    %6673 = vmatpush1.msra.mxu0 0.0
    %6674 = vmatprep.subr.mxu0 0.0
    %6675 = vmatpush1.msra.mxu0 0.0
    %6676 = vmatprep.subr.mxu0 0.0
    %6677 = vmatpush1.msra.mxu0 0.0
    %6678 = vmatprep.mubr.f32.mxu0 0.0
    %6679 = vmatmul.mubr.f32.gmra.mrb[0].mxu0 %v6610
    %v6680 = vpop.f32.mrb[0].mxu0
    %v6681 = vadd.f32 0.0, %v6680
    %v6682 = vpop.f32.mrb[0].mxu0
    %6683 = vdwg.mxu0
    %6684 = vrot.lane.b32.xlu0 %v5509, 112
    %v6685 = vpop.permute.xlu0 %6684
    %6686 = vrot.lane.b32.xlu0 %v6336, 112
    %v6687 = vpop.permute.xlu0 %6686
    %6688 = vrot.lane.b32.xlu0 %v6335, 112
    %v6689 = vpop.permute.xlu0 %6688
    %v6690 = vsel %vm256, %v6685, 0
    %v6692 = vsel %vm256, %v6687, 0
    %v6694 = vsel %vm256, %v6689, 0
    %6696 = vmatprep.subr.mxu0 0.0
    %6697 = vmatpush1.xpose.msra.mxu0 %v6692
    %6698 = vmatprep.subr.mxu0 0.0
    %6699 = vmatpush1.xpose.msra.mxu0 %v6694
    %6700 = vmatprep.subr.mxu0 0.0
    %6701 = vmatpush1.xpose.msra.mxu0 0.0
    %6702 = vmatprep.subr.mxu0 0.0
    %6703 = vmatpush1.xpose.msra.mxu0 0.0
    %6704 = vmatprep.subr.mxu0 0.0
    %6705 = vmatpush1.xpose.msra.mxu0 0.0
    %6706 = vmatprep.subr.mxu0 0.0
    %6707 = vmatpush1.xpose.msra.mxu0 0.0
    %6708 = vmatprep.subr.mxu0 0.0
    %6709 = vmatpush1.xpose.msra.mxu0 0.0
    %6710 = vmatprep.subr.mxu0 0.0
    %6711 = vmatpush1.xpose.msra.mxu0 0.0
    %6712 = vmatprep.subr.mxu0 0.0
    %6713 = vmatpush1.xpose.msra.mxu0 0.0
    %6714 = vmatprep.subr.mxu0 0.0
    %6715 = vmatpush1.xpose.msra.mxu0 0.0
    %6716 = vmatprep.subr.mxu0 0.0
    %6717 = vmatpush1.xpose.msra.mxu0 0.0
    %6718 = vmatprep.subr.mxu0 0.0
    %6719 = vmatpush1.xpose.msra.mxu0 0.0
    %6720 = vmatprep.subr.mxu0 0.0
    %6721 = vmatpush1.xpose.msra.mxu0 0.0
    %6722 = vmatprep.subr.mxu0 0.0
    %6723 = vmatpush1.xpose.msra.mxu0 0.0
    %6724 = vmatprep.subr.mxu0 0.0
    %6725 = vmatpush1.xpose.msra.mxu0 0.0
    %6726 = vmatprep.subr.mxu0 0.0
    %6727 = vmatpush1.xpose.msra.mxu0 0.0
    %6728 = vmatprep.subr.mxu0 0.0
    %6729 = vmatpush1.xpose.msra.mxu0 0.0
    %6730 = vmatprep.subr.mxu0 0.0
    %6731 = vmatpush1.xpose.msra.mxu0 0.0
    %6732 = vmatprep.subr.mxu0 0.0
    %6733 = vmatpush1.xpose.msra.mxu0 0.0
    %6734 = vmatprep.subr.mxu0 0.0
    %6735 = vmatpush1.xpose.msra.mxu0 0.0
    %6736 = vmatprep.subr.mxu0 0.0
    %6737 = vmatpush1.xpose.msra.mxu0 0.0
    %6738 = vmatprep.subr.mxu0 0.0
    %6739 = vmatpush1.xpose.msra.mxu0 0.0
    %6740 = vmatprep.subr.mxu0 0.0
    %6741 = vmatpush1.xpose.msra.mxu0 0.0
    %6742 = vmatprep.subr.mxu0 0.0
    %6743 = vmatpush1.xpose.msra.mxu0 0.0
    %6744 = vmatprep.subr.mxu0 0.0
    %6745 = vmatpush1.xpose.msra.mxu0 0.0
    %6746 = vmatprep.subr.mxu0 0.0
    %6747 = vmatpush1.xpose.msra.mxu0 0.0
    %6748 = vmatprep.subr.mxu0 0.0
    %6749 = vmatpush1.xpose.msra.mxu0 0.0
    %6750 = vmatprep.subr.mxu0 0.0
    %6751 = vmatpush1.xpose.msra.mxu0 0.0
    %6752 = vmatprep.subr.mxu0 0.0
    %6753 = vmatpush1.xpose.msra.mxu0 0.0
    %6754 = vmatprep.subr.mxu0 0.0
    %6755 = vmatpush1.xpose.msra.mxu0 0.0
    %6756 = vmatprep.subr.mxu0 0.0
    %6757 = vmatpush1.xpose.msra.mxu0 0.0
    %6758 = vmatprep.subr.mxu0 0.0
    %6759 = vmatpush1.xpose.msra.mxu0 0.0
    %6760 = vmatprep.mubr.f32.mxu0 0.0
    %6761 = vmatmul.mubr.f32.gmra.mrb[0].mxu0 %v6690
    %v6762 = vpop.f32.mrb[0].mxu0
    %v6763 = vadd.f32 %v95, %v6762
    %v6764 = vpop.f32.mrb[0].mxu0
    %6765 = vdwg.mxu0
    %v6766 = vsel %vm2056, %v6763, -inf
    %6767 = vmax.xlane.f32.xlu0 %v6766
    %v6768 = vpop.xlane.xlu0 %6767
    %v6769 = vsub.f32 %v6763, %v6768
    %v6770 = vmul.f32 %v6769, 1.442695
    %v6771 = vpow.pop %v6770
    %v6772 = vsel %vm2056, %v6771, 0.0
    %6773 = vadd.xlane.f32.xlu0 %v6772
    %v6774 = vpop.xlane.xlu0 %6773
    %v6775 = vrcp.pop %v6774
    %v6776 = vmul.f32 %v6774, %v6775
    %v6777 = vsub.f32 2.0, %v6776
    %v6778 = vmul.f32 %v6775, %v6777
    %v6779 = vmul.f32 %v6771, %v6778
    %6780 = vrot.lane.b32.xlu0 %v6336, 80
    %v6781 = vpop.permute.xlu0 %6780
    %6782 = vrot.lane.b32.xlu0 %v6335, 80
    %v6783 = vpop.permute.xlu0 %6782
    %v6786 = vsel %vm2056, %v6779, 0
    %v6788 = vsel %vm2079, %v6783, 0
    %6790 = vmatprep.subr.mxu0 0.0
    %6791 = vmatpush1.msra.mxu0 %v6781
    %6792 = vmatprep.subr.mxu0 0.0
    %6793 = vmatpush1.msra.mxu0 %v6788
    %6794 = vmatprep.subr.mxu0 0.0
    %6795 = vmatpush1.msra.mxu0 0.0
    %6796 = vmatprep.subr.mxu0 0.0
    %6797 = vmatpush1.msra.mxu0 0.0
    %6798 = vmatprep.subr.mxu0 0.0
    %6799 = vmatpush1.msra.mxu0 0.0
    %6800 = vmatprep.subr.mxu0 0.0
    %6801 = vmatpush1.msra.mxu0 0.0
    %6802 = vmatprep.subr.mxu0 0.0
    %6803 = vmatpush1.msra.mxu0 0.0
    %6804 = vmatprep.subr.mxu0 0.0
    %6805 = vmatpush1.msra.mxu0 0.0
    %6806 = vmatprep.subr.mxu0 0.0
    %6807 = vmatpush1.msra.mxu0 0.0
    %6808 = vmatprep.subr.mxu0 0.0
    %6809 = vmatpush1.msra.mxu0 0.0
    %6810 = vmatprep.subr.mxu0 0.0
    %6811 = vmatpush1.msra.mxu0 0.0
    %6812 = vmatprep.subr.mxu0 0.0
    %6813 = vmatpush1.msra.mxu0 0.0
    %6814 = vmatprep.subr.mxu0 0.0
    %6815 = vmatpush1.msra.mxu0 0.0
    %6816 = vmatprep.subr.mxu0 0.0
    %6817 = vmatpush1.msra.mxu0 0.0
    %6818 = vmatprep.subr.mxu0 0.0
    %6819 = vmatpush1.msra.mxu0 0.0
    %6820 = vmatprep.subr.mxu0 0.0
    %6821 = vmatpush1.msra.mxu0 0.0
    %6822 = vmatprep.subr.mxu0 0.0
    %6823 = vmatpush1.msra.mxu0 0.0
    %6824 = vmatprep.subr.mxu0 0.0
    %6825 = vmatpush1.msra.mxu0 0.0
    %6826 = vmatprep.subr.mxu0 0.0
    %6827 = vmatpush1.msra.mxu0 0.0
    %6828 = vmatprep.subr.mxu0 0.0
    %6829 = vmatpush1.msra.mxu0 0.0
    %6830 = vmatprep.subr.mxu0 0.0
    %6831 = vmatpush1.msra.mxu0 0.0
    %6832 = vmatprep.subr.mxu0 0.0
    %6833 = vmatpush1.msra.mxu0 0.0
    %6834 = vmatprep.subr.mxu0 0.0
    %6835 = vmatpush1.msra.mxu0 0.0
    %6836 = vmatprep.subr.mxu0 0.0
    %6837 = vmatpush1.msra.mxu0 0.0
    %6838 = vmatprep.subr.mxu0 0.0
    %6839 = vmatpush1.msra.mxu0 0.0
    %6840 = vmatprep.subr.mxu0 0.0
    %6841 = vmatpush1.msra.mxu0 0.0
    %6842 = vmatprep.subr.mxu0 0.0
    %6843 = vmatpush1.msra.mxu0 0.0
    %6844 = vmatprep.subr.mxu0 0.0
    %6845 = vmatpush1.msra.mxu0 0.0
    %6846 = vmatprep.subr.mxu0 0.0
    %6847 = vmatpush1.msra.mxu0 0.0
    %6848 = vmatprep.subr.mxu0 0.0
    %6849 = vmatpush1.msra.mxu0 0.0
    %6850 = vmatprep.subr.mxu0 0.0
    %6851 = vmatpush1.msra.mxu0 0.0
    %6852 = vmatprep.subr.mxu0 0.0
    %6853 = vmatpush1.msra.mxu0 0.0
    %6854 = vmatprep.mubr.f32.mxu0 0.0
    %6855 = vmatmul.mubr.f32.gmra.mrb[0].mxu0 %v6786
    %v6856 = vpop.f32.mrb[0].mxu0
    %v6857 = vadd.f32 0.0, %v6856
    %v6858 = vpop.f32.mrb[0].mxu0
    %6859 = vdwg.mxu0
    %6860 = vrot.lane.b32.xlu0 %v5509, 104
    %v6861 = vpop.permute.xlu0 %6860
    %6862 = vrot.lane.b32.xlu0 %v6336, 104
    %v6863 = vpop.permute.xlu0 %6862
    %6864 = vrot.lane.b32.xlu0 %v6335, 104
    %v6865 = vpop.permute.xlu0 %6864
    %v6866 = vsel %vm256, %v6861, 0
    %v6868 = vsel %vm256, %v6863, 0
    %v6870 = vsel %vm256, %v6865, 0
    %6872 = vmatprep.subr.mxu0 0.0
    %6873 = vmatpush1.xpose.msra.mxu0 %v6868
    %6874 = vmatprep.subr.mxu0 0.0
    %6875 = vmatpush1.xpose.msra.mxu0 %v6870
    %6876 = vmatprep.subr.mxu0 0.0
    %6877 = vmatpush1.xpose.msra.mxu0 0.0
    %6878 = vmatprep.subr.mxu0 0.0
    %6879 = vmatpush1.xpose.msra.mxu0 0.0
    %6880 = vmatprep.subr.mxu0 0.0
    %6881 = vmatpush1.xpose.msra.mxu0 0.0
    %6882 = vmatprep.subr.mxu0 0.0
    %6883 = vmatpush1.xpose.msra.mxu0 0.0
    %6884 = vmatprep.subr.mxu0 0.0
    %6885 = vmatpush1.xpose.msra.mxu0 0.0
    %6886 = vmatprep.subr.mxu0 0.0
    %6887 = vmatpush1.xpose.msra.mxu0 0.0
    %6888 = vmatprep.subr.mxu0 0.0
    %6889 = vmatpush1.xpose.msra.mxu0 0.0
    %6890 = vmatprep.subr.mxu0 0.0
    %6891 = vmatpush1.xpose.msra.mxu0 0.0
    %6892 = vmatprep.subr.mxu0 0.0
    %6893 = vmatpush1.xpose.msra.mxu0 0.0
    %6894 = vmatprep.subr.mxu0 0.0
    %6895 = vmatpush1.xpose.msra.mxu0 0.0
    %6896 = vmatprep.subr.mxu0 0.0
    %6897 = vmatpush1.xpose.msra.mxu0 0.0
    %6898 = vmatprep.subr.mxu0 0.0
    %6899 = vmatpush1.xpose.msra.mxu0 0.0
    %6900 = vmatprep.subr.mxu0 0.0
    %6901 = vmatpush1.xpose.msra.mxu0 0.0
    %6902 = vmatprep.subr.mxu0 0.0
    %6903 = vmatpush1.xpose.msra.mxu0 0.0
    %6904 = vmatprep.subr.mxu0 0.0
    %6905 = vmatpush1.xpose.msra.mxu0 0.0
    %6906 = vmatprep.subr.mxu0 0.0
    %6907 = vmatpush1.xpose.msra.mxu0 0.0
    %6908 = vmatprep.subr.mxu0 0.0
    %6909 = vmatpush1.xpose.msra.mxu0 0.0
    %6910 = vmatprep.subr.mxu0 0.0
    %6911 = vmatpush1.xpose.msra.mxu0 0.0
    %6912 = vmatprep.subr.mxu0 0.0
    %6913 = vmatpush1.xpose.msra.mxu0 0.0
    %6914 = vmatprep.subr.mxu0 0.0
    %6915 = vmatpush1.xpose.msra.mxu0 0.0
    %6916 = vmatprep.subr.mxu0 0.0
    %6917 = vmatpush1.xpose.msra.mxu0 0.0
    %6918 = vmatprep.subr.mxu0 0.0
    %6919 = vmatpush1.xpose.msra.mxu0 0.0
    %6920 = vmatprep.subr.mxu0 0.0
    %6921 = vmatpush1.xpose.msra.mxu0 0.0
    %6922 = vmatprep.subr.mxu0 0.0
    %6923 = vmatpush1.xpose.msra.mxu0 0.0
    %6924 = vmatprep.subr.mxu0 0.0
    %6925 = vmatpush1.xpose.msra.mxu0 0.0
    %6926 = vmatprep.subr.mxu0 0.0
    %6927 = vmatpush1.xpose.msra.mxu0 0.0
    %6928 = vmatprep.subr.mxu0 0.0
    %6929 = vmatpush1.xpose.msra.mxu0 0.0
    %6930 = vmatprep.subr.mxu0 0.0
    %6931 = vmatpush1.xpose.msra.mxu0 0.0
    %6932 = vmatprep.subr.mxu0 0.0
    %6933 = vmatpush1.xpose.msra.mxu0 0.0
    %6934 = vmatprep.subr.mxu0 0.0
    %6935 = vmatpush1.xpose.msra.mxu0 0.0
    %6936 = vmatprep.mubr.f32.mxu0 0.0
    %6937 = vmatmul.mubr.f32.gmra.mrb[0].mxu0 %v6866
    %v6938 = vpop.f32.mrb[0].mxu0
    %v6939 = vadd.f32 %v95, %v6938
    %v6940 = vpop.f32.mrb[0].mxu0
    %6941 = vdwg.mxu0
    %v6942 = vsel %vm2056, %v6939, -inf
    %6943 = vmax.xlane.f32.xlu0 %v6942
    %v6944 = vpop.xlane.xlu0 %6943
    %v6945 = vsub.f32 %v6939, %v6944
    %v6946 = vmul.f32 %v6945, 1.442695
    %v6947 = vpow.pop %v6946
    %v6948 = vsel %vm2056, %v6947, 0.0
    %6949 = vadd.xlane.f32.xlu0 %v6948
    %v6950 = vpop.xlane.xlu0 %6949
    %v6951 = vrcp.pop %v6950
    %v6952 = vmul.f32 %v6950, %v6951
    %v6953 = vsub.f32 2.0, %v6952
    %v6954 = vmul.f32 %v6951, %v6953
    %v6955 = vmul.f32 %v6947, %v6954
    %6956 = vrot.lane.b32.xlu0 %v6336, 72
    %v6957 = vpop.permute.xlu0 %6956
    %6958 = vrot.lane.b32.xlu0 %v6335, 72
    %v6959 = vpop.permute.xlu0 %6958
    %v6962 = vsel %vm2056, %v6955, 0
    %v6964 = vsel %vm2079, %v6959, 0
    %6966 = vmatprep.subr.mxu0 0.0
    %6967 = vmatpush1.msra.mxu0 %v6957
    %6968 = vmatprep.subr.mxu0 0.0
    %6969 = vmatpush1.msra.mxu0 %v6964
    %6970 = vmatprep.subr.mxu0 0.0
    %6971 = vmatpush1.msra.mxu0 0.0
    %6972 = vmatprep.subr.mxu0 0.0
    %6973 = vmatpush1.msra.mxu0 0.0
    %6974 = vmatprep.subr.mxu0 0.0
    %6975 = vmatpush1.msra.mxu0 0.0
    %6976 = vmatprep.subr.mxu0 0.0
    %6977 = vmatpush1.msra.mxu0 0.0
    %6978 = vmatprep.subr.mxu0 0.0
    %6979 = vmatpush1.msra.mxu0 0.0
    %6980 = vmatprep.subr.mxu0 0.0
    %6981 = vmatpush1.msra.mxu0 0.0
    %6982 = vmatprep.subr.mxu0 0.0
    %6983 = vmatpush1.msra.mxu0 0.0
    %6984 = vmatprep.subr.mxu0 0.0
    %6985 = vmatpush1.msra.mxu0 0.0
    %6986 = vmatprep.subr.mxu0 0.0
    %6987 = vmatpush1.msra.mxu0 0.0
    %6988 = vmatprep.subr.mxu0 0.0
    %6989 = vmatpush1.msra.mxu0 0.0
    %6990 = vmatprep.subr.mxu0 0.0
    %6991 = vmatpush1.msra.mxu0 0.0
    %6992 = vmatprep.subr.mxu0 0.0
    %6993 = vmatpush1.msra.mxu0 0.0
    %6994 = vmatprep.subr.mxu0 0.0
    %6995 = vmatpush1.msra.mxu0 0.0
    %6996 = vmatprep.subr.mxu0 0.0
    %6997 = vmatpush1.msra.mxu0 0.0
    %6998 = vmatprep.subr.mxu0 0.0
    %6999 = vmatpush1.msra.mxu0 0.0
    %7000 = vmatprep.subr.mxu0 0.0
    %7001 = vmatpush1.msra.mxu0 0.0
    %7002 = vmatprep.subr.mxu0 0.0
    %7003 = vmatpush1.msra.mxu0 0.0
    %7004 = vmatprep.subr.mxu0 0.0
    %7005 = vmatpush1.msra.mxu0 0.0
    %7006 = vmatprep.subr.mxu0 0.0
    %7007 = vmatpush1.msra.mxu0 0.0
    %7008 = vmatprep.subr.mxu0 0.0
    %7009 = vmatpush1.msra.mxu0 0.0
    %7010 = vmatprep.subr.mxu0 0.0
    %7011 = vmatpush1.msra.mxu0 0.0
    %7012 = vmatprep.subr.mxu0 0.0
    %7013 = vmatpush1.msra.mxu0 0.0
    %7014 = vmatprep.subr.mxu0 0.0
    %7015 = vmatpush1.msra.mxu0 0.0
    %7016 = vmatprep.subr.mxu0 0.0
    %7017 = vmatpush1.msra.mxu0 0.0
    %7018 = vmatprep.subr.mxu0 0.0
    %7019 = vmatpush1.msra.mxu0 0.0
    %7020 = vmatprep.subr.mxu0 0.0
    %7021 = vmatpush1.msra.mxu0 0.0
    %7022 = vmatprep.subr.mxu0 0.0
    %7023 = vmatpush1.msra.mxu0 0.0
    %7024 = vmatprep.subr.mxu0 0.0
    %7025 = vmatpush1.msra.mxu0 0.0
    %7026 = vmatprep.subr.mxu0 0.0
    %7027 = vmatpush1.msra.mxu0 0.0
    %7028 = vmatprep.subr.mxu0 0.0
    %7029 = vmatpush1.msra.mxu0 0.0
    %7030 = vmatprep.mubr.f32.mxu0 0.0
    %7031 = vmatmul.mubr.f32.gmra.mrb[0].mxu0 %v6962
    %v7032 = vpop.f32.mrb[0].mxu0
    %v7033 = vadd.f32 0.0, %v7032
    %v7034 = vpop.f32.mrb[0].mxu0
    %7035 = vdwg.mxu0
    %7037 = vrot.lane.b32.xlu0 %v6681, 8
    %v7038 = vpop.permute.xlu0 %7037
    %7041 = vrot.lane.b32.xlu0 %v6857, 16
    %v7042 = vpop.permute.xlu0 %7041
    %7045 = vrot.lane.b32.xlu0 %v7033, 24
    %v7046 = vpop.permute.xlu0 %7045
    %v7048 = vsel %vm256, %v6505, %v7038
    %v7049 = vsel %vm938, %v7048, %v7042
    %v7050 = vsel %vm940, %v7049, %v7046
    %v7051 = vlaneseq
    %v7052 = vshrl.u32 %v7051, 7
    %v7053 = vsub.s32 0, %v7052
    %v7054 = vrot.slane %v5616, %v7053
    %v7056 = vsel %vm98, %v6332, 0
    %v7059 = vsel %vm98, %v7050, 0
    %7061 = vmatprep.subr.mxu0 0.0
    %7062 = vmatpush1.msra.mxu0 %v5612
    %7063 = vmatprep.subr.mxu0 0.0
    %7064 = vmatpush1.msra.mxu0 %v5613
    %7065 = vmatprep.subr.mxu0 0.0
    %7066 = vmatpush1.msra.mxu0 %v5614
    %7067 = vmatprep.subr.mxu0 0.0
    %7068 = vmatpush1.msra.mxu0 %v5615
    %7069 = vmatprep.subr.mxu0 0.0
    %7070 = vmatpush1.msra.mxu0 0.0
    %7071 = vmatprep.subr.mxu0 0.0
    %7072 = vmatpush1.msra.mxu0 0.0
    %7073 = vmatprep.subr.mxu0 0.0
    %7074 = vmatpush1.msra.mxu0 0.0
    %7075 = vmatprep.subr.mxu0 0.0
    %7076 = vmatpush1.msra.mxu0 0.0
    %7077 = vmatprep.subr.mxu0 0.0
    %7078 = vmatpush1.msra.mxu0 0.0
    %7079 = vmatprep.subr.mxu0 0.0
    %7080 = vmatpush1.msra.mxu0 0.0
    %7081 = vmatprep.subr.mxu0 0.0
    %7082 = vmatpush1.msra.mxu0 0.0
    %7083 = vmatprep.subr.mxu0 0.0
    %7084 = vmatpush1.msra.mxu0 0.0
    %7085 = vmatprep.subr.mxu0 0.0
    %7086 = vmatpush1.msra.mxu0 0.0
    %7087 = vmatprep.subr.mxu0 0.0
    %7088 = vmatpush1.msra.mxu0 0.0
    %7089 = vmatprep.subr.mxu0 0.0
    %7090 = vmatpush1.msra.mxu0 0.0
    %7091 = vmatprep.subr.mxu0 0.0
    %7092 = vmatpush1.msra.mxu0 0.0
    %7093 = vmatprep.subr.mxu0 0.0
    %7094 = vmatpush1.msra.mxu0 0.0
    %7095 = vmatprep.subr.mxu0 0.0
    %7096 = vmatpush1.msra.mxu0 0.0
    %7097 = vmatprep.subr.mxu0 0.0
    %7098 = vmatpush1.msra.mxu0 0.0
    %7099 = vmatprep.subr.mxu0 0.0
    %7100 = vmatpush1.msra.mxu0 0.0
    %7101 = vmatprep.subr.mxu0 0.0
    %7102 = vmatpush1.msra.mxu0 0.0
    %7103 = vmatprep.subr.mxu0 0.0
    %7104 = vmatpush1.msra.mxu0 0.0
    %7105 = vmatprep.subr.mxu0 0.0
    %7106 = vmatpush1.msra.mxu0 0.0
    %7107 = vmatprep.subr.mxu0 0.0
    %7108 = vmatpush1.msra.mxu0 0.0
    %7109 = vmatprep.subr.mxu0 0.0
    %7110 = vmatpush1.msra.mxu0 0.0
    %7111 = vmatprep.subr.mxu0 0.0
    %7112 = vmatpush1.msra.mxu0 0.0
    %7113 = vmatprep.subr.mxu0 0.0
    %7114 = vmatpush1.msra.mxu0 0.0
    %7115 = vmatprep.subr.mxu0 0.0
    %7116 = vmatpush1.msra.mxu0 0.0
    %7117 = vmatprep.subr.mxu0 0.0
    %7118 = vmatpush1.msra.mxu0 0.0
    %7119 = vmatprep.subr.mxu0 0.0
    %7120 = vmatpush1.msra.mxu0 0.0
    %7121 = vmatprep.subr.mxu0 0.0
    %7122 = vmatpush1.msra.mxu0 0.0
    %7123 = vmatprep.subr.mxu0 0.0
    %7124 = vmatpush1.msra.mxu0 0.0
    %7125 = vmatprep.mubr.f32.mxu0 0.0
    %7126 = vmatmul.mubr.f32.gmra.mrb[0].mxu0 %v7056
    %v7127 = vpop.f32.mrb[0].mxu0
    %v7128 = vadd.f32 %v7054, %v7127
    %v7129 = vpop.f32.mrb[0].mxu0
    %7130 = vmatprep.mubr.f32.mxu0 0.0
    %7131 = vmatmul.mubr.f32.gmra.mrb[0].mxu0 %v7059
    %v7132 = vpop.f32.mrb[0].mxu0
    %v7133 = vadd.f32 %v7054, %v7132
    %v7134 = vpop.f32.mrb[0].mxu0
    %7135 = vdwg.mxu0
    %v7136 = vadd.f32 %v5362, %v7128
    %v7137 = vadd.f32 %v5363, %v7133
    %v7138 = vsel %vm98, %v7136, 0.0
    %7139 = vadd.xlane.f32.xlu0 %v7138
    %v7140 = vpop.xlane.xlu0 %7139
    %v7141 = vsel %vm98, %v7137, 0.0
    %7142 = vadd.xlane.f32.xlu0 %v7141
    %v7143 = vpop.xlane.xlu0 %7142
    %v7144 = vmul.f32 %v7140, %v105
    %v7145 = vmul.f32 %v7143, %v105
    %v7146 = vsub.f32 %v7136, %v7144
    %v7147 = vsub.f32 %v7137, %v7145
    %v7148 = vmul.f32 %v7146, %v7146
    %v7149 = vmul.f32 %v7147, %v7147
    %v7150 = vsel %vm98, %v7148, 0.0
    %7151 = vadd.xlane.f32.xlu0 %v7150
    %v7152 = vpop.xlane.xlu0 %7151
    %v7153 = vsel %vm98, %v7149, 0.0
    %7154 = vadd.xlane.f32.xlu0 %v7153
    %v7155 = vpop.xlane.xlu0 %7154
    %v7156 = vmul.f32 %v7152, 0.032258064
    %v7157 = vmul.f32 %v7155, 0.032258064
    %v7158 = vrsqrt.pop %v7156
    %v7159 = vmul.f32 %v7156, %v7158
    %vm7160 = vcmp.eq.f32.partialorder %v7156, inf
    %v7161 = vsel %vm7160, %v7156, %v7159
    %vm7162 = vcmp.eq.f32.partialorder %v7156, 0.0
    %v7163 = vand.u32 %v7156, 2147483648
    %v7164 = vsel %vm7162, %v7163, %v7161
    %v7165 = vrsqrt.pop %v7157
    %v7166 = vmul.f32 %v7157, %v7165
    %vm7167 = vcmp.eq.f32.partialorder %v7157, inf
    %v7168 = vsel %vm7167, %v7157, %v7166
    %vm7169 = vcmp.eq.f32.partialorder %v7157, 0.0
    %v7170 = vand.u32 %v7157, 2147483648
    %v7171 = vsel %vm7169, %v7170, %v7168
    %v7172 = vlaneseq
    %v7173 = vshrl.u32 %v7172, 7
    %v7174 = vsub.s32 2, %v7173
    %v7175 = vrot.slane %v3750, %v7174
    %v7176 = vmul.f32 %v7175, %v7146
    %v7177 = vmul.f32 %v7175, %v7147
    %v7178 = vadd.f32 %v7164, 1e-06
    %v7179 = vadd.f32 %v7171, 1e-06
    %v7180 = vrcp.pop %v7178
    %v7181 = vrcp.pop %v7179
    %v7182 = vmul.f32 %v7178, %v7180
    %v7183 = vmul.f32 %v7179, %v7181
    %v7184 = vsub.f32 2.0, %v7182
    %v7185 = vsub.f32 2.0, %v7183
    %v7186 = vmul.f32 %v7180, %v7184
    %v7187 = vmul.f32 %v7181, %v7185
    %v7188 = vmul.f32 %v7176, %v7186
    %v7189 = vmul.f32 %v7177, %v7187
    %v7190 = vlaneseq
    %v7191 = vshrl.u32 %v7190, 7
    %v7192 = vsub.s32 2, %v7191
    %v7193 = vrot.slane %v3751, %v7192
    %v7194 = vadd.f32 %v7188, %v7193
    %v7195 = vadd.f32 %v7189, %v7193
    %v7196 = vld [vmem:[#allocation10 + $0x1c0] sm:$0xff]
    %v7197 = vld [vmem:[#allocation10 + $0x1c8] sm:$0xff]
    %v7198 = vld [vmem:[#allocation10 + $0x1d0] sm:$0xff]
    %v7199 = vld [vmem:[#allocation10 + $0x1d8] sm:$0xff]
    %v7200 = vld [vmem:[#allocation10 + $0x1e0] sm:$0x1]
    %v7201 = vlaneseq
    %v7202 = vshrl.u32 %v7201, 7
    %v7203 = vsub.s32 0, %v7202
    %v7204 = vrot.slane %v7200, %v7203
    %v7206 = vsel %vm98, %v7194, 0
    %v7209 = vsel %vm98, %v7195, 0
    %7211 = vmatprep.subr.mxu0 0.0
    %7212 = vmatpush1.msra.mxu0 %v7196
    %7213 = vmatprep.subr.mxu0 0.0
    %7214 = vmatpush1.msra.mxu0 %v7197
    %7215 = vmatprep.subr.mxu0 0.0
    %7216 = vmatpush1.msra.mxu0 %v7198
    %7217 = vmatprep.subr.mxu0 0.0
    %7218 = vmatpush1.msra.mxu0 %v7199
    %7219 = vmatprep.subr.mxu0 0.0
    %7220 = vmatpush1.msra.mxu0 0.0
    %7221 = vmatprep.subr.mxu0 0.0
    %7222 = vmatpush1.msra.mxu0 0.0
    %7223 = vmatprep.subr.mxu0 0.0
    %7224 = vmatpush1.msra.mxu0 0.0
    %7225 = vmatprep.subr.mxu0 0.0
    %7226 = vmatpush1.msra.mxu0 0.0
    %7227 = vmatprep.subr.mxu0 0.0
    %7228 = vmatpush1.msra.mxu0 0.0
    %7229 = vmatprep.subr.mxu0 0.0
    %7230 = vmatpush1.msra.mxu0 0.0
    %7231 = vmatprep.subr.mxu0 0.0
    %7232 = vmatpush1.msra.mxu0 0.0
    %7233 = vmatprep.subr.mxu0 0.0
    %7234 = vmatpush1.msra.mxu0 0.0
    %7235 = vmatprep.subr.mxu0 0.0
    %7236 = vmatpush1.msra.mxu0 0.0
    %7237 = vmatprep.subr.mxu0 0.0
    %7238 = vmatpush1.msra.mxu0 0.0
    %7239 = vmatprep.subr.mxu0 0.0
    %7240 = vmatpush1.msra.mxu0 0.0
    %7241 = vmatprep.subr.mxu0 0.0
    %7242 = vmatpush1.msra.mxu0 0.0
    %7243 = vmatprep.subr.mxu0 0.0
    %7244 = vmatpush1.msra.mxu0 0.0
    %7245 = vmatprep.subr.mxu0 0.0
    %7246 = vmatpush1.msra.mxu0 0.0
    %7247 = vmatprep.subr.mxu0 0.0
    %7248 = vmatpush1.msra.mxu0 0.0
    %7249 = vmatprep.subr.mxu0 0.0
    %7250 = vmatpush1.msra.mxu0 0.0
    %7251 = vmatprep.subr.mxu0 0.0
    %7252 = vmatpush1.msra.mxu0 0.0
    %7253 = vmatprep.subr.mxu0 0.0
    %7254 = vmatpush1.msra.mxu0 0.0
    %7255 = vmatprep.subr.mxu0 0.0
    %7256 = vmatpush1.msra.mxu0 0.0
    %7257 = vmatprep.subr.mxu0 0.0
    %7258 = vmatpush1.msra.mxu0 0.0
    %7259 = vmatprep.subr.mxu0 0.0
    %7260 = vmatpush1.msra.mxu0 0.0
    %7261 = vmatprep.subr.mxu0 0.0
    %7262 = vmatpush1.msra.mxu0 0.0
    %7263 = vmatprep.subr.mxu0 0.0
    %7264 = vmatpush1.msra.mxu0 0.0
    %7265 = vmatprep.subr.mxu0 0.0
    %7266 = vmatpush1.msra.mxu0 0.0
    %7267 = vmatprep.subr.mxu0 0.0
    %7268 = vmatpush1.msra.mxu0 0.0
    %7269 = vmatprep.subr.mxu0 0.0
    %7270 = vmatpush1.msra.mxu0 0.0
    %7271 = vmatprep.subr.mxu0 0.0
    %7272 = vmatpush1.msra.mxu0 0.0
    %7273 = vmatprep.subr.mxu0 0.0
    %7274 = vmatpush1.msra.mxu0 0.0
    %7275 = vmatprep.mubr.f32.mxu0 0.0
    %7276 = vmatmul.mubr.f32.gmra.mrb[0].mxu0 %v7206
    %v7277 = vpop.f32.mrb[0].mxu0
    %v7278 = vadd.f32 %v7204, %v7277
    %v7279 = vpop.f32.mrb[0].mxu0
    %7280 = vmatprep.mubr.f32.mxu0 0.0
    %7281 = vmatmul.mubr.f32.gmra.mrb[0].mxu0 %v7209
    %v7282 = vpop.f32.mrb[0].mxu0
    %v7283 = vadd.f32 %v7204, %v7282
    %v7284 = vpop.f32.mrb[0].mxu0
    %7285 = vdwg.mxu0
    %v7286 = vmax.f32 %v7278, 0.0
    %v7287 = vmax.f32 %v7283, 0.0
    %v7288 = vld [vmem:[#allocation10 + $0x1e8] sm:$0xff]
    %v7289 = vld [vmem:[#allocation10 + $0x1f0] sm:$0xff]
    %v7290 = vld [vmem:[#allocation10 + $0x1f8] sm:$0xff]
    %v7291 = vld [vmem:[#allocation10 + $0x200] sm:$0xff]
    %v7292 = vld [vmem:[#allocation10 + $0x208] sm:$0xff]
    %v7293 = vld [vmem:[#allocation10 + $0x210] sm:$0xff]
    %v7294 = vld [vmem:[#allocation10 + $0x218] sm:$0xff]
    %v7295 = vld [vmem:[#allocation10 + $0x220] sm:$0xff]
    %v7297 = vsel %vm3659, %v7286, 0
    %v7300 = vsel %vm3659, %v7287, 0
    %7302 = vmatprep.subr.mxu0 0.0
    %7303 = vmatpush1.msra.mxu0 %v7288
    %7304 = vmatprep.subr.mxu0 0.0
    %7305 = vmatpush1.msra.mxu0 %v7289
    %7306 = vmatprep.subr.mxu0 0.0
    %7307 = vmatpush1.msra.mxu0 %v7290
    %7308 = vmatprep.subr.mxu0 0.0
    %7309 = vmatpush1.msra.mxu0 %v7291
    %7310 = vmatprep.subr.mxu0 0.0
    %7311 = vmatpush1.msra.mxu0 %v7292
    %7312 = vmatprep.subr.mxu0 0.0
    %7313 = vmatpush1.msra.mxu0 %v7293
    %7314 = vmatprep.subr.mxu0 0.0
    %7315 = vmatpush1.msra.mxu0 %v7294
    %7316 = vmatprep.subr.mxu0 0.0
    %7317 = vmatpush1.msra.mxu0 %v7295
    %7318 = vmatprep.subr.mxu0 0.0
    %7319 = vmatpush1.msra.mxu0 0.0
    %7320 = vmatprep.subr.mxu0 0.0
    %7321 = vmatpush1.msra.mxu0 0.0
    %7322 = vmatprep.subr.mxu0 0.0
    %7323 = vmatpush1.msra.mxu0 0.0
    %7324 = vmatprep.subr.mxu0 0.0
    %7325 = vmatpush1.msra.mxu0 0.0
    %7326 = vmatprep.subr.mxu0 0.0
    %7327 = vmatpush1.msra.mxu0 0.0
    %7328 = vmatprep.subr.mxu0 0.0
    %7329 = vmatpush1.msra.mxu0 0.0
    %7330 = vmatprep.subr.mxu0 0.0
    %7331 = vmatpush1.msra.mxu0 0.0
    %7332 = vmatprep.subr.mxu0 0.0
    %7333 = vmatpush1.msra.mxu0 0.0
    %7334 = vmatprep.subr.mxu0 0.0
    %7335 = vmatpush1.msra.mxu0 0.0
    %7336 = vmatprep.subr.mxu0 0.0
    %7337 = vmatpush1.msra.mxu0 0.0
    %7338 = vmatprep.subr.mxu0 0.0
    %7339 = vmatpush1.msra.mxu0 0.0
    %7340 = vmatprep.subr.mxu0 0.0
    %7341 = vmatpush1.msra.mxu0 0.0
    %7342 = vmatprep.subr.mxu0 0.0
    %7343 = vmatpush1.msra.mxu0 0.0
    %7344 = vmatprep.subr.mxu0 0.0
    %7345 = vmatpush1.msra.mxu0 0.0
    %7346 = vmatprep.subr.mxu0 0.0
    %7347 = vmatpush1.msra.mxu0 0.0
    %7348 = vmatprep.subr.mxu0 0.0
    %7349 = vmatpush1.msra.mxu0 0.0
    %7350 = vmatprep.subr.mxu0 0.0
    %7351 = vmatpush1.msra.mxu0 0.0
    %7352 = vmatprep.subr.mxu0 0.0
    %7353 = vmatpush1.msra.mxu0 0.0
    %7354 = vmatprep.subr.mxu0 0.0
    %7355 = vmatpush1.msra.mxu0 0.0
    %7356 = vmatprep.subr.mxu0 0.0
    %7357 = vmatpush1.msra.mxu0 0.0
    %7358 = vmatprep.subr.mxu0 0.0
    %7359 = vmatpush1.msra.mxu0 0.0
    %7360 = vmatprep.subr.mxu0 0.0
    %7361 = vmatpush1.msra.mxu0 0.0
    %7362 = vmatprep.subr.mxu0 0.0
    %7363 = vmatpush1.msra.mxu0 0.0
    %7364 = vmatprep.subr.mxu0 0.0
    %7365 = vmatpush1.msra.mxu0 0.0
    %7366 = vmatprep.mubr.f32.mxu0 0.0
    %7367 = vmatmul.mubr.f32.gmra.mrb[0].mxu0 %v7297
    %v7368 = vpop.f32.mrb[0].mxu0
    %v7369 = vadd.f32 0.0, %v7368
    %v7370 = vpop.f32.mrb[0].mxu0
    %7371 = vmatprep.mubr.f32.mxu0 0.0
    %7372 = vmatmul.mubr.f32.gmra.mrb[0].mxu0 %v7300
    %v7373 = vpop.f32.mrb[0].mxu0
    %v7374 = vadd.f32 0.0, %v7373
    %v7375 = vpop.f32.mrb[0].mxu0
    %7376 = vdwg.mxu0
    %v7377 = vadd.f32 %v7136, %v7369
    %v7378 = vadd.f32 %v7137, %v7374
    %v7379 = vld [vmem:[#allocation10 + $0x228] sm:$0x1]
    %v7380 = vlaneseq
    %v7381 = vshrl.u32 %v7380, 7
    %v7382 = vsub.s32 0, %v7381
    %v7383 = vrot.slane %v7379, %v7382
    %v7384 = vadd.f32 %v7377, %v7383
    %v7385 = vadd.f32 %v7378, %v7383
    %v7386 = vld [vmem:[#allocation10 + $0x240] sm:$0x1]
    %v7387 = vld [vmem:[#allocation10 + $0x248] sm:$0x1]
    %v7388 = vsel %vm98, %v7384, 0.0
    %7389 = vadd.xlane.f32.xlu0 %v7388
    %v7390 = vpop.xlane.xlu0 %7389
    %v7391 = vsel %vm98, %v7385, 0.0
    %7392 = vadd.xlane.f32.xlu0 %v7391
    %v7393 = vpop.xlane.xlu0 %7392
    %v7394 = vmul.f32 %v7390, %v105
    %v7395 = vmul.f32 %v7393, %v105
    %v7396 = vsub.f32 %v7384, %v7394
    %v7397 = vsub.f32 %v7385, %v7395
    %v7398 = vmul.f32 %v7396, %v7396
    %v7399 = vmul.f32 %v7397, %v7397
    %v7400 = vsel %vm98, %v7398, 0.0
    %7401 = vadd.xlane.f32.xlu0 %v7400
    %v7402 = vpop.xlane.xlu0 %7401
    %v7403 = vsel %vm98, %v7399, 0.0
    %7404 = vadd.xlane.f32.xlu0 %v7403
    %v7405 = vpop.xlane.xlu0 %7404
    %v7406 = vmul.f32 %v7402, 0.032258064
    %v7407 = vmul.f32 %v7405, 0.032258064
    %v7408 = vrsqrt.pop %v7406
    %v7409 = vmul.f32 %v7406, %v7408
    %vm7410 = vcmp.eq.f32.partialorder %v7406, inf
    %v7411 = vsel %vm7410, %v7406, %v7409
    %vm7412 = vcmp.eq.f32.partialorder %v7406, 0.0
    %v7413 = vand.u32 %v7406, 2147483648
    %v7414 = vsel %vm7412, %v7413, %v7411
    %v7415 = vrsqrt.pop %v7407
    %v7416 = vmul.f32 %v7407, %v7415
    %vm7417 = vcmp.eq.f32.partialorder %v7407, inf
    %v7418 = vsel %vm7417, %v7407, %v7416
    %vm7419 = vcmp.eq.f32.partialorder %v7407, 0.0
    %v7420 = vand.u32 %v7407, 2147483648
    %v7421 = vsel %vm7419, %v7420, %v7418
    %v7422 = vlaneseq
    %v7423 = vshrl.u32 %v7422, 7
    %v7424 = vsub.s32 0, %v7423
    %v7425 = vrot.slane %v7386, %v7424
    %v7426 = vmul.f32 %v7425, %v7396
    %v7427 = vmul.f32 %v7425, %v7397
    %v7428 = vadd.f32 %v7414, 1e-06
    %v7429 = vadd.f32 %v7421, 1e-06
    %v7430 = vrcp.pop %v7428
    %v7431 = vrcp.pop %v7429
    %v7432 = vmul.f32 %v7428, %v7430
    %v7433 = vmul.f32 %v7429, %v7431
    %v7434 = vsub.f32 2.0, %v7432
    %v7435 = vsub.f32 2.0, %v7433
    %v7436 = vmul.f32 %v7430, %v7434
    %v7437 = vmul.f32 %v7431, %v7435
    %v7438 = vmul.f32 %v7426, %v7436
    %v7439 = vmul.f32 %v7427, %v7437
    %v7440 = vlaneseq
    %v7441 = vshrl.u32 %v7440, 7
    %v7442 = vsub.s32 0, %v7441
    %v7443 = vrot.slane %v7387, %v7442
    %v7444 = vadd.f32 %v7438, %v7443
    %v7445 = vadd.f32 %v7439, %v7443
    %7446 = vst.msk [vmem:[#allocation11] sm:$0xff] %vm98, %v7444
    %7447 = vst.msk [vmem:[#allocation11 + $0x8] sm:$0xff] %vm98, %v7445
    // Predicated region
    $region42: #{tpu_custom_call.1} parent=1 // pred_check
      _
    $region43: #{tpu_custom_call.1} parent=1 // pred_check_branch
      %7449 = sbr.rel (0) target = $region45
    $region44: #{tpu_custom_call.1} parent=1 // pred_region
      %s7451 = ssub.s32 256, 256
      %7452 = vsyncadd [#allocation4], %s7451
      %s7453 = sshll.u32 [#allocation11], 4
      %s7454 = int_to_ptr.vmem [resolvable:$true] %s7453
      %7459 = dma.vmem_to_hbm [thread:$0]  %s7454, 256, %s5, [#allocation4], 128, 128, 8
    $region45: #{tpu_custom_call.1} parent=1 // pred_fallthru
      _
    // Predicated region
    $region46: #{tpu_custom_call.1} parent=1 // pred_check
      _
    $region47: #{tpu_custom_call.1} parent=1 // pred_check_branch
      %7461 = sbr.rel (0) target = $region49
    $region48: #{tpu_custom_call.1} parent=1 // pred_region
      %7462 = dma.done [#allocation4], 256
    $region49: #{tpu_custom_call.1} parent=1 // pred_fallthru
      _
    %7463 = vsyncpa [#allocation3], 1
    %7464 = vsyncpa [#allocation6], 1
    %7465 = vsyncpa [#allocation9], 1
    %7466 = vsyncpa [#allocation4], 1

</llo_original>
